<compile_context>
chip_gen: v5e
topology: v5e:2x2
jax: 0.10.0
libtpu: 0.0.40
codegen_flags: <defaults>
</compile_context>

<pallas_src>
import functools

import jax
import jax.numpy as jnp
from jax.experimental import pallas as pl
from jax.experimental.pallas import tpu as pltpu

EMBED_DIM = 128
F_BASE = 32
VOCAB = 1590
LATENT = 64          # latentDim
BN_EPS = 1e-5        # nn.BatchNorm2d default eps
ETA = 1e-6           # SentenceEncoder eta

_VMEM_LIMIT = 32 * 1024 * 1024


def _round_up(x, m):
    return (x + m - 1) // m * m


# ----------------------------- Pallas kernels ------------------------------

def _conv_bn_relu_kernel(p_ref, w_ref, g_ref, b_ref, o_ref):
    """y = relu(batchnorm(P @ W)), training-mode BN over all rows.

    p_ref: (M, K)  bf16 im2col patches (M = B*OH*OW, no padded rows)
    w_ref: (K, N)  bf16 conv weight as (KH*KW*Cin, Cout)
    g_ref: (1, N)  f32 BN gamma
    b_ref: (1, N)  f32 BN beta
    o_ref: (M, N)  bf16 output
    """
    y = jnp.dot(p_ref[...], w_ref[...], preferred_element_type=jnp.float32)
    m = y.shape[0]                                   # static row count
    mean = jnp.sum(y, axis=0, keepdims=True) * (1.0 / m)
    d = y - mean
    var = jnp.sum(d * d, axis=0, keepdims=True) * (1.0 / m)   # centered -> >= 0
    scale = g_ref[...] * jax.lax.rsqrt(var + BN_EPS)           # folded affine
    o_ref[...] = jnp.maximum(d * scale + b_ref[...], 0.0).astype(o_ref.dtype)


def _heads_kernel(p_ref, w_ref, o_ref, *, latent):
    """One matmul for both heads: cols [0,latent) = mu, [latent,2*latent) = logvar.

    softplus (beta=1, threshold=20, PyTorch default) + eta is applied only to
    the logvar lanes via a lane mask.
    """
    y = jnp.dot(p_ref[...], w_ref[...], preferred_element_type=jnp.float32)
    sp = jnp.where(y > 20.0, y, jnp.log1p(jnp.exp(jnp.minimum(y, 20.0)))) + ETA
    col = jax.lax.broadcasted_iota(jnp.int32, y.shape, 1)
    o_ref[...] = jnp.where(col >= latent, sp, y)


# ----------------------------- pallas_call wrappers -------------------------

def _pallas_conv_bn_relu(patches, weight, gamma, beta):
    M, K = patches.shape
    N = weight.shape[1]
    return pl.pallas_call(
        _conv_bn_relu_kernel,
        out_shape=jax.ShapeDtypeStruct((M, N), jnp.bfloat16),
        grid=(1,),
        in_specs=[
            pl.BlockSpec((M, K), lambda i: (0, 0)),
            pl.BlockSpec((K, N), lambda i: (0, 0)),
            pl.BlockSpec((1, N), lambda i: (0, 0)),
            pl.BlockSpec((1, N), lambda i: (0, 0)),
        ],
        out_specs=pl.BlockSpec((M, N), lambda i: (0, 0)),
        compiler_params=pltpu.CompilerParams(
            dimension_semantics=("arbitrary",),
            vmem_limit_bytes=_VMEM_LIMIT,
        ),
    )(patches, weight, gamma, beta)


def _pallas_heads(patches, weight, latent):
    M, K = patches.shape
    N = weight.shape[1]
    kern = functools.partial(_heads_kernel, latent=latent)
    return pl.pallas_call(
        kern,
        out_shape=jax.ShapeDtypeStruct((M, N), jnp.float32),
        grid=(1,),
        in_specs=[
            pl.BlockSpec((M, K), lambda i: (0, 0)),
            pl.BlockSpec((K, N), lambda i: (0, 0)),
        ],
        out_specs=pl.BlockSpec((M, N), lambda i: (0, 0)),
        compiler_params=pltpu.CompilerParams(
            dimension_semantics=("arbitrary",),
            vmem_limit_bytes=_VMEM_LIMIT,
        ),
    )(patches, weight)


# ----------------------------- XLA glue (channels-last) ---------------------

def _extract_patches(x, kh, kw, sh, sw, ph, pw):
    """x: (B, H, W, C) NHWC -> (B*OH*OW, KH*KW*C) patches, plus (OH, OW).

    Patch column order is (kh, kw, c), matching weight.transpose(2,3,1,0).
    """
    B, H, W, C = x.shape
    OH = (H + 2 * ph - kh) // sh + 1
    OW = (W + 2 * pw - kw) // sw + 1
    xp = jnp.pad(x, ((0, 0), (ph, ph), (pw, pw), (0, 0)))
    cols = []
    for i in range(kh):
        for j in range(kw):
            cols.append(
                xp[:, i:i + sh * (OH - 1) + 1:sh, j:j + sw * (OW - 1) + 1:sw, :])
    p = jnp.concatenate(cols, axis=-1)              # (B, OH, OW, KH*KW*C)
    return p.reshape(B * OH * OW, kh * kw * C), OH, OW


def conv_bn_relu(x, w, gamma, beta, stride, padding):
    """x: (B, H, W, Cin) bf16 NHWC; w: (Cout, Cin, KH, KW) f32 (PyTorch layout)."""
    B = x.shape[0]
    cout, cin, kh, kw = w.shape
    P, OH, OW = _extract_patches(x, kh, kw, stride[0], stride[1],
                                 padding[0], padding[1])
    Wm = w.transpose(2, 3, 1, 0).reshape(kh * kw * cin, cout).astype(jnp.bfloat16)
    Y = _pallas_conv_bn_relu(
        P.astype(jnp.bfloat16), Wm,
        gamma.reshape(1, cout).astype(jnp.float32),
        beta.reshape(1, cout).astype(jnp.float32))
    return Y.reshape(B, OH, OW, cout)               # stays NHWC, bf16


def fused_heads(x, wc1, wc2):
    """x: (B, 4, 4, 128) bf16; wc*: (latent, 128, 4, 4).  Returns (mu, softplus(lv)+eta)."""
    B = x.shape[0]
    latent = wc1.shape[0]
    Pm = x.reshape(B, -1)                           # (B, 4*4*128), (oh, ow, c) order
    Mp = _round_up(B, 8)
    Pm = jnp.pad(Pm, ((0, Mp - B), (0, 0))).astype(jnp.bfloat16)
    Wc = jnp.concatenate(
        [wc1.transpose(2, 3, 1, 0).reshape(-1, latent),
         wc2.transpose(2, 3, 1, 0).reshape(-1, latent)], axis=1).astype(jnp.bfloat16)
    out = _pallas_heads(Pm, Wc, latent)             # (Mp, 2*latent) f32
    mu = jnp.squeeze(out[:B, :latent])
    logvar_sp = jnp.squeeze(out[:B, latent:])
    return mu, logvar_sp


# ----------------------------- model ---------------------------------------

def init_params(key):
    ks = jax.random.split(key, 32)

    def nrm(k, shape, scale=0.05):
        return scale * jax.random.normal(k, shape, jnp.float32)

    emb = nrm(ks[0], (VOCAB, EMBED_DIM), 0.1)
    emb = emb.at[0].set(0.0)                        # padding_idx=0 -> zero row
    p = {"embedding": emb}

    conv_shapes = [
        (F_BASE, 1, 4, 4),
        (F_BASE * 2, F_BASE, 4, 4),
        (F_BASE * 4, F_BASE * 2, 4, 4),
        (F_BASE * 4, F_BASE * 4, 1, 4),
        (F_BASE * 4, F_BASE * 4, 1, 4),
    ]
    for i, s in enumerate(conv_shapes, start=1):
        p[f"w{i}"] = nrm(ks[i], s)
        p[f"g{i}"] = 1.0 + 0.01 * jax.random.normal(ks[5 + i], (s[0],), jnp.float32)
        p[f"b{i}"] = 0.01 * jax.random.normal(ks[10 + i], (s[0],), jnp.float32)

    p["wc1"] = nrm(ks[20], (LATENT, F_BASE * 4, 4, 4))
    p["wc2"] = nrm(ks[21], (LATENT, F_BASE * 4, 4, 4))
    return p


def sentence_encoder_forward(x_tokens, params):
    # Embedding lookup (data-dependent gather) kept as XLA glue; cast to bf16
    # once so all downstream activation traffic is half width.
    e = params["embedding"][x_tokens].astype(jnp.bfloat16)     # (B, 32, 128)
    h = e[..., None]                                            # (B, 32, 128, 1) NHWC

    h = conv_bn_relu(h, params["w1"], params["g1"], params["b1"], (2, 2), (1, 1))  # (B,16,64,32)
    h = conv_bn_relu(h, params["w2"], params["g2"], params["b2"], (2, 2), (1, 1))  # (B,8,32,64)
    h = conv_bn_relu(h, params["w3"], params["g3"], params["b3"], (2, 2), (1, 1))  # (B,4,16,128)
    h = conv_bn_relu(h, params["w4"], params["g4"], params["b4"], (1, 2), (0, 1))  # (B,4,8,128)
    h = conv_bn_relu(h, params["w5"], params["g5"], params["b5"], (1, 2), (0, 1))  # (B,4,4,128)

    mu, logvar_sp = fused_heads(h, params["wc1"], params["wc2"])  # (B,64), (B,64)
    return mu, logvar_sp


if __name__ == "__main__":
    key = jax.random.PRNGKey(0)
    k_data, k_params = jax.random.split(key)

    B, SEQ = 2, 32
    x = jax.random.randint(k_data, (B, SEQ), 0, VOCAB, dtype=jnp.int32)
    params = init_params(k_params)

    mu, logvar_sp = jax.jit(sentence_encoder_forward)(x, params)
    jax.block_until_ready((mu, logvar_sp))

    assert mu.shape == (B, LATENT), mu.shape
    assert logvar_sp.shape == (B, LATENT), logvar_sp.shape
    assert bool(jnp.all(jnp.isfinite(mu))) and bool(jnp.all(jnp.isfinite(logvar_sp)))
    assert bool(jnp.all(logvar_sp >= ETA))   # softplus(x) + eta >= eta

    print("KERNEL_OK")
</pallas_src>

<mosaic_0001>
module attributes {stable_mosaic.version = 11 : i64} {
  func.func @_conv_bn_relu_kernel(%arg0: i32, %arg1: memref<2048x16xbf16, #tpu.memory_space<vmem>>, %arg2: memref<16x32xbf16, #tpu.memory_space<vmem>>, %arg3: memref<1x32xf32, #tpu.memory_space<vmem>>, %arg4: memref<1x32xf32, #tpu.memory_space<vmem>>, %arg5: memref<2048x32xbf16, #tpu.memory_space<vmem>>) attributes {dimension_semantics = [#tpu.dimension_semantics<arbitrary>], iteration_bounds = array<i64: 1>, scalar_prefetch = 0 : i64, scratch_operands = 0 : i64, tpu.core_type = #tpu.core_type<tc>, window_params = [{pipeline_mode = #tpu.pipeline_mode<synchronous>, transform_indices = @transform_0, window_bounds = array<i64: 2048, 16>}, {pipeline_mode = #tpu.pipeline_mode<synchronous>, transform_indices = @transform_1, window_bounds = array<i64: 16, 32>}, {pipeline_mode = #tpu.pipeline_mode<synchronous>, transform_indices = @transform_2, window_bounds = array<i64: 1, 32>}, {pipeline_mode = #tpu.pipeline_mode<synchronous>, transform_indices = @transform_3, window_bounds = array<i64: 1, 32>}, {pipeline_mode = #tpu.pipeline_mode<synchronous>, transform_indices = @transform_4, window_bounds = array<i64: 2048, 32>}]} {
    %c0 = arith.constant 0 : index
    %c0_0 = arith.constant 0 : index
    %0 = vector.load %arg1[%c0, %c0_0] : memref<2048x16xbf16, #tpu.memory_space<vmem>>, vector<2048x16xbf16>
    %c0_1 = arith.constant 0 : index
    %c0_2 = arith.constant 0 : index
    %1 = vector.load %arg2[%c0_1, %c0_2] : memref<16x32xbf16, #tpu.memory_space<vmem>>, vector<16x32xbf16>
    %cst = arith.constant dense<0.000000e+00> : vector<2048x32xf32>
    %2 = tpu.matmul %0, %1, %cst {dimension_numbers = #tpu.dot_dimension_numbers<[1], [0], [0], [1], [0, 0, 1, 1], [], []>} : vector<2048x16xbf16>, vector<16x32xbf16>, vector<2048x32xf32> -> vector<2048x32xf32>
    %cst_3 = arith.constant dense<0.000000e+00> : vector<32xf32>
    %3 = vector.multi_reduction <add>, %2, %cst_3 [0] : vector<2048x32xf32> to vector<32xf32>
    %4 = vector.shape_cast %3 : vector<32xf32> to vector<1x32xf32>
    %cst_4 = arith.constant 4.8828125E-4 : f32
    %5 = vector.broadcast %cst_4 : f32 to vector<1x32xf32>
    %6 = arith.mulf %4, %5 : vector<1x32xf32>
    %7 = vector.broadcast %6 : vector<1x32xf32> to vector<2048x32xf32>
    %8 = arith.subf %2, %7 : vector<2048x32xf32>
    %9 = arith.mulf %8, %8 : vector<2048x32xf32>
    %cst_5 = arith.constant dense<0.000000e+00> : vector<32xf32>
    %10 = vector.multi_reduction <add>, %9, %cst_5 [0] : vector<2048x32xf32> to vector<32xf32>
    %11 = vector.shape_cast %10 : vector<32xf32> to vector<1x32xf32>
    %cst_6 = arith.constant 4.8828125E-4 : f32
    %12 = vector.broadcast %cst_6 : f32 to vector<1x32xf32>
    %13 = arith.mulf %11, %12 : vector<1x32xf32>
    %c0_7 = arith.constant 0 : index
    %c0_8 = arith.constant 0 : index
    %14 = vector.load %arg3[%c0_7, %c0_8] : memref<1x32xf32, #tpu.memory_space<vmem>>, vector<1x32xf32>
    %cst_9 = arith.constant 9.99999974E-6 : f32
    %15 = vector.broadcast %cst_9 : f32 to vector<1x32xf32>
    %16 = arith.addf %13, %15 : vector<1x32xf32>
    %17 = math.rsqrt %16 : vector<1x32xf32>
    %18 = arith.mulf %14, %17 : vector<1x32xf32>
    %19 = vector.broadcast %18 : vector<1x32xf32> to vector<2048x32xf32>
    %20 = arith.mulf %8, %19 : vector<2048x32xf32>
    %c0_10 = arith.constant 0 : index
    %c0_11 = arith.constant 0 : index
    %21 = vector.load %arg4[%c0_10, %c0_11] : memref<1x32xf32, #tpu.memory_space<vmem>>, vector<1x32xf32>
    %22 = vector.broadcast %21 : vector<1x32xf32> to vector<2048x32xf32>
    %23 = arith.addf %20, %22 : vector<2048x32xf32>
    %cst_12 = arith.constant 0.000000e+00 : f32
    %24 = vector.broadcast %cst_12 : f32 to vector<2048x32xf32>
    %25 = arith.maximumf %23, %24 : vector<2048x32xf32>
    %26 = arith.truncf %25 : vector<2048x32xf32> to vector<2048x32xbf16>
    %c0_13 = arith.constant 0 : index
    %c0_14 = arith.constant 0 : index
    %27 = vector.load %arg5[%c0_13, %c0_14] : memref<2048x32xbf16, #tpu.memory_space<vmem>>, vector<2048x32xbf16>
    tpu.vector_store %arg5[%c0_13, %c0_14], %26 {strides = array<i32>} : memref<2048x32xbf16, #tpu.memory_space<vmem>>, vector<2048x32xbf16>,
    return
  }
  func.func @transform_0(%arg0: i32) -> (i32, i32) {
    %c0_i32 = arith.constant 0 : i32
    %c0_i32_0 = arith.constant 0 : i32
    %c0_i32_1 = arith.constant 0 : i32
    return %c0_i32, %c0_i32_0 : i32, i32
  }
  func.func @transform_1(%arg0: i32) -> (i32, i32) {
    %c0_i32 = arith.constant 0 : i32
    %c0_i32_0 = arith.constant 0 : i32
    %c0_i32_1 = arith.constant 0 : i32
    return %c0_i32, %c0_i32_0 : i32, i32
  }
  func.func @transform_2(%arg0: i32) -> (i32, i32) {
    %c0_i32 = arith.constant 0 : i32
    %c0_i32_0 = arith.constant 0 : i32
    %c0_i32_1 = arith.constant 0 : i32
    return %c0_i32, %c0_i32_0 : i32, i32
  }
  func.func @transform_3(%arg0: i32) -> (i32, i32) {
    %c0_i32 = arith.constant 0 : i32
    %c0_i32_0 = arith.constant 0 : i32
    %c0_i32_1 = arith.constant 0 : i32
    return %c0_i32, %c0_i32_0 : i32, i32
  }
  func.func @transform_4(%arg0: i32) -> (i32, i32) {
    %c0_i32 = arith.constant 0 : i32
    %c0_i32_0 = arith.constant 0 : i32
    %c0_i32_1 = arith.constant 0 : i32
    return %c0_i32, %c0_i32_0 : i32, i32
  }
}

module attributes {stable_mosaic.version = 11 : i64} {
  func.func @_conv_bn_relu_kernel(%arg0: i32, %arg1: memref<512x512xbf16, #tpu.memory_space<vmem>>, %arg2: memref<512x64xbf16, #tpu.memory_space<vmem>>, %arg3: memref<1x64xf32, #tpu.memory_space<vmem>>, %arg4: memref<1x64xf32, #tpu.memory_space<vmem>>, %arg5: memref<512x64xbf16, #tpu.memory_space<vmem>>) attributes {dimension_semantics = [#tpu.dimension_semantics<arbitrary>], iteration_bounds = array<i64: 1>, scalar_prefetch = 0 : i64, scratch_operands = 0 : i64, tpu.core_type = #tpu.core_type<tc>, window_params = [{pipeline_mode = #tpu.pipeline_mode<synchronous>, transform_indices = @transform_0, window_bounds = array<i64: 512, 512>}, {pipeline_mode = #tpu.pipeline_mode<synchronous>, transform_indices = @transform_1, window_bounds = array<i64: 512, 64>}, {pipeline_mode = #tpu.pipeline_mode<synchronous>, transform_indices = @transform_2, window_bounds = array<i64: 1, 64>}, {pipeline_mode = #tpu.pipeline_mode<synchronous>, transform_indices = @transform_3, window_bounds = array<i64: 1, 64>}, {pipeline_mode = #tpu.pipeline_mode<synchronous>, transform_indices = @transform_4, window_bounds = array<i64: 512, 64>}]} {
    %c0 = arith.constant 0 : index
    %c0_0 = arith.constant 0 : index
    %0 = vector.load %arg1[%c0, %c0_0] : memref<512x512xbf16, #tpu.memory_space<vmem>>, vector<512x512xbf16>
    %c0_1 = arith.constant 0 : index
    %c0_2 = arith.constant 0 : index
    %1 = vector.load %arg2[%c0_1, %c0_2] : memref<512x64xbf16, #tpu.memory_space<vmem>>, vector<512x64xbf16>
    %cst = arith.constant dense<0.000000e+00> : vector<512x64xf32>
    %2 = tpu.matmul %0, %1, %cst {dimension_numbers = #tpu.dot_dimension_numbers<[1], [0], [0], [1], [0, 0, 1, 1], [], []>} : vector<512x512xbf16>, vector<512x64xbf16>, vector<512x64xf32> -> vector<512x64xf32>
    %cst_3 = arith.constant dense<0.000000e+00> : vector<64xf32>
    %3 = vector.multi_reduction <add>, %2, %cst_3 [0] : vector<512x64xf32> to vector<64xf32>
    %4 = vector.shape_cast %3 : vector<64xf32> to vector<1x64xf32>
    %cst_4 = arith.constant 0.001953125 : f32
    %5 = vector.broadcast %cst_4 : f32 to vector<1x64xf32>
    %6 = arith.mulf %4, %5 : vector<1x64xf32>
    %7 = vector.broadcast %6 : vector<1x64xf32> to vector<512x64xf32>
    %8 = arith.subf %2, %7 : vector<512x64xf32>
    %9 = arith.mulf %8, %8 : vector<512x64xf32>
    %cst_5 = arith.constant dense<0.000000e+00> : vector<64xf32>
    %10 = vector.multi_reduction <add>, %9, %cst_5 [0] : vector<512x64xf32> to vector<64xf32>
    %11 = vector.shape_cast %10 : vector<64xf32> to vector<1x64xf32>
    %cst_6 = arith.constant 0.001953125 : f32
    %12 = vector.broadcast %cst_6 : f32 to vector<1x64xf32>
    %13 = arith.mulf %11, %12 : vector<1x64xf32>
    %c0_7 = arith.constant 0 : index
    %c0_8 = arith.constant 0 : index
    %14 = vector.load %arg3[%c0_7, %c0_8] : memref<1x64xf32, #tpu.memory_space<vmem>>, vector<1x64xf32>
    %cst_9 = arith.constant 9.99999974E-6 : f32
    %15 = vector.broadcast %cst_9 : f32 to vector<1x64xf32>
    %16 = arith.addf %13, %15 : vector<1x64xf32>
    %17 = math.rsqrt %16 : vector<1x64xf32>
    %18 = arith.mulf %14, %17 : vector<1x64xf32>
    %19 = vector.broadcast %18 : vector<1x64xf32> to vector<512x64xf32>
    %20 = arith.mulf %8, %19 : vector<512x64xf32>
    %c0_10 = arith.constant 0 : index
    %c0_11 = arith.constant 0 : index
    %21 = vector.load %arg4[%c0_10, %c0_11] : memref<1x64xf32, #tpu.memory_space<vmem>>, vector<1x64xf32>
    %22 = vector.broadcast %21 : vector<1x64xf32> to vector<512x64xf32>
    %23 = arith.addf %20, %22 : vector<512x64xf32>
    %cst_12 = arith.constant 0.000000e+00 : f32
    %24 = vector.broadcast %cst_12 : f32 to vector<512x64xf32>
    %25 = arith.maximumf %23, %24 : vector<512x64xf32>
    %26 = arith.truncf %25 : vector<512x64xf32> to vector<512x64xbf16>
    %c0_13 = arith.constant 0 : index
    %c0_14 = arith.constant 0 : index
    %27 = vector.load %arg5[%c0_13, %c0_14] : memref<512x64xbf16, #tpu.memory_space<vmem>>, vector<512x64xbf16>
    tpu.vector_store %arg5[%c0_13, %c0_14], %26 {strides = array<i32>} : memref<512x64xbf16, #tpu.memory_space<vmem>>, vector<512x64xbf16>,
    return
  }
  func.func @transform_0(%arg0: i32) -> (i32, i32) {
    %c0_i32 = arith.constant 0 : i32
    %c0_i32_0 = arith.constant 0 : i32
    %c0_i32_1 = arith.constant 0 : i32
    return %c0_i32, %c0_i32_0 : i32, i32
  }
  func.func @transform_1(%arg0: i32) -> (i32, i32) {
    %c0_i32 = arith.constant 0 : i32
    %c0_i32_0 = arith.constant 0 : i32
    %c0_i32_1 = arith.constant 0 : i32
    return %c0_i32, %c0_i32_0 : i32, i32
  }
  func.func @transform_2(%arg0: i32) -> (i32, i32) {
    %c0_i32 = arith.constant 0 : i32
    %c0_i32_0 = arith.constant 0 : i32
    %c0_i32_1 = arith.constant 0 : i32
    return %c0_i32, %c0_i32_0 : i32, i32
  }
  func.func @transform_3(%arg0: i32) -> (i32, i32) {
    %c0_i32 = arith.constant 0 : i32
    %c0_i32_0 = arith.constant 0 : i32
    %c0_i32_1 = arith.constant 0 : i32
    return %c0_i32, %c0_i32_0 : i32, i32
  }
  func.func @transform_4(%arg0: i32) -> (i32, i32) {
    %c0_i32 = arith.constant 0 : i32
    %c0_i32_0 = arith.constant 0 : i32
    %c0_i32_1 = arith.constant 0 : i32
    return %c0_i32, %c0_i32_0 : i32, i32
  }
}

module attributes {stable_mosaic.version = 11 : i64} {
  func.func @_conv_bn_relu_kernel(%arg0: i32, %arg1: memref<128x1024xbf16, #tpu.memory_space<vmem>>, %arg2: memref<1024x128xbf16, #tpu.memory_space<vmem>>, %arg3: memref<1x128xf32, #tpu.memory_space<vmem>>, %arg4: memref<1x128xf32, #tpu.memory_space<vmem>>, %arg5: memref<128x128xbf16, #tpu.memory_space<vmem>>) attributes {dimension_semantics = [#tpu.dimension_semantics<arbitrary>], iteration_bounds = array<i64: 1>, scalar_prefetch = 0 : i64, scratch_operands = 0 : i64, tpu.core_type = #tpu.core_type<tc>, window_params = [{pipeline_mode = #tpu.pipeline_mode<synchronous>, transform_indices = @transform_0, window_bounds = array<i64: 128, 1024>}, {pipeline_mode = #tpu.pipeline_mode<synchronous>, transform_indices = @transform_1, window_bounds = array<i64: 1024, 128>}, {pipeline_mode = #tpu.pipeline_mode<synchronous>, transform_indices = @transform_2, window_bounds = array<i64: 1, 128>}, {pipeline_mode = #tpu.pipeline_mode<synchronous>, transform_indices = @transform_3, window_bounds = array<i64: 1, 128>}, {pipeline_mode = #tpu.pipeline_mode<synchronous>, transform_indices = @transform_4, window_bounds = array<i64: 128, 128>}]} {
    %c0 = arith.constant 0 : index
    %c0_0 = arith.constant 0 : index
    %0 = vector.load %arg1[%c0, %c0_0] : memref<128x1024xbf16, #tpu.memory_space<vmem>>, vector<128x1024xbf16>
    %c0_1 = arith.constant 0 : index
    %c0_2 = arith.constant 0 : index
    %1 = vector.load %arg2[%c0_1, %c0_2] : memref<1024x128xbf16, #tpu.memory_space<vmem>>, vector<1024x128xbf16>
    %cst = arith.constant dense<0.000000e+00> : vector<128x128xf32>
    %2 = tpu.matmul %0, %1, %cst {dimension_numbers = #tpu.dot_dimension_numbers<[1], [0], [0], [1], [0, 0, 1, 1], [], []>} : vector<128x1024xbf16>, vector<1024x128xbf16>, vector<128x128xf32> -> vector<128x128xf32>
    %cst_3 = arith.constant dense<0.000000e+00> : vector<128xf32>
    %3 = vector.multi_reduction <add>, %2, %cst_3 [0] : vector<128x128xf32> to vector<128xf32>
    %4 = vector.shape_cast %3 : vector<128xf32> to vector<1x128xf32>
    %cst_4 = arith.constant 7.812500e-03 : f32
    %5 = vector.broadcast %cst_4 : f32 to vector<1x128xf32>
    %6 = arith.mulf %4, %5 : vector<1x128xf32>
    %7 = vector.broadcast %6 : vector<1x128xf32> to vector<128x128xf32>
    %8 = arith.subf %2, %7 : vector<128x128xf32>
    %9 = arith.mulf %8, %8 : vector<128x128xf32>
    %cst_5 = arith.constant dense<0.000000e+00> : vector<128xf32>
    %10 = vector.multi_reduction <add>, %9, %cst_5 [0] : vector<128x128xf32> to vector<128xf32>
    %11 = vector.shape_cast %10 : vector<128xf32> to vector<1x128xf32>
    %cst_6 = arith.constant 7.812500e-03 : f32
    %12 = vector.broadcast %cst_6 : f32 to vector<1x128xf32>
    %13 = arith.mulf %11, %12 : vector<1x128xf32>
    %c0_7 = arith.constant 0 : index
    %c0_8 = arith.constant 0 : index
    %14 = vector.load %arg3[%c0_7, %c0_8] : memref<1x128xf32, #tpu.memory_space<vmem>>, vector<1x128xf32>
    %cst_9 = arith.constant 9.99999974E-6 : f32
    %15 = vector.broadcast %cst_9 : f32 to vector<1x128xf32>
    %16 = arith.addf %13, %15 : vector<1x128xf32>
    %17 = math.rsqrt %16 : vector<1x128xf32>
    %18 = arith.mulf %14, %17 : vector<1x128xf32>
    %19 = vector.broadcast %18 : vector<1x128xf32> to vector<128x128xf32>
    %20 = arith.mulf %8, %19 : vector<128x128xf32>
    %c0_10 = arith.constant 0 : index
    %c0_11 = arith.constant 0 : index
    %21 = vector.load %arg4[%c0_10, %c0_11] : memref<1x128xf32, #tpu.memory_space<vmem>>, vector<1x128xf32>
    %22 = vector.broadcast %21 : vector<1x128xf32> to vector<128x128xf32>
    %23 = arith.addf %20, %22 : vector<128x128xf32>
    %cst_12 = arith.constant 0.000000e+00 : f32
    %24 = vector.broadcast %cst_12 : f32 to vector<128x128xf32>
    %25 = arith.maximumf %23, %24 : vector<128x128xf32>
    %26 = arith.truncf %25 : vector<128x128xf32> to vector<128x128xbf16>
    %c0_13 = arith.constant 0 : index
    %c0_14 = arith.constant 0 : index
    %27 = vector.load %arg5[%c0_13, %c0_14] : memref<128x128xbf16, #tpu.memory_space<vmem>>, vector<128x128xbf16>
    tpu.vector_store %arg5[%c0_13, %c0_14], %26 {strides = array<i32>} : memref<128x128xbf16, #tpu.memory_space<vmem>>, vector<128x128xbf16>,
    return
  }
  func.func @transform_0(%arg0: i32) -> (i32, i32) {
    %c0_i32 = arith.constant 0 : i32
    %c0_i32_0 = arith.constant 0 : i32
    %c0_i32_1 = arith.constant 0 : i32
    return %c0_i32, %c0_i32_0 : i32, i32
  }
  func.func @transform_1(%arg0: i32) -> (i32, i32) {
    %c0_i32 = arith.constant 0 : i32
    %c0_i32_0 = arith.constant 0 : i32
    %c0_i32_1 = arith.constant 0 : i32
    return %c0_i32, %c0_i32_0 : i32, i32
  }
  func.func @transform_2(%arg0: i32) -> (i32, i32) {
    %c0_i32 = arith.constant 0 : i32
    %c0_i32_0 = arith.constant 0 : i32
    %c0_i32_1 = arith.constant 0 : i32
    return %c0_i32, %c0_i32_0 : i32, i32
  }
  func.func @transform_3(%arg0: i32) -> (i32, i32) {
    %c0_i32 = arith.constant 0 : i32
    %c0_i32_0 = arith.constant 0 : i32
    %c0_i32_1 = arith.constant 0 : i32
    return %c0_i32, %c0_i32_0 : i32, i32
  }
  func.func @transform_4(%arg0: i32) -> (i32, i32) {
    %c0_i32 = arith.constant 0 : i32
    %c0_i32_0 = arith.constant 0 : i32
    %c0_i32_1 = arith.constant 0 : i32
    return %c0_i32, %c0_i32_0 : i32, i32
  }
}

module attributes {stable_mosaic.version = 11 : i64} {
  func.func @_conv_bn_relu_kernel(%arg0: i32, %arg1: memref<64x512xbf16, #tpu.memory_space<vmem>>, %arg2: memref<512x128xbf16, #tpu.memory_space<vmem>>, %arg3: memref<1x128xf32, #tpu.memory_space<vmem>>, %arg4: memref<1x128xf32, #tpu.memory_space<vmem>>, %arg5: memref<64x128xbf16, #tpu.memory_space<vmem>>) attributes {dimension_semantics = [#tpu.dimension_semantics<arbitrary>], iteration_bounds = array<i64: 1>, scalar_prefetch = 0 : i64, scratch_operands = 0 : i64, tpu.core_type = #tpu.core_type<tc>, window_params = [{pipeline_mode = #tpu.pipeline_mode<synchronous>, transform_indices = @transform_0, window_bounds = array<i64: 64, 512>}, {pipeline_mode = #tpu.pipeline_mode<synchronous>, transform_indices = @transform_1, window_bounds = array<i64: 512, 128>}, {pipeline_mode = #tpu.pipeline_mode<synchronous>, transform_indices = @transform_2, window_bounds = array<i64: 1, 128>}, {pipeline_mode = #tpu.pipeline_mode<synchronous>, transform_indices = @transform_3, window_bounds = array<i64: 1, 128>}, {pipeline_mode = #tpu.pipeline_mode<synchronous>, transform_indices = @transform_4, window_bounds = array<i64: 64, 128>}]} {
    %c0 = arith.constant 0 : index
    %c0_0 = arith.constant 0 : index
    %0 = vector.load %arg1[%c0, %c0_0] : memref<64x512xbf16, #tpu.memory_space<vmem>>, vector<64x512xbf16>
    %c0_1 = arith.constant 0 : index
    %c0_2 = arith.constant 0 : index
    %1 = vector.load %arg2[%c0_1, %c0_2] : memref<512x128xbf16, #tpu.memory_space<vmem>>, vector<512x128xbf16>
    %cst = arith.constant dense<0.000000e+00> : vector<64x128xf32>
    %2 = tpu.matmul %0, %1, %cst {dimension_numbers = #tpu.dot_dimension_numbers<[1], [0], [0], [1], [0, 0, 1, 1], [], []>} : vector<64x512xbf16>, vector<512x128xbf16>, vector<64x128xf32> -> vector<64x128xf32>
    %cst_3 = arith.constant dense<0.000000e+00> : vector<128xf32>
    %3 = vector.multi_reduction <add>, %2, %cst_3 [0] : vector<64x128xf32> to vector<128xf32>
    %4 = vector.shape_cast %3 : vector<128xf32> to vector<1x128xf32>
    %cst_4 = arith.constant 1.562500e-02 : f32
    %5 = vector.broadcast %cst_4 : f32 to vector<1x128xf32>
    %6 = arith.mulf %4, %5 : vector<1x128xf32>
    %7 = vector.broadcast %6 : vector<1x128xf32> to vector<64x128xf32>
    %8 = arith.subf %2, %7 : vector<64x128xf32>
    %9 = arith.mulf %8, %8 : vector<64x128xf32>
    %cst_5 = arith.constant dense<0.000000e+00> : vector<128xf32>
    %10 = vector.multi_reduction <add>, %9, %cst_5 [0] : vector<64x128xf32> to vector<128xf32>
    %11 = vector.shape_cast %10 : vector<128xf32> to vector<1x128xf32>
    %cst_6 = arith.constant 1.562500e-02 : f32
    %12 = vector.broadcast %cst_6 : f32 to vector<1x128xf32>
    %13 = arith.mulf %11, %12 : vector<1x128xf32>
    %c0_7 = arith.constant 0 : index
    %c0_8 = arith.constant 0 : index
    %14 = vector.load %arg3[%c0_7, %c0_8] : memref<1x128xf32, #tpu.memory_space<vmem>>, vector<1x128xf32>
    %cst_9 = arith.constant 9.99999974E-6 : f32
    %15 = vector.broadcast %cst_9 : f32 to vector<1x128xf32>
    %16 = arith.addf %13, %15 : vector<1x128xf32>
    %17 = math.rsqrt %16 : vector<1x128xf32>
    %18 = arith.mulf %14, %17 : vector<1x128xf32>
    %19 = vector.broadcast %18 : vector<1x128xf32> to vector<64x128xf32>
    %20 = arith.mulf %8, %19 : vector<64x128xf32>
    %c0_10 = arith.constant 0 : index
    %c0_11 = arith.constant 0 : index
    %21 = vector.load %arg4[%c0_10, %c0_11] : memref<1x128xf32, #tpu.memory_space<vmem>>, vector<1x128xf32>
    %22 = vector.broadcast %21 : vector<1x128xf32> to vector<64x128xf32>
    %23 = arith.addf %20, %22 : vector<64x128xf32>
    %cst_12 = arith.constant 0.000000e+00 : f32
    %24 = vector.broadcast %cst_12 : f32 to vector<64x128xf32>
    %25 = arith.maximumf %23, %24 : vector<64x128xf32>
    %26 = arith.truncf %25 : vector<64x128xf32> to vector<64x128xbf16>
    %c0_13 = arith.constant 0 : index
    %c0_14 = arith.constant 0 : index
    %27 = vector.load %arg5[%c0_13, %c0_14] : memref<64x128xbf16, #tpu.memory_space<vmem>>, vector<64x128xbf16>
    tpu.vector_store %arg5[%c0_13, %c0_14], %26 {strides = array<i32>} : memref<64x128xbf16, #tpu.memory_space<vmem>>, vector<64x128xbf16>,
    return
  }
  func.func @transform_0(%arg0: i32) -> (i32, i32) {
    %c0_i32 = arith.constant 0 : i32
    %c0_i32_0 = arith.constant 0 : i32
    %c0_i32_1 = arith.constant 0 : i32
    return %c0_i32, %c0_i32_0 : i32, i32
  }
  func.func @transform_1(%arg0: i32) -> (i32, i32) {
    %c0_i32 = arith.constant 0 : i32
    %c0_i32_0 = arith.constant 0 : i32
    %c0_i32_1 = arith.constant 0 : i32
    return %c0_i32, %c0_i32_0 : i32, i32
  }
  func.func @transform_2(%arg0: i32) -> (i32, i32) {
    %c0_i32 = arith.constant 0 : i32
    %c0_i32_0 = arith.constant 0 : i32
    %c0_i32_1 = arith.constant 0 : i32
    return %c0_i32, %c0_i32_0 : i32, i32
  }
  func.func @transform_3(%arg0: i32) -> (i32, i32) {
    %c0_i32 = arith.constant 0 : i32
    %c0_i32_0 = arith.constant 0 : i32
    %c0_i32_1 = arith.constant 0 : i32
    return %c0_i32, %c0_i32_0 : i32, i32
  }
  func.func @transform_4(%arg0: i32) -> (i32, i32) {
    %c0_i32 = arith.constant 0 : i32
    %c0_i32_0 = arith.constant 0 : i32
    %c0_i32_1 = arith.constant 0 : i32
    return %c0_i32, %c0_i32_0 : i32, i32
  }
}

module attributes {stable_mosaic.version = 11 : i64} {
  func.func @_conv_bn_relu_kernel(%arg0: i32, %arg1: memref<32x512xbf16, #tpu.memory_space<vmem>>, %arg2: memref<512x128xbf16, #tpu.memory_space<vmem>>, %arg3: memref<1x128xf32, #tpu.memory_space<vmem>>, %arg4: memref<1x128xf32, #tpu.memory_space<vmem>>, %arg5: memref<32x128xbf16, #tpu.memory_space<vmem>>) attributes {dimension_semantics = [#tpu.dimension_semantics<arbitrary>], iteration_bounds = array<i64: 1>, scalar_prefetch = 0 : i64, scratch_operands = 0 : i64, tpu.core_type = #tpu.core_type<tc>, window_params = [{pipeline_mode = #tpu.pipeline_mode<synchronous>, transform_indices = @transform_0, window_bounds = array<i64: 32, 512>}, {pipeline_mode = #tpu.pipeline_mode<synchronous>, transform_indices = @transform_1, window_bounds = array<i64: 512, 128>}, {pipeline_mode = #tpu.pipeline_mode<synchronous>, transform_indices = @transform_2, window_bounds = array<i64: 1, 128>}, {pipeline_mode = #tpu.pipeline_mode<synchronous>, transform_indices = @transform_3, window_bounds = array<i64: 1, 128>}, {pipeline_mode = #tpu.pipeline_mode<synchronous>, transform_indices = @transform_4, window_bounds = array<i64: 32, 128>}]} {
    %c0 = arith.constant 0 : index
    %c0_0 = arith.constant 0 : index
    %0 = vector.load %arg1[%c0, %c0_0] : memref<32x512xbf16, #tpu.memory_space<vmem>>, vector<32x512xbf16>
    %c0_1 = arith.constant 0 : index
    %c0_2 = arith.constant 0 : index
    %1 = vector.load %arg2[%c0_1, %c0_2] : memref<512x128xbf16, #tpu.memory_space<vmem>>, vector<512x128xbf16>
    %cst = arith.constant dense<0.000000e+00> : vector<32x128xf32>
    %2 = tpu.matmul %0, %1, %cst {dimension_numbers = #tpu.dot_dimension_numbers<[1], [0], [0], [1], [0, 0, 1, 1], [], []>} : vector<32x512xbf16>, vector<512x128xbf16>, vector<32x128xf32> -> vector<32x128xf32>
    %cst_3 = arith.constant dense<0.000000e+00> : vector<128xf32>
    %3 = vector.multi_reduction <add>, %2, %cst_3 [0] : vector<32x128xf32> to vector<128xf32>
    %4 = vector.shape_cast %3 : vector<128xf32> to vector<1x128xf32>
    %cst_4 = arith.constant 3.125000e-02 : f32
    %5 = vector.broadcast %cst_4 : f32 to vector<1x128xf32>
    %6 = arith.mulf %4, %5 : vector<1x128xf32>
    %7 = vector.broadcast %6 : vector<1x128xf32> to vector<32x128xf32>
    %8 = arith.subf %2, %7 : vector<32x128xf32>
    %9 = arith.mulf %8, %8 : vector<32x128xf32>
    %cst_5 = arith.constant dense<0.000000e+00> : vector<128xf32>
    %10 = vector.multi_reduction <add>, %9, %cst_5 [0] : vector<32x128xf32> to vector<128xf32>
    %11 = vector.shape_cast %10 : vector<128xf32> to vector<1x128xf32>
    %cst_6 = arith.constant 3.125000e-02 : f32
    %12 = vector.broadcast %cst_6 : f32 to vector<1x128xf32>
    %13 = arith.mulf %11, %12 : vector<1x128xf32>
    %c0_7 = arith.constant 0 : index
    %c0_8 = arith.constant 0 : index
    %14 = vector.load %arg3[%c0_7, %c0_8] : memref<1x128xf32, #tpu.memory_space<vmem>>, vector<1x128xf32>
    %cst_9 = arith.constant 9.99999974E-6 : f32
    %15 = vector.broadcast %cst_9 : f32 to vector<1x128xf32>
    %16 = arith.addf %13, %15 : vector<1x128xf32>
    %17 = math.rsqrt %16 : vector<1x128xf32>
    %18 = arith.mulf %14, %17 : vector<1x128xf32>
    %19 = vector.broadcast %18 : vector<1x128xf32> to vector<32x128xf32>
    %20 = arith.mulf %8, %19 : vector<32x128xf32>
    %c0_10 = arith.constant 0 : index
    %c0_11 = arith.constant 0 : index
    %21 = vector.load %arg4[%c0_10, %c0_11] : memref<1x128xf32, #tpu.memory_space<vmem>>, vector<1x128xf32>
    %22 = vector.broadcast %21 : vector<1x128xf32> to vector<32x128xf32>
    %23 = arith.addf %20, %22 : vector<32x128xf32>
    %cst_12 = arith.constant 0.000000e+00 : f32
    %24 = vector.broadcast %cst_12 : f32 to vector<32x128xf32>
    %25 = arith.maximumf %23, %24 : vector<32x128xf32>
    %26 = arith.truncf %25 : vector<32x128xf32> to vector<32x128xbf16>
    %c0_13 = arith.constant 0 : index
    %c0_14 = arith.constant 0 : index
    %27 = vector.load %arg5[%c0_13, %c0_14] : memref<32x128xbf16, #tpu.memory_space<vmem>>, vector<32x128xbf16>
    tpu.vector_store %arg5[%c0_13, %c0_14], %26 {strides = array<i32>} : memref<32x128xbf16, #tpu.memory_space<vmem>>, vector<32x128xbf16>,
    return
  }
  func.func @transform_0(%arg0: i32) -> (i32, i32) {
    %c0_i32 = arith.constant 0 : i32
    %c0_i32_0 = arith.constant 0 : i32
    %c0_i32_1 = arith.constant 0 : i32
    return %c0_i32, %c0_i32_0 : i32, i32
  }
  func.func @transform_1(%arg0: i32) -> (i32, i32) {
    %c0_i32 = arith.constant 0 : i32
    %c0_i32_0 = arith.constant 0 : i32
    %c0_i32_1 = arith.constant 0 : i32
    return %c0_i32, %c0_i32_0 : i32, i32
  }
  func.func @transform_2(%arg0: i32) -> (i32, i32) {
    %c0_i32 = arith.constant 0 : i32
    %c0_i32_0 = arith.constant 0 : i32
    %c0_i32_1 = arith.constant 0 : i32
    return %c0_i32, %c0_i32_0 : i32, i32
  }
  func.func @transform_3(%arg0: i32) -> (i32, i32) {
    %c0_i32 = arith.constant 0 : i32
    %c0_i32_0 = arith.constant 0 : i32
    %c0_i32_1 = arith.constant 0 : i32
    return %c0_i32, %c0_i32_0 : i32, i32
  }
  func.func @transform_4(%arg0: i32) -> (i32, i32) {
    %c0_i32 = arith.constant 0 : i32
    %c0_i32_0 = arith.constant 0 : i32
    %c0_i32_1 = arith.constant 0 : i32
    return %c0_i32, %c0_i32_0 : i32, i32
  }
}

module attributes {stable_mosaic.version = 11 : i64} {
  func.func @_heads_kernel(%arg0: i32, %arg1: memref<8x2048xbf16, #tpu.memory_space<vmem>>, %arg2: memref<2048x128xbf16, #tpu.memory_space<vmem>>, %arg3: memref<8x128xf32, #tpu.memory_space<vmem>>) attributes {dimension_semantics = [#tpu.dimension_semantics<arbitrary>], iteration_bounds = array<i64: 1>, scalar_prefetch = 0 : i64, scratch_operands = 0 : i64, tpu.core_type = #tpu.core_type<tc>, window_params = [{pipeline_mode = #tpu.pipeline_mode<synchronous>, transform_indices = @transform_0, window_bounds = array<i64: 8, 2048>}, {pipeline_mode = #tpu.pipeline_mode<synchronous>, transform_indices = @transform_1, window_bounds = array<i64: 2048, 128>}, {pipeline_mode = #tpu.pipeline_mode<synchronous>, transform_indices = @transform_2, window_bounds = array<i64: 8, 128>}]} {
    %c0 = arith.constant 0 : index
    %c0_0 = arith.constant 0 : index
    %0 = vector.load %arg1[%c0, %c0_0] : memref<8x2048xbf16, #tpu.memory_space<vmem>>, vector<8x2048xbf16>
    %c0_1 = arith.constant 0 : index
    %c0_2 = arith.constant 0 : index
    %1 = vector.load %arg2[%c0_1, %c0_2] : memref<2048x128xbf16, #tpu.memory_space<vmem>>, vector<2048x128xbf16>
    %cst = arith.constant dense<0.000000e+00> : vector<8x128xf32>
    %2 = tpu.matmul %0, %1, %cst {dimension_numbers = #tpu.dot_dimension_numbers<[1], [0], [0], [1], [0, 0, 1, 1], [], []>} : vector<8x2048xbf16>, vector<2048x128xbf16>, vector<8x128xf32> -> vector<8x128xf32>
    %cst_3 = arith.constant 2.000000e+01 : f32
    %3 = vector.broadcast %cst_3 : f32 to vector<8x128xf32>
    %4 = arith.cmpf ogt, %2, %3 : vector<8x128xf32>
    %cst_4 = arith.constant 2.000000e+01 : f32
    %5 = vector.broadcast %cst_4 : f32 to vector<8x128xf32>
    %6 = arith.minimumf %2, %5 : vector<8x128xf32>
    %7 = math.exp %6 : vector<8x128xf32>
    %8 = math.log1p %7 : vector<8x128xf32>
    %9 = arith.select %4, %2, %8 : vector<8x128xi1>, vector<8x128xf32>
    %cst_5 = arith.constant 9.99999997E-7 : f32
    %10 = vector.broadcast %cst_5 : f32 to vector<8x128xf32>
    %11 = arith.addf %9, %10 : vector<8x128xf32>
    %12 = tpu.iota {dimensions = array<i32: 1>} : vector<8x128xi32>
    %c64_i32 = arith.constant 64 : i32
    %13 = vector.broadcast %c64_i32 : i32 to vector<8x128xi32>
    %14 = arith.cmpi sge, %12, %13 : vector<8x128xi32>
    %15 = arith.select %14, %11, %2 : vector<8x128xi1>, vector<8x128xf32>
    %c0_6 = arith.constant 0 : index
    %c0_7 = arith.constant 0 : index
    %16 = vector.load %arg3[%c0_6, %c0_7] : memref<8x128xf32, #tpu.memory_space<vmem>>, vector<8x128xf32>
    tpu.vector_store %arg3[%c0_6, %c0_7], %15 {strides = array<i32>} : memref<8x128xf32, #tpu.memory_space<vmem>>, vector<8x128xf32>,
    return
  }
  func.func @transform_0(%arg0: i32) -> (i32, i32) {
    %c0_i32 = arith.constant 0 : i32
    %c0_i32_0 = arith.constant 0 : i32
    %c0_i32_1 = arith.constant 0 : i32
    return %c0_i32, %c0_i32_0 : i32, i32
  }
  func.func @transform_1(%arg0: i32) -> (i32, i32) {
    %c0_i32 = arith.constant 0 : i32
    %c0_i32_0 = arith.constant 0 : i32
    %c0_i32_1 = arith.constant 0 : i32
    return %c0_i32, %c0_i32_0 : i32, i32
  }
  func.func @transform_2(%arg0: i32) -> (i32, i32) {
    %c0_i32 = arith.constant 0 : i32
    %c0_i32_0 = arith.constant 0 : i32
    %c0_i32_1 = arith.constant 0 : i32
    return %c0_i32, %c0_i32_0 : i32, i32
  }
}

</mosaic_0001>

<llo_original>
// kernel: sentence_encoder_forward.6
$region0: #{sentence_encoder_forward.6}
  #allocation0 [shape = 'u32[]', space=smem, size = 0x4, offset = 0x4, fixed_abs, tag = 'smem constant byte address 0x4 - core index']
  #allocation1 [shape = 'u32[72,128]{1,0:T(1,128)}', space=vmem, size = 0x9000, scoped, tag = 'internal scratch']
  %s0 = inlined_call_operand.vmem [shape: bf16[2048,16], index: 0, kind: input, shape index: {}]
  %s1 = inlined_call_operand.vmem [shape: bf16[16,32], index: 1, kind: input, shape index: {}]
  %s2 = inlined_call_operand.vmem [shape: f32[1,32], index: 2, kind: input, shape index: {}]
  %s3 = inlined_call_operand.vmem [shape: f32[1,32], index: 3, kind: input, shape index: {}]
  %s4 = inlined_call_operand.vmem [shape: bf16[2048,32], index: 4, kind: output, shape index: {}]
  %s5 = sld [smem:[#allocation0]]
  $region26: #{sentence_encoder_forward.6} parent=0
    _
  %s7 = ssub.s32 1, %s5
  %s8 = scalar_select 0, %s7, %s5
  // Predicated region
  $region2: #{sentence_encoder_forward.6} parent=0 // pred_check
    _
  $region3: #{sentence_encoder_forward.6} parent=0 // pred_check_branch
    %10 = sbr.rel (0) target = $region5
  $region4: #{sentence_encoder_forward.6} parent=0 // pred_region
    _
  $region5: #{sentence_encoder_forward.6} parent=0 // pred_fallthru
    _
  // Predicated region
  $region6: #{sentence_encoder_forward.6} parent=0 // pred_check
    _
  $region7: #{sentence_encoder_forward.6} parent=0 // pred_check_branch
    %12 = sbr.rel (0) target = $region9
  $region8: #{sentence_encoder_forward.6} parent=0 // pred_region
    _
  $region9: #{sentence_encoder_forward.6} parent=0 // pred_fallthru
    _
  // Predicated region
  $region10: #{sentence_encoder_forward.6} parent=0 // pred_check
    _
  $region11: #{sentence_encoder_forward.6} parent=0 // pred_check_branch
    %14 = sbr.rel (0) target = $region13
  $region12: #{sentence_encoder_forward.6} parent=0 // pred_region
    _
  $region13: #{sentence_encoder_forward.6} parent=0 // pred_fallthru
    _
  // Predicated region
  $region14: #{sentence_encoder_forward.6} parent=0 // pred_check
    _
  $region15: #{sentence_encoder_forward.6} parent=0 // pred_check_branch
    %16 = sbr.rel (0) target = $region17
  $region16: #{sentence_encoder_forward.6} parent=0 // pred_region
    _
  $region17: #{sentence_encoder_forward.6} parent=0 // pred_fallthru
    _
  %v18 = vld [vmem:[%s0] sm:$0xf]
  %v19 = vld [vmem:[%s0 + $0x4] sm:$0xf]
  %v20 = vld [vmem:[%s0 + $0x8] sm:$0xf]
  %v21 = vld [vmem:[%s0 + $0xc] sm:$0xf]
  %v22 = vld [vmem:[%s0 + $0x10] sm:$0xf]
  %v23 = vld [vmem:[%s0 + $0x14] sm:$0xf]
  %v24 = vld [vmem:[%s0 + $0x18] sm:$0xf]
  %v25 = vld [vmem:[%s0 + $0x1c] sm:$0xf]
  %v26 = vld [vmem:[%s0 + $0x20] sm:$0xf]
  %v27 = vld [vmem:[%s0 + $0x24] sm:$0xf]
  %v28 = vld [vmem:[%s0 + $0x28] sm:$0xf]
  %v29 = vld [vmem:[%s0 + $0x2c] sm:$0xf]
  %v30 = vld [vmem:[%s0 + $0x30] sm:$0xf]
  %v31 = vld [vmem:[%s0 + $0x34] sm:$0xf]
  %v32 = vld [vmem:[%s0 + $0x38] sm:$0xf]
  %v33 = vld [vmem:[%s0 + $0x3c] sm:$0xf]
  %v34 = vld [vmem:[%s0 + $0x40] sm:$0xf]
  %v35 = vld [vmem:[%s0 + $0x44] sm:$0xf]
  %v36 = vld [vmem:[%s0 + $0x48] sm:$0xf]
  %v37 = vld [vmem:[%s0 + $0x4c] sm:$0xf]
  %v38 = vld [vmem:[%s0 + $0x50] sm:$0xf]
  %v39 = vld [vmem:[%s0 + $0x54] sm:$0xf]
  %v40 = vld [vmem:[%s0 + $0x58] sm:$0xf]
  %v41 = vld [vmem:[%s0 + $0x5c] sm:$0xf]
  %v42 = vld [vmem:[%s0 + $0x60] sm:$0xf]
  %v43 = vld [vmem:[%s0 + $0x64] sm:$0xf]
  %v44 = vld [vmem:[%s0 + $0x68] sm:$0xf]
  %v45 = vld [vmem:[%s0 + $0x6c] sm:$0xf]
  %v46 = vld [vmem:[%s0 + $0x70] sm:$0xf]
  %v47 = vld [vmem:[%s0 + $0x74] sm:$0xf]
  %v48 = vld [vmem:[%s0 + $0x78] sm:$0xf]
  %v49 = vld [vmem:[%s0 + $0x7c] sm:$0xf]
  %v50 = vld [vmem:[%s0 + $0x80] sm:$0xf]
  %v51 = vld [vmem:[%s0 + $0x84] sm:$0xf]
  %v52 = vld [vmem:[%s0 + $0x88] sm:$0xf]
  %v53 = vld [vmem:[%s0 + $0x8c] sm:$0xf]
  %v54 = vld [vmem:[%s0 + $0x90] sm:$0xf]
  %v55 = vld [vmem:[%s0 + $0x94] sm:$0xf]
  %v56 = vld [vmem:[%s0 + $0x98] sm:$0xf]
  %v57 = vld [vmem:[%s0 + $0x9c] sm:$0xf]
  %v58 = vld [vmem:[%s0 + $0xa0] sm:$0xf]
  %v59 = vld [vmem:[%s0 + $0xa4] sm:$0xf]
  %v60 = vld [vmem:[%s0 + $0xa8] sm:$0xf]
  %v61 = vld [vmem:[%s0 + $0xac] sm:$0xf]
  %v62 = vld [vmem:[%s0 + $0xb0] sm:$0xf]
  %v63 = vld [vmem:[%s0 + $0xb4] sm:$0xf]
  %v64 = vld [vmem:[%s0 + $0xb8] sm:$0xf]
  %v65 = vld [vmem:[%s0 + $0xbc] sm:$0xf]
  %v66 = vld [vmem:[%s0 + $0xc0] sm:$0xf]
  %v67 = vld [vmem:[%s0 + $0xc4] sm:$0xf]
  %v68 = vld [vmem:[%s0 + $0xc8] sm:$0xf]
  %v69 = vld [vmem:[%s0 + $0xcc] sm:$0xf]
  %v70 = vld [vmem:[%s0 + $0xd0] sm:$0xf]
  %v71 = vld [vmem:[%s0 + $0xd4] sm:$0xf]
  %v72 = vld [vmem:[%s0 + $0xd8] sm:$0xf]
  %v73 = vld [vmem:[%s0 + $0xdc] sm:$0xf]
  %v74 = vld [vmem:[%s0 + $0xe0] sm:$0xf]
  %v75 = vld [vmem:[%s0 + $0xe4] sm:$0xf]
  %v76 = vld [vmem:[%s0 + $0xe8] sm:$0xf]
  %v77 = vld [vmem:[%s0 + $0xec] sm:$0xf]
  %v78 = vld [vmem:[%s0 + $0xf0] sm:$0xf]
  %v79 = vld [vmem:[%s0 + $0xf4] sm:$0xf]
  %v80 = vld [vmem:[%s0 + $0xf8] sm:$0xf]
  %v81 = vld [vmem:[%s0 + $0xfc] sm:$0xf]
  %v82 = vld [vmem:[%s0 + $0x100] sm:$0xf]
  %v83 = vld [vmem:[%s0 + $0x104] sm:$0xf]
  %v84 = vld [vmem:[%s0 + $0x108] sm:$0xf]
  %v85 = vld [vmem:[%s0 + $0x10c] sm:$0xf]
  %v86 = vld [vmem:[%s0 + $0x110] sm:$0xf]
  %v87 = vld [vmem:[%s0 + $0x114] sm:$0xf]
  %v88 = vld [vmem:[%s0 + $0x118] sm:$0xf]
  %v89 = vld [vmem:[%s0 + $0x11c] sm:$0xf]
  %v90 = vld [vmem:[%s0 + $0x120] sm:$0xf]
  %v91 = vld [vmem:[%s0 + $0x124] sm:$0xf]
  %v92 = vld [vmem:[%s0 + $0x128] sm:$0xf]
  %v93 = vld [vmem:[%s0 + $0x12c] sm:$0xf]
  %v94 = vld [vmem:[%s0 + $0x130] sm:$0xf]
  %v95 = vld [vmem:[%s0 + $0x134] sm:$0xf]
  %v96 = vld [vmem:[%s0 + $0x138] sm:$0xf]
  %v97 = vld [vmem:[%s0 + $0x13c] sm:$0xf]
  %v98 = vld [vmem:[%s0 + $0x140] sm:$0xf]
  %v99 = vld [vmem:[%s0 + $0x144] sm:$0xf]
  %v100 = vld [vmem:[%s0 + $0x148] sm:$0xf]
  %v101 = vld [vmem:[%s0 + $0x14c] sm:$0xf]
  %v102 = vld [vmem:[%s0 + $0x150] sm:$0xf]
  %v103 = vld [vmem:[%s0 + $0x154] sm:$0xf]
  %v104 = vld [vmem:[%s0 + $0x158] sm:$0xf]
  %v105 = vld [vmem:[%s0 + $0x15c] sm:$0xf]
  %v106 = vld [vmem:[%s0 + $0x160] sm:$0xf]
  %v107 = vld [vmem:[%s0 + $0x164] sm:$0xf]
  %v108 = vld [vmem:[%s0 + $0x168] sm:$0xf]
  %v109 = vld [vmem:[%s0 + $0x16c] sm:$0xf]
  %v110 = vld [vmem:[%s0 + $0x170] sm:$0xf]
  %v111 = vld [vmem:[%s0 + $0x174] sm:$0xf]
  %v112 = vld [vmem:[%s0 + $0x178] sm:$0xf]
  %v113 = vld [vmem:[%s0 + $0x17c] sm:$0xf]
  %v114 = vld [vmem:[%s0 + $0x180] sm:$0xf]
  %v115 = vld [vmem:[%s0 + $0x184] sm:$0xf]
  %v116 = vld [vmem:[%s0 + $0x188] sm:$0xf]
  %v117 = vld [vmem:[%s0 + $0x18c] sm:$0xf]
  %v118 = vld [vmem:[%s0 + $0x190] sm:$0xf]
  %v119 = vld [vmem:[%s0 + $0x194] sm:$0xf]
  %v120 = vld [vmem:[%s0 + $0x198] sm:$0xf]
  %v121 = vld [vmem:[%s0 + $0x19c] sm:$0xf]
  %v122 = vld [vmem:[%s0 + $0x1a0] sm:$0xf]
  %v123 = vld [vmem:[%s0 + $0x1a4] sm:$0xf]
  %v124 = vld [vmem:[%s0 + $0x1a8] sm:$0xf]
  %v125 = vld [vmem:[%s0 + $0x1ac] sm:$0xf]
  %v126 = vld [vmem:[%s0 + $0x1b0] sm:$0xf]
  %v127 = vld [vmem:[%s0 + $0x1b4] sm:$0xf]
  %v128 = vld [vmem:[%s0 + $0x1b8] sm:$0xf]
  %v129 = vld [vmem:[%s0 + $0x1bc] sm:$0xf]
  %v130 = vld [vmem:[%s0 + $0x1c0] sm:$0xf]
  %v131 = vld [vmem:[%s0 + $0x1c4] sm:$0xf]
  %v132 = vld [vmem:[%s0 + $0x1c8] sm:$0xf]
  %v133 = vld [vmem:[%s0 + $0x1cc] sm:$0xf]
  %v134 = vld [vmem:[%s0 + $0x1d0] sm:$0xf]
  %v135 = vld [vmem:[%s0 + $0x1d4] sm:$0xf]
  %v136 = vld [vmem:[%s0 + $0x1d8] sm:$0xf]
  %v137 = vld [vmem:[%s0 + $0x1dc] sm:$0xf]
  %v138 = vld [vmem:[%s0 + $0x1e0] sm:$0xf]
  %v139 = vld [vmem:[%s0 + $0x1e4] sm:$0xf]
  %v140 = vld [vmem:[%s0 + $0x1e8] sm:$0xf]
  %v141 = vld [vmem:[%s0 + $0x1ec] sm:$0xf]
  %v142 = vld [vmem:[%s0 + $0x1f0] sm:$0xf]
  %v143 = vld [vmem:[%s0 + $0x1f4] sm:$0xf]
  %v144 = vld [vmem:[%s0 + $0x1f8] sm:$0xf]
  %v145 = vld [vmem:[%s0 + $0x1fc] sm:$0xf]
  %v146 = vld [vmem:[%s0 + $0x200] sm:$0xf]
  %v147 = vld [vmem:[%s0 + $0x204] sm:$0xf]
  %v148 = vld [vmem:[%s0 + $0x208] sm:$0xf]
  %v149 = vld [vmem:[%s0 + $0x20c] sm:$0xf]
  %v150 = vld [vmem:[%s0 + $0x210] sm:$0xf]
  %v151 = vld [vmem:[%s0 + $0x214] sm:$0xf]
  %v152 = vld [vmem:[%s0 + $0x218] sm:$0xf]
  %v153 = vld [vmem:[%s0 + $0x21c] sm:$0xf]
  %v154 = vld [vmem:[%s0 + $0x220] sm:$0xf]
  %v155 = vld [vmem:[%s0 + $0x224] sm:$0xf]
  %v156 = vld [vmem:[%s0 + $0x228] sm:$0xf]
  %v157 = vld [vmem:[%s0 + $0x22c] sm:$0xf]
  %v158 = vld [vmem:[%s0 + $0x230] sm:$0xf]
  %v159 = vld [vmem:[%s0 + $0x234] sm:$0xf]
  %v160 = vld [vmem:[%s0 + $0x238] sm:$0xf]
  %v161 = vld [vmem:[%s0 + $0x23c] sm:$0xf]
  %v162 = vld [vmem:[%s0 + $0x240] sm:$0xf]
  %v163 = vld [vmem:[%s0 + $0x244] sm:$0xf]
  %v164 = vld [vmem:[%s0 + $0x248] sm:$0xf]
  %v165 = vld [vmem:[%s0 + $0x24c] sm:$0xf]
  %v166 = vld [vmem:[%s0 + $0x250] sm:$0xf]
  %v167 = vld [vmem:[%s0 + $0x254] sm:$0xf]
  %v168 = vld [vmem:[%s0 + $0x258] sm:$0xf]
  %v169 = vld [vmem:[%s0 + $0x25c] sm:$0xf]
  %v170 = vld [vmem:[%s0 + $0x260] sm:$0xf]
  %v171 = vld [vmem:[%s0 + $0x264] sm:$0xf]
  %v172 = vld [vmem:[%s0 + $0x268] sm:$0xf]
  %v173 = vld [vmem:[%s0 + $0x26c] sm:$0xf]
  %v174 = vld [vmem:[%s0 + $0x270] sm:$0xf]
  %v175 = vld [vmem:[%s0 + $0x274] sm:$0xf]
  %v176 = vld [vmem:[%s0 + $0x278] sm:$0xf]
  %v177 = vld [vmem:[%s0 + $0x27c] sm:$0xf]
  %v178 = vld [vmem:[%s0 + $0x280] sm:$0xf]
  %v179 = vld [vmem:[%s0 + $0x284] sm:$0xf]
  %v180 = vld [vmem:[%s0 + $0x288] sm:$0xf]
  %v181 = vld [vmem:[%s0 + $0x28c] sm:$0xf]
  %v182 = vld [vmem:[%s0 + $0x290] sm:$0xf]
  %v183 = vld [vmem:[%s0 + $0x294] sm:$0xf]
  %v184 = vld [vmem:[%s0 + $0x298] sm:$0xf]
  %v185 = vld [vmem:[%s0 + $0x29c] sm:$0xf]
  %v186 = vld [vmem:[%s0 + $0x2a0] sm:$0xf]
  %v187 = vld [vmem:[%s0 + $0x2a4] sm:$0xf]
  %v188 = vld [vmem:[%s0 + $0x2a8] sm:$0xf]
  %v189 = vld [vmem:[%s0 + $0x2ac] sm:$0xf]
  %v190 = vld [vmem:[%s0 + $0x2b0] sm:$0xf]
  %v191 = vld [vmem:[%s0 + $0x2b4] sm:$0xf]
  %v192 = vld [vmem:[%s0 + $0x2b8] sm:$0xf]
  %v193 = vld [vmem:[%s0 + $0x2bc] sm:$0xf]
  %v194 = vld [vmem:[%s0 + $0x2c0] sm:$0xf]
  %v195 = vld [vmem:[%s0 + $0x2c4] sm:$0xf]
  %v196 = vld [vmem:[%s0 + $0x2c8] sm:$0xf]
  %v197 = vld [vmem:[%s0 + $0x2cc] sm:$0xf]
  %v198 = vld [vmem:[%s0 + $0x2d0] sm:$0xf]
  %v199 = vld [vmem:[%s0 + $0x2d4] sm:$0xf]
  %v200 = vld [vmem:[%s0 + $0x2d8] sm:$0xf]
  %v201 = vld [vmem:[%s0 + $0x2dc] sm:$0xf]
  %v202 = vld [vmem:[%s0 + $0x2e0] sm:$0xf]
  %v203 = vld [vmem:[%s0 + $0x2e4] sm:$0xf]
  %v204 = vld [vmem:[%s0 + $0x2e8] sm:$0xf]
  %v205 = vld [vmem:[%s0 + $0x2ec] sm:$0xf]
  %v206 = vld [vmem:[%s0 + $0x2f0] sm:$0xf]
  %v207 = vld [vmem:[%s0 + $0x2f4] sm:$0xf]
  %v208 = vld [vmem:[%s0 + $0x2f8] sm:$0xf]
  %v209 = vld [vmem:[%s0 + $0x2fc] sm:$0xf]
  %v210 = vld [vmem:[%s0 + $0x300] sm:$0xf]
  %v211 = vld [vmem:[%s0 + $0x304] sm:$0xf]
  %v212 = vld [vmem:[%s0 + $0x308] sm:$0xf]
  %v213 = vld [vmem:[%s0 + $0x30c] sm:$0xf]
  %v214 = vld [vmem:[%s0 + $0x310] sm:$0xf]
  %v215 = vld [vmem:[%s0 + $0x314] sm:$0xf]
  %v216 = vld [vmem:[%s0 + $0x318] sm:$0xf]
  %v217 = vld [vmem:[%s0 + $0x31c] sm:$0xf]
  %v218 = vld [vmem:[%s0 + $0x320] sm:$0xf]
  %v219 = vld [vmem:[%s0 + $0x324] sm:$0xf]
  %v220 = vld [vmem:[%s0 + $0x328] sm:$0xf]
  %v221 = vld [vmem:[%s0 + $0x32c] sm:$0xf]
  %v222 = vld [vmem:[%s0 + $0x330] sm:$0xf]
  %v223 = vld [vmem:[%s0 + $0x334] sm:$0xf]
  %v224 = vld [vmem:[%s0 + $0x338] sm:$0xf]
  %v225 = vld [vmem:[%s0 + $0x33c] sm:$0xf]
  %v226 = vld [vmem:[%s0 + $0x340] sm:$0xf]
  %v227 = vld [vmem:[%s0 + $0x344] sm:$0xf]
  %v228 = vld [vmem:[%s0 + $0x348] sm:$0xf]
  %v229 = vld [vmem:[%s0 + $0x34c] sm:$0xf]
  %v230 = vld [vmem:[%s0 + $0x350] sm:$0xf]
  %v231 = vld [vmem:[%s0 + $0x354] sm:$0xf]
  %v232 = vld [vmem:[%s0 + $0x358] sm:$0xf]
  %v233 = vld [vmem:[%s0 + $0x35c] sm:$0xf]
  %v234 = vld [vmem:[%s0 + $0x360] sm:$0xf]
  %v235 = vld [vmem:[%s0 + $0x364] sm:$0xf]
  %v236 = vld [vmem:[%s0 + $0x368] sm:$0xf]
  %v237 = vld [vmem:[%s0 + $0x36c] sm:$0xf]
  %v238 = vld [vmem:[%s0 + $0x370] sm:$0xf]
  %v239 = vld [vmem:[%s0 + $0x374] sm:$0xf]
  %v240 = vld [vmem:[%s0 + $0x378] sm:$0xf]
  %v241 = vld [vmem:[%s0 + $0x37c] sm:$0xf]
  %v242 = vld [vmem:[%s0 + $0x380] sm:$0xf]
  %v243 = vld [vmem:[%s0 + $0x384] sm:$0xf]
  %v244 = vld [vmem:[%s0 + $0x388] sm:$0xf]
  %v245 = vld [vmem:[%s0 + $0x38c] sm:$0xf]
  %v246 = vld [vmem:[%s0 + $0x390] sm:$0xf]
  %v247 = vld [vmem:[%s0 + $0x394] sm:$0xf]
  %v248 = vld [vmem:[%s0 + $0x398] sm:$0xf]
  %v249 = vld [vmem:[%s0 + $0x39c] sm:$0xf]
  %v250 = vld [vmem:[%s0 + $0x3a0] sm:$0xf]
  %v251 = vld [vmem:[%s0 + $0x3a4] sm:$0xf]
  %v252 = vld [vmem:[%s0 + $0x3a8] sm:$0xf]
  %v253 = vld [vmem:[%s0 + $0x3ac] sm:$0xf]
  %v254 = vld [vmem:[%s0 + $0x3b0] sm:$0xf]
  %v255 = vld [vmem:[%s0 + $0x3b4] sm:$0xf]
  %v256 = vld [vmem:[%s0 + $0x3b8] sm:$0xf]
  %v257 = vld [vmem:[%s0 + $0x3bc] sm:$0xf]
  %v258 = vld [vmem:[%s0 + $0x3c0] sm:$0xf]
  %v259 = vld [vmem:[%s0 + $0x3c4] sm:$0xf]
  %v260 = vld [vmem:[%s0 + $0x3c8] sm:$0xf]
  %v261 = vld [vmem:[%s0 + $0x3cc] sm:$0xf]
  %v262 = vld [vmem:[%s0 + $0x3d0] sm:$0xf]
  %v263 = vld [vmem:[%s0 + $0x3d4] sm:$0xf]
  %v264 = vld [vmem:[%s0 + $0x3d8] sm:$0xf]
  %v265 = vld [vmem:[%s0 + $0x3dc] sm:$0xf]
  %v266 = vld [vmem:[%s0 + $0x3e0] sm:$0xf]
  %v267 = vld [vmem:[%s0 + $0x3e4] sm:$0xf]
  %v268 = vld [vmem:[%s0 + $0x3e8] sm:$0xf]
  %v269 = vld [vmem:[%s0 + $0x3ec] sm:$0xf]
  %v270 = vld [vmem:[%s0 + $0x3f0] sm:$0xf]
  %v271 = vld [vmem:[%s0 + $0x3f4] sm:$0xf]
  %v272 = vld [vmem:[%s0 + $0x3f8] sm:$0xf]
  %v273 = vld [vmem:[%s0 + $0x3fc] sm:$0xf]
  %v274 = vld [vmem:[%s1] sm:$0xf]
  %v275 = vld [vmem:[%s1 + $0x4] sm:$0xf]
  %v532 = vunpack.c.l.b16 %v18
  %v533 = vunpack.c.l.b16 %v19
  %v534 = vunpack.c.l.b16 %v20
  %v535 = vunpack.c.l.b16 %v21
  %v536 = vunpack.c.l.b16 %v22
  %v537 = vunpack.c.l.b16 %v23
  %v538 = vunpack.c.l.b16 %v24
  %v539 = vunpack.c.l.b16 %v25
  %v540 = vunpack.c.l.b16 %v26
  %v541 = vunpack.c.l.b16 %v27
  %v542 = vunpack.c.l.b16 %v28
  %v543 = vunpack.c.l.b16 %v29
  %v544 = vunpack.c.l.b16 %v30
  %v545 = vunpack.c.l.b16 %v31
  %v546 = vunpack.c.l.b16 %v32
  %v547 = vunpack.c.l.b16 %v33
  %v548 = vunpack.c.l.b16 %v34
  %v549 = vunpack.c.l.b16 %v35
  %v550 = vunpack.c.l.b16 %v36
  %v551 = vunpack.c.l.b16 %v37
  %v552 = vunpack.c.l.b16 %v38
  %v553 = vunpack.c.l.b16 %v39
  %v554 = vunpack.c.l.b16 %v40
  %v555 = vunpack.c.l.b16 %v41
  %v556 = vunpack.c.l.b16 %v42
  %v557 = vunpack.c.l.b16 %v43
  %v558 = vunpack.c.l.b16 %v44
  %v559 = vunpack.c.l.b16 %v45
  %v560 = vunpack.c.l.b16 %v46
  %v561 = vunpack.c.l.b16 %v47
  %v562 = vunpack.c.l.b16 %v48
  %v563 = vunpack.c.l.b16 %v49
  %v564 = vunpack.c.l.b16 %v50
  %v565 = vunpack.c.l.b16 %v51
  %v566 = vunpack.c.l.b16 %v52
  %v567 = vunpack.c.l.b16 %v53
  %v568 = vunpack.c.l.b16 %v54
  %v569 = vunpack.c.l.b16 %v55
  %v570 = vunpack.c.l.b16 %v56
  %v571 = vunpack.c.l.b16 %v57
  %v572 = vunpack.c.l.b16 %v58
  %v573 = vunpack.c.l.b16 %v59
  %v574 = vunpack.c.l.b16 %v60
  %v575 = vunpack.c.l.b16 %v61
  %v576 = vunpack.c.l.b16 %v62
  %v577 = vunpack.c.l.b16 %v63
  %v578 = vunpack.c.l.b16 %v64
  %v579 = vunpack.c.l.b16 %v65
  %v580 = vunpack.c.l.b16 %v66
  %v581 = vunpack.c.l.b16 %v67
  %v582 = vunpack.c.l.b16 %v68
  %v583 = vunpack.c.l.b16 %v69
  %v584 = vunpack.c.l.b16 %v70
  %v585 = vunpack.c.l.b16 %v71
  %v586 = vunpack.c.l.b16 %v72
  %v587 = vunpack.c.l.b16 %v73
  %v588 = vunpack.c.l.b16 %v74
  %v589 = vunpack.c.l.b16 %v75
  %v590 = vunpack.c.l.b16 %v76
  %v591 = vunpack.c.l.b16 %v77
  %v592 = vunpack.c.l.b16 %v78
  %v593 = vunpack.c.l.b16 %v79
  %v594 = vunpack.c.l.b16 %v80
  %v595 = vunpack.c.l.b16 %v81
  %v596 = vunpack.c.l.b16 %v82
  %v597 = vunpack.c.l.b16 %v83
  %v598 = vunpack.c.l.b16 %v84
  %v599 = vunpack.c.l.b16 %v85
  %v600 = vunpack.c.l.b16 %v86
  %v601 = vunpack.c.l.b16 %v87
  %v602 = vunpack.c.l.b16 %v88
  %v603 = vunpack.c.l.b16 %v89
  %v604 = vunpack.c.l.b16 %v90
  %v605 = vunpack.c.l.b16 %v91
  %v606 = vunpack.c.l.b16 %v92
  %v607 = vunpack.c.l.b16 %v93
  %v608 = vunpack.c.l.b16 %v94
  %v609 = vunpack.c.l.b16 %v95
  %v610 = vunpack.c.l.b16 %v96
  %v611 = vunpack.c.l.b16 %v97
  %v612 = vunpack.c.l.b16 %v98
  %v613 = vunpack.c.l.b16 %v99
  %v614 = vunpack.c.l.b16 %v100
  %v615 = vunpack.c.l.b16 %v101
  %v616 = vunpack.c.l.b16 %v102
  %v617 = vunpack.c.l.b16 %v103
  %v618 = vunpack.c.l.b16 %v104
  %v619 = vunpack.c.l.b16 %v105
  %v620 = vunpack.c.l.b16 %v106
  %v621 = vunpack.c.l.b16 %v107
  %v622 = vunpack.c.l.b16 %v108
  %v623 = vunpack.c.l.b16 %v109
  %v624 = vunpack.c.l.b16 %v110
  %v625 = vunpack.c.l.b16 %v111
  %v626 = vunpack.c.l.b16 %v112
  %v627 = vunpack.c.l.b16 %v113
  %v628 = vunpack.c.l.b16 %v114
  %v629 = vunpack.c.l.b16 %v115
  %v630 = vunpack.c.l.b16 %v116
  %v631 = vunpack.c.l.b16 %v117
  %v632 = vunpack.c.l.b16 %v118
  %v633 = vunpack.c.l.b16 %v119
  %v634 = vunpack.c.l.b16 %v120
  %v635 = vunpack.c.l.b16 %v121
  %v636 = vunpack.c.l.b16 %v122
  %v637 = vunpack.c.l.b16 %v123
  %v638 = vunpack.c.l.b16 %v124
  %v639 = vunpack.c.l.b16 %v125
  %v640 = vunpack.c.l.b16 %v126
  %v641 = vunpack.c.l.b16 %v127
  %v642 = vunpack.c.l.b16 %v128
  %v643 = vunpack.c.l.b16 %v129
  %v644 = vunpack.c.l.b16 %v130
  %v645 = vunpack.c.l.b16 %v131
  %v646 = vunpack.c.l.b16 %v132
  %v647 = vunpack.c.l.b16 %v133
  %v648 = vunpack.c.l.b16 %v134
  %v649 = vunpack.c.l.b16 %v135
  %v650 = vunpack.c.l.b16 %v136
  %v651 = vunpack.c.l.b16 %v137
  %v652 = vunpack.c.l.b16 %v138
  %v653 = vunpack.c.l.b16 %v139
  %v654 = vunpack.c.l.b16 %v140
  %v655 = vunpack.c.l.b16 %v141
  %v656 = vunpack.c.l.b16 %v142
  %v657 = vunpack.c.l.b16 %v143
  %v658 = vunpack.c.l.b16 %v144
  %v659 = vunpack.c.l.b16 %v145
  %v660 = vunpack.c.l.b16 %v146
  %v661 = vunpack.c.l.b16 %v147
  %v662 = vunpack.c.l.b16 %v148
  %v663 = vunpack.c.l.b16 %v149
  %v664 = vunpack.c.l.b16 %v150
  %v665 = vunpack.c.l.b16 %v151
  %v666 = vunpack.c.l.b16 %v152
  %v667 = vunpack.c.l.b16 %v153
  %v668 = vunpack.c.l.b16 %v154
  %v669 = vunpack.c.l.b16 %v155
  %v670 = vunpack.c.l.b16 %v156
  %v671 = vunpack.c.l.b16 %v157
  %v672 = vunpack.c.l.b16 %v158
  %v673 = vunpack.c.l.b16 %v159
  %v674 = vunpack.c.l.b16 %v160
  %v675 = vunpack.c.l.b16 %v161
  %v676 = vunpack.c.l.b16 %v162
  %v677 = vunpack.c.l.b16 %v163
  %v678 = vunpack.c.l.b16 %v164
  %v679 = vunpack.c.l.b16 %v165
  %v680 = vunpack.c.l.b16 %v166
  %v681 = vunpack.c.l.b16 %v167
  %v682 = vunpack.c.l.b16 %v168
  %v683 = vunpack.c.l.b16 %v169
  %v684 = vunpack.c.l.b16 %v170
  %v685 = vunpack.c.l.b16 %v171
  %v686 = vunpack.c.l.b16 %v172
  %v687 = vunpack.c.l.b16 %v173
  %v688 = vunpack.c.l.b16 %v174
  %v689 = vunpack.c.l.b16 %v175
  %v690 = vunpack.c.l.b16 %v176
  %v691 = vunpack.c.l.b16 %v177
  %v692 = vunpack.c.l.b16 %v178
  %v693 = vunpack.c.l.b16 %v179
  %v694 = vunpack.c.l.b16 %v180
  %v695 = vunpack.c.l.b16 %v181
  %v696 = vunpack.c.l.b16 %v182
  %v697 = vunpack.c.l.b16 %v183
  %v698 = vunpack.c.l.b16 %v184
  %v699 = vunpack.c.l.b16 %v185
  %v700 = vunpack.c.l.b16 %v186
  %v701 = vunpack.c.l.b16 %v187
  %v702 = vunpack.c.l.b16 %v188
  %v703 = vunpack.c.l.b16 %v189
  %v704 = vunpack.c.l.b16 %v190
  %v705 = vunpack.c.l.b16 %v191
  %v706 = vunpack.c.l.b16 %v192
  %v707 = vunpack.c.l.b16 %v193
  %v708 = vunpack.c.l.b16 %v194
  %v709 = vunpack.c.l.b16 %v195
  %v710 = vunpack.c.l.b16 %v196
  %v711 = vunpack.c.l.b16 %v197
  %v712 = vunpack.c.l.b16 %v198
  %v713 = vunpack.c.l.b16 %v199
  %v714 = vunpack.c.l.b16 %v200
  %v715 = vunpack.c.l.b16 %v201
  %v716 = vunpack.c.l.b16 %v202
  %v717 = vunpack.c.l.b16 %v203
  %v718 = vunpack.c.l.b16 %v204
  %v719 = vunpack.c.l.b16 %v205
  %v720 = vunpack.c.l.b16 %v206
  %v721 = vunpack.c.l.b16 %v207
  %v722 = vunpack.c.l.b16 %v208
  %v723 = vunpack.c.l.b16 %v209
  %v724 = vunpack.c.l.b16 %v210
  %v725 = vunpack.c.l.b16 %v211
  %v726 = vunpack.c.l.b16 %v212
  %v727 = vunpack.c.l.b16 %v213
  %v728 = vunpack.c.l.b16 %v214
  %v729 = vunpack.c.l.b16 %v215
  %v730 = vunpack.c.l.b16 %v216
  %v731 = vunpack.c.l.b16 %v217
  %v732 = vunpack.c.l.b16 %v218
  %v733 = vunpack.c.l.b16 %v219
  %v734 = vunpack.c.l.b16 %v220
  %v735 = vunpack.c.l.b16 %v221
  %v736 = vunpack.c.l.b16 %v222
  %v737 = vunpack.c.l.b16 %v223
  %v738 = vunpack.c.l.b16 %v224
  %v739 = vunpack.c.l.b16 %v225
  %v740 = vunpack.c.l.b16 %v226
  %v741 = vunpack.c.l.b16 %v227
  %v742 = vunpack.c.l.b16 %v228
  %v743 = vunpack.c.l.b16 %v229
  %v744 = vunpack.c.l.b16 %v230
  %v745 = vunpack.c.l.b16 %v231
  %v746 = vunpack.c.l.b16 %v232
  %v747 = vunpack.c.l.b16 %v233
  %v748 = vunpack.c.l.b16 %v234
  %v749 = vunpack.c.l.b16 %v235
  %v750 = vunpack.c.l.b16 %v236
  %v751 = vunpack.c.l.b16 %v237
  %v752 = vunpack.c.l.b16 %v238
  %v753 = vunpack.c.l.b16 %v239
  %v754 = vunpack.c.l.b16 %v240
  %v755 = vunpack.c.l.b16 %v241
  %v756 = vunpack.c.l.b16 %v242
  %v757 = vunpack.c.l.b16 %v243
  %v758 = vunpack.c.l.b16 %v244
  %v759 = vunpack.c.l.b16 %v245
  %v760 = vunpack.c.l.b16 %v246
  %v761 = vunpack.c.l.b16 %v247
  %v762 = vunpack.c.l.b16 %v248
  %v763 = vunpack.c.l.b16 %v249
  %v764 = vunpack.c.l.b16 %v250
  %v765 = vunpack.c.l.b16 %v251
  %v766 = vunpack.c.l.b16 %v252
  %v767 = vunpack.c.l.b16 %v253
  %v768 = vunpack.c.l.b16 %v254
  %v769 = vunpack.c.l.b16 %v255
  %v770 = vunpack.c.l.b16 %v256
  %v771 = vunpack.c.l.b16 %v257
  %v772 = vunpack.c.l.b16 %v258
  %v773 = vunpack.c.l.b16 %v259
  %v774 = vunpack.c.l.b16 %v260
  %v775 = vunpack.c.l.b16 %v261
  %v776 = vunpack.c.l.b16 %v262
  %v777 = vunpack.c.l.b16 %v263
  %v778 = vunpack.c.l.b16 %v264
  %v779 = vunpack.c.l.b16 %v265
  %v780 = vunpack.c.l.b16 %v266
  %v781 = vunpack.c.l.b16 %v267
  %v782 = vunpack.c.l.b16 %v268
  %v783 = vunpack.c.l.b16 %v269
  %v784 = vunpack.c.l.b16 %v270
  %v785 = vunpack.c.l.b16 %v271
  %v786 = vunpack.c.l.b16 %v272
  %v787 = vunpack.c.l.b16 %v273
  %v788 = vpack.c.b16 %v533, %v532
  %v789 = vpack.c.b16 %v535, %v534
  %v790 = vpack.c.b16 %v537, %v536
  %v791 = vpack.c.b16 %v539, %v538
  %v792 = vpack.c.b16 %v541, %v540
  %v793 = vpack.c.b16 %v543, %v542
  %v794 = vpack.c.b16 %v545, %v544
  %v795 = vpack.c.b16 %v547, %v546
  %v796 = vpack.c.b16 %v549, %v548
  %v797 = vpack.c.b16 %v551, %v550
  %v798 = vpack.c.b16 %v553, %v552
  %v799 = vpack.c.b16 %v555, %v554
  %v800 = vpack.c.b16 %v557, %v556
  %v801 = vpack.c.b16 %v559, %v558
  %v802 = vpack.c.b16 %v561, %v560
  %v803 = vpack.c.b16 %v563, %v562
  %v804 = vpack.c.b16 %v565, %v564
  %v805 = vpack.c.b16 %v567, %v566
  %v806 = vpack.c.b16 %v569, %v568
  %v807 = vpack.c.b16 %v571, %v570
  %v808 = vpack.c.b16 %v573, %v572
  %v809 = vpack.c.b16 %v575, %v574
  %v810 = vpack.c.b16 %v577, %v576
  %v811 = vpack.c.b16 %v579, %v578
  %v812 = vpack.c.b16 %v581, %v580
  %v813 = vpack.c.b16 %v583, %v582
  %v814 = vpack.c.b16 %v585, %v584
  %v815 = vpack.c.b16 %v587, %v586
  %v816 = vpack.c.b16 %v589, %v588
  %v817 = vpack.c.b16 %v591, %v590
  %v818 = vpack.c.b16 %v593, %v592
  %v819 = vpack.c.b16 %v595, %v594
  %v820 = vpack.c.b16 %v597, %v596
  %v821 = vpack.c.b16 %v599, %v598
  %v822 = vpack.c.b16 %v601, %v600
  %v823 = vpack.c.b16 %v603, %v602
  %v824 = vpack.c.b16 %v605, %v604
  %v825 = vpack.c.b16 %v607, %v606
  %v826 = vpack.c.b16 %v609, %v608
  %v827 = vpack.c.b16 %v611, %v610
  %v828 = vpack.c.b16 %v613, %v612
  %v829 = vpack.c.b16 %v615, %v614
  %v830 = vpack.c.b16 %v617, %v616
  %v831 = vpack.c.b16 %v619, %v618
  %v832 = vpack.c.b16 %v621, %v620
  %v833 = vpack.c.b16 %v623, %v622
  %v834 = vpack.c.b16 %v625, %v624
  %v835 = vpack.c.b16 %v627, %v626
  %v836 = vpack.c.b16 %v629, %v628
  %v837 = vpack.c.b16 %v631, %v630
  %v838 = vpack.c.b16 %v633, %v632
  %v839 = vpack.c.b16 %v635, %v634
  %v840 = vpack.c.b16 %v637, %v636
  %v841 = vpack.c.b16 %v639, %v638
  %v842 = vpack.c.b16 %v641, %v640
  %v843 = vpack.c.b16 %v643, %v642
  %v844 = vpack.c.b16 %v645, %v644
  %v845 = vpack.c.b16 %v647, %v646
  %v846 = vpack.c.b16 %v649, %v648
  %v847 = vpack.c.b16 %v651, %v650
  %v848 = vpack.c.b16 %v653, %v652
  %v849 = vpack.c.b16 %v655, %v654
  %v850 = vpack.c.b16 %v657, %v656
  %v851 = vpack.c.b16 %v659, %v658
  %v852 = vpack.c.b16 %v661, %v660
  %v853 = vpack.c.b16 %v663, %v662
  %v854 = vpack.c.b16 %v665, %v664
  %v855 = vpack.c.b16 %v667, %v666
  %v856 = vpack.c.b16 %v669, %v668
  %v857 = vpack.c.b16 %v671, %v670
  %v858 = vpack.c.b16 %v673, %v672
  %v859 = vpack.c.b16 %v675, %v674
  %v860 = vpack.c.b16 %v677, %v676
  %v861 = vpack.c.b16 %v679, %v678
  %v862 = vpack.c.b16 %v681, %v680
  %v863 = vpack.c.b16 %v683, %v682
  %v864 = vpack.c.b16 %v685, %v684
  %v865 = vpack.c.b16 %v687, %v686
  %v866 = vpack.c.b16 %v689, %v688
  %v867 = vpack.c.b16 %v691, %v690
  %v868 = vpack.c.b16 %v693, %v692
  %v869 = vpack.c.b16 %v695, %v694
  %v870 = vpack.c.b16 %v697, %v696
  %v871 = vpack.c.b16 %v699, %v698
  %v872 = vpack.c.b16 %v701, %v700
  %v873 = vpack.c.b16 %v703, %v702
  %v874 = vpack.c.b16 %v705, %v704
  %v875 = vpack.c.b16 %v707, %v706
  %v876 = vpack.c.b16 %v709, %v708
  %v877 = vpack.c.b16 %v711, %v710
  %v878 = vpack.c.b16 %v713, %v712
  %v879 = vpack.c.b16 %v715, %v714
  %v880 = vpack.c.b16 %v717, %v716
  %v881 = vpack.c.b16 %v719, %v718
  %v882 = vpack.c.b16 %v721, %v720
  %v883 = vpack.c.b16 %v723, %v722
  %v884 = vpack.c.b16 %v725, %v724
  %v885 = vpack.c.b16 %v727, %v726
  %v886 = vpack.c.b16 %v729, %v728
  %v887 = vpack.c.b16 %v731, %v730
  %v888 = vpack.c.b16 %v733, %v732
  %v889 = vpack.c.b16 %v735, %v734
  %v890 = vpack.c.b16 %v737, %v736
  %v891 = vpack.c.b16 %v739, %v738
  %v892 = vpack.c.b16 %v741, %v740
  %v893 = vpack.c.b16 %v743, %v742
  %v894 = vpack.c.b16 %v745, %v744
  %v895 = vpack.c.b16 %v747, %v746
  %v896 = vpack.c.b16 %v749, %v748
  %v897 = vpack.c.b16 %v751, %v750
  %v898 = vpack.c.b16 %v753, %v752
  %v899 = vpack.c.b16 %v755, %v754
  %v900 = vpack.c.b16 %v757, %v756
  %v901 = vpack.c.b16 %v759, %v758
  %v902 = vpack.c.b16 %v761, %v760
  %v903 = vpack.c.b16 %v763, %v762
  %v904 = vpack.c.b16 %v765, %v764
  %v905 = vpack.c.b16 %v767, %v766
  %v906 = vpack.c.b16 %v769, %v768
  %v907 = vpack.c.b16 %v771, %v770
  %v908 = vpack.c.b16 %v773, %v772
  %v909 = vpack.c.b16 %v775, %v774
  %v910 = vpack.c.b16 %v777, %v776
  %v911 = vpack.c.b16 %v779, %v778
  %v912 = vpack.c.b16 %v781, %v780
  %v913 = vpack.c.b16 %v783, %v782
  %v914 = vpack.c.b16 %v785, %v784
  %v915 = vpack.c.b16 %v787, %v786
  %v918 = vunpack.c.l.b16 %v274
  %v919 = vunpack.c.l.b16 %v275
  %v920 = vpack.c.b16 %v919, %v918
  %vm922 = vcmask 130048
  %v924 = vsel %vm922, %v788, 0
  %v927 = vsel %vm922, %v789, 0
  %v930 = vsel %vm922, %v790, 0
  %v933 = vsel %vm922, %v791, 0
  %v936 = vsel %vm922, %v792, 0
  %v939 = vsel %vm922, %v793, 0
  %v942 = vsel %vm922, %v794, 0
  %v945 = vsel %vm922, %v795, 0
  %v948 = vsel %vm922, %v796, 0
  %v951 = vsel %vm922, %v797, 0
  %v954 = vsel %vm922, %v798, 0
  %v957 = vsel %vm922, %v799, 0
  %v960 = vsel %vm922, %v800, 0
  %v963 = vsel %vm922, %v801, 0
  %v966 = vsel %vm922, %v802, 0
  %v969 = vsel %vm922, %v803, 0
  %v972 = vsel %vm922, %v804, 0
  %v975 = vsel %vm922, %v805, 0
  %v978 = vsel %vm922, %v806, 0
  %v981 = vsel %vm922, %v807, 0
  %v984 = vsel %vm922, %v808, 0
  %v987 = vsel %vm922, %v809, 0
  %v990 = vsel %vm922, %v810, 0
  %v993 = vsel %vm922, %v811, 0
  %v996 = vsel %vm922, %v812, 0
  %v999 = vsel %vm922, %v813, 0
  %v1002 = vsel %vm922, %v814, 0
  %v1005 = vsel %vm922, %v815, 0
  %v1008 = vsel %vm922, %v816, 0
  %v1011 = vsel %vm922, %v817, 0
  %v1014 = vsel %vm922, %v818, 0
  %v1017 = vsel %vm922, %v819, 0
  %v1020 = vsel %vm922, %v820, 0
  %v1023 = vsel %vm922, %v821, 0
  %v1026 = vsel %vm922, %v822, 0
  %v1029 = vsel %vm922, %v823, 0
  %v1032 = vsel %vm922, %v824, 0
  %v1035 = vsel %vm922, %v825, 0
  %v1038 = vsel %vm922, %v826, 0
  %v1041 = vsel %vm922, %v827, 0
  %v1044 = vsel %vm922, %v828, 0
  %v1047 = vsel %vm922, %v829, 0
  %v1050 = vsel %vm922, %v830, 0
  %v1053 = vsel %vm922, %v831, 0
  %v1056 = vsel %vm922, %v832, 0
  %v1059 = vsel %vm922, %v833, 0
  %v1062 = vsel %vm922, %v834, 0
  %v1065 = vsel %vm922, %v835, 0
  %v1068 = vsel %vm922, %v836, 0
  %v1071 = vsel %vm922, %v837, 0
  %v1074 = vsel %vm922, %v838, 0
  %v1077 = vsel %vm922, %v839, 0
  %v1080 = vsel %vm922, %v840, 0
  %v1083 = vsel %vm922, %v841, 0
  %v1086 = vsel %vm922, %v842, 0
  %v1089 = vsel %vm922, %v843, 0
  %v1092 = vsel %vm922, %v844, 0
  %v1095 = vsel %vm922, %v845, 0
  %v1098 = vsel %vm922, %v846, 0
  %v1101 = vsel %vm922, %v847, 0
  %v1104 = vsel %vm922, %v848, 0
  %v1107 = vsel %vm922, %v849, 0
  %v1110 = vsel %vm922, %v850, 0
  %v1113 = vsel %vm922, %v851, 0
  %v1116 = vsel %vm922, %v852, 0
  %v1119 = vsel %vm922, %v853, 0
  %v1122 = vsel %vm922, %v854, 0
  %v1125 = vsel %vm922, %v855, 0
  %v1128 = vsel %vm922, %v856, 0
  %v1131 = vsel %vm922, %v857, 0
  %v1134 = vsel %vm922, %v858, 0
  %v1137 = vsel %vm922, %v859, 0
  %v1140 = vsel %vm922, %v860, 0
  %v1143 = vsel %vm922, %v861, 0
  %v1146 = vsel %vm922, %v862, 0
  %v1149 = vsel %vm922, %v863, 0
  %v1152 = vsel %vm922, %v864, 0
  %v1155 = vsel %vm922, %v865, 0
  %v1158 = vsel %vm922, %v866, 0
  %v1161 = vsel %vm922, %v867, 0
  %v1164 = vsel %vm922, %v868, 0
  %v1167 = vsel %vm922, %v869, 0
  %v1170 = vsel %vm922, %v870, 0
  %v1173 = vsel %vm922, %v871, 0
  %v1176 = vsel %vm922, %v872, 0
  %v1179 = vsel %vm922, %v873, 0
  %v1182 = vsel %vm922, %v874, 0
  %v1185 = vsel %vm922, %v875, 0
  %v1188 = vsel %vm922, %v876, 0
  %v1191 = vsel %vm922, %v877, 0
  %v1194 = vsel %vm922, %v878, 0
  %v1197 = vsel %vm922, %v879, 0
  %v1200 = vsel %vm922, %v880, 0
  %v1203 = vsel %vm922, %v881, 0
  %v1206 = vsel %vm922, %v882, 0
  %v1209 = vsel %vm922, %v883, 0
  %v1212 = vsel %vm922, %v884, 0
  %v1215 = vsel %vm922, %v885, 0
  %v1218 = vsel %vm922, %v886, 0
  %v1221 = vsel %vm922, %v887, 0
  %v1224 = vsel %vm922, %v888, 0
  %v1227 = vsel %vm922, %v889, 0
  %v1230 = vsel %vm922, %v890, 0
  %v1233 = vsel %vm922, %v891, 0
  %v1236 = vsel %vm922, %v892, 0
  %v1239 = vsel %vm922, %v893, 0
  %v1242 = vsel %vm922, %v894, 0
  %v1245 = vsel %vm922, %v895, 0
  %v1248 = vsel %vm922, %v896, 0
  %v1251 = vsel %vm922, %v897, 0
  %v1254 = vsel %vm922, %v898, 0
  %v1257 = vsel %vm922, %v899, 0
  %v1260 = vsel %vm922, %v900, 0
  %v1263 = vsel %vm922, %v901, 0
  %v1266 = vsel %vm922, %v902, 0
  %v1269 = vsel %vm922, %v903, 0
  %v1272 = vsel %vm922, %v904, 0
  %v1275 = vsel %vm922, %v905, 0
  %v1278 = vsel %vm922, %v906, 0
  %v1281 = vsel %vm922, %v907, 0
  %v1284 = vsel %vm922, %v908, 0
  %v1287 = vsel %vm922, %v909, 0
  %v1290 = vsel %vm922, %v910, 0
  %v1293 = vsel %vm922, %v911, 0
  %v1296 = vsel %vm922, %v912, 0
  %v1299 = vsel %vm922, %v913, 0
  %v1302 = vsel %vm922, %v914, 0
  %v1305 = vsel %vm922, %v915, 0
  %1307 = vmatpush.bf16.msra.mxu0 0
  %1308 = vmatpush.bf16.msra.mxu0 0
  %1309 = vmatpush.bf16.msra.mxu0 0
  %1310 = vmatpush.bf16.msra.mxu0 0
  %1311 = vmatpush.bf16.msra.mxu0 0
  %1312 = vmatpush.bf16.msra.mxu0 0
  %1313 = vmatpush.bf16.msra.mxu0 0
  %1314 = vmatpush.bf16.msra.mxu0 %v920
  %1315 = vmatmul.bf16.gmra.mxu0 %v924
  %v1316 = vpop.f32.mrf.mxu0
  %v1317 = vadd.f32 0.0, %v1316
  %v1318 = vpop.f32.mrf.mxu0
  %v1319 = vadd.f32 0.0, %v1318
  %1320 = vmatmul.bf16.gmra.mxu0 %v927
  %v1321 = vpop.f32.mrf.mxu0
  %v1322 = vadd.f32 0.0, %v1321
  %v1323 = vpop.f32.mrf.mxu0
  %v1324 = vadd.f32 0.0, %v1323
  %1325 = vmatmul.bf16.gmra.mxu0 %v930
  %v1326 = vpop.f32.mrf.mxu0
  %v1327 = vadd.f32 0.0, %v1326
  %v1328 = vpop.f32.mrf.mxu0
  %v1329 = vadd.f32 0.0, %v1328
  %1330 = vmatmul.bf16.gmra.mxu0 %v933
  %v1331 = vpop.f32.mrf.mxu0
  %v1332 = vadd.f32 0.0, %v1331
  %v1333 = vpop.f32.mrf.mxu0
  %v1334 = vadd.f32 0.0, %v1333
  %1335 = vmatmul.bf16.gmra.mxu0 %v936
  %v1336 = vpop.f32.mrf.mxu0
  %v1337 = vadd.f32 0.0, %v1336
  %v1338 = vpop.f32.mrf.mxu0
  %v1339 = vadd.f32 0.0, %v1338
  %1340 = vmatmul.bf16.gmra.mxu0 %v939
  %v1341 = vpop.f32.mrf.mxu0
  %v1342 = vadd.f32 0.0, %v1341
  %v1343 = vpop.f32.mrf.mxu0
  %v1344 = vadd.f32 0.0, %v1343
  %1345 = vmatmul.bf16.gmra.mxu0 %v942
  %v1346 = vpop.f32.mrf.mxu0
  %v1347 = vadd.f32 0.0, %v1346
  %v1348 = vpop.f32.mrf.mxu0
  %v1349 = vadd.f32 0.0, %v1348
  %1350 = vmatmul.bf16.gmra.mxu0 %v945
  %v1351 = vpop.f32.mrf.mxu0
  %v1352 = vadd.f32 0.0, %v1351
  %v1353 = vpop.f32.mrf.mxu0
  %v1354 = vadd.f32 0.0, %v1353
  %1355 = vmatmul.bf16.gmra.mxu0 %v948
  %v1356 = vpop.f32.mrf.mxu0
  %v1357 = vadd.f32 0.0, %v1356
  %v1358 = vpop.f32.mrf.mxu0
  %v1359 = vadd.f32 0.0, %v1358
  %1360 = vmatmul.bf16.gmra.mxu0 %v951
  %v1361 = vpop.f32.mrf.mxu0
  %v1362 = vadd.f32 0.0, %v1361
  %v1363 = vpop.f32.mrf.mxu0
  %v1364 = vadd.f32 0.0, %v1363
  %1365 = vmatmul.bf16.gmra.mxu0 %v954
  %v1366 = vpop.f32.mrf.mxu0
  %v1367 = vadd.f32 0.0, %v1366
  %v1368 = vpop.f32.mrf.mxu0
  %v1369 = vadd.f32 0.0, %v1368
  %1370 = vmatmul.bf16.gmra.mxu0 %v957
  %v1371 = vpop.f32.mrf.mxu0
  %v1372 = vadd.f32 0.0, %v1371
  %v1373 = vpop.f32.mrf.mxu0
  %v1374 = vadd.f32 0.0, %v1373
  %1375 = vmatmul.bf16.gmra.mxu0 %v960
  %v1376 = vpop.f32.mrf.mxu0
  %v1377 = vadd.f32 0.0, %v1376
  %v1378 = vpop.f32.mrf.mxu0
  %v1379 = vadd.f32 0.0, %v1378
  %1380 = vmatmul.bf16.gmra.mxu0 %v963
  %v1381 = vpop.f32.mrf.mxu0
  %v1382 = vadd.f32 0.0, %v1381
  %v1383 = vpop.f32.mrf.mxu0
  %v1384 = vadd.f32 0.0, %v1383
  %1385 = vmatmul.bf16.gmra.mxu0 %v966
  %v1386 = vpop.f32.mrf.mxu0
  %v1387 = vadd.f32 0.0, %v1386
  %v1388 = vpop.f32.mrf.mxu0
  %v1389 = vadd.f32 0.0, %v1388
  %1390 = vmatmul.bf16.gmra.mxu0 %v969
  %v1391 = vpop.f32.mrf.mxu0
  %v1392 = vadd.f32 0.0, %v1391
  %v1393 = vpop.f32.mrf.mxu0
  %v1394 = vadd.f32 0.0, %v1393
  %1395 = vmatmul.bf16.gmra.mxu0 %v972
  %v1396 = vpop.f32.mrf.mxu0
  %v1397 = vadd.f32 0.0, %v1396
  %v1398 = vpop.f32.mrf.mxu0
  %v1399 = vadd.f32 0.0, %v1398
  %1400 = vmatmul.bf16.gmra.mxu0 %v975
  %v1401 = vpop.f32.mrf.mxu0
  %v1402 = vadd.f32 0.0, %v1401
  %v1403 = vpop.f32.mrf.mxu0
  %v1404 = vadd.f32 0.0, %v1403
  %1405 = vmatmul.bf16.gmra.mxu0 %v978
  %v1406 = vpop.f32.mrf.mxu0
  %v1407 = vadd.f32 0.0, %v1406
  %v1408 = vpop.f32.mrf.mxu0
  %v1409 = vadd.f32 0.0, %v1408
  %1410 = vmatmul.bf16.gmra.mxu0 %v981
  %v1411 = vpop.f32.mrf.mxu0
  %v1412 = vadd.f32 0.0, %v1411
  %v1413 = vpop.f32.mrf.mxu0
  %v1414 = vadd.f32 0.0, %v1413
  %1415 = vmatmul.bf16.gmra.mxu0 %v984
  %v1416 = vpop.f32.mrf.mxu0
  %v1417 = vadd.f32 0.0, %v1416
  %v1418 = vpop.f32.mrf.mxu0
  %v1419 = vadd.f32 0.0, %v1418
  %1420 = vmatmul.bf16.gmra.mxu0 %v987
  %v1421 = vpop.f32.mrf.mxu0
  %v1422 = vadd.f32 0.0, %v1421
  %v1423 = vpop.f32.mrf.mxu0
  %v1424 = vadd.f32 0.0, %v1423
  %1425 = vmatmul.bf16.gmra.mxu0 %v990
  %v1426 = vpop.f32.mrf.mxu0
  %v1427 = vadd.f32 0.0, %v1426
  %v1428 = vpop.f32.mrf.mxu0
  %v1429 = vadd.f32 0.0, %v1428
  %1430 = vmatmul.bf16.gmra.mxu0 %v993
  %v1431 = vpop.f32.mrf.mxu0
  %v1432 = vadd.f32 0.0, %v1431
  %v1433 = vpop.f32.mrf.mxu0
  %v1434 = vadd.f32 0.0, %v1433
  %1435 = vmatmul.bf16.gmra.mxu0 %v996
  %v1436 = vpop.f32.mrf.mxu0
  %v1437 = vadd.f32 0.0, %v1436
  %v1438 = vpop.f32.mrf.mxu0
  %v1439 = vadd.f32 0.0, %v1438
  %1440 = vmatmul.bf16.gmra.mxu0 %v999
  %v1441 = vpop.f32.mrf.mxu0
  %v1442 = vadd.f32 0.0, %v1441
  %v1443 = vpop.f32.mrf.mxu0
  %v1444 = vadd.f32 0.0, %v1443
  %1445 = vmatmul.bf16.gmra.mxu0 %v1002
  %v1446 = vpop.f32.mrf.mxu0
  %v1447 = vadd.f32 0.0, %v1446
  %v1448 = vpop.f32.mrf.mxu0
  %v1449 = vadd.f32 0.0, %v1448
  %1450 = vmatmul.bf16.gmra.mxu0 %v1005
  %v1451 = vpop.f32.mrf.mxu0
  %v1452 = vadd.f32 0.0, %v1451
  %v1453 = vpop.f32.mrf.mxu0
  %v1454 = vadd.f32 0.0, %v1453
  %1455 = vmatmul.bf16.gmra.mxu0 %v1008
  %v1456 = vpop.f32.mrf.mxu0
  %v1457 = vadd.f32 0.0, %v1456
  %v1458 = vpop.f32.mrf.mxu0
  %v1459 = vadd.f32 0.0, %v1458
  %1460 = vmatmul.bf16.gmra.mxu0 %v1011
  %v1461 = vpop.f32.mrf.mxu0
  %v1462 = vadd.f32 0.0, %v1461
  %v1463 = vpop.f32.mrf.mxu0
  %v1464 = vadd.f32 0.0, %v1463
  %1465 = vmatmul.bf16.gmra.mxu0 %v1014
  %v1466 = vpop.f32.mrf.mxu0
  %v1467 = vadd.f32 0.0, %v1466
  %v1468 = vpop.f32.mrf.mxu0
  %v1469 = vadd.f32 0.0, %v1468
  %1470 = vmatmul.bf16.gmra.mxu0 %v1017
  %v1471 = vpop.f32.mrf.mxu0
  %v1472 = vadd.f32 0.0, %v1471
  %v1473 = vpop.f32.mrf.mxu0
  %v1474 = vadd.f32 0.0, %v1473
  %1475 = vmatmul.bf16.gmra.mxu0 %v1020
  %v1476 = vpop.f32.mrf.mxu0
  %v1477 = vadd.f32 0.0, %v1476
  %v1478 = vpop.f32.mrf.mxu0
  %v1479 = vadd.f32 0.0, %v1478
  %1480 = vmatmul.bf16.gmra.mxu0 %v1023
  %v1481 = vpop.f32.mrf.mxu0
  %v1482 = vadd.f32 0.0, %v1481
  %v1483 = vpop.f32.mrf.mxu0
  %v1484 = vadd.f32 0.0, %v1483
  %1485 = vmatmul.bf16.gmra.mxu0 %v1026
  %v1486 = vpop.f32.mrf.mxu0
  %v1487 = vadd.f32 0.0, %v1486
  %v1488 = vpop.f32.mrf.mxu0
  %v1489 = vadd.f32 0.0, %v1488
  %1490 = vmatmul.bf16.gmra.mxu0 %v1029
  %v1491 = vpop.f32.mrf.mxu0
  %v1492 = vadd.f32 0.0, %v1491
  %v1493 = vpop.f32.mrf.mxu0
  %v1494 = vadd.f32 0.0, %v1493
  %1495 = vmatmul.bf16.gmra.mxu0 %v1032
  %v1496 = vpop.f32.mrf.mxu0
  %v1497 = vadd.f32 0.0, %v1496
  %v1498 = vpop.f32.mrf.mxu0
  %v1499 = vadd.f32 0.0, %v1498
  %1500 = vmatmul.bf16.gmra.mxu0 %v1035
  %v1501 = vpop.f32.mrf.mxu0
  %v1502 = vadd.f32 0.0, %v1501
  %v1503 = vpop.f32.mrf.mxu0
  %v1504 = vadd.f32 0.0, %v1503
  %1505 = vmatmul.bf16.gmra.mxu0 %v1038
  %v1506 = vpop.f32.mrf.mxu0
  %v1507 = vadd.f32 0.0, %v1506
  %v1508 = vpop.f32.mrf.mxu0
  %v1509 = vadd.f32 0.0, %v1508
  %1510 = vmatmul.bf16.gmra.mxu0 %v1041
  %v1511 = vpop.f32.mrf.mxu0
  %v1512 = vadd.f32 0.0, %v1511
  %v1513 = vpop.f32.mrf.mxu0
  %v1514 = vadd.f32 0.0, %v1513
  %1515 = vmatmul.bf16.gmra.mxu0 %v1044
  %v1516 = vpop.f32.mrf.mxu0
  %v1517 = vadd.f32 0.0, %v1516
  %v1518 = vpop.f32.mrf.mxu0
  %v1519 = vadd.f32 0.0, %v1518
  %1520 = vmatmul.bf16.gmra.mxu0 %v1047
  %v1521 = vpop.f32.mrf.mxu0
  %v1522 = vadd.f32 0.0, %v1521
  %v1523 = vpop.f32.mrf.mxu0
  %v1524 = vadd.f32 0.0, %v1523
  %1525 = vmatmul.bf16.gmra.mxu0 %v1050
  %v1526 = vpop.f32.mrf.mxu0
  %v1527 = vadd.f32 0.0, %v1526
  %v1528 = vpop.f32.mrf.mxu0
  %v1529 = vadd.f32 0.0, %v1528
  %1530 = vmatmul.bf16.gmra.mxu0 %v1053
  %v1531 = vpop.f32.mrf.mxu0
  %v1532 = vadd.f32 0.0, %v1531
  %v1533 = vpop.f32.mrf.mxu0
  %v1534 = vadd.f32 0.0, %v1533
  %1535 = vmatmul.bf16.gmra.mxu0 %v1056
  %v1536 = vpop.f32.mrf.mxu0
  %v1537 = vadd.f32 0.0, %v1536
  %v1538 = vpop.f32.mrf.mxu0
  %v1539 = vadd.f32 0.0, %v1538
  %1540 = vmatmul.bf16.gmra.mxu0 %v1059
  %v1541 = vpop.f32.mrf.mxu0
  %v1542 = vadd.f32 0.0, %v1541
  %v1543 = vpop.f32.mrf.mxu0
  %v1544 = vadd.f32 0.0, %v1543
  %1545 = vmatmul.bf16.gmra.mxu0 %v1062
  %v1546 = vpop.f32.mrf.mxu0
  %v1547 = vadd.f32 0.0, %v1546
  %v1548 = vpop.f32.mrf.mxu0
  %v1549 = vadd.f32 0.0, %v1548
  %1550 = vmatmul.bf16.gmra.mxu0 %v1065
  %v1551 = vpop.f32.mrf.mxu0
  %v1552 = vadd.f32 0.0, %v1551
  %v1553 = vpop.f32.mrf.mxu0
  %v1554 = vadd.f32 0.0, %v1553
  %1555 = vmatmul.bf16.gmra.mxu0 %v1068
  %v1556 = vpop.f32.mrf.mxu0
  %v1557 = vadd.f32 0.0, %v1556
  %v1558 = vpop.f32.mrf.mxu0
  %v1559 = vadd.f32 0.0, %v1558
  %1560 = vmatmul.bf16.gmra.mxu0 %v1071
  %v1561 = vpop.f32.mrf.mxu0
  %v1562 = vadd.f32 0.0, %v1561
  %v1563 = vpop.f32.mrf.mxu0
  %v1564 = vadd.f32 0.0, %v1563
  %1565 = vmatmul.bf16.gmra.mxu0 %v1074
  %v1566 = vpop.f32.mrf.mxu0
  %v1567 = vadd.f32 0.0, %v1566
  %v1568 = vpop.f32.mrf.mxu0
  %v1569 = vadd.f32 0.0, %v1568
  %1570 = vmatmul.bf16.gmra.mxu0 %v1077
  %v1571 = vpop.f32.mrf.mxu0
  %v1572 = vadd.f32 0.0, %v1571
  %v1573 = vpop.f32.mrf.mxu0
  %v1574 = vadd.f32 0.0, %v1573
  %1575 = vmatmul.bf16.gmra.mxu0 %v1080
  %v1576 = vpop.f32.mrf.mxu0
  %v1577 = vadd.f32 0.0, %v1576
  %v1578 = vpop.f32.mrf.mxu0
  %v1579 = vadd.f32 0.0, %v1578
  %1580 = vmatmul.bf16.gmra.mxu0 %v1083
  %v1581 = vpop.f32.mrf.mxu0
  %v1582 = vadd.f32 0.0, %v1581
  %v1583 = vpop.f32.mrf.mxu0
  %v1584 = vadd.f32 0.0, %v1583
  %1585 = vmatmul.bf16.gmra.mxu0 %v1086
  %v1586 = vpop.f32.mrf.mxu0
  %v1587 = vadd.f32 0.0, %v1586
  %v1588 = vpop.f32.mrf.mxu0
  %v1589 = vadd.f32 0.0, %v1588
  %1590 = vmatmul.bf16.gmra.mxu0 %v1089
  %v1591 = vpop.f32.mrf.mxu0
  %v1592 = vadd.f32 0.0, %v1591
  %v1593 = vpop.f32.mrf.mxu0
  %v1594 = vadd.f32 0.0, %v1593
  %1595 = vmatmul.bf16.gmra.mxu0 %v1092
  %v1596 = vpop.f32.mrf.mxu0
  %v1597 = vadd.f32 0.0, %v1596
  %v1598 = vpop.f32.mrf.mxu0
  %v1599 = vadd.f32 0.0, %v1598
  %1600 = vmatmul.bf16.gmra.mxu0 %v1095
  %v1601 = vpop.f32.mrf.mxu0
  %v1602 = vadd.f32 0.0, %v1601
  %v1603 = vpop.f32.mrf.mxu0
  %v1604 = vadd.f32 0.0, %v1603
  %1605 = vmatmul.bf16.gmra.mxu0 %v1098
  %v1606 = vpop.f32.mrf.mxu0
  %v1607 = vadd.f32 0.0, %v1606
  %v1608 = vpop.f32.mrf.mxu0
  %v1609 = vadd.f32 0.0, %v1608
  %1610 = vmatmul.bf16.gmra.mxu0 %v1101
  %v1611 = vpop.f32.mrf.mxu0
  %v1612 = vadd.f32 0.0, %v1611
  %v1613 = vpop.f32.mrf.mxu0
  %v1614 = vadd.f32 0.0, %v1613
  %1615 = vmatmul.bf16.gmra.mxu0 %v1104
  %v1616 = vpop.f32.mrf.mxu0
  %v1617 = vadd.f32 0.0, %v1616
  %v1618 = vpop.f32.mrf.mxu0
  %v1619 = vadd.f32 0.0, %v1618
  %1620 = vmatmul.bf16.gmra.mxu0 %v1107
  %v1621 = vpop.f32.mrf.mxu0
  %v1622 = vadd.f32 0.0, %v1621
  %v1623 = vpop.f32.mrf.mxu0
  %v1624 = vadd.f32 0.0, %v1623
  %1625 = vmatmul.bf16.gmra.mxu0 %v1110
  %v1626 = vpop.f32.mrf.mxu0
  %v1627 = vadd.f32 0.0, %v1626
  %v1628 = vpop.f32.mrf.mxu0
  %v1629 = vadd.f32 0.0, %v1628
  %1630 = vmatmul.bf16.gmra.mxu0 %v1113
  %v1631 = vpop.f32.mrf.mxu0
  %v1632 = vadd.f32 0.0, %v1631
  %v1633 = vpop.f32.mrf.mxu0
  %v1634 = vadd.f32 0.0, %v1633
  %1635 = vmatmul.bf16.gmra.mxu0 %v1116
  %v1636 = vpop.f32.mrf.mxu0
  %v1637 = vadd.f32 0.0, %v1636
  %v1638 = vpop.f32.mrf.mxu0
  %v1639 = vadd.f32 0.0, %v1638
  %1640 = vmatmul.bf16.gmra.mxu0 %v1119
  %v1641 = vpop.f32.mrf.mxu0
  %v1642 = vadd.f32 0.0, %v1641
  %v1643 = vpop.f32.mrf.mxu0
  %v1644 = vadd.f32 0.0, %v1643
  %1645 = vmatmul.bf16.gmra.mxu0 %v1122
  %v1646 = vpop.f32.mrf.mxu0
  %v1647 = vadd.f32 0.0, %v1646
  %v1648 = vpop.f32.mrf.mxu0
  %v1649 = vadd.f32 0.0, %v1648
  %1650 = vmatmul.bf16.gmra.mxu0 %v1125
  %v1651 = vpop.f32.mrf.mxu0
  %v1652 = vadd.f32 0.0, %v1651
  %v1653 = vpop.f32.mrf.mxu0
  %v1654 = vadd.f32 0.0, %v1653
  %1655 = vmatmul.bf16.gmra.mxu0 %v1128
  %v1656 = vpop.f32.mrf.mxu0
  %v1657 = vadd.f32 0.0, %v1656
  %v1658 = vpop.f32.mrf.mxu0
  %v1659 = vadd.f32 0.0, %v1658
  %1660 = vmatmul.bf16.gmra.mxu0 %v1131
  %v1661 = vpop.f32.mrf.mxu0
  %v1662 = vadd.f32 0.0, %v1661
  %v1663 = vpop.f32.mrf.mxu0
  %v1664 = vadd.f32 0.0, %v1663
  %1665 = vmatmul.bf16.gmra.mxu0 %v1134
  %v1666 = vpop.f32.mrf.mxu0
  %v1667 = vadd.f32 0.0, %v1666
  %v1668 = vpop.f32.mrf.mxu0
  %v1669 = vadd.f32 0.0, %v1668
  %1670 = vmatmul.bf16.gmra.mxu0 %v1137
  %v1671 = vpop.f32.mrf.mxu0
  %v1672 = vadd.f32 0.0, %v1671
  %v1673 = vpop.f32.mrf.mxu0
  %v1674 = vadd.f32 0.0, %v1673
  %1675 = vmatmul.bf16.gmra.mxu0 %v1140
  %v1676 = vpop.f32.mrf.mxu0
  %v1677 = vadd.f32 0.0, %v1676
  %v1678 = vpop.f32.mrf.mxu0
  %v1679 = vadd.f32 0.0, %v1678
  %1680 = vmatmul.bf16.gmra.mxu0 %v1143
  %v1681 = vpop.f32.mrf.mxu0
  %v1682 = vadd.f32 0.0, %v1681
  %v1683 = vpop.f32.mrf.mxu0
  %v1684 = vadd.f32 0.0, %v1683
  %1685 = vmatmul.bf16.gmra.mxu0 %v1146
  %v1686 = vpop.f32.mrf.mxu0
  %v1687 = vadd.f32 0.0, %v1686
  %v1688 = vpop.f32.mrf.mxu0
  %v1689 = vadd.f32 0.0, %v1688
  %1690 = vmatmul.bf16.gmra.mxu0 %v1149
  %v1691 = vpop.f32.mrf.mxu0
  %v1692 = vadd.f32 0.0, %v1691
  %v1693 = vpop.f32.mrf.mxu0
  %v1694 = vadd.f32 0.0, %v1693
  %1695 = vmatmul.bf16.gmra.mxu0 %v1152
  %v1696 = vpop.f32.mrf.mxu0
  %v1697 = vadd.f32 0.0, %v1696
  %v1698 = vpop.f32.mrf.mxu0
  %v1699 = vadd.f32 0.0, %v1698
  %1700 = vmatmul.bf16.gmra.mxu0 %v1155
  %v1701 = vpop.f32.mrf.mxu0
  %v1702 = vadd.f32 0.0, %v1701
  %v1703 = vpop.f32.mrf.mxu0
  %v1704 = vadd.f32 0.0, %v1703
  %1705 = vmatmul.bf16.gmra.mxu0 %v1158
  %v1706 = vpop.f32.mrf.mxu0
  %v1707 = vadd.f32 0.0, %v1706
  %v1708 = vpop.f32.mrf.mxu0
  %v1709 = vadd.f32 0.0, %v1708
  %1710 = vmatmul.bf16.gmra.mxu0 %v1161
  %v1711 = vpop.f32.mrf.mxu0
  %v1712 = vadd.f32 0.0, %v1711
  %v1713 = vpop.f32.mrf.mxu0
  %v1714 = vadd.f32 0.0, %v1713
  %1715 = vmatmul.bf16.gmra.mxu0 %v1164
  %v1716 = vpop.f32.mrf.mxu0
  %v1717 = vadd.f32 0.0, %v1716
  %v1718 = vpop.f32.mrf.mxu0
  %v1719 = vadd.f32 0.0, %v1718
  %1720 = vmatmul.bf16.gmra.mxu0 %v1167
  %v1721 = vpop.f32.mrf.mxu0
  %v1722 = vadd.f32 0.0, %v1721
  %v1723 = vpop.f32.mrf.mxu0
  %v1724 = vadd.f32 0.0, %v1723
  %1725 = vmatmul.bf16.gmra.mxu0 %v1170
  %v1726 = vpop.f32.mrf.mxu0
  %v1727 = vadd.f32 0.0, %v1726
  %v1728 = vpop.f32.mrf.mxu0
  %v1729 = vadd.f32 0.0, %v1728
  %1730 = vmatmul.bf16.gmra.mxu0 %v1173
  %v1731 = vpop.f32.mrf.mxu0
  %v1732 = vadd.f32 0.0, %v1731
  %v1733 = vpop.f32.mrf.mxu0
  %v1734 = vadd.f32 0.0, %v1733
  %1735 = vmatmul.bf16.gmra.mxu0 %v1176
  %v1736 = vpop.f32.mrf.mxu0
  %v1737 = vadd.f32 0.0, %v1736
  %v1738 = vpop.f32.mrf.mxu0
  %v1739 = vadd.f32 0.0, %v1738
  %1740 = vmatmul.bf16.gmra.mxu0 %v1179
  %v1741 = vpop.f32.mrf.mxu0
  %v1742 = vadd.f32 0.0, %v1741
  %v1743 = vpop.f32.mrf.mxu0
  %v1744 = vadd.f32 0.0, %v1743
  %1745 = vmatmul.bf16.gmra.mxu0 %v1182
  %v1746 = vpop.f32.mrf.mxu0
  %v1747 = vadd.f32 0.0, %v1746
  %v1748 = vpop.f32.mrf.mxu0
  %v1749 = vadd.f32 0.0, %v1748
  %1750 = vmatmul.bf16.gmra.mxu0 %v1185
  %v1751 = vpop.f32.mrf.mxu0
  %v1752 = vadd.f32 0.0, %v1751
  %v1753 = vpop.f32.mrf.mxu0
  %v1754 = vadd.f32 0.0, %v1753
  %1755 = vmatmul.bf16.gmra.mxu0 %v1188
  %v1756 = vpop.f32.mrf.mxu0
  %v1757 = vadd.f32 0.0, %v1756
  %v1758 = vpop.f32.mrf.mxu0
  %v1759 = vadd.f32 0.0, %v1758
  %1760 = vmatmul.bf16.gmra.mxu0 %v1191
  %v1761 = vpop.f32.mrf.mxu0
  %v1762 = vadd.f32 0.0, %v1761
  %v1763 = vpop.f32.mrf.mxu0
  %v1764 = vadd.f32 0.0, %v1763
  %1765 = vmatmul.bf16.gmra.mxu0 %v1194
  %v1766 = vpop.f32.mrf.mxu0
  %v1767 = vadd.f32 0.0, %v1766
  %v1768 = vpop.f32.mrf.mxu0
  %v1769 = vadd.f32 0.0, %v1768
  %1770 = vmatmul.bf16.gmra.mxu0 %v1197
  %v1771 = vpop.f32.mrf.mxu0
  %v1772 = vadd.f32 0.0, %v1771
  %v1773 = vpop.f32.mrf.mxu0
  %v1774 = vadd.f32 0.0, %v1773
  %1775 = vmatmul.bf16.gmra.mxu0 %v1200
  %v1776 = vpop.f32.mrf.mxu0
  %v1777 = vadd.f32 0.0, %v1776
  %v1778 = vpop.f32.mrf.mxu0
  %v1779 = vadd.f32 0.0, %v1778
  %1780 = vmatmul.bf16.gmra.mxu0 %v1203
  %v1781 = vpop.f32.mrf.mxu0
  %v1782 = vadd.f32 0.0, %v1781
  %v1783 = vpop.f32.mrf.mxu0
  %v1784 = vadd.f32 0.0, %v1783
  %1785 = vmatmul.bf16.gmra.mxu0 %v1206
  %v1786 = vpop.f32.mrf.mxu0
  %v1787 = vadd.f32 0.0, %v1786
  %v1788 = vpop.f32.mrf.mxu0
  %v1789 = vadd.f32 0.0, %v1788
  %1790 = vmatmul.bf16.gmra.mxu0 %v1209
  %v1791 = vpop.f32.mrf.mxu0
  %v1792 = vadd.f32 0.0, %v1791
  %v1793 = vpop.f32.mrf.mxu0
  %v1794 = vadd.f32 0.0, %v1793
  %1795 = vmatmul.bf16.gmra.mxu0 %v1212
  %v1796 = vpop.f32.mrf.mxu0
  %v1797 = vadd.f32 0.0, %v1796
  %v1798 = vpop.f32.mrf.mxu0
  %v1799 = vadd.f32 0.0, %v1798
  %1800 = vmatmul.bf16.gmra.mxu0 %v1215
  %v1801 = vpop.f32.mrf.mxu0
  %v1802 = vadd.f32 0.0, %v1801
  %v1803 = vpop.f32.mrf.mxu0
  %v1804 = vadd.f32 0.0, %v1803
  %1805 = vmatmul.bf16.gmra.mxu0 %v1218
  %v1806 = vpop.f32.mrf.mxu0
  %v1807 = vadd.f32 0.0, %v1806
  %v1808 = vpop.f32.mrf.mxu0
  %v1809 = vadd.f32 0.0, %v1808
  %1810 = vmatmul.bf16.gmra.mxu0 %v1221
  %v1811 = vpop.f32.mrf.mxu0
  %v1812 = vadd.f32 0.0, %v1811
  %v1813 = vpop.f32.mrf.mxu0
  %v1814 = vadd.f32 0.0, %v1813
  %1815 = vmatmul.bf16.gmra.mxu0 %v1224
  %v1816 = vpop.f32.mrf.mxu0
  %v1817 = vadd.f32 0.0, %v1816
  %v1818 = vpop.f32.mrf.mxu0
  %v1819 = vadd.f32 0.0, %v1818
  %1820 = vmatmul.bf16.gmra.mxu0 %v1227
  %v1821 = vpop.f32.mrf.mxu0
  %v1822 = vadd.f32 0.0, %v1821
  %v1823 = vpop.f32.mrf.mxu0
  %v1824 = vadd.f32 0.0, %v1823
  %1825 = vmatmul.bf16.gmra.mxu0 %v1230
  %v1826 = vpop.f32.mrf.mxu0
  %v1827 = vadd.f32 0.0, %v1826
  %v1828 = vpop.f32.mrf.mxu0
  %v1829 = vadd.f32 0.0, %v1828
  %1830 = vmatmul.bf16.gmra.mxu0 %v1233
  %v1831 = vpop.f32.mrf.mxu0
  %v1832 = vadd.f32 0.0, %v1831
  %v1833 = vpop.f32.mrf.mxu0
  %v1834 = vadd.f32 0.0, %v1833
  %1835 = vmatmul.bf16.gmra.mxu0 %v1236
  %v1836 = vpop.f32.mrf.mxu0
  %v1837 = vadd.f32 0.0, %v1836
  %v1838 = vpop.f32.mrf.mxu0
  %v1839 = vadd.f32 0.0, %v1838
  %1840 = vmatmul.bf16.gmra.mxu0 %v1239
  %v1841 = vpop.f32.mrf.mxu0
  %v1842 = vadd.f32 0.0, %v1841
  %v1843 = vpop.f32.mrf.mxu0
  %v1844 = vadd.f32 0.0, %v1843
  %1845 = vmatmul.bf16.gmra.mxu0 %v1242
  %v1846 = vpop.f32.mrf.mxu0
  %v1847 = vadd.f32 0.0, %v1846
  %v1848 = vpop.f32.mrf.mxu0
  %v1849 = vadd.f32 0.0, %v1848
  %1850 = vmatmul.bf16.gmra.mxu0 %v1245
  %v1851 = vpop.f32.mrf.mxu0
  %v1852 = vadd.f32 0.0, %v1851
  %v1853 = vpop.f32.mrf.mxu0
  %v1854 = vadd.f32 0.0, %v1853
  %1855 = vmatmul.bf16.gmra.mxu0 %v1248
  %v1856 = vpop.f32.mrf.mxu0
  %v1857 = vadd.f32 0.0, %v1856
  %v1858 = vpop.f32.mrf.mxu0
  %v1859 = vadd.f32 0.0, %v1858
  %1860 = vmatmul.bf16.gmra.mxu0 %v1251
  %v1861 = vpop.f32.mrf.mxu0
  %v1862 = vadd.f32 0.0, %v1861
  %v1863 = vpop.f32.mrf.mxu0
  %v1864 = vadd.f32 0.0, %v1863
  %1865 = vmatmul.bf16.gmra.mxu0 %v1254
  %v1866 = vpop.f32.mrf.mxu0
  %v1867 = vadd.f32 0.0, %v1866
  %v1868 = vpop.f32.mrf.mxu0
  %v1869 = vadd.f32 0.0, %v1868
  %1870 = vmatmul.bf16.gmra.mxu0 %v1257
  %v1871 = vpop.f32.mrf.mxu0
  %v1872 = vadd.f32 0.0, %v1871
  %v1873 = vpop.f32.mrf.mxu0
  %v1874 = vadd.f32 0.0, %v1873
  %1875 = vmatmul.bf16.gmra.mxu0 %v1260
  %v1876 = vpop.f32.mrf.mxu0
  %v1877 = vadd.f32 0.0, %v1876
  %v1878 = vpop.f32.mrf.mxu0
  %v1879 = vadd.f32 0.0, %v1878
  %1880 = vmatmul.bf16.gmra.mxu0 %v1263
  %v1881 = vpop.f32.mrf.mxu0
  %v1882 = vadd.f32 0.0, %v1881
  %v1883 = vpop.f32.mrf.mxu0
  %v1884 = vadd.f32 0.0, %v1883
  %1885 = vmatmul.bf16.gmra.mxu0 %v1266
  %v1886 = vpop.f32.mrf.mxu0
  %v1887 = vadd.f32 0.0, %v1886
  %v1888 = vpop.f32.mrf.mxu0
  %v1889 = vadd.f32 0.0, %v1888
  %1890 = vmatmul.bf16.gmra.mxu0 %v1269
  %v1891 = vpop.f32.mrf.mxu0
  %v1892 = vadd.f32 0.0, %v1891
  %v1893 = vpop.f32.mrf.mxu0
  %v1894 = vadd.f32 0.0, %v1893
  %1895 = vmatmul.bf16.gmra.mxu0 %v1272
  %v1896 = vpop.f32.mrf.mxu0
  %v1897 = vadd.f32 0.0, %v1896
  %v1898 = vpop.f32.mrf.mxu0
  %v1899 = vadd.f32 0.0, %v1898
  %1900 = vmatmul.bf16.gmra.mxu0 %v1275
  %v1901 = vpop.f32.mrf.mxu0
  %v1902 = vadd.f32 0.0, %v1901
  %v1903 = vpop.f32.mrf.mxu0
  %v1904 = vadd.f32 0.0, %v1903
  %1905 = vmatmul.bf16.gmra.mxu0 %v1278
  %v1906 = vpop.f32.mrf.mxu0
  %v1907 = vadd.f32 0.0, %v1906
  %v1908 = vpop.f32.mrf.mxu0
  %v1909 = vadd.f32 0.0, %v1908
  %1910 = vmatmul.bf16.gmra.mxu0 %v1281
  %v1911 = vpop.f32.mrf.mxu0
  %v1912 = vadd.f32 0.0, %v1911
  %v1913 = vpop.f32.mrf.mxu0
  %v1914 = vadd.f32 0.0, %v1913
  %1915 = vmatmul.bf16.gmra.mxu0 %v1284
  %v1916 = vpop.f32.mrf.mxu0
  %v1917 = vadd.f32 0.0, %v1916
  %v1918 = vpop.f32.mrf.mxu0
  %v1919 = vadd.f32 0.0, %v1918
  %1920 = vmatmul.bf16.gmra.mxu0 %v1287
  %v1921 = vpop.f32.mrf.mxu0
  %v1922 = vadd.f32 0.0, %v1921
  %v1923 = vpop.f32.mrf.mxu0
  %v1924 = vadd.f32 0.0, %v1923
  %1925 = vmatmul.bf16.gmra.mxu0 %v1290
  %v1926 = vpop.f32.mrf.mxu0
  %v1927 = vadd.f32 0.0, %v1926
  %v1928 = vpop.f32.mrf.mxu0
  %v1929 = vadd.f32 0.0, %v1928
  %1930 = vmatmul.bf16.gmra.mxu0 %v1293
  %v1931 = vpop.f32.mrf.mxu0
  %v1932 = vadd.f32 0.0, %v1931
  %v1933 = vpop.f32.mrf.mxu0
  %v1934 = vadd.f32 0.0, %v1933
  %1935 = vmatmul.bf16.gmra.mxu0 %v1296
  %v1936 = vpop.f32.mrf.mxu0
  %v1937 = vadd.f32 0.0, %v1936
  %v1938 = vpop.f32.mrf.mxu0
  %v1939 = vadd.f32 0.0, %v1938
  %1940 = vmatmul.bf16.gmra.mxu0 %v1299
  %v1941 = vpop.f32.mrf.mxu0
  %v1942 = vadd.f32 0.0, %v1941
  %v1943 = vpop.f32.mrf.mxu0
  %v1944 = vadd.f32 0.0, %v1943
  %1945 = vmatmul.bf16.gmra.mxu0 %v1302
  %v1946 = vpop.f32.mrf.mxu0
  %v1947 = vadd.f32 0.0, %v1946
  %v1948 = vpop.f32.mrf.mxu0
  %v1949 = vadd.f32 0.0, %v1948
  %1950 = vmatmul.bf16.gmra.mxu0 %v1305
  %v1951 = vpop.f32.mrf.mxu0
  %v1952 = vadd.f32 0.0, %v1951
  %v1953 = vpop.f32.mrf.mxu0
  %v1954 = vadd.f32 0.0, %v1953
  %1955 = vdwg.mxu0
  %vm1956 = vcmask 261120
  %v1957 = vsel %vm1956, %v1317, 0.0
  %v1958 = vsel %vm1956, %v1319, 0.0
  %v1959 = vadd.f32 %v1957, %v1958
  %v1960 = vsel %vm1956, %v1322, 0.0
  %v1961 = vadd.f32 %v1959, %v1960
  %v1962 = vsel %vm1956, %v1324, 0.0
  %v1963 = vadd.f32 %v1961, %v1962
  %v1964 = vsel %vm1956, %v1327, 0.0
  %v1965 = vadd.f32 %v1963, %v1964
  %v1966 = vsel %vm1956, %v1329, 0.0
  %v1967 = vadd.f32 %v1965, %v1966
  %v1968 = vsel %vm1956, %v1332, 0.0
  %v1969 = vadd.f32 %v1967, %v1968
  %v1970 = vsel %vm1956, %v1334, 0.0
  %v1971 = vadd.f32 %v1969, %v1970
  %v1972 = vsel %vm1956, %v1337, 0.0
  %v1973 = vadd.f32 %v1971, %v1972
  %v1974 = vsel %vm1956, %v1339, 0.0
  %v1975 = vadd.f32 %v1973, %v1974
  %v1976 = vsel %vm1956, %v1342, 0.0
  %v1977 = vadd.f32 %v1975, %v1976
  %v1978 = vsel %vm1956, %v1344, 0.0
  %v1979 = vadd.f32 %v1977, %v1978
  %v1980 = vsel %vm1956, %v1347, 0.0
  %v1981 = vadd.f32 %v1979, %v1980
  %v1982 = vsel %vm1956, %v1349, 0.0
  %v1983 = vadd.f32 %v1981, %v1982
  %v1984 = vsel %vm1956, %v1352, 0.0
  %v1985 = vadd.f32 %v1983, %v1984
  %v1986 = vsel %vm1956, %v1354, 0.0
  %v1987 = vadd.f32 %v1985, %v1986
  %v1988 = vsel %vm1956, %v1357, 0.0
  %v1989 = vadd.f32 %v1987, %v1988
  %v1990 = vsel %vm1956, %v1359, 0.0
  %v1991 = vadd.f32 %v1989, %v1990
  %v1992 = vsel %vm1956, %v1362, 0.0
  %v1993 = vadd.f32 %v1991, %v1992
  %v1994 = vsel %vm1956, %v1364, 0.0
  %v1995 = vadd.f32 %v1993, %v1994
  %v1996 = vsel %vm1956, %v1367, 0.0
  %v1997 = vadd.f32 %v1995, %v1996
  %v1998 = vsel %vm1956, %v1369, 0.0
  %v1999 = vadd.f32 %v1997, %v1998
  %v2000 = vsel %vm1956, %v1372, 0.0
  %v2001 = vadd.f32 %v1999, %v2000
  %v2002 = vsel %vm1956, %v1374, 0.0
  %v2003 = vadd.f32 %v2001, %v2002
  %v2004 = vsel %vm1956, %v1377, 0.0
  %v2005 = vadd.f32 %v2003, %v2004
  %v2006 = vsel %vm1956, %v1379, 0.0
  %v2007 = vadd.f32 %v2005, %v2006
  %v2008 = vsel %vm1956, %v1382, 0.0
  %v2009 = vadd.f32 %v2007, %v2008
  %v2010 = vsel %vm1956, %v1384, 0.0
  %v2011 = vadd.f32 %v2009, %v2010
  %v2012 = vsel %vm1956, %v1387, 0.0
  %v2013 = vadd.f32 %v2011, %v2012
  %v2014 = vsel %vm1956, %v1389, 0.0
  %v2015 = vadd.f32 %v2013, %v2014
  %v2016 = vsel %vm1956, %v1392, 0.0
  %v2017 = vadd.f32 %v2015, %v2016
  %v2018 = vsel %vm1956, %v1394, 0.0
  %v2019 = vadd.f32 %v2017, %v2018
  %v2020 = vsel %vm1956, %v1397, 0.0
  %v2021 = vadd.f32 %v2019, %v2020
  %v2022 = vsel %vm1956, %v1399, 0.0
  %v2023 = vadd.f32 %v2021, %v2022
  %v2024 = vsel %vm1956, %v1402, 0.0
  %v2025 = vadd.f32 %v2023, %v2024
  %v2026 = vsel %vm1956, %v1404, 0.0
  %v2027 = vadd.f32 %v2025, %v2026
  %v2028 = vsel %vm1956, %v1407, 0.0
  %v2029 = vadd.f32 %v2027, %v2028
  %v2030 = vsel %vm1956, %v1409, 0.0
  %v2031 = vadd.f32 %v2029, %v2030
  %v2032 = vsel %vm1956, %v1412, 0.0
  %v2033 = vadd.f32 %v2031, %v2032
  %v2034 = vsel %vm1956, %v1414, 0.0
  %v2035 = vadd.f32 %v2033, %v2034
  %v2036 = vsel %vm1956, %v1417, 0.0
  %v2037 = vadd.f32 %v2035, %v2036
  %v2038 = vsel %vm1956, %v1419, 0.0
  %v2039 = vadd.f32 %v2037, %v2038
  %v2040 = vsel %vm1956, %v1422, 0.0
  %v2041 = vadd.f32 %v2039, %v2040
  %v2042 = vsel %vm1956, %v1424, 0.0
  %v2043 = vadd.f32 %v2041, %v2042
  %v2044 = vsel %vm1956, %v1427, 0.0
  %v2045 = vadd.f32 %v2043, %v2044
  %v2046 = vsel %vm1956, %v1429, 0.0
  %v2047 = vadd.f32 %v2045, %v2046
  %v2048 = vsel %vm1956, %v1432, 0.0
  %v2049 = vadd.f32 %v2047, %v2048
  %v2050 = vsel %vm1956, %v1434, 0.0
  %v2051 = vadd.f32 %v2049, %v2050
  %v2052 = vsel %vm1956, %v1437, 0.0
  %v2053 = vadd.f32 %v2051, %v2052
  %v2054 = vsel %vm1956, %v1439, 0.0
  %v2055 = vadd.f32 %v2053, %v2054
  %v2056 = vsel %vm1956, %v1442, 0.0
  %v2057 = vadd.f32 %v2055, %v2056
  %v2058 = vsel %vm1956, %v1444, 0.0
  %v2059 = vadd.f32 %v2057, %v2058
  %v2060 = vsel %vm1956, %v1447, 0.0
  %v2061 = vadd.f32 %v2059, %v2060
  %v2062 = vsel %vm1956, %v1449, 0.0
  %v2063 = vadd.f32 %v2061, %v2062
  %v2064 = vsel %vm1956, %v1452, 0.0
  %v2065 = vadd.f32 %v2063, %v2064
  %v2066 = vsel %vm1956, %v1454, 0.0
  %v2067 = vadd.f32 %v2065, %v2066
  %v2068 = vsel %vm1956, %v1457, 0.0
  %v2069 = vadd.f32 %v2067, %v2068
  %v2070 = vsel %vm1956, %v1459, 0.0
  %v2071 = vadd.f32 %v2069, %v2070
  %v2072 = vsel %vm1956, %v1462, 0.0
  %v2073 = vadd.f32 %v2071, %v2072
  %v2074 = vsel %vm1956, %v1464, 0.0
  %v2075 = vadd.f32 %v2073, %v2074
  %v2076 = vsel %vm1956, %v1467, 0.0
  %v2077 = vadd.f32 %v2075, %v2076
  %v2078 = vsel %vm1956, %v1469, 0.0
  %v2079 = vadd.f32 %v2077, %v2078
  %v2080 = vsel %vm1956, %v1472, 0.0
  %v2081 = vadd.f32 %v2079, %v2080
  %v2082 = vsel %vm1956, %v1474, 0.0
  %v2083 = vadd.f32 %v2081, %v2082
  %v2084 = vsel %vm1956, %v1477, 0.0
  %v2085 = vadd.f32 %v2083, %v2084
  %v2086 = vsel %vm1956, %v1479, 0.0
  %v2087 = vadd.f32 %v2085, %v2086
  %v2088 = vsel %vm1956, %v1482, 0.0
  %v2089 = vadd.f32 %v2087, %v2088
  %v2090 = vsel %vm1956, %v1484, 0.0
  %v2091 = vadd.f32 %v2089, %v2090
  %v2092 = vsel %vm1956, %v1487, 0.0
  %v2093 = vadd.f32 %v2091, %v2092
  %v2094 = vsel %vm1956, %v1489, 0.0
  %v2095 = vadd.f32 %v2093, %v2094
  %v2096 = vsel %vm1956, %v1492, 0.0
  %v2097 = vadd.f32 %v2095, %v2096
  %v2098 = vsel %vm1956, %v1494, 0.0
  %v2099 = vadd.f32 %v2097, %v2098
  %v2100 = vsel %vm1956, %v1497, 0.0
  %v2101 = vadd.f32 %v2099, %v2100
  %v2102 = vsel %vm1956, %v1499, 0.0
  %v2103 = vadd.f32 %v2101, %v2102
  %v2104 = vsel %vm1956, %v1502, 0.0
  %v2105 = vadd.f32 %v2103, %v2104
  %v2106 = vsel %vm1956, %v1504, 0.0
  %v2107 = vadd.f32 %v2105, %v2106
  %v2108 = vsel %vm1956, %v1507, 0.0
  %v2109 = vadd.f32 %v2107, %v2108
  %v2110 = vsel %vm1956, %v1509, 0.0
  %v2111 = vadd.f32 %v2109, %v2110
  %v2112 = vsel %vm1956, %v1512, 0.0
  %v2113 = vadd.f32 %v2111, %v2112
  %v2114 = vsel %vm1956, %v1514, 0.0
  %v2115 = vadd.f32 %v2113, %v2114
  %v2116 = vsel %vm1956, %v1517, 0.0
  %v2117 = vadd.f32 %v2115, %v2116
  %v2118 = vsel %vm1956, %v1519, 0.0
  %v2119 = vadd.f32 %v2117, %v2118
  %v2120 = vsel %vm1956, %v1522, 0.0
  %v2121 = vadd.f32 %v2119, %v2120
  %v2122 = vsel %vm1956, %v1524, 0.0
  %v2123 = vadd.f32 %v2121, %v2122
  %v2124 = vsel %vm1956, %v1527, 0.0
  %v2125 = vadd.f32 %v2123, %v2124
  %v2126 = vsel %vm1956, %v1529, 0.0
  %v2127 = vadd.f32 %v2125, %v2126
  %v2128 = vsel %vm1956, %v1532, 0.0
  %v2129 = vadd.f32 %v2127, %v2128
  %v2130 = vsel %vm1956, %v1534, 0.0
  %v2131 = vadd.f32 %v2129, %v2130
  %v2132 = vsel %vm1956, %v1537, 0.0
  %v2133 = vadd.f32 %v2131, %v2132
  %v2134 = vsel %vm1956, %v1539, 0.0
  %v2135 = vadd.f32 %v2133, %v2134
  %v2136 = vsel %vm1956, %v1542, 0.0
  %v2137 = vadd.f32 %v2135, %v2136
  %v2138 = vsel %vm1956, %v1544, 0.0
  %v2139 = vadd.f32 %v2137, %v2138
  %v2140 = vsel %vm1956, %v1547, 0.0
  %v2141 = vadd.f32 %v2139, %v2140
  %v2142 = vsel %vm1956, %v1549, 0.0
  %v2143 = vadd.f32 %v2141, %v2142
  %v2144 = vsel %vm1956, %v1552, 0.0
  %v2145 = vadd.f32 %v2143, %v2144
  %v2146 = vsel %vm1956, %v1554, 0.0
  %v2147 = vadd.f32 %v2145, %v2146
  %v2148 = vsel %vm1956, %v1557, 0.0
  %v2149 = vadd.f32 %v2147, %v2148
  %v2150 = vsel %vm1956, %v1559, 0.0
  %v2151 = vadd.f32 %v2149, %v2150
  %v2152 = vsel %vm1956, %v1562, 0.0
  %v2153 = vadd.f32 %v2151, %v2152
  %v2154 = vsel %vm1956, %v1564, 0.0
  %v2155 = vadd.f32 %v2153, %v2154
  %v2156 = vsel %vm1956, %v1567, 0.0
  %v2157 = vadd.f32 %v2155, %v2156
  %v2158 = vsel %vm1956, %v1569, 0.0
  %v2159 = vadd.f32 %v2157, %v2158
  %v2160 = vsel %vm1956, %v1572, 0.0
  %v2161 = vadd.f32 %v2159, %v2160
  %v2162 = vsel %vm1956, %v1574, 0.0
  %v2163 = vadd.f32 %v2161, %v2162
  %v2164 = vsel %vm1956, %v1577, 0.0
  %v2165 = vadd.f32 %v2163, %v2164
  %v2166 = vsel %vm1956, %v1579, 0.0
  %v2167 = vadd.f32 %v2165, %v2166
  %v2168 = vsel %vm1956, %v1582, 0.0
  %v2169 = vadd.f32 %v2167, %v2168
  %v2170 = vsel %vm1956, %v1584, 0.0
  %v2171 = vadd.f32 %v2169, %v2170
  %v2172 = vsel %vm1956, %v1587, 0.0
  %v2173 = vadd.f32 %v2171, %v2172
  %v2174 = vsel %vm1956, %v1589, 0.0
  %v2175 = vadd.f32 %v2173, %v2174
  %v2176 = vsel %vm1956, %v1592, 0.0
  %v2177 = vadd.f32 %v2175, %v2176
  %v2178 = vsel %vm1956, %v1594, 0.0
  %v2179 = vadd.f32 %v2177, %v2178
  %v2180 = vsel %vm1956, %v1597, 0.0
  %v2181 = vadd.f32 %v2179, %v2180
  %v2182 = vsel %vm1956, %v1599, 0.0
  %v2183 = vadd.f32 %v2181, %v2182
  %v2184 = vsel %vm1956, %v1602, 0.0
  %v2185 = vadd.f32 %v2183, %v2184
  %v2186 = vsel %vm1956, %v1604, 0.0
  %v2187 = vadd.f32 %v2185, %v2186
  %v2188 = vsel %vm1956, %v1607, 0.0
  %v2189 = vadd.f32 %v2187, %v2188
  %v2190 = vsel %vm1956, %v1609, 0.0
  %v2191 = vadd.f32 %v2189, %v2190
  %v2192 = vsel %vm1956, %v1612, 0.0
  %v2193 = vadd.f32 %v2191, %v2192
  %v2194 = vsel %vm1956, %v1614, 0.0
  %v2195 = vadd.f32 %v2193, %v2194
  %v2196 = vsel %vm1956, %v1617, 0.0
  %v2197 = vadd.f32 %v2195, %v2196
  %v2198 = vsel %vm1956, %v1619, 0.0
  %v2199 = vadd.f32 %v2197, %v2198
  %v2200 = vsel %vm1956, %v1622, 0.0
  %v2201 = vadd.f32 %v2199, %v2200
  %v2202 = vsel %vm1956, %v1624, 0.0
  %v2203 = vadd.f32 %v2201, %v2202
  %v2204 = vsel %vm1956, %v1627, 0.0
  %v2205 = vadd.f32 %v2203, %v2204
  %v2206 = vsel %vm1956, %v1629, 0.0
  %v2207 = vadd.f32 %v2205, %v2206
  %v2208 = vsel %vm1956, %v1632, 0.0
  %v2209 = vadd.f32 %v2207, %v2208
  %v2210 = vsel %vm1956, %v1634, 0.0
  %v2211 = vadd.f32 %v2209, %v2210
  %v2212 = vsel %vm1956, %v1637, 0.0
  %v2213 = vadd.f32 %v2211, %v2212
  %v2214 = vsel %vm1956, %v1639, 0.0
  %v2215 = vadd.f32 %v2213, %v2214
  %v2216 = vsel %vm1956, %v1642, 0.0
  %v2217 = vadd.f32 %v2215, %v2216
  %v2218 = vsel %vm1956, %v1644, 0.0
  %v2219 = vadd.f32 %v2217, %v2218
  %v2220 = vsel %vm1956, %v1647, 0.0
  %v2221 = vadd.f32 %v2219, %v2220
  %v2222 = vsel %vm1956, %v1649, 0.0
  %v2223 = vadd.f32 %v2221, %v2222
  %v2224 = vsel %vm1956, %v1652, 0.0
  %v2225 = vadd.f32 %v2223, %v2224
  %v2226 = vsel %vm1956, %v1654, 0.0
  %v2227 = vadd.f32 %v2225, %v2226
  %v2228 = vsel %vm1956, %v1657, 0.0
  %v2229 = vadd.f32 %v2227, %v2228
  %v2230 = vsel %vm1956, %v1659, 0.0
  %v2231 = vadd.f32 %v2229, %v2230
  %v2232 = vsel %vm1956, %v1662, 0.0
  %v2233 = vadd.f32 %v2231, %v2232
  %v2234 = vsel %vm1956, %v1664, 0.0
  %v2235 = vadd.f32 %v2233, %v2234
  %v2236 = vsel %vm1956, %v1667, 0.0
  %v2237 = vadd.f32 %v2235, %v2236
  %v2238 = vsel %vm1956, %v1669, 0.0
  %v2239 = vadd.f32 %v2237, %v2238
  %v2240 = vsel %vm1956, %v1672, 0.0
  %v2241 = vadd.f32 %v2239, %v2240
  %v2242 = vsel %vm1956, %v1674, 0.0
  %v2243 = vadd.f32 %v2241, %v2242
  %v2244 = vsel %vm1956, %v1677, 0.0
  %v2245 = vadd.f32 %v2243, %v2244
  %v2246 = vsel %vm1956, %v1679, 0.0
  %v2247 = vadd.f32 %v2245, %v2246
  %v2248 = vsel %vm1956, %v1682, 0.0
  %v2249 = vadd.f32 %v2247, %v2248
  %v2250 = vsel %vm1956, %v1684, 0.0
  %v2251 = vadd.f32 %v2249, %v2250
  %v2252 = vsel %vm1956, %v1687, 0.0
  %v2253 = vadd.f32 %v2251, %v2252
  %v2254 = vsel %vm1956, %v1689, 0.0
  %v2255 = vadd.f32 %v2253, %v2254
  %v2256 = vsel %vm1956, %v1692, 0.0
  %v2257 = vadd.f32 %v2255, %v2256
  %v2258 = vsel %vm1956, %v1694, 0.0
  %v2259 = vadd.f32 %v2257, %v2258
  %v2260 = vsel %vm1956, %v1697, 0.0
  %v2261 = vadd.f32 %v2259, %v2260
  %v2262 = vsel %vm1956, %v1699, 0.0
  %v2263 = vadd.f32 %v2261, %v2262
  %v2264 = vsel %vm1956, %v1702, 0.0
  %v2265 = vadd.f32 %v2263, %v2264
  %v2266 = vsel %vm1956, %v1704, 0.0
  %v2267 = vadd.f32 %v2265, %v2266
  %v2268 = vsel %vm1956, %v1707, 0.0
  %v2269 = vadd.f32 %v2267, %v2268
  %v2270 = vsel %vm1956, %v1709, 0.0
  %v2271 = vadd.f32 %v2269, %v2270
  %v2272 = vsel %vm1956, %v1712, 0.0
  %v2273 = vadd.f32 %v2271, %v2272
  %v2274 = vsel %vm1956, %v1714, 0.0
  %v2275 = vadd.f32 %v2273, %v2274
  %v2276 = vsel %vm1956, %v1717, 0.0
  %v2277 = vadd.f32 %v2275, %v2276
  %v2278 = vsel %vm1956, %v1719, 0.0
  %v2279 = vadd.f32 %v2277, %v2278
  %v2280 = vsel %vm1956, %v1722, 0.0
  %v2281 = vadd.f32 %v2279, %v2280
  %v2282 = vsel %vm1956, %v1724, 0.0
  %v2283 = vadd.f32 %v2281, %v2282
  %v2284 = vsel %vm1956, %v1727, 0.0
  %v2285 = vadd.f32 %v2283, %v2284
  %v2286 = vsel %vm1956, %v1729, 0.0
  %v2287 = vadd.f32 %v2285, %v2286
  %v2288 = vsel %vm1956, %v1732, 0.0
  %v2289 = vadd.f32 %v2287, %v2288
  %v2290 = vsel %vm1956, %v1734, 0.0
  %v2291 = vadd.f32 %v2289, %v2290
  %v2292 = vsel %vm1956, %v1737, 0.0
  %v2293 = vadd.f32 %v2291, %v2292
  %v2294 = vsel %vm1956, %v1739, 0.0
  %v2295 = vadd.f32 %v2293, %v2294
  %v2296 = vsel %vm1956, %v1742, 0.0
  %v2297 = vadd.f32 %v2295, %v2296
  %v2298 = vsel %vm1956, %v1744, 0.0
  %v2299 = vadd.f32 %v2297, %v2298
  %v2300 = vsel %vm1956, %v1747, 0.0
  %v2301 = vadd.f32 %v2299, %v2300
  %v2302 = vsel %vm1956, %v1749, 0.0
  %v2303 = vadd.f32 %v2301, %v2302
  %v2304 = vsel %vm1956, %v1752, 0.0
  %v2305 = vadd.f32 %v2303, %v2304
  %v2306 = vsel %vm1956, %v1754, 0.0
  %v2307 = vadd.f32 %v2305, %v2306
  %v2308 = vsel %vm1956, %v1757, 0.0
  %v2309 = vadd.f32 %v2307, %v2308
  %v2310 = vsel %vm1956, %v1759, 0.0
  %v2311 = vadd.f32 %v2309, %v2310
  %v2312 = vsel %vm1956, %v1762, 0.0
  %v2313 = vadd.f32 %v2311, %v2312
  %v2314 = vsel %vm1956, %v1764, 0.0
  %v2315 = vadd.f32 %v2313, %v2314
  %v2316 = vsel %vm1956, %v1767, 0.0
  %v2317 = vadd.f32 %v2315, %v2316
  %v2318 = vsel %vm1956, %v1769, 0.0
  %v2319 = vadd.f32 %v2317, %v2318
  %v2320 = vsel %vm1956, %v1772, 0.0
  %v2321 = vadd.f32 %v2319, %v2320
  %v2322 = vsel %vm1956, %v1774, 0.0
  %v2323 = vadd.f32 %v2321, %v2322
  %v2324 = vsel %vm1956, %v1777, 0.0
  %v2325 = vadd.f32 %v2323, %v2324
  %v2326 = vsel %vm1956, %v1779, 0.0
  %v2327 = vadd.f32 %v2325, %v2326
  %v2328 = vsel %vm1956, %v1782, 0.0
  %v2329 = vadd.f32 %v2327, %v2328
  %v2330 = vsel %vm1956, %v1784, 0.0
  %v2331 = vadd.f32 %v2329, %v2330
  %v2332 = vsel %vm1956, %v1787, 0.0
  %v2333 = vadd.f32 %v2331, %v2332
  %v2334 = vsel %vm1956, %v1789, 0.0
  %v2335 = vadd.f32 %v2333, %v2334
  %v2336 = vsel %vm1956, %v1792, 0.0
  %v2337 = vadd.f32 %v2335, %v2336
  %v2338 = vsel %vm1956, %v1794, 0.0
  %v2339 = vadd.f32 %v2337, %v2338
  %v2340 = vsel %vm1956, %v1797, 0.0
  %v2341 = vadd.f32 %v2339, %v2340
  %v2342 = vsel %vm1956, %v1799, 0.0
  %v2343 = vadd.f32 %v2341, %v2342
  %v2344 = vsel %vm1956, %v1802, 0.0
  %v2345 = vadd.f32 %v2343, %v2344
  %v2346 = vsel %vm1956, %v1804, 0.0
  %v2347 = vadd.f32 %v2345, %v2346
  %v2348 = vsel %vm1956, %v1807, 0.0
  %v2349 = vadd.f32 %v2347, %v2348
  %v2350 = vsel %vm1956, %v1809, 0.0
  %v2351 = vadd.f32 %v2349, %v2350
  %v2352 = vsel %vm1956, %v1812, 0.0
  %v2353 = vadd.f32 %v2351, %v2352
  %v2354 = vsel %vm1956, %v1814, 0.0
  %v2355 = vadd.f32 %v2353, %v2354
  %v2356 = vsel %vm1956, %v1817, 0.0
  %v2357 = vadd.f32 %v2355, %v2356
  %v2358 = vsel %vm1956, %v1819, 0.0
  %v2359 = vadd.f32 %v2357, %v2358
  %v2360 = vsel %vm1956, %v1822, 0.0
  %v2361 = vadd.f32 %v2359, %v2360
  %v2362 = vsel %vm1956, %v1824, 0.0
  %v2363 = vadd.f32 %v2361, %v2362
  %v2364 = vsel %vm1956, %v1827, 0.0
  %v2365 = vadd.f32 %v2363, %v2364
  %v2366 = vsel %vm1956, %v1829, 0.0
  %v2367 = vadd.f32 %v2365, %v2366
  %v2368 = vsel %vm1956, %v1832, 0.0
  %v2369 = vadd.f32 %v2367, %v2368
  %v2370 = vsel %vm1956, %v1834, 0.0
  %v2371 = vadd.f32 %v2369, %v2370
  %v2372 = vsel %vm1956, %v1837, 0.0
  %v2373 = vadd.f32 %v2371, %v2372
  %v2374 = vsel %vm1956, %v1839, 0.0
  %v2375 = vadd.f32 %v2373, %v2374
  %v2376 = vsel %vm1956, %v1842, 0.0
  %v2377 = vadd.f32 %v2375, %v2376
  %v2378 = vsel %vm1956, %v1844, 0.0
  %v2379 = vadd.f32 %v2377, %v2378
  %v2380 = vsel %vm1956, %v1847, 0.0
  %v2381 = vadd.f32 %v2379, %v2380
  %v2382 = vsel %vm1956, %v1849, 0.0
  %v2383 = vadd.f32 %v2381, %v2382
  %v2384 = vsel %vm1956, %v1852, 0.0
  %v2385 = vadd.f32 %v2383, %v2384
  %v2386 = vsel %vm1956, %v1854, 0.0
  %v2387 = vadd.f32 %v2385, %v2386
  %v2388 = vsel %vm1956, %v1857, 0.0
  %v2389 = vadd.f32 %v2387, %v2388
  %v2390 = vsel %vm1956, %v1859, 0.0
  %v2391 = vadd.f32 %v2389, %v2390
  %v2392 = vsel %vm1956, %v1862, 0.0
  %v2393 = vadd.f32 %v2391, %v2392
  %v2394 = vsel %vm1956, %v1864, 0.0
  %v2395 = vadd.f32 %v2393, %v2394
  %v2396 = vsel %vm1956, %v1867, 0.0
  %v2397 = vadd.f32 %v2395, %v2396
  %v2398 = vsel %vm1956, %v1869, 0.0
  %v2399 = vadd.f32 %v2397, %v2398
  %v2400 = vsel %vm1956, %v1872, 0.0
  %v2401 = vadd.f32 %v2399, %v2400
  %v2402 = vsel %vm1956, %v1874, 0.0
  %v2403 = vadd.f32 %v2401, %v2402
  %v2404 = vsel %vm1956, %v1877, 0.0
  %v2405 = vadd.f32 %v2403, %v2404
  %v2406 = vsel %vm1956, %v1879, 0.0
  %v2407 = vadd.f32 %v2405, %v2406
  %v2408 = vsel %vm1956, %v1882, 0.0
  %v2409 = vadd.f32 %v2407, %v2408
  %v2410 = vsel %vm1956, %v1884, 0.0
  %v2411 = vadd.f32 %v2409, %v2410
  %v2412 = vsel %vm1956, %v1887, 0.0
  %v2413 = vadd.f32 %v2411, %v2412
  %v2414 = vsel %vm1956, %v1889, 0.0
  %v2415 = vadd.f32 %v2413, %v2414
  %v2416 = vsel %vm1956, %v1892, 0.0
  %v2417 = vadd.f32 %v2415, %v2416
  %v2418 = vsel %vm1956, %v1894, 0.0
  %v2419 = vadd.f32 %v2417, %v2418
  %v2420 = vsel %vm1956, %v1897, 0.0
  %v2421 = vadd.f32 %v2419, %v2420
  %v2422 = vsel %vm1956, %v1899, 0.0
  %v2423 = vadd.f32 %v2421, %v2422
  %v2424 = vsel %vm1956, %v1902, 0.0
  %v2425 = vadd.f32 %v2423, %v2424
  %v2426 = vsel %vm1956, %v1904, 0.0
  %v2427 = vadd.f32 %v2425, %v2426
  %v2428 = vsel %vm1956, %v1907, 0.0
  %v2429 = vadd.f32 %v2427, %v2428
  %v2430 = vsel %vm1956, %v1909, 0.0
  %v2431 = vadd.f32 %v2429, %v2430
  %v2432 = vsel %vm1956, %v1912, 0.0
  %v2433 = vadd.f32 %v2431, %v2432
  %v2434 = vsel %vm1956, %v1914, 0.0
  %v2435 = vadd.f32 %v2433, %v2434
  %v2436 = vsel %vm1956, %v1917, 0.0
  %v2437 = vadd.f32 %v2435, %v2436
  %v2438 = vsel %vm1956, %v1919, 0.0
  %v2439 = vadd.f32 %v2437, %v2438
  %v2440 = vsel %vm1956, %v1922, 0.0
  %v2441 = vadd.f32 %v2439, %v2440
  %v2442 = vsel %vm1956, %v1924, 0.0
  %v2443 = vadd.f32 %v2441, %v2442
  %v2444 = vsel %vm1956, %v1927, 0.0
  %v2445 = vadd.f32 %v2443, %v2444
  %v2446 = vsel %vm1956, %v1929, 0.0
  %v2447 = vadd.f32 %v2445, %v2446
  %v2448 = vsel %vm1956, %v1932, 0.0
  %v2449 = vadd.f32 %v2447, %v2448
  %v2450 = vsel %vm1956, %v1934, 0.0
  %v2451 = vadd.f32 %v2449, %v2450
  %v2452 = vsel %vm1956, %v1937, 0.0
  %v2453 = vadd.f32 %v2451, %v2452
  %v2454 = vsel %vm1956, %v1939, 0.0
  %v2455 = vadd.f32 %v2453, %v2454
  %v2456 = vsel %vm1956, %v1942, 0.0
  %v2457 = vadd.f32 %v2455, %v2456
  %v2458 = vsel %vm1956, %v1944, 0.0
  %v2459 = vadd.f32 %v2457, %v2458
  %v2460 = vsel %vm1956, %v1947, 0.0
  %v2461 = vadd.f32 %v2459, %v2460
  %v2462 = vsel %vm1956, %v1949, 0.0
  %v2463 = vadd.f32 %v2461, %v2462
  %v2464 = vsel %vm1956, %v1952, 0.0
  %v2465 = vadd.f32 %v2463, %v2464
  %v2466 = vsel %vm1956, %v1954, 0.0
  %v2467 = vadd.f32 %v2465, %v2466
  %v2468 = vrot.slane %v2467, 4
  %v2469 = vadd.f32 %v2467, %v2468
  %v2470 = vrot.slane %v2469, 2
  %v2471 = vadd.f32 %v2469, %v2470
  %v2472 = vrot.slane %v2471, 1
  %v2473 = vadd.f32 %v2471, %v2472
  %v2474 = vmul.f32 %v2473, 0.00048828125
  %v2475 = vsub.f32 %v1317, %v2474
  %v2476 = vsub.f32 %v1319, %v2474
  %v2477 = vsub.f32 %v1322, %v2474
  %v2478 = vsub.f32 %v1324, %v2474
  %v2479 = vsub.f32 %v1327, %v2474
  %v2480 = vsub.f32 %v1329, %v2474
  %v2481 = vsub.f32 %v1332, %v2474
  %v2482 = vsub.f32 %v1334, %v2474
  %v2483 = vsub.f32 %v1337, %v2474
  %v2484 = vsub.f32 %v1339, %v2474
  %v2485 = vsub.f32 %v1342, %v2474
  %v2486 = vsub.f32 %v1344, %v2474
  %v2487 = vsub.f32 %v1347, %v2474
  %v2488 = vsub.f32 %v1349, %v2474
  %v2489 = vsub.f32 %v1352, %v2474
  %v2490 = vsub.f32 %v1354, %v2474
  %v2491 = vsub.f32 %v1357, %v2474
  %v2492 = vsub.f32 %v1359, %v2474
  %v2493 = vsub.f32 %v1362, %v2474
  %v2494 = vsub.f32 %v1364, %v2474
  %v2495 = vsub.f32 %v1367, %v2474
  %v2496 = vsub.f32 %v1369, %v2474
  %v2497 = vsub.f32 %v1372, %v2474
  %v2498 = vsub.f32 %v1374, %v2474
  %v2499 = vsub.f32 %v1377, %v2474
  %v2500 = vsub.f32 %v1379, %v2474
  %v2501 = vsub.f32 %v1382, %v2474
  %v2502 = vsub.f32 %v1384, %v2474
  %v2503 = vsub.f32 %v1387, %v2474
  %v2504 = vsub.f32 %v1389, %v2474
  %v2505 = vsub.f32 %v1392, %v2474
  %v2506 = vsub.f32 %v1394, %v2474
  %v2507 = vsub.f32 %v1397, %v2474
  %v2508 = vsub.f32 %v1399, %v2474
  %v2509 = vsub.f32 %v1402, %v2474
  %v2510 = vsub.f32 %v1404, %v2474
  %v2511 = vsub.f32 %v1407, %v2474
  %v2512 = vsub.f32 %v1409, %v2474
  %v2513 = vsub.f32 %v1412, %v2474
  %v2514 = vsub.f32 %v1414, %v2474
  %v2515 = vsub.f32 %v1417, %v2474
  %v2516 = vsub.f32 %v1419, %v2474
  %v2517 = vsub.f32 %v1422, %v2474
  %v2518 = vsub.f32 %v1424, %v2474
  %v2519 = vsub.f32 %v1427, %v2474
  %v2520 = vsub.f32 %v1429, %v2474
  %v2521 = vsub.f32 %v1432, %v2474
  %v2522 = vsub.f32 %v1434, %v2474
  %v2523 = vsub.f32 %v1437, %v2474
  %v2524 = vsub.f32 %v1439, %v2474
  %v2525 = vsub.f32 %v1442, %v2474
  %v2526 = vsub.f32 %v1444, %v2474
  %v2527 = vsub.f32 %v1447, %v2474
  %v2528 = vsub.f32 %v1449, %v2474
  %v2529 = vsub.f32 %v1452, %v2474
  %v2530 = vsub.f32 %v1454, %v2474
  %v2531 = vsub.f32 %v1457, %v2474
  %v2532 = vsub.f32 %v1459, %v2474
  %v2533 = vsub.f32 %v1462, %v2474
  %v2534 = vsub.f32 %v1464, %v2474
  %v2535 = vsub.f32 %v1467, %v2474
  %v2536 = vsub.f32 %v1469, %v2474
  %v2537 = vsub.f32 %v1472, %v2474
  %v2538 = vsub.f32 %v1474, %v2474
  %v2539 = vsub.f32 %v1477, %v2474
  %v2540 = vsub.f32 %v1479, %v2474
  %v2541 = vsub.f32 %v1482, %v2474
  %v2542 = vsub.f32 %v1484, %v2474
  %v2543 = vsub.f32 %v1487, %v2474
  %v2544 = vsub.f32 %v1489, %v2474
  %v2545 = vsub.f32 %v1492, %v2474
  %v2546 = vsub.f32 %v1494, %v2474
  %v2547 = vsub.f32 %v1497, %v2474
  %v2548 = vsub.f32 %v1499, %v2474
  %v2549 = vsub.f32 %v1502, %v2474
  %v2550 = vsub.f32 %v1504, %v2474
  %v2551 = vsub.f32 %v1507, %v2474
  %v2552 = vsub.f32 %v1509, %v2474
  %v2553 = vsub.f32 %v1512, %v2474
  %v2554 = vsub.f32 %v1514, %v2474
  %v2555 = vsub.f32 %v1517, %v2474
  %v2556 = vsub.f32 %v1519, %v2474
  %v2557 = vsub.f32 %v1522, %v2474
  %v2558 = vsub.f32 %v1524, %v2474
  %v2559 = vsub.f32 %v1527, %v2474
  %v2560 = vsub.f32 %v1529, %v2474
  %v2561 = vsub.f32 %v1532, %v2474
  %v2562 = vsub.f32 %v1534, %v2474
  %v2563 = vsub.f32 %v1537, %v2474
  %v2564 = vsub.f32 %v1539, %v2474
  %v2565 = vsub.f32 %v1542, %v2474
  %v2566 = vsub.f32 %v1544, %v2474
  %v2567 = vsub.f32 %v1547, %v2474
  %v2568 = vsub.f32 %v1549, %v2474
  %v2569 = vsub.f32 %v1552, %v2474
  %v2570 = vsub.f32 %v1554, %v2474
  %v2571 = vsub.f32 %v1557, %v2474
  %v2572 = vsub.f32 %v1559, %v2474
  %v2573 = vsub.f32 %v1562, %v2474
  %v2574 = vsub.f32 %v1564, %v2474
  %v2575 = vsub.f32 %v1567, %v2474
  %v2576 = vsub.f32 %v1569, %v2474
  %v2577 = vsub.f32 %v1572, %v2474
  %v2578 = vsub.f32 %v1574, %v2474
  %v2579 = vsub.f32 %v1577, %v2474
  %v2580 = vsub.f32 %v1579, %v2474
  %v2581 = vsub.f32 %v1582, %v2474
  %v2582 = vsub.f32 %v1584, %v2474
  %v2583 = vsub.f32 %v1587, %v2474
  %v2584 = vsub.f32 %v1589, %v2474
  %v2585 = vsub.f32 %v1592, %v2474
  %v2586 = vsub.f32 %v1594, %v2474
  %v2587 = vsub.f32 %v1597, %v2474
  %v2588 = vsub.f32 %v1599, %v2474
  %v2589 = vsub.f32 %v1602, %v2474
  %v2590 = vsub.f32 %v1604, %v2474
  %v2591 = vsub.f32 %v1607, %v2474
  %v2592 = vsub.f32 %v1609, %v2474
  %v2593 = vsub.f32 %v1612, %v2474
  %v2594 = vsub.f32 %v1614, %v2474
  %v2595 = vsub.f32 %v1617, %v2474
  %v2596 = vsub.f32 %v1619, %v2474
  %v2597 = vsub.f32 %v1622, %v2474
  %v2598 = vsub.f32 %v1624, %v2474
  %v2599 = vsub.f32 %v1627, %v2474
  %v2600 = vsub.f32 %v1629, %v2474
  %v2601 = vsub.f32 %v1632, %v2474
  %v2602 = vsub.f32 %v1634, %v2474
  %v2603 = vsub.f32 %v1637, %v2474
  %v2604 = vsub.f32 %v1639, %v2474
  %v2605 = vsub.f32 %v1642, %v2474
  %v2606 = vsub.f32 %v1644, %v2474
  %v2607 = vsub.f32 %v1647, %v2474
  %v2608 = vsub.f32 %v1649, %v2474
  %v2609 = vsub.f32 %v1652, %v2474
  %v2610 = vsub.f32 %v1654, %v2474
  %v2611 = vsub.f32 %v1657, %v2474
  %v2612 = vsub.f32 %v1659, %v2474
  %v2613 = vsub.f32 %v1662, %v2474
  %v2614 = vsub.f32 %v1664, %v2474
  %v2615 = vsub.f32 %v1667, %v2474
  %v2616 = vsub.f32 %v1669, %v2474
  %v2617 = vsub.f32 %v1672, %v2474
  %v2618 = vsub.f32 %v1674, %v2474
  %v2619 = vsub.f32 %v1677, %v2474
  %v2620 = vsub.f32 %v1679, %v2474
  %v2621 = vsub.f32 %v1682, %v2474
  %v2622 = vsub.f32 %v1684, %v2474
  %v2623 = vsub.f32 %v1687, %v2474
  %v2624 = vsub.f32 %v1689, %v2474
  %v2625 = vsub.f32 %v1692, %v2474
  %v2626 = vsub.f32 %v1694, %v2474
  %v2627 = vsub.f32 %v1697, %v2474
  %v2628 = vsub.f32 %v1699, %v2474
  %v2629 = vsub.f32 %v1702, %v2474
  %v2630 = vsub.f32 %v1704, %v2474
  %v2631 = vsub.f32 %v1707, %v2474
  %v2632 = vsub.f32 %v1709, %v2474
  %v2633 = vsub.f32 %v1712, %v2474
  %v2634 = vsub.f32 %v1714, %v2474
  %v2635 = vsub.f32 %v1717, %v2474
  %v2636 = vsub.f32 %v1719, %v2474
  %v2637 = vsub.f32 %v1722, %v2474
  %v2638 = vsub.f32 %v1724, %v2474
  %v2639 = vsub.f32 %v1727, %v2474
  %v2640 = vsub.f32 %v1729, %v2474
  %v2641 = vsub.f32 %v1732, %v2474
  %v2642 = vsub.f32 %v1734, %v2474
  %v2643 = vsub.f32 %v1737, %v2474
  %v2644 = vsub.f32 %v1739, %v2474
  %v2645 = vsub.f32 %v1742, %v2474
  %v2646 = vsub.f32 %v1744, %v2474
  %v2647 = vsub.f32 %v1747, %v2474
  %v2648 = vsub.f32 %v1749, %v2474
  %v2649 = vsub.f32 %v1752, %v2474
  %v2650 = vsub.f32 %v1754, %v2474
  %v2651 = vsub.f32 %v1757, %v2474
  %v2652 = vsub.f32 %v1759, %v2474
  %v2653 = vsub.f32 %v1762, %v2474
  %v2654 = vsub.f32 %v1764, %v2474
  %v2655 = vsub.f32 %v1767, %v2474
  %v2656 = vsub.f32 %v1769, %v2474
  %v2657 = vsub.f32 %v1772, %v2474
  %v2658 = vsub.f32 %v1774, %v2474
  %v2659 = vsub.f32 %v1777, %v2474
  %v2660 = vsub.f32 %v1779, %v2474
  %v2661 = vsub.f32 %v1782, %v2474
  %v2662 = vsub.f32 %v1784, %v2474
  %v2663 = vsub.f32 %v1787, %v2474
  %v2664 = vsub.f32 %v1789, %v2474
  %v2665 = vsub.f32 %v1792, %v2474
  %v2666 = vsub.f32 %v1794, %v2474
  %v2667 = vsub.f32 %v1797, %v2474
  %v2668 = vsub.f32 %v1799, %v2474
  %v2669 = vsub.f32 %v1802, %v2474
  %v2670 = vsub.f32 %v1804, %v2474
  %v2671 = vsub.f32 %v1807, %v2474
  %v2672 = vsub.f32 %v1809, %v2474
  %v2673 = vsub.f32 %v1812, %v2474
  %v2674 = vsub.f32 %v1814, %v2474
  %v2675 = vsub.f32 %v1817, %v2474
  %v2676 = vsub.f32 %v1819, %v2474
  %v2677 = vsub.f32 %v1822, %v2474
  %v2678 = vsub.f32 %v1824, %v2474
  %v2679 = vsub.f32 %v1827, %v2474
  %v2680 = vsub.f32 %v1829, %v2474
  %v2681 = vsub.f32 %v1832, %v2474
  %v2682 = vsub.f32 %v1834, %v2474
  %v2683 = vsub.f32 %v1837, %v2474
  %v2684 = vsub.f32 %v1839, %v2474
  %v2685 = vsub.f32 %v1842, %v2474
  %v2686 = vsub.f32 %v1844, %v2474
  %v2687 = vsub.f32 %v1847, %v2474
  %v2688 = vsub.f32 %v1849, %v2474
  %v2689 = vsub.f32 %v1852, %v2474
  %v2690 = vsub.f32 %v1854, %v2474
  %v2691 = vsub.f32 %v1857, %v2474
  %v2692 = vsub.f32 %v1859, %v2474
  %v2693 = vsub.f32 %v1862, %v2474
  %v2694 = vsub.f32 %v1864, %v2474
  %v2695 = vsub.f32 %v1867, %v2474
  %v2696 = vsub.f32 %v1869, %v2474
  %v2697 = vsub.f32 %v1872, %v2474
  %v2698 = vsub.f32 %v1874, %v2474
  %v2699 = vsub.f32 %v1877, %v2474
  %v2700 = vsub.f32 %v1879, %v2474
  %v2701 = vsub.f32 %v1882, %v2474
  %v2702 = vsub.f32 %v1884, %v2474
  %v2703 = vsub.f32 %v1887, %v2474
  %v2704 = vsub.f32 %v1889, %v2474
  %v2705 = vsub.f32 %v1892, %v2474
  %v2706 = vsub.f32 %v1894, %v2474
  %v2707 = vsub.f32 %v1897, %v2474
  %v2708 = vsub.f32 %v1899, %v2474
  %v2709 = vsub.f32 %v1902, %v2474
  %v2710 = vsub.f32 %v1904, %v2474
  %v2711 = vsub.f32 %v1907, %v2474
  %v2712 = vsub.f32 %v1909, %v2474
  %v2713 = vsub.f32 %v1912, %v2474
  %v2714 = vsub.f32 %v1914, %v2474
  %v2715 = vsub.f32 %v1917, %v2474
  %v2716 = vsub.f32 %v1919, %v2474
  %v2717 = vsub.f32 %v1922, %v2474
  %v2718 = vsub.f32 %v1924, %v2474
  %v2719 = vsub.f32 %v1927, %v2474
  %v2720 = vsub.f32 %v1929, %v2474
  %v2721 = vsub.f32 %v1932, %v2474
  %v2722 = vsub.f32 %v1934, %v2474
  %v2723 = vsub.f32 %v1937, %v2474
  %v2724 = vsub.f32 %v1939, %v2474
  %v2725 = vsub.f32 %v1942, %v2474
  %v2726 = vsub.f32 %v1944, %v2474
  %v2727 = vsub.f32 %v1947, %v2474
  %v2728 = vsub.f32 %v1949, %v2474
  %v2729 = vsub.f32 %v1952, %v2474
  %v2730 = vsub.f32 %v1954, %v2474
  %v2731 = vmul.f32 %v2475, %v2475
  %v2732 = vmul.f32 %v2476, %v2476
  %v2733 = vmul.f32 %v2477, %v2477
  %v2734 = vmul.f32 %v2478, %v2478
  %v2735 = vmul.f32 %v2479, %v2479
  %v2736 = vmul.f32 %v2480, %v2480
  %v2737 = vmul.f32 %v2481, %v2481
  %v2738 = vmul.f32 %v2482, %v2482
  %v2739 = vmul.f32 %v2483, %v2483
  %v2740 = vmul.f32 %v2484, %v2484
  %v2741 = vmul.f32 %v2485, %v2485
  %v2742 = vmul.f32 %v2486, %v2486
  %v2743 = vmul.f32 %v2487, %v2487
  %v2744 = vmul.f32 %v2488, %v2488
  %v2745 = vmul.f32 %v2489, %v2489
  %v2746 = vmul.f32 %v2490, %v2490
  %v2747 = vmul.f32 %v2491, %v2491
  %v2748 = vmul.f32 %v2492, %v2492
  %v2749 = vmul.f32 %v2493, %v2493
  %v2750 = vmul.f32 %v2494, %v2494
  %v2751 = vmul.f32 %v2495, %v2495
  %v2752 = vmul.f32 %v2496, %v2496
  %v2753 = vmul.f32 %v2497, %v2497
  %v2754 = vmul.f32 %v2498, %v2498
  %v2755 = vmul.f32 %v2499, %v2499
  %v2756 = vmul.f32 %v2500, %v2500
  %v2757 = vmul.f32 %v2501, %v2501
  %v2758 = vmul.f32 %v2502, %v2502
  %v2759 = vmul.f32 %v2503, %v2503
  %v2760 = vmul.f32 %v2504, %v2504
  %v2761 = vmul.f32 %v2505, %v2505
  %v2762 = vmul.f32 %v2506, %v2506
  %v2763 = vmul.f32 %v2507, %v2507
  %v2764 = vmul.f32 %v2508, %v2508
  %v2765 = vmul.f32 %v2509, %v2509
  %v2766 = vmul.f32 %v2510, %v2510
  %v2767 = vmul.f32 %v2511, %v2511
  %v2768 = vmul.f32 %v2512, %v2512
  %v2769 = vmul.f32 %v2513, %v2513
  %v2770 = vmul.f32 %v2514, %v2514
  %v2771 = vmul.f32 %v2515, %v2515
  %v2772 = vmul.f32 %v2516, %v2516
  %v2773 = vmul.f32 %v2517, %v2517
  %v2774 = vmul.f32 %v2518, %v2518
  %v2775 = vmul.f32 %v2519, %v2519
  %v2776 = vmul.f32 %v2520, %v2520
  %v2777 = vmul.f32 %v2521, %v2521
  %v2778 = vmul.f32 %v2522, %v2522
  %v2779 = vmul.f32 %v2523, %v2523
  %v2780 = vmul.f32 %v2524, %v2524
  %v2781 = vmul.f32 %v2525, %v2525
  %v2782 = vmul.f32 %v2526, %v2526
  %v2783 = vmul.f32 %v2527, %v2527
  %v2784 = vmul.f32 %v2528, %v2528
  %v2785 = vmul.f32 %v2529, %v2529
  %v2786 = vmul.f32 %v2530, %v2530
  %v2787 = vmul.f32 %v2531, %v2531
  %v2788 = vmul.f32 %v2532, %v2532
  %v2789 = vmul.f32 %v2533, %v2533
  %v2790 = vmul.f32 %v2534, %v2534
  %v2791 = vmul.f32 %v2535, %v2535
  %v2792 = vmul.f32 %v2536, %v2536
  %v2793 = vmul.f32 %v2537, %v2537
  %v2794 = vmul.f32 %v2538, %v2538
  %v2795 = vmul.f32 %v2539, %v2539
  %v2796 = vmul.f32 %v2540, %v2540
  %v2797 = vmul.f32 %v2541, %v2541
  %v2798 = vmul.f32 %v2542, %v2542
  %v2799 = vmul.f32 %v2543, %v2543
  %v2800 = vmul.f32 %v2544, %v2544
  %v2801 = vmul.f32 %v2545, %v2545
  %v2802 = vmul.f32 %v2546, %v2546
  %v2803 = vmul.f32 %v2547, %v2547
  %v2804 = vmul.f32 %v2548, %v2548
  %v2805 = vmul.f32 %v2549, %v2549
  %v2806 = vmul.f32 %v2550, %v2550
  %v2807 = vmul.f32 %v2551, %v2551
  %v2808 = vmul.f32 %v2552, %v2552
  %v2809 = vmul.f32 %v2553, %v2553
  %v2810 = vmul.f32 %v2554, %v2554
  %v2811 = vmul.f32 %v2555, %v2555
  %v2812 = vmul.f32 %v2556, %v2556
  %v2813 = vmul.f32 %v2557, %v2557
  %v2814 = vmul.f32 %v2558, %v2558
  %v2815 = vmul.f32 %v2559, %v2559
  %v2816 = vmul.f32 %v2560, %v2560
  %v2817 = vmul.f32 %v2561, %v2561
  %v2818 = vmul.f32 %v2562, %v2562
  %v2819 = vmul.f32 %v2563, %v2563
  %v2820 = vmul.f32 %v2564, %v2564
  %v2821 = vmul.f32 %v2565, %v2565
  %v2822 = vmul.f32 %v2566, %v2566
  %v2823 = vmul.f32 %v2567, %v2567
  %v2824 = vmul.f32 %v2568, %v2568
  %v2825 = vmul.f32 %v2569, %v2569
  %v2826 = vmul.f32 %v2570, %v2570
  %v2827 = vmul.f32 %v2571, %v2571
  %v2828 = vmul.f32 %v2572, %v2572
  %v2829 = vmul.f32 %v2573, %v2573
  %v2830 = vmul.f32 %v2574, %v2574
  %v2831 = vmul.f32 %v2575, %v2575
  %v2832 = vmul.f32 %v2576, %v2576
  %v2833 = vmul.f32 %v2577, %v2577
  %v2834 = vmul.f32 %v2578, %v2578
  %v2835 = vmul.f32 %v2579, %v2579
  %v2836 = vmul.f32 %v2580, %v2580
  %v2837 = vmul.f32 %v2581, %v2581
  %v2838 = vmul.f32 %v2582, %v2582
  %v2839 = vmul.f32 %v2583, %v2583
  %v2840 = vmul.f32 %v2584, %v2584
  %v2841 = vmul.f32 %v2585, %v2585
  %v2842 = vmul.f32 %v2586, %v2586
  %v2843 = vmul.f32 %v2587, %v2587
  %v2844 = vmul.f32 %v2588, %v2588
  %v2845 = vmul.f32 %v2589, %v2589
  %v2846 = vmul.f32 %v2590, %v2590
  %v2847 = vmul.f32 %v2591, %v2591
  %v2848 = vmul.f32 %v2592, %v2592
  %v2849 = vmul.f32 %v2593, %v2593
  %v2850 = vmul.f32 %v2594, %v2594
  %v2851 = vmul.f32 %v2595, %v2595
  %v2852 = vmul.f32 %v2596, %v2596
  %v2853 = vmul.f32 %v2597, %v2597
  %v2854 = vmul.f32 %v2598, %v2598
  %v2855 = vmul.f32 %v2599, %v2599
  %v2856 = vmul.f32 %v2600, %v2600
  %v2857 = vmul.f32 %v2601, %v2601
  %v2858 = vmul.f32 %v2602, %v2602
  %v2859 = vmul.f32 %v2603, %v2603
  %v2860 = vmul.f32 %v2604, %v2604
  %v2861 = vmul.f32 %v2605, %v2605
  %v2862 = vmul.f32 %v2606, %v2606
  %v2863 = vmul.f32 %v2607, %v2607
  %v2864 = vmul.f32 %v2608, %v2608
  %v2865 = vmul.f32 %v2609, %v2609
  %v2866 = vmul.f32 %v2610, %v2610
  %v2867 = vmul.f32 %v2611, %v2611
  %v2868 = vmul.f32 %v2612, %v2612
  %v2869 = vmul.f32 %v2613, %v2613
  %v2870 = vmul.f32 %v2614, %v2614
  %v2871 = vmul.f32 %v2615, %v2615
  %v2872 = vmul.f32 %v2616, %v2616
  %v2873 = vmul.f32 %v2617, %v2617
  %v2874 = vmul.f32 %v2618, %v2618
  %v2875 = vmul.f32 %v2619, %v2619
  %v2876 = vmul.f32 %v2620, %v2620
  %v2877 = vmul.f32 %v2621, %v2621
  %v2878 = vmul.f32 %v2622, %v2622
  %v2879 = vmul.f32 %v2623, %v2623
  %v2880 = vmul.f32 %v2624, %v2624
  %v2881 = vmul.f32 %v2625, %v2625
  %v2882 = vmul.f32 %v2626, %v2626
  %v2883 = vmul.f32 %v2627, %v2627
  %v2884 = vmul.f32 %v2628, %v2628
  %v2885 = vmul.f32 %v2629, %v2629
  %v2886 = vmul.f32 %v2630, %v2630
  %v2887 = vmul.f32 %v2631, %v2631
  %v2888 = vmul.f32 %v2632, %v2632
  %v2889 = vmul.f32 %v2633, %v2633
  %v2890 = vmul.f32 %v2634, %v2634
  %v2891 = vmul.f32 %v2635, %v2635
  %v2892 = vmul.f32 %v2636, %v2636
  %v2893 = vmul.f32 %v2637, %v2637
  %v2894 = vmul.f32 %v2638, %v2638
  %v2895 = vmul.f32 %v2639, %v2639
  %v2896 = vmul.f32 %v2640, %v2640
  %v2897 = vmul.f32 %v2641, %v2641
  %v2898 = vmul.f32 %v2642, %v2642
  %v2899 = vmul.f32 %v2643, %v2643
  %v2900 = vmul.f32 %v2644, %v2644
  %v2901 = vmul.f32 %v2645, %v2645
  %v2902 = vmul.f32 %v2646, %v2646
  %v2903 = vmul.f32 %v2647, %v2647
  %v2904 = vmul.f32 %v2648, %v2648
  %v2905 = vmul.f32 %v2649, %v2649
  %v2906 = vmul.f32 %v2650, %v2650
  %v2907 = vmul.f32 %v2651, %v2651
  %v2908 = vmul.f32 %v2652, %v2652
  %v2909 = vmul.f32 %v2653, %v2653
  %v2910 = vmul.f32 %v2654, %v2654
  %v2911 = vmul.f32 %v2655, %v2655
  %v2912 = vmul.f32 %v2656, %v2656
  %v2913 = vmul.f32 %v2657, %v2657
  %v2914 = vmul.f32 %v2658, %v2658
  %v2915 = vmul.f32 %v2659, %v2659
  %v2916 = vmul.f32 %v2660, %v2660
  %v2917 = vmul.f32 %v2661, %v2661
  %v2918 = vmul.f32 %v2662, %v2662
  %v2919 = vmul.f32 %v2663, %v2663
  %v2920 = vmul.f32 %v2664, %v2664
  %v2921 = vmul.f32 %v2665, %v2665
  %v2922 = vmul.f32 %v2666, %v2666
  %v2923 = vmul.f32 %v2667, %v2667
  %v2924 = vmul.f32 %v2668, %v2668
  %v2925 = vmul.f32 %v2669, %v2669
  %v2926 = vmul.f32 %v2670, %v2670
  %v2927 = vmul.f32 %v2671, %v2671
  %v2928 = vmul.f32 %v2672, %v2672
  %v2929 = vmul.f32 %v2673, %v2673
  %v2930 = vmul.f32 %v2674, %v2674
  %v2931 = vmul.f32 %v2675, %v2675
  %v2932 = vmul.f32 %v2676, %v2676
  %v2933 = vmul.f32 %v2677, %v2677
  %v2934 = vmul.f32 %v2678, %v2678
  %v2935 = vmul.f32 %v2679, %v2679
  %v2936 = vmul.f32 %v2680, %v2680
  %v2937 = vmul.f32 %v2681, %v2681
  %v2938 = vmul.f32 %v2682, %v2682
  %v2939 = vmul.f32 %v2683, %v2683
  %v2940 = vmul.f32 %v2684, %v2684
  %v2941 = vmul.f32 %v2685, %v2685
  %v2942 = vmul.f32 %v2686, %v2686
  %v2943 = vmul.f32 %v2687, %v2687
  %v2944 = vmul.f32 %v2688, %v2688
  %v2945 = vmul.f32 %v2689, %v2689
  %v2946 = vmul.f32 %v2690, %v2690
  %v2947 = vmul.f32 %v2691, %v2691
  %v2948 = vmul.f32 %v2692, %v2692
  %v2949 = vmul.f32 %v2693, %v2693
  %v2950 = vmul.f32 %v2694, %v2694
  %v2951 = vmul.f32 %v2695, %v2695
  %v2952 = vmul.f32 %v2696, %v2696
  %v2953 = vmul.f32 %v2697, %v2697
  %v2954 = vmul.f32 %v2698, %v2698
  %v2955 = vmul.f32 %v2699, %v2699
  %v2956 = vmul.f32 %v2700, %v2700
  %v2957 = vmul.f32 %v2701, %v2701
  %v2958 = vmul.f32 %v2702, %v2702
  %v2959 = vmul.f32 %v2703, %v2703
  %v2960 = vmul.f32 %v2704, %v2704
  %v2961 = vmul.f32 %v2705, %v2705
  %v2962 = vmul.f32 %v2706, %v2706
  %v2963 = vmul.f32 %v2707, %v2707
  %v2964 = vmul.f32 %v2708, %v2708
  %v2965 = vmul.f32 %v2709, %v2709
  %v2966 = vmul.f32 %v2710, %v2710
  %v2967 = vmul.f32 %v2711, %v2711
  %v2968 = vmul.f32 %v2712, %v2712
  %v2969 = vmul.f32 %v2713, %v2713
  %v2970 = vmul.f32 %v2714, %v2714
  %v2971 = vmul.f32 %v2715, %v2715
  %v2972 = vmul.f32 %v2716, %v2716
  %v2973 = vmul.f32 %v2717, %v2717
  %v2974 = vmul.f32 %v2718, %v2718
  %v2975 = vmul.f32 %v2719, %v2719
  %v2976 = vmul.f32 %v2720, %v2720
  %v2977 = vmul.f32 %v2721, %v2721
  %v2978 = vmul.f32 %v2722, %v2722
  %v2979 = vmul.f32 %v2723, %v2723
  %v2980 = vmul.f32 %v2724, %v2724
  %v2981 = vmul.f32 %v2725, %v2725
  %v2982 = vmul.f32 %v2726, %v2726
  %v2983 = vmul.f32 %v2727, %v2727
  %v2984 = vmul.f32 %v2728, %v2728
  %v2985 = vmul.f32 %v2729, %v2729
  %v2986 = vmul.f32 %v2730, %v2730
  %v2987 = vsel %vm1956, %v2731, 0.0
  %v2988 = vsel %vm1956, %v2732, 0.0
  %v2989 = vadd.f32 %v2987, %v2988
  %v2990 = vsel %vm1956, %v2733, 0.0
  %v2991 = vadd.f32 %v2989, %v2990
  %v2992 = vsel %vm1956, %v2734, 0.0
  %v2993 = vadd.f32 %v2991, %v2992
  %v2994 = vsel %vm1956, %v2735, 0.0
  %v2995 = vadd.f32 %v2993, %v2994
  %v2996 = vsel %vm1956, %v2736, 0.0
  %v2997 = vadd.f32 %v2995, %v2996
  %v2998 = vsel %vm1956, %v2737, 0.0
  %v2999 = vadd.f32 %v2997, %v2998
  %v3000 = vsel %vm1956, %v2738, 0.0
  %v3001 = vadd.f32 %v2999, %v3000
  %v3002 = vsel %vm1956, %v2739, 0.0
  %v3003 = vadd.f32 %v3001, %v3002
  %v3004 = vsel %vm1956, %v2740, 0.0
  %v3005 = vadd.f32 %v3003, %v3004
  %v3006 = vsel %vm1956, %v2741, 0.0
  %v3007 = vadd.f32 %v3005, %v3006
  %v3008 = vsel %vm1956, %v2742, 0.0
  %v3009 = vadd.f32 %v3007, %v3008
  %v3010 = vsel %vm1956, %v2743, 0.0
  %v3011 = vadd.f32 %v3009, %v3010
  %v3012 = vsel %vm1956, %v2744, 0.0
  %v3013 = vadd.f32 %v3011, %v3012
  %v3014 = vsel %vm1956, %v2745, 0.0
  %v3015 = vadd.f32 %v3013, %v3014
  %v3016 = vsel %vm1956, %v2746, 0.0
  %v3017 = vadd.f32 %v3015, %v3016
  %v3018 = vsel %vm1956, %v2747, 0.0
  %v3019 = vadd.f32 %v3017, %v3018
  %v3020 = vsel %vm1956, %v2748, 0.0
  %v3021 = vadd.f32 %v3019, %v3020
  %v3022 = vsel %vm1956, %v2749, 0.0
  %v3023 = vadd.f32 %v3021, %v3022
  %v3024 = vsel %vm1956, %v2750, 0.0
  %v3025 = vadd.f32 %v3023, %v3024
  %v3026 = vsel %vm1956, %v2751, 0.0
  %v3027 = vadd.f32 %v3025, %v3026
  %v3028 = vsel %vm1956, %v2752, 0.0
  %v3029 = vadd.f32 %v3027, %v3028
  %v3030 = vsel %vm1956, %v2753, 0.0
  %v3031 = vadd.f32 %v3029, %v3030
  %v3032 = vsel %vm1956, %v2754, 0.0
  %v3033 = vadd.f32 %v3031, %v3032
  %v3034 = vsel %vm1956, %v2755, 0.0
  %v3035 = vadd.f32 %v3033, %v3034
  %v3036 = vsel %vm1956, %v2756, 0.0
  %v3037 = vadd.f32 %v3035, %v3036
  %v3038 = vsel %vm1956, %v2757, 0.0
  %v3039 = vadd.f32 %v3037, %v3038
  %v3040 = vsel %vm1956, %v2758, 0.0
  %v3041 = vadd.f32 %v3039, %v3040
  %v3042 = vsel %vm1956, %v2759, 0.0
  %v3043 = vadd.f32 %v3041, %v3042
  %v3044 = vsel %vm1956, %v2760, 0.0
  %v3045 = vadd.f32 %v3043, %v3044
  %v3046 = vsel %vm1956, %v2761, 0.0
  %v3047 = vadd.f32 %v3045, %v3046
  %v3048 = vsel %vm1956, %v2762, 0.0
  %v3049 = vadd.f32 %v3047, %v3048
  %v3050 = vsel %vm1956, %v2763, 0.0
  %v3051 = vadd.f32 %v3049, %v3050
  %v3052 = vsel %vm1956, %v2764, 0.0
  %v3053 = vadd.f32 %v3051, %v3052
  %v3054 = vsel %vm1956, %v2765, 0.0
  %v3055 = vadd.f32 %v3053, %v3054
  %v3056 = vsel %vm1956, %v2766, 0.0
  %v3057 = vadd.f32 %v3055, %v3056
  %v3058 = vsel %vm1956, %v2767, 0.0
  %v3059 = vadd.f32 %v3057, %v3058
  %v3060 = vsel %vm1956, %v2768, 0.0
  %v3061 = vadd.f32 %v3059, %v3060
  %v3062 = vsel %vm1956, %v2769, 0.0
  %v3063 = vadd.f32 %v3061, %v3062
  %v3064 = vsel %vm1956, %v2770, 0.0
  %v3065 = vadd.f32 %v3063, %v3064
  %v3066 = vsel %vm1956, %v2771, 0.0
  %v3067 = vadd.f32 %v3065, %v3066
  %v3068 = vsel %vm1956, %v2772, 0.0
  %v3069 = vadd.f32 %v3067, %v3068
  %v3070 = vsel %vm1956, %v2773, 0.0
  %v3071 = vadd.f32 %v3069, %v3070
  %v3072 = vsel %vm1956, %v2774, 0.0
  %v3073 = vadd.f32 %v3071, %v3072
  %v3074 = vsel %vm1956, %v2775, 0.0
  %v3075 = vadd.f32 %v3073, %v3074
  %v3076 = vsel %vm1956, %v2776, 0.0
  %v3077 = vadd.f32 %v3075, %v3076
  %v3078 = vsel %vm1956, %v2777, 0.0
  %v3079 = vadd.f32 %v3077, %v3078
  %v3080 = vsel %vm1956, %v2778, 0.0
  %v3081 = vadd.f32 %v3079, %v3080
  %v3082 = vsel %vm1956, %v2779, 0.0
  %v3083 = vadd.f32 %v3081, %v3082
  %v3084 = vsel %vm1956, %v2780, 0.0
  %v3085 = vadd.f32 %v3083, %v3084
  %v3086 = vsel %vm1956, %v2781, 0.0
  %v3087 = vadd.f32 %v3085, %v3086
  %v3088 = vsel %vm1956, %v2782, 0.0
  %v3089 = vadd.f32 %v3087, %v3088
  %v3090 = vsel %vm1956, %v2783, 0.0
  %v3091 = vadd.f32 %v3089, %v3090
  %v3092 = vsel %vm1956, %v2784, 0.0
  %v3093 = vadd.f32 %v3091, %v3092
  %v3094 = vsel %vm1956, %v2785, 0.0
  %v3095 = vadd.f32 %v3093, %v3094
  %v3096 = vsel %vm1956, %v2786, 0.0
  %v3097 = vadd.f32 %v3095, %v3096
  %v3098 = vsel %vm1956, %v2787, 0.0
  %v3099 = vadd.f32 %v3097, %v3098
  %v3100 = vsel %vm1956, %v2788, 0.0
  %v3101 = vadd.f32 %v3099, %v3100
  %v3102 = vsel %vm1956, %v2789, 0.0
  %v3103 = vadd.f32 %v3101, %v3102
  %v3104 = vsel %vm1956, %v2790, 0.0
  %v3105 = vadd.f32 %v3103, %v3104
  %v3106 = vsel %vm1956, %v2791, 0.0
  %v3107 = vadd.f32 %v3105, %v3106
  %v3108 = vsel %vm1956, %v2792, 0.0
  %v3109 = vadd.f32 %v3107, %v3108
  %v3110 = vsel %vm1956, %v2793, 0.0
  %v3111 = vadd.f32 %v3109, %v3110
  %v3112 = vsel %vm1956, %v2794, 0.0
  %v3113 = vadd.f32 %v3111, %v3112
  %v3114 = vsel %vm1956, %v2795, 0.0
  %v3115 = vadd.f32 %v3113, %v3114
  %v3116 = vsel %vm1956, %v2796, 0.0
  %v3117 = vadd.f32 %v3115, %v3116
  %v3118 = vsel %vm1956, %v2797, 0.0
  %v3119 = vadd.f32 %v3117, %v3118
  %v3120 = vsel %vm1956, %v2798, 0.0
  %v3121 = vadd.f32 %v3119, %v3120
  %v3122 = vsel %vm1956, %v2799, 0.0
  %v3123 = vadd.f32 %v3121, %v3122
  %v3124 = vsel %vm1956, %v2800, 0.0
  %v3125 = vadd.f32 %v3123, %v3124
  %v3126 = vsel %vm1956, %v2801, 0.0
  %v3127 = vadd.f32 %v3125, %v3126
  %v3128 = vsel %vm1956, %v2802, 0.0
  %v3129 = vadd.f32 %v3127, %v3128
  %v3130 = vsel %vm1956, %v2803, 0.0
  %v3131 = vadd.f32 %v3129, %v3130
  %v3132 = vsel %vm1956, %v2804, 0.0
  %v3133 = vadd.f32 %v3131, %v3132
  %v3134 = vsel %vm1956, %v2805, 0.0
  %v3135 = vadd.f32 %v3133, %v3134
  %v3136 = vsel %vm1956, %v2806, 0.0
  %v3137 = vadd.f32 %v3135, %v3136
  %v3138 = vsel %vm1956, %v2807, 0.0
  %v3139 = vadd.f32 %v3137, %v3138
  %v3140 = vsel %vm1956, %v2808, 0.0
  %v3141 = vadd.f32 %v3139, %v3140
  %v3142 = vsel %vm1956, %v2809, 0.0
  %v3143 = vadd.f32 %v3141, %v3142
  %v3144 = vsel %vm1956, %v2810, 0.0
  %v3145 = vadd.f32 %v3143, %v3144
  %v3146 = vsel %vm1956, %v2811, 0.0
  %v3147 = vadd.f32 %v3145, %v3146
  %v3148 = vsel %vm1956, %v2812, 0.0
  %v3149 = vadd.f32 %v3147, %v3148
  %v3150 = vsel %vm1956, %v2813, 0.0
  %v3151 = vadd.f32 %v3149, %v3150
  %v3152 = vsel %vm1956, %v2814, 0.0
  %v3153 = vadd.f32 %v3151, %v3152
  %v3154 = vsel %vm1956, %v2815, 0.0
  %v3155 = vadd.f32 %v3153, %v3154
  %v3156 = vsel %vm1956, %v2816, 0.0
  %v3157 = vadd.f32 %v3155, %v3156
  %v3158 = vsel %vm1956, %v2817, 0.0
  %v3159 = vadd.f32 %v3157, %v3158
  %v3160 = vsel %vm1956, %v2818, 0.0
  %v3161 = vadd.f32 %v3159, %v3160
  %v3162 = vsel %vm1956, %v2819, 0.0
  %v3163 = vadd.f32 %v3161, %v3162
  %v3164 = vsel %vm1956, %v2820, 0.0
  %v3165 = vadd.f32 %v3163, %v3164
  %v3166 = vsel %vm1956, %v2821, 0.0
  %v3167 = vadd.f32 %v3165, %v3166
  %v3168 = vsel %vm1956, %v2822, 0.0
  %v3169 = vadd.f32 %v3167, %v3168
  %v3170 = vsel %vm1956, %v2823, 0.0
  %v3171 = vadd.f32 %v3169, %v3170
  %v3172 = vsel %vm1956, %v2824, 0.0
  %v3173 = vadd.f32 %v3171, %v3172
  %v3174 = vsel %vm1956, %v2825, 0.0
  %v3175 = vadd.f32 %v3173, %v3174
  %v3176 = vsel %vm1956, %v2826, 0.0
  %v3177 = vadd.f32 %v3175, %v3176
  %v3178 = vsel %vm1956, %v2827, 0.0
  %v3179 = vadd.f32 %v3177, %v3178
  %v3180 = vsel %vm1956, %v2828, 0.0
  %v3181 = vadd.f32 %v3179, %v3180
  %v3182 = vsel %vm1956, %v2829, 0.0
  %v3183 = vadd.f32 %v3181, %v3182
  %v3184 = vsel %vm1956, %v2830, 0.0
  %v3185 = vadd.f32 %v3183, %v3184
  %v3186 = vsel %vm1956, %v2831, 0.0
  %v3187 = vadd.f32 %v3185, %v3186
  %v3188 = vsel %vm1956, %v2832, 0.0
  %v3189 = vadd.f32 %v3187, %v3188
  %v3190 = vsel %vm1956, %v2833, 0.0
  %v3191 = vadd.f32 %v3189, %v3190
  %v3192 = vsel %vm1956, %v2834, 0.0
  %v3193 = vadd.f32 %v3191, %v3192
  %v3194 = vsel %vm1956, %v2835, 0.0
  %v3195 = vadd.f32 %v3193, %v3194
  %v3196 = vsel %vm1956, %v2836, 0.0
  %v3197 = vadd.f32 %v3195, %v3196
  %v3198 = vsel %vm1956, %v2837, 0.0
  %v3199 = vadd.f32 %v3197, %v3198
  %v3200 = vsel %vm1956, %v2838, 0.0
  %v3201 = vadd.f32 %v3199, %v3200
  %v3202 = vsel %vm1956, %v2839, 0.0
  %v3203 = vadd.f32 %v3201, %v3202
  %v3204 = vsel %vm1956, %v2840, 0.0
  %v3205 = vadd.f32 %v3203, %v3204
  %v3206 = vsel %vm1956, %v2841, 0.0
  %v3207 = vadd.f32 %v3205, %v3206
  %v3208 = vsel %vm1956, %v2842, 0.0
  %v3209 = vadd.f32 %v3207, %v3208
  %v3210 = vsel %vm1956, %v2843, 0.0
  %v3211 = vadd.f32 %v3209, %v3210
  %v3212 = vsel %vm1956, %v2844, 0.0
  %v3213 = vadd.f32 %v3211, %v3212
  %v3214 = vsel %vm1956, %v2845, 0.0
  %v3215 = vadd.f32 %v3213, %v3214
  %v3216 = vsel %vm1956, %v2846, 0.0
  %v3217 = vadd.f32 %v3215, %v3216
  %v3218 = vsel %vm1956, %v2847, 0.0
  %v3219 = vadd.f32 %v3217, %v3218
  %v3220 = vsel %vm1956, %v2848, 0.0
  %v3221 = vadd.f32 %v3219, %v3220
  %v3222 = vsel %vm1956, %v2849, 0.0
  %v3223 = vadd.f32 %v3221, %v3222
  %v3224 = vsel %vm1956, %v2850, 0.0
  %v3225 = vadd.f32 %v3223, %v3224
  %v3226 = vsel %vm1956, %v2851, 0.0
  %v3227 = vadd.f32 %v3225, %v3226
  %v3228 = vsel %vm1956, %v2852, 0.0
  %v3229 = vadd.f32 %v3227, %v3228
  %v3230 = vsel %vm1956, %v2853, 0.0
  %v3231 = vadd.f32 %v3229, %v3230
  %v3232 = vsel %vm1956, %v2854, 0.0
  %v3233 = vadd.f32 %v3231, %v3232
  %v3234 = vsel %vm1956, %v2855, 0.0
  %v3235 = vadd.f32 %v3233, %v3234
  %v3236 = vsel %vm1956, %v2856, 0.0
  %v3237 = vadd.f32 %v3235, %v3236
  %v3238 = vsel %vm1956, %v2857, 0.0
  %v3239 = vadd.f32 %v3237, %v3238
  %v3240 = vsel %vm1956, %v2858, 0.0
  %v3241 = vadd.f32 %v3239, %v3240
  %v3242 = vsel %vm1956, %v2859, 0.0
  %v3243 = vadd.f32 %v3241, %v3242
  %v3244 = vsel %vm1956, %v2860, 0.0
  %v3245 = vadd.f32 %v3243, %v3244
  %v3246 = vsel %vm1956, %v2861, 0.0
  %v3247 = vadd.f32 %v3245, %v3246
  %v3248 = vsel %vm1956, %v2862, 0.0
  %v3249 = vadd.f32 %v3247, %v3248
  %v3250 = vsel %vm1956, %v2863, 0.0
  %v3251 = vadd.f32 %v3249, %v3250
  %v3252 = vsel %vm1956, %v2864, 0.0
  %v3253 = vadd.f32 %v3251, %v3252
  %v3254 = vsel %vm1956, %v2865, 0.0
  %v3255 = vadd.f32 %v3253, %v3254
  %v3256 = vsel %vm1956, %v2866, 0.0
  %v3257 = vadd.f32 %v3255, %v3256
  %v3258 = vsel %vm1956, %v2867, 0.0
  %v3259 = vadd.f32 %v3257, %v3258
  %v3260 = vsel %vm1956, %v2868, 0.0
  %v3261 = vadd.f32 %v3259, %v3260
  %v3262 = vsel %vm1956, %v2869, 0.0
  %v3263 = vadd.f32 %v3261, %v3262
  %v3264 = vsel %vm1956, %v2870, 0.0
  %v3265 = vadd.f32 %v3263, %v3264
  %v3266 = vsel %vm1956, %v2871, 0.0
  %v3267 = vadd.f32 %v3265, %v3266
  %v3268 = vsel %vm1956, %v2872, 0.0
  %v3269 = vadd.f32 %v3267, %v3268
  %v3270 = vsel %vm1956, %v2873, 0.0
  %v3271 = vadd.f32 %v3269, %v3270
  %v3272 = vsel %vm1956, %v2874, 0.0
  %v3273 = vadd.f32 %v3271, %v3272
  %v3274 = vsel %vm1956, %v2875, 0.0
  %v3275 = vadd.f32 %v3273, %v3274
  %v3276 = vsel %vm1956, %v2876, 0.0
  %v3277 = vadd.f32 %v3275, %v3276
  %v3278 = vsel %vm1956, %v2877, 0.0
  %v3279 = vadd.f32 %v3277, %v3278
  %v3280 = vsel %vm1956, %v2878, 0.0
  %v3281 = vadd.f32 %v3279, %v3280
  %v3282 = vsel %vm1956, %v2879, 0.0
  %v3283 = vadd.f32 %v3281, %v3282
  %v3284 = vsel %vm1956, %v2880, 0.0
  %v3285 = vadd.f32 %v3283, %v3284
  %v3286 = vsel %vm1956, %v2881, 0.0
  %v3287 = vadd.f32 %v3285, %v3286
  %v3288 = vsel %vm1956, %v2882, 0.0
  %v3289 = vadd.f32 %v3287, %v3288
  %v3290 = vsel %vm1956, %v2883, 0.0
  %v3291 = vadd.f32 %v3289, %v3290
  %v3292 = vsel %vm1956, %v2884, 0.0
  %v3293 = vadd.f32 %v3291, %v3292
  %v3294 = vsel %vm1956, %v2885, 0.0
  %v3295 = vadd.f32 %v3293, %v3294
  %v3296 = vsel %vm1956, %v2886, 0.0
  %v3297 = vadd.f32 %v3295, %v3296
  %v3298 = vsel %vm1956, %v2887, 0.0
  %v3299 = vadd.f32 %v3297, %v3298
  %v3300 = vsel %vm1956, %v2888, 0.0
  %v3301 = vadd.f32 %v3299, %v3300
  %v3302 = vsel %vm1956, %v2889, 0.0
  %v3303 = vadd.f32 %v3301, %v3302
  %v3304 = vsel %vm1956, %v2890, 0.0
  %v3305 = vadd.f32 %v3303, %v3304
  %v3306 = vsel %vm1956, %v2891, 0.0
  %v3307 = vadd.f32 %v3305, %v3306
  %v3308 = vsel %vm1956, %v2892, 0.0
  %v3309 = vadd.f32 %v3307, %v3308
  %v3310 = vsel %vm1956, %v2893, 0.0
  %v3311 = vadd.f32 %v3309, %v3310
  %v3312 = vsel %vm1956, %v2894, 0.0
  %v3313 = vadd.f32 %v3311, %v3312
  %v3314 = vsel %vm1956, %v2895, 0.0
  %v3315 = vadd.f32 %v3313, %v3314
  %v3316 = vsel %vm1956, %v2896, 0.0
  %v3317 = vadd.f32 %v3315, %v3316
  %v3318 = vsel %vm1956, %v2897, 0.0
  %v3319 = vadd.f32 %v3317, %v3318
  %v3320 = vsel %vm1956, %v2898, 0.0
  %v3321 = vadd.f32 %v3319, %v3320
  %v3322 = vsel %vm1956, %v2899, 0.0
  %v3323 = vadd.f32 %v3321, %v3322
  %v3324 = vsel %vm1956, %v2900, 0.0
  %v3325 = vadd.f32 %v3323, %v3324
  %v3326 = vsel %vm1956, %v2901, 0.0
  %v3327 = vadd.f32 %v3325, %v3326
  %v3328 = vsel %vm1956, %v2902, 0.0
  %v3329 = vadd.f32 %v3327, %v3328
  %v3330 = vsel %vm1956, %v2903, 0.0
  %v3331 = vadd.f32 %v3329, %v3330
  %v3332 = vsel %vm1956, %v2904, 0.0
  %v3333 = vadd.f32 %v3331, %v3332
  %v3334 = vsel %vm1956, %v2905, 0.0
  %v3335 = vadd.f32 %v3333, %v3334
  %v3336 = vsel %vm1956, %v2906, 0.0
  %v3337 = vadd.f32 %v3335, %v3336
  %v3338 = vsel %vm1956, %v2907, 0.0
  %v3339 = vadd.f32 %v3337, %v3338
  %v3340 = vsel %vm1956, %v2908, 0.0
  %v3341 = vadd.f32 %v3339, %v3340
  %v3342 = vsel %vm1956, %v2909, 0.0
  %v3343 = vadd.f32 %v3341, %v3342
  %v3344 = vsel %vm1956, %v2910, 0.0
  %v3345 = vadd.f32 %v3343, %v3344
  %v3346 = vsel %vm1956, %v2911, 0.0
  %v3347 = vadd.f32 %v3345, %v3346
  %v3348 = vsel %vm1956, %v2912, 0.0
  %v3349 = vadd.f32 %v3347, %v3348
  %v3350 = vsel %vm1956, %v2913, 0.0
  %v3351 = vadd.f32 %v3349, %v3350
  %v3352 = vsel %vm1956, %v2914, 0.0
  %v3353 = vadd.f32 %v3351, %v3352
  %v3354 = vsel %vm1956, %v2915, 0.0
  %v3355 = vadd.f32 %v3353, %v3354
  %v3356 = vsel %vm1956, %v2916, 0.0
  %v3357 = vadd.f32 %v3355, %v3356
  %v3358 = vsel %vm1956, %v2917, 0.0
  %v3359 = vadd.f32 %v3357, %v3358
  %v3360 = vsel %vm1956, %v2918, 0.0
  %v3361 = vadd.f32 %v3359, %v3360
  %v3362 = vsel %vm1956, %v2919, 0.0
  %v3363 = vadd.f32 %v3361, %v3362
  %v3364 = vsel %vm1956, %v2920, 0.0
  %v3365 = vadd.f32 %v3363, %v3364
  %v3366 = vsel %vm1956, %v2921, 0.0
  %v3367 = vadd.f32 %v3365, %v3366
  %v3368 = vsel %vm1956, %v2922, 0.0
  %v3369 = vadd.f32 %v3367, %v3368
  %v3370 = vsel %vm1956, %v2923, 0.0
  %v3371 = vadd.f32 %v3369, %v3370
  %v3372 = vsel %vm1956, %v2924, 0.0
  %v3373 = vadd.f32 %v3371, %v3372
  %v3374 = vsel %vm1956, %v2925, 0.0
  %v3375 = vadd.f32 %v3373, %v3374
  %v3376 = vsel %vm1956, %v2926, 0.0
  %v3377 = vadd.f32 %v3375, %v3376
  %v3378 = vsel %vm1956, %v2927, 0.0
  %v3379 = vadd.f32 %v3377, %v3378
  %v3380 = vsel %vm1956, %v2928, 0.0
  %v3381 = vadd.f32 %v3379, %v3380
  %v3382 = vsel %vm1956, %v2929, 0.0
  %v3383 = vadd.f32 %v3381, %v3382
  %v3384 = vsel %vm1956, %v2930, 0.0
  %v3385 = vadd.f32 %v3383, %v3384
  %v3386 = vsel %vm1956, %v2931, 0.0
  %v3387 = vadd.f32 %v3385, %v3386
  %v3388 = vsel %vm1956, %v2932, 0.0
  %v3389 = vadd.f32 %v3387, %v3388
  %v3390 = vsel %vm1956, %v2933, 0.0
  %v3391 = vadd.f32 %v3389, %v3390
  %v3392 = vsel %vm1956, %v2934, 0.0
  %v3393 = vadd.f32 %v3391, %v3392
  %v3394 = vsel %vm1956, %v2935, 0.0
  %v3395 = vadd.f32 %v3393, %v3394
  %v3396 = vsel %vm1956, %v2936, 0.0
  %v3397 = vadd.f32 %v3395, %v3396
  %v3398 = vsel %vm1956, %v2937, 0.0
  %v3399 = vadd.f32 %v3397, %v3398
  %v3400 = vsel %vm1956, %v2938, 0.0
  %v3401 = vadd.f32 %v3399, %v3400
  %v3402 = vsel %vm1956, %v2939, 0.0
  %v3403 = vadd.f32 %v3401, %v3402
  %v3404 = vsel %vm1956, %v2940, 0.0
  %v3405 = vadd.f32 %v3403, %v3404
  %v3406 = vsel %vm1956, %v2941, 0.0
  %v3407 = vadd.f32 %v3405, %v3406
  %v3408 = vsel %vm1956, %v2942, 0.0
  %v3409 = vadd.f32 %v3407, %v3408
  %v3410 = vsel %vm1956, %v2943, 0.0
  %v3411 = vadd.f32 %v3409, %v3410
  %v3412 = vsel %vm1956, %v2944, 0.0
  %v3413 = vadd.f32 %v3411, %v3412
  %v3414 = vsel %vm1956, %v2945, 0.0
  %v3415 = vadd.f32 %v3413, %v3414
  %v3416 = vsel %vm1956, %v2946, 0.0
  %v3417 = vadd.f32 %v3415, %v3416
  %v3418 = vsel %vm1956, %v2947, 0.0
  %v3419 = vadd.f32 %v3417, %v3418
  %v3420 = vsel %vm1956, %v2948, 0.0
  %v3421 = vadd.f32 %v3419, %v3420
  %v3422 = vsel %vm1956, %v2949, 0.0
  %v3423 = vadd.f32 %v3421, %v3422
  %v3424 = vsel %vm1956, %v2950, 0.0
  %v3425 = vadd.f32 %v3423, %v3424
  %v3426 = vsel %vm1956, %v2951, 0.0
  %v3427 = vadd.f32 %v3425, %v3426
  %v3428 = vsel %vm1956, %v2952, 0.0
  %v3429 = vadd.f32 %v3427, %v3428
  %v3430 = vsel %vm1956, %v2953, 0.0
  %v3431 = vadd.f32 %v3429, %v3430
  %v3432 = vsel %vm1956, %v2954, 0.0
  %v3433 = vadd.f32 %v3431, %v3432
  %v3434 = vsel %vm1956, %v2955, 0.0
  %v3435 = vadd.f32 %v3433, %v3434
  %v3436 = vsel %vm1956, %v2956, 0.0
  %v3437 = vadd.f32 %v3435, %v3436
  %v3438 = vsel %vm1956, %v2957, 0.0
  %v3439 = vadd.f32 %v3437, %v3438
  %v3440 = vsel %vm1956, %v2958, 0.0
  %v3441 = vadd.f32 %v3439, %v3440
  %v3442 = vsel %vm1956, %v2959, 0.0
  %v3443 = vadd.f32 %v3441, %v3442
  %v3444 = vsel %vm1956, %v2960, 0.0
  %v3445 = vadd.f32 %v3443, %v3444
  %v3446 = vsel %vm1956, %v2961, 0.0
  %v3447 = vadd.f32 %v3445, %v3446
  %v3448 = vsel %vm1956, %v2962, 0.0
  %v3449 = vadd.f32 %v3447, %v3448
  %v3450 = vsel %vm1956, %v2963, 0.0
  %v3451 = vadd.f32 %v3449, %v3450
  %v3452 = vsel %vm1956, %v2964, 0.0
  %v3453 = vadd.f32 %v3451, %v3452
  %v3454 = vsel %vm1956, %v2965, 0.0
  %v3455 = vadd.f32 %v3453, %v3454
  %v3456 = vsel %vm1956, %v2966, 0.0
  %v3457 = vadd.f32 %v3455, %v3456
  %v3458 = vsel %vm1956, %v2967, 0.0
  %v3459 = vadd.f32 %v3457, %v3458
  %v3460 = vsel %vm1956, %v2968, 0.0
  %v3461 = vadd.f32 %v3459, %v3460
  %v3462 = vsel %vm1956, %v2969, 0.0
  %v3463 = vadd.f32 %v3461, %v3462
  %v3464 = vsel %vm1956, %v2970, 0.0
  %v3465 = vadd.f32 %v3463, %v3464
  %v3466 = vsel %vm1956, %v2971, 0.0
  %v3467 = vadd.f32 %v3465, %v3466
  %v3468 = vsel %vm1956, %v2972, 0.0
  %v3469 = vadd.f32 %v3467, %v3468
  %v3470 = vsel %vm1956, %v2973, 0.0
  %v3471 = vadd.f32 %v3469, %v3470
  %v3472 = vsel %vm1956, %v2974, 0.0
  %v3473 = vadd.f32 %v3471, %v3472
  %v3474 = vsel %vm1956, %v2975, 0.0
  %v3475 = vadd.f32 %v3473, %v3474
  %v3476 = vsel %vm1956, %v2976, 0.0
  %v3477 = vadd.f32 %v3475, %v3476
  %v3478 = vsel %vm1956, %v2977, 0.0
  %v3479 = vadd.f32 %v3477, %v3478
  %v3480 = vsel %vm1956, %v2978, 0.0
  %v3481 = vadd.f32 %v3479, %v3480
  %v3482 = vsel %vm1956, %v2979, 0.0
  %v3483 = vadd.f32 %v3481, %v3482
  %v3484 = vsel %vm1956, %v2980, 0.0
  %v3485 = vadd.f32 %v3483, %v3484
  %v3486 = vsel %vm1956, %v2981, 0.0
  %v3487 = vadd.f32 %v3485, %v3486
  %v3488 = vsel %vm1956, %v2982, 0.0
  %v3489 = vadd.f32 %v3487, %v3488
  %v3490 = vsel %vm1956, %v2983, 0.0
  %v3491 = vadd.f32 %v3489, %v3490
  %v3492 = vsel %vm1956, %v2984, 0.0
  %v3493 = vadd.f32 %v3491, %v3492
  %v3494 = vsel %vm1956, %v2985, 0.0
  %v3495 = vadd.f32 %v3493, %v3494
  %v3496 = vsel %vm1956, %v2986, 0.0
  %v3497 = vadd.f32 %v3495, %v3496
  %v3498 = vrot.slane %v3497, 4
  %v3499 = vadd.f32 %v3497, %v3498
  %v3500 = vrot.slane %v3499, 2
  %v3501 = vadd.f32 %v3499, %v3500
  %v3502 = vrot.slane %v3501, 1
  %v3503 = vadd.f32 %v3501, %v3502
  %v3504 = vmul.f32 %v3503, 0.00048828125
  %v3505 = vld [vmem:[%s2] sm:$0x1]
  %v3506 = vadd.f32 %v3504, 1e-05
  %v3507 = vrsqrt.pop %v3506
  %v3508 = vmul.f32 %v3507, %v3506
  %v3509 = vmul.f32 %v3508, %v3507
  %v3510 = vmul.f32 0.5, %v3509
  %v3511 = vsub.f32 1.5, %v3510
  %v3512 = vmul.f32 %v3507, %v3511
  %vm3513 = vweird.f32 %v3506
  %vm3514 = vweird.f32 %v3507
  %vm3515 = vmor %vm3513, %vm3514
  %v3516 = vsel %vm3515, %v3507, %v3512
  %v3517 = vmul.f32 %v3505, %v3516
  %v3519 = vperm.slane %v3517, 0
  %v3521 = vmul.f32 %v2475, %v3519
  %v3522 = vmul.f32 %v2476, %v3519
  %v3523 = vmul.f32 %v2477, %v3519
  %v3524 = vmul.f32 %v2478, %v3519
  %v3525 = vmul.f32 %v2479, %v3519
  %v3526 = vmul.f32 %v2480, %v3519
  %v3527 = vmul.f32 %v2481, %v3519
  %v3528 = vmul.f32 %v2482, %v3519
  %v3529 = vmul.f32 %v2483, %v3519
  %v3530 = vmul.f32 %v2484, %v3519
  %v3531 = vmul.f32 %v2485, %v3519
  %v3532 = vmul.f32 %v2486, %v3519
  %v3533 = vmul.f32 %v2487, %v3519
  %v3534 = vmul.f32 %v2488, %v3519
  %v3535 = vmul.f32 %v2489, %v3519
  %v3536 = vmul.f32 %v2490, %v3519
  %v3537 = vmul.f32 %v2491, %v3519
  %v3538 = vmul.f32 %v2492, %v3519
  %v3539 = vmul.f32 %v2493, %v3519
  %v3540 = vmul.f32 %v2494, %v3519
  %v3541 = vmul.f32 %v2495, %v3519
  %v3542 = vmul.f32 %v2496, %v3519
  %v3543 = vmul.f32 %v2497, %v3519
  %v3544 = vmul.f32 %v2498, %v3519
  %v3545 = vmul.f32 %v2499, %v3519
  %v3546 = vmul.f32 %v2500, %v3519
  %v3547 = vmul.f32 %v2501, %v3519
  %v3548 = vmul.f32 %v2502, %v3519
  %v3549 = vmul.f32 %v2503, %v3519
  %v3550 = vmul.f32 %v2504, %v3519
  %v3551 = vmul.f32 %v2505, %v3519
  %v3552 = vmul.f32 %v2506, %v3519
  %v3553 = vmul.f32 %v2507, %v3519
  %v3554 = vmul.f32 %v2508, %v3519
  %v3555 = vmul.f32 %v2509, %v3519
  %v3556 = vmul.f32 %v2510, %v3519
  %v3557 = vmul.f32 %v2511, %v3519
  %v3558 = vmul.f32 %v2512, %v3519
  %v3559 = vmul.f32 %v2513, %v3519
  %v3560 = vmul.f32 %v2514, %v3519
  %v3561 = vmul.f32 %v2515, %v3519
  %v3562 = vmul.f32 %v2516, %v3519
  %v3563 = vmul.f32 %v2517, %v3519
  %v3564 = vmul.f32 %v2518, %v3519
  %v3565 = vmul.f32 %v2519, %v3519
  %v3566 = vmul.f32 %v2520, %v3519
  %v3567 = vmul.f32 %v2521, %v3519
  %v3568 = vmul.f32 %v2522, %v3519
  %v3569 = vmul.f32 %v2523, %v3519
  %v3570 = vmul.f32 %v2524, %v3519
  %v3571 = vmul.f32 %v2525, %v3519
  %v3572 = vmul.f32 %v2526, %v3519
  %v3573 = vmul.f32 %v2527, %v3519
  %v3574 = vmul.f32 %v2528, %v3519
  %v3575 = vmul.f32 %v2529, %v3519
  %v3576 = vmul.f32 %v2530, %v3519
  %v3577 = vmul.f32 %v2531, %v3519
  %v3578 = vmul.f32 %v2532, %v3519
  %v3579 = vmul.f32 %v2533, %v3519
  %v3580 = vmul.f32 %v2534, %v3519
  %v3581 = vmul.f32 %v2535, %v3519
  %v3582 = vmul.f32 %v2536, %v3519
  %v3583 = vmul.f32 %v2537, %v3519
  %v3584 = vmul.f32 %v2538, %v3519
  %v3585 = vmul.f32 %v2539, %v3519
  %v3586 = vmul.f32 %v2540, %v3519
  %v3587 = vmul.f32 %v2541, %v3519
  %v3588 = vmul.f32 %v2542, %v3519
  %v3589 = vmul.f32 %v2543, %v3519
  %v3590 = vmul.f32 %v2544, %v3519
  %v3591 = vmul.f32 %v2545, %v3519
  %v3592 = vmul.f32 %v2546, %v3519
  %v3593 = vmul.f32 %v2547, %v3519
  %v3594 = vmul.f32 %v2548, %v3519
  %v3595 = vmul.f32 %v2549, %v3519
  %v3596 = vmul.f32 %v2550, %v3519
  %v3597 = vmul.f32 %v2551, %v3519
  %v3598 = vmul.f32 %v2552, %v3519
  %v3599 = vmul.f32 %v2553, %v3519
  %v3600 = vmul.f32 %v2554, %v3519
  %v3601 = vmul.f32 %v2555, %v3519
  %v3602 = vmul.f32 %v2556, %v3519
  %v3603 = vmul.f32 %v2557, %v3519
  %v3604 = vmul.f32 %v2558, %v3519
  %v3605 = vmul.f32 %v2559, %v3519
  %v3606 = vmul.f32 %v2560, %v3519
  %v3607 = vmul.f32 %v2561, %v3519
  %v3608 = vmul.f32 %v2562, %v3519
  %v3609 = vmul.f32 %v2563, %v3519
  %v3610 = vmul.f32 %v2564, %v3519
  %v3611 = vmul.f32 %v2565, %v3519
  %v3612 = vmul.f32 %v2566, %v3519
  %v3613 = vmul.f32 %v2567, %v3519
  %v3614 = vmul.f32 %v2568, %v3519
  %v3615 = vmul.f32 %v2569, %v3519
  %v3616 = vmul.f32 %v2570, %v3519
  %v3617 = vmul.f32 %v2571, %v3519
  %v3618 = vmul.f32 %v2572, %v3519
  %v3619 = vmul.f32 %v2573, %v3519
  %v3620 = vmul.f32 %v2574, %v3519
  %v3621 = vmul.f32 %v2575, %v3519
  %v3622 = vmul.f32 %v2576, %v3519
  %v3623 = vmul.f32 %v2577, %v3519
  %v3624 = vmul.f32 %v2578, %v3519
  %v3625 = vmul.f32 %v2579, %v3519
  %v3626 = vmul.f32 %v2580, %v3519
  %v3627 = vmul.f32 %v2581, %v3519
  %v3628 = vmul.f32 %v2582, %v3519
  %v3629 = vmul.f32 %v2583, %v3519
  %v3630 = vmul.f32 %v2584, %v3519
  %v3631 = vmul.f32 %v2585, %v3519
  %v3632 = vmul.f32 %v2586, %v3519
  %v3633 = vmul.f32 %v2587, %v3519
  %v3634 = vmul.f32 %v2588, %v3519
  %v3635 = vmul.f32 %v2589, %v3519
  %v3636 = vmul.f32 %v2590, %v3519
  %v3637 = vmul.f32 %v2591, %v3519
  %v3638 = vmul.f32 %v2592, %v3519
  %v3639 = vmul.f32 %v2593, %v3519
  %v3640 = vmul.f32 %v2594, %v3519
  %v3641 = vmul.f32 %v2595, %v3519
  %v3642 = vmul.f32 %v2596, %v3519
  %v3643 = vmul.f32 %v2597, %v3519
  %v3644 = vmul.f32 %v2598, %v3519
  %v3645 = vmul.f32 %v2599, %v3519
  %v3646 = vmul.f32 %v2600, %v3519
  %v3647 = vmul.f32 %v2601, %v3519
  %v3648 = vmul.f32 %v2602, %v3519
  %v3649 = vmul.f32 %v2603, %v3519
  %v3650 = vmul.f32 %v2604, %v3519
  %v3651 = vmul.f32 %v2605, %v3519
  %v3652 = vmul.f32 %v2606, %v3519
  %v3653 = vmul.f32 %v2607, %v3519
  %v3654 = vmul.f32 %v2608, %v3519
  %v3655 = vmul.f32 %v2609, %v3519
  %v3656 = vmul.f32 %v2610, %v3519
  %v3657 = vmul.f32 %v2611, %v3519
  %v3658 = vmul.f32 %v2612, %v3519
  %v3659 = vmul.f32 %v2613, %v3519
  %v3660 = vmul.f32 %v2614, %v3519
  %v3661 = vmul.f32 %v2615, %v3519
  %v3662 = vmul.f32 %v2616, %v3519
  %v3663 = vmul.f32 %v2617, %v3519
  %v3664 = vmul.f32 %v2618, %v3519
  %v3665 = vmul.f32 %v2619, %v3519
  %v3666 = vmul.f32 %v2620, %v3519
  %v3667 = vmul.f32 %v2621, %v3519
  %v3668 = vmul.f32 %v2622, %v3519
  %v3669 = vmul.f32 %v2623, %v3519
  %v3670 = vmul.f32 %v2624, %v3519
  %v3671 = vmul.f32 %v2625, %v3519
  %v3672 = vmul.f32 %v2626, %v3519
  %v3673 = vmul.f32 %v2627, %v3519
  %v3674 = vmul.f32 %v2628, %v3519
  %v3675 = vmul.f32 %v2629, %v3519
  %v3676 = vmul.f32 %v2630, %v3519
  %v3677 = vmul.f32 %v2631, %v3519
  %v3678 = vmul.f32 %v2632, %v3519
  %v3679 = vmul.f32 %v2633, %v3519
  %v3680 = vmul.f32 %v2634, %v3519
  %v3681 = vmul.f32 %v2635, %v3519
  %v3682 = vmul.f32 %v2636, %v3519
  %v3683 = vmul.f32 %v2637, %v3519
  %v3684 = vmul.f32 %v2638, %v3519
  %v3685 = vmul.f32 %v2639, %v3519
  %v3686 = vmul.f32 %v2640, %v3519
  %v3687 = vmul.f32 %v2641, %v3519
  %v3688 = vmul.f32 %v2642, %v3519
  %v3689 = vmul.f32 %v2643, %v3519
  %v3690 = vmul.f32 %v2644, %v3519
  %v3691 = vmul.f32 %v2645, %v3519
  %v3692 = vmul.f32 %v2646, %v3519
  %v3693 = vmul.f32 %v2647, %v3519
  %v3694 = vmul.f32 %v2648, %v3519
  %v3695 = vmul.f32 %v2649, %v3519
  %v3696 = vmul.f32 %v2650, %v3519
  %v3697 = vmul.f32 %v2651, %v3519
  %v3698 = vmul.f32 %v2652, %v3519
  %v3699 = vmul.f32 %v2653, %v3519
  %v3700 = vmul.f32 %v2654, %v3519
  %v3701 = vmul.f32 %v2655, %v3519
  %v3702 = vmul.f32 %v2656, %v3519
  %v3703 = vmul.f32 %v2657, %v3519
  %v3704 = vmul.f32 %v2658, %v3519
  %v3705 = vmul.f32 %v2659, %v3519
  %v3706 = vmul.f32 %v2660, %v3519
  %v3707 = vmul.f32 %v2661, %v3519
  %v3708 = vmul.f32 %v2662, %v3519
  %v3709 = vmul.f32 %v2663, %v3519
  %v3710 = vmul.f32 %v2664, %v3519
  %v3711 = vmul.f32 %v2665, %v3519
  %v3712 = vmul.f32 %v2666, %v3519
  %v3713 = vmul.f32 %v2667, %v3519
  %v3714 = vmul.f32 %v2668, %v3519
  %v3715 = vmul.f32 %v2669, %v3519
  %v3716 = vmul.f32 %v2670, %v3519
  %v3717 = vmul.f32 %v2671, %v3519
  %v3718 = vmul.f32 %v2672, %v3519
  %v3719 = vmul.f32 %v2673, %v3519
  %v3720 = vmul.f32 %v2674, %v3519
  %v3721 = vmul.f32 %v2675, %v3519
  %v3722 = vmul.f32 %v2676, %v3519
  %v3723 = vmul.f32 %v2677, %v3519
  %v3724 = vmul.f32 %v2678, %v3519
  %v3725 = vmul.f32 %v2679, %v3519
  %v3726 = vmul.f32 %v2680, %v3519
  %v3727 = vmul.f32 %v2681, %v3519
  %v3728 = vmul.f32 %v2682, %v3519
  %v3729 = vmul.f32 %v2683, %v3519
  %v3730 = vmul.f32 %v2684, %v3519
  %v3731 = vmul.f32 %v2685, %v3519
  %v3732 = vmul.f32 %v2686, %v3519
  %v3733 = vmul.f32 %v2687, %v3519
  %v3734 = vmul.f32 %v2688, %v3519
  %v3735 = vmul.f32 %v2689, %v3519
  %v3736 = vmul.f32 %v2690, %v3519
  %v3737 = vmul.f32 %v2691, %v3519
  %v3738 = vmul.f32 %v2692, %v3519
  %v3739 = vmul.f32 %v2693, %v3519
  %v3740 = vmul.f32 %v2694, %v3519
  %v3741 = vmul.f32 %v2695, %v3519
  %v3742 = vmul.f32 %v2696, %v3519
  %v3743 = vmul.f32 %v2697, %v3519
  %v3744 = vmul.f32 %v2698, %v3519
  %v3745 = vmul.f32 %v2699, %v3519
  %v3746 = vmul.f32 %v2700, %v3519
  %v3747 = vmul.f32 %v2701, %v3519
  %v3748 = vmul.f32 %v2702, %v3519
  %v3749 = vmul.f32 %v2703, %v3519
  %v3750 = vmul.f32 %v2704, %v3519
  %v3751 = vmul.f32 %v2705, %v3519
  %v3752 = vmul.f32 %v2706, %v3519
  %v3753 = vmul.f32 %v2707, %v3519
  %v3754 = vmul.f32 %v2708, %v3519
  %v3755 = vmul.f32 %v2709, %v3519
  %v3756 = vmul.f32 %v2710, %v3519
  %v3757 = vmul.f32 %v2711, %v3519
  %v3758 = vmul.f32 %v2712, %v3519
  %v3759 = vmul.f32 %v2713, %v3519
  %v3760 = vmul.f32 %v2714, %v3519
  %v3761 = vmul.f32 %v2715, %v3519
  %v3762 = vmul.f32 %v2716, %v3519
  %v3763 = vmul.f32 %v2717, %v3519
  %v3764 = vmul.f32 %v2718, %v3519
  %v3765 = vmul.f32 %v2719, %v3519
  %v3766 = vmul.f32 %v2720, %v3519
  %v3767 = vmul.f32 %v2721, %v3519
  %v3768 = vmul.f32 %v2722, %v3519
  %v3769 = vmul.f32 %v2723, %v3519
  %v3770 = vmul.f32 %v2724, %v3519
  %v3771 = vmul.f32 %v2725, %v3519
  %v3772 = vmul.f32 %v2726, %v3519
  %v3773 = vmul.f32 %v2727, %v3519
  %v3774 = vmul.f32 %v2728, %v3519
  %v3775 = vmul.f32 %v2729, %v3519
  %v3776 = vmul.f32 %v2730, %v3519
  %v3777 = vld [vmem:[%s3] sm:$0x1]
  %v3779 = vperm.slane %v3777, 0
  %v3781 = vadd.f32 %v3521, %v3779
  %v3782 = vadd.f32 %v3522, %v3779
  %v3783 = vadd.f32 %v3523, %v3779
  %v3784 = vadd.f32 %v3524, %v3779
  %v3785 = vadd.f32 %v3525, %v3779
  %v3786 = vadd.f32 %v3526, %v3779
  %v3787 = vadd.f32 %v3527, %v3779
  %v3788 = vadd.f32 %v3528, %v3779
  %v3789 = vadd.f32 %v3529, %v3779
  %v3790 = vadd.f32 %v3530, %v3779
  %v3791 = vadd.f32 %v3531, %v3779
  %v3792 = vadd.f32 %v3532, %v3779
  %v3793 = vadd.f32 %v3533, %v3779
  %v3794 = vadd.f32 %v3534, %v3779
  %v3795 = vadd.f32 %v3535, %v3779
  %v3796 = vadd.f32 %v3536, %v3779
  %v3797 = vadd.f32 %v3537, %v3779
  %v3798 = vadd.f32 %v3538, %v3779
  %v3799 = vadd.f32 %v3539, %v3779
  %v3800 = vadd.f32 %v3540, %v3779
  %v3801 = vadd.f32 %v3541, %v3779
  %v3802 = vadd.f32 %v3542, %v3779
  %v3803 = vadd.f32 %v3543, %v3779
  %v3804 = vadd.f32 %v3544, %v3779
  %v3805 = vadd.f32 %v3545, %v3779
  %v3806 = vadd.f32 %v3546, %v3779
  %v3807 = vadd.f32 %v3547, %v3779
  %v3808 = vadd.f32 %v3548, %v3779
  %v3809 = vadd.f32 %v3549, %v3779
  %v3810 = vadd.f32 %v3550, %v3779
  %v3811 = vadd.f32 %v3551, %v3779
  %v3812 = vadd.f32 %v3552, %v3779
  %v3813 = vadd.f32 %v3553, %v3779
  %v3814 = vadd.f32 %v3554, %v3779
  %v3815 = vadd.f32 %v3555, %v3779
  %v3816 = vadd.f32 %v3556, %v3779
  %v3817 = vadd.f32 %v3557, %v3779
  %v3818 = vadd.f32 %v3558, %v3779
  %v3819 = vadd.f32 %v3559, %v3779
  %v3820 = vadd.f32 %v3560, %v3779
  %v3821 = vadd.f32 %v3561, %v3779
  %v3822 = vadd.f32 %v3562, %v3779
  %v3823 = vadd.f32 %v3563, %v3779
  %v3824 = vadd.f32 %v3564, %v3779
  %v3825 = vadd.f32 %v3565, %v3779
  %v3826 = vadd.f32 %v3566, %v3779
  %v3827 = vadd.f32 %v3567, %v3779
  %v3828 = vadd.f32 %v3568, %v3779
  %v3829 = vadd.f32 %v3569, %v3779
  %v3830 = vadd.f32 %v3570, %v3779
  %v3831 = vadd.f32 %v3571, %v3779
  %v3832 = vadd.f32 %v3572, %v3779
  %v3833 = vadd.f32 %v3573, %v3779
  %v3834 = vadd.f32 %v3574, %v3779
  %v3835 = vadd.f32 %v3575, %v3779
  %v3836 = vadd.f32 %v3576, %v3779
  %v3837 = vadd.f32 %v3577, %v3779
  %v3838 = vadd.f32 %v3578, %v3779
  %v3839 = vadd.f32 %v3579, %v3779
  %v3840 = vadd.f32 %v3580, %v3779
  %v3841 = vadd.f32 %v3581, %v3779
  %v3842 = vadd.f32 %v3582, %v3779
  %v3843 = vadd.f32 %v3583, %v3779
  %v3844 = vadd.f32 %v3584, %v3779
  %v3845 = vadd.f32 %v3585, %v3779
  %v3846 = vadd.f32 %v3586, %v3779
  %v3847 = vadd.f32 %v3587, %v3779
  %v3848 = vadd.f32 %v3588, %v3779
  %v3849 = vadd.f32 %v3589, %v3779
  %v3850 = vadd.f32 %v3590, %v3779
  %v3851 = vadd.f32 %v3591, %v3779
  %v3852 = vadd.f32 %v3592, %v3779
  %v3853 = vadd.f32 %v3593, %v3779
  %v3854 = vadd.f32 %v3594, %v3779
  %v3855 = vadd.f32 %v3595, %v3779
  %v3856 = vadd.f32 %v3596, %v3779
  %v3857 = vadd.f32 %v3597, %v3779
  %v3858 = vadd.f32 %v3598, %v3779
  %v3859 = vadd.f32 %v3599, %v3779
  %v3860 = vadd.f32 %v3600, %v3779
  %v3861 = vadd.f32 %v3601, %v3779
  %v3862 = vadd.f32 %v3602, %v3779
  %v3863 = vadd.f32 %v3603, %v3779
  %v3864 = vadd.f32 %v3604, %v3779
  %v3865 = vadd.f32 %v3605, %v3779
  %v3866 = vadd.f32 %v3606, %v3779
  %v3867 = vadd.f32 %v3607, %v3779
  %v3868 = vadd.f32 %v3608, %v3779
  %v3869 = vadd.f32 %v3609, %v3779
  %v3870 = vadd.f32 %v3610, %v3779
  %v3871 = vadd.f32 %v3611, %v3779
  %v3872 = vadd.f32 %v3612, %v3779
  %v3873 = vadd.f32 %v3613, %v3779
  %v3874 = vadd.f32 %v3614, %v3779
  %v3875 = vadd.f32 %v3615, %v3779
  %v3876 = vadd.f32 %v3616, %v3779
  %v3877 = vadd.f32 %v3617, %v3779
  %v3878 = vadd.f32 %v3618, %v3779
  %v3879 = vadd.f32 %v3619, %v3779
  %v3880 = vadd.f32 %v3620, %v3779
  %v3881 = vadd.f32 %v3621, %v3779
  %v3882 = vadd.f32 %v3622, %v3779
  %v3883 = vadd.f32 %v3623, %v3779
  %v3884 = vadd.f32 %v3624, %v3779
  %v3885 = vadd.f32 %v3625, %v3779
  %v3886 = vadd.f32 %v3626, %v3779
  %v3887 = vadd.f32 %v3627, %v3779
  %v3888 = vadd.f32 %v3628, %v3779
  %v3889 = vadd.f32 %v3629, %v3779
  %v3890 = vadd.f32 %v3630, %v3779
  %v3891 = vadd.f32 %v3631, %v3779
  %v3892 = vadd.f32 %v3632, %v3779
  %v3893 = vadd.f32 %v3633, %v3779
  %v3894 = vadd.f32 %v3634, %v3779
  %v3895 = vadd.f32 %v3635, %v3779
  %v3896 = vadd.f32 %v3636, %v3779
  %v3897 = vadd.f32 %v3637, %v3779
  %v3898 = vadd.f32 %v3638, %v3779
  %v3899 = vadd.f32 %v3639, %v3779
  %v3900 = vadd.f32 %v3640, %v3779
  %v3901 = vadd.f32 %v3641, %v3779
  %v3902 = vadd.f32 %v3642, %v3779
  %v3903 = vadd.f32 %v3643, %v3779
  %v3904 = vadd.f32 %v3644, %v3779
  %v3905 = vadd.f32 %v3645, %v3779
  %v3906 = vadd.f32 %v3646, %v3779
  %v3907 = vadd.f32 %v3647, %v3779
  %v3908 = vadd.f32 %v3648, %v3779
  %v3909 = vadd.f32 %v3649, %v3779
  %v3910 = vadd.f32 %v3650, %v3779
  %v3911 = vadd.f32 %v3651, %v3779
  %v3912 = vadd.f32 %v3652, %v3779
  %v3913 = vadd.f32 %v3653, %v3779
  %v3914 = vadd.f32 %v3654, %v3779
  %v3915 = vadd.f32 %v3655, %v3779
  %v3916 = vadd.f32 %v3656, %v3779
  %v3917 = vadd.f32 %v3657, %v3779
  %v3918 = vadd.f32 %v3658, %v3779
  %v3919 = vadd.f32 %v3659, %v3779
  %v3920 = vadd.f32 %v3660, %v3779
  %v3921 = vadd.f32 %v3661, %v3779
  %v3922 = vadd.f32 %v3662, %v3779
  %v3923 = vadd.f32 %v3663, %v3779
  %v3924 = vadd.f32 %v3664, %v3779
  %v3925 = vadd.f32 %v3665, %v3779
  %v3926 = vadd.f32 %v3666, %v3779
  %v3927 = vadd.f32 %v3667, %v3779
  %v3928 = vadd.f32 %v3668, %v3779
  %v3929 = vadd.f32 %v3669, %v3779
  %v3930 = vadd.f32 %v3670, %v3779
  %v3931 = vadd.f32 %v3671, %v3779
  %v3932 = vadd.f32 %v3672, %v3779
  %v3933 = vadd.f32 %v3673, %v3779
  %v3934 = vadd.f32 %v3674, %v3779
  %v3935 = vadd.f32 %v3675, %v3779
  %v3936 = vadd.f32 %v3676, %v3779
  %v3937 = vadd.f32 %v3677, %v3779
  %v3938 = vadd.f32 %v3678, %v3779
  %v3939 = vadd.f32 %v3679, %v3779
  %v3940 = vadd.f32 %v3680, %v3779
  %v3941 = vadd.f32 %v3681, %v3779
  %v3942 = vadd.f32 %v3682, %v3779
  %v3943 = vadd.f32 %v3683, %v3779
  %v3944 = vadd.f32 %v3684, %v3779
  %v3945 = vadd.f32 %v3685, %v3779
  %v3946 = vadd.f32 %v3686, %v3779
  %v3947 = vadd.f32 %v3687, %v3779
  %v3948 = vadd.f32 %v3688, %v3779
  %v3949 = vadd.f32 %v3689, %v3779
  %v3950 = vadd.f32 %v3690, %v3779
  %v3951 = vadd.f32 %v3691, %v3779
  %v3952 = vadd.f32 %v3692, %v3779
  %v3953 = vadd.f32 %v3693, %v3779
  %v3954 = vadd.f32 %v3694, %v3779
  %v3955 = vadd.f32 %v3695, %v3779
  %v3956 = vadd.f32 %v3696, %v3779
  %v3957 = vadd.f32 %v3697, %v3779
  %v3958 = vadd.f32 %v3698, %v3779
  %v3959 = vadd.f32 %v3699, %v3779
  %v3960 = vadd.f32 %v3700, %v3779
  %v3961 = vadd.f32 %v3701, %v3779
  %v3962 = vadd.f32 %v3702, %v3779
  %v3963 = vadd.f32 %v3703, %v3779
  %v3964 = vadd.f32 %v3704, %v3779
  %v3965 = vadd.f32 %v3705, %v3779
  %v3966 = vadd.f32 %v3706, %v3779
  %v3967 = vadd.f32 %v3707, %v3779
  %v3968 = vadd.f32 %v3708, %v3779
  %v3969 = vadd.f32 %v3709, %v3779
  %v3970 = vadd.f32 %v3710, %v3779
  %v3971 = vadd.f32 %v3711, %v3779
  %v3972 = vadd.f32 %v3712, %v3779
  %v3973 = vadd.f32 %v3713, %v3779
  %v3974 = vadd.f32 %v3714, %v3779
  %v3975 = vadd.f32 %v3715, %v3779
  %v3976 = vadd.f32 %v3716, %v3779
  %v3977 = vadd.f32 %v3717, %v3779
  %v3978 = vadd.f32 %v3718, %v3779
  %v3979 = vadd.f32 %v3719, %v3779
  %v3980 = vadd.f32 %v3720, %v3779
  %v3981 = vadd.f32 %v3721, %v3779
  %v3982 = vadd.f32 %v3722, %v3779
  %v3983 = vadd.f32 %v3723, %v3779
  %v3984 = vadd.f32 %v3724, %v3779
  %v3985 = vadd.f32 %v3725, %v3779
  %v3986 = vadd.f32 %v3726, %v3779
  %v3987 = vadd.f32 %v3727, %v3779
  %v3988 = vadd.f32 %v3728, %v3779
  %v3989 = vadd.f32 %v3729, %v3779
  %v3990 = vadd.f32 %v3730, %v3779
  %v3991 = vadd.f32 %v3731, %v3779
  %v3992 = vadd.f32 %v3732, %v3779
  %v3993 = vadd.f32 %v3733, %v3779
  %v3994 = vadd.f32 %v3734, %v3779
  %v3995 = vadd.f32 %v3735, %v3779
  %v3996 = vadd.f32 %v3736, %v3779
  %v3997 = vadd.f32 %v3737, %v3779
  %v3998 = vadd.f32 %v3738, %v3779
  %v3999 = vadd.f32 %v3739, %v3779
  %v4000 = vadd.f32 %v3740, %v3779
  %v4001 = vadd.f32 %v3741, %v3779
  %v4002 = vadd.f32 %v3742, %v3779
  %v4003 = vadd.f32 %v3743, %v3779
  %v4004 = vadd.f32 %v3744, %v3779
  %v4005 = vadd.f32 %v3745, %v3779
  %v4006 = vadd.f32 %v3746, %v3779
  %v4007 = vadd.f32 %v3747, %v3779
  %v4008 = vadd.f32 %v3748, %v3779
  %v4009 = vadd.f32 %v3749, %v3779
  %v4010 = vadd.f32 %v3750, %v3779
  %v4011 = vadd.f32 %v3751, %v3779
  %v4012 = vadd.f32 %v3752, %v3779
  %v4013 = vadd.f32 %v3753, %v3779
  %v4014 = vadd.f32 %v3754, %v3779
  %v4015 = vadd.f32 %v3755, %v3779
  %v4016 = vadd.f32 %v3756, %v3779
  %v4017 = vadd.f32 %v3757, %v3779
  %v4018 = vadd.f32 %v3758, %v3779
  %v4019 = vadd.f32 %v3759, %v3779
  %v4020 = vadd.f32 %v3760, %v3779
  %v4021 = vadd.f32 %v3761, %v3779
  %v4022 = vadd.f32 %v3762, %v3779
  %v4023 = vadd.f32 %v3763, %v3779
  %v4024 = vadd.f32 %v3764, %v3779
  %v4025 = vadd.f32 %v3765, %v3779
  %v4026 = vadd.f32 %v3766, %v3779
  %v4027 = vadd.f32 %v3767, %v3779
  %v4028 = vadd.f32 %v3768, %v3779
  %v4029 = vadd.f32 %v3769, %v3779
  %v4030 = vadd.f32 %v3770, %v3779
  %v4031 = vadd.f32 %v3771, %v3779
  %v4032 = vadd.f32 %v3772, %v3779
  %v4033 = vadd.f32 %v3773, %v3779
  %v4034 = vadd.f32 %v3774, %v3779
  %v4035 = vadd.f32 %v3775, %v3779
  %v4036 = vadd.f32 %v3776, %v3779
  %v4037 = vmax.f32 %v3781, 0.0
  %v4038 = vmax.f32 %v3782, 0.0
  %v4039 = vmax.f32 %v3783, 0.0
  %v4040 = vmax.f32 %v3784, 0.0
  %v4041 = vmax.f32 %v3785, 0.0
  %v4042 = vmax.f32 %v3786, 0.0
  %v4043 = vmax.f32 %v3787, 0.0
  %v4044 = vmax.f32 %v3788, 0.0
  %v4045 = vmax.f32 %v3789, 0.0
  %v4046 = vmax.f32 %v3790, 0.0
  %v4047 = vmax.f32 %v3791, 0.0
  %v4048 = vmax.f32 %v3792, 0.0
  %v4049 = vmax.f32 %v3793, 0.0
  %v4050 = vmax.f32 %v3794, 0.0
  %v4051 = vmax.f32 %v3795, 0.0
  %v4052 = vmax.f32 %v3796, 0.0
  %v4053 = vmax.f32 %v3797, 0.0
  %v4054 = vmax.f32 %v3798, 0.0
  %v4055 = vmax.f32 %v3799, 0.0
  %v4056 = vmax.f32 %v3800, 0.0
  %v4057 = vmax.f32 %v3801, 0.0
  %v4058 = vmax.f32 %v3802, 0.0
  %v4059 = vmax.f32 %v3803, 0.0
  %v4060 = vmax.f32 %v3804, 0.0
  %v4061 = vmax.f32 %v3805, 0.0
  %v4062 = vmax.f32 %v3806, 0.0
  %v4063 = vmax.f32 %v3807, 0.0
  %v4064 = vmax.f32 %v3808, 0.0
  %v4065 = vmax.f32 %v3809, 0.0
  %v4066 = vmax.f32 %v3810, 0.0
  %v4067 = vmax.f32 %v3811, 0.0
  %v4068 = vmax.f32 %v3812, 0.0
  %v4069 = vmax.f32 %v3813, 0.0
  %v4070 = vmax.f32 %v3814, 0.0
  %v4071 = vmax.f32 %v3815, 0.0
  %v4072 = vmax.f32 %v3816, 0.0
  %v4073 = vmax.f32 %v3817, 0.0
  %v4074 = vmax.f32 %v3818, 0.0
  %v4075 = vmax.f32 %v3819, 0.0
  %v4076 = vmax.f32 %v3820, 0.0
  %v4077 = vmax.f32 %v3821, 0.0
  %v4078 = vmax.f32 %v3822, 0.0
  %v4079 = vmax.f32 %v3823, 0.0
  %v4080 = vmax.f32 %v3824, 0.0
  %v4081 = vmax.f32 %v3825, 0.0
  %v4082 = vmax.f32 %v3826, 0.0
  %v4083 = vmax.f32 %v3827, 0.0
  %v4084 = vmax.f32 %v3828, 0.0
  %v4085 = vmax.f32 %v3829, 0.0
  %v4086 = vmax.f32 %v3830, 0.0
  %v4087 = vmax.f32 %v3831, 0.0
  %v4088 = vmax.f32 %v3832, 0.0
  %v4089 = vmax.f32 %v3833, 0.0
  %v4090 = vmax.f32 %v3834, 0.0
  %v4091 = vmax.f32 %v3835, 0.0
  %v4092 = vmax.f32 %v3836, 0.0
  %v4093 = vmax.f32 %v3837, 0.0
  %v4094 = vmax.f32 %v3838, 0.0
  %v4095 = vmax.f32 %v3839, 0.0
  %v4096 = vmax.f32 %v3840, 0.0
  %v4097 = vmax.f32 %v3841, 0.0
  %v4098 = vmax.f32 %v3842, 0.0
  %v4099 = vmax.f32 %v3843, 0.0
  %v4100 = vmax.f32 %v3844, 0.0
  %v4101 = vmax.f32 %v3845, 0.0
  %v4102 = vmax.f32 %v3846, 0.0
  %v4103 = vmax.f32 %v3847, 0.0
  %v4104 = vmax.f32 %v3848, 0.0
  %v4105 = vmax.f32 %v3849, 0.0
  %v4106 = vmax.f32 %v3850, 0.0
  %v4107 = vmax.f32 %v3851, 0.0
  %v4108 = vmax.f32 %v3852, 0.0
  %v4109 = vmax.f32 %v3853, 0.0
  %v4110 = vmax.f32 %v3854, 0.0
  %v4111 = vmax.f32 %v3855, 0.0
  %v4112 = vmax.f32 %v3856, 0.0
  %v4113 = vmax.f32 %v3857, 0.0
  %v4114 = vmax.f32 %v3858, 0.0
  %v4115 = vmax.f32 %v3859, 0.0
  %v4116 = vmax.f32 %v3860, 0.0
  %v4117 = vmax.f32 %v3861, 0.0
  %v4118 = vmax.f32 %v3862, 0.0
  %v4119 = vmax.f32 %v3863, 0.0
  %v4120 = vmax.f32 %v3864, 0.0
  %v4121 = vmax.f32 %v3865, 0.0
  %v4122 = vmax.f32 %v3866, 0.0
  %v4123 = vmax.f32 %v3867, 0.0
  %v4124 = vmax.f32 %v3868, 0.0
  %v4125 = vmax.f32 %v3869, 0.0
  %v4126 = vmax.f32 %v3870, 0.0
  %v4127 = vmax.f32 %v3871, 0.0
  %v4128 = vmax.f32 %v3872, 0.0
  %v4129 = vmax.f32 %v3873, 0.0
  %v4130 = vmax.f32 %v3874, 0.0
  %v4131 = vmax.f32 %v3875, 0.0
  %v4132 = vmax.f32 %v3876, 0.0
  %v4133 = vmax.f32 %v3877, 0.0
  %v4134 = vmax.f32 %v3878, 0.0
  %v4135 = vmax.f32 %v3879, 0.0
  %v4136 = vmax.f32 %v3880, 0.0
  %v4137 = vmax.f32 %v3881, 0.0
  %v4138 = vmax.f32 %v3882, 0.0
  %v4139 = vmax.f32 %v3883, 0.0
  %v4140 = vmax.f32 %v3884, 0.0
  %v4141 = vmax.f32 %v3885, 0.0
  %v4142 = vmax.f32 %v3886, 0.0
  %v4143 = vmax.f32 %v3887, 0.0
  %v4144 = vmax.f32 %v3888, 0.0
  %v4145 = vmax.f32 %v3889, 0.0
  %v4146 = vmax.f32 %v3890, 0.0
  %v4147 = vmax.f32 %v3891, 0.0
  %v4148 = vmax.f32 %v3892, 0.0
  %v4149 = vmax.f32 %v3893, 0.0
  %v4150 = vmax.f32 %v3894, 0.0
  %v4151 = vmax.f32 %v3895, 0.0
  %v4152 = vmax.f32 %v3896, 0.0
  %v4153 = vmax.f32 %v3897, 0.0
  %v4154 = vmax.f32 %v3898, 0.0
  %v4155 = vmax.f32 %v3899, 0.0
  %v4156 = vmax.f32 %v3900, 0.0
  %v4157 = vmax.f32 %v3901, 0.0
  %v4158 = vmax.f32 %v3902, 0.0
  %v4159 = vmax.f32 %v3903, 0.0
  %v4160 = vmax.f32 %v3904, 0.0
  %v4161 = vmax.f32 %v3905, 0.0
  %v4162 = vmax.f32 %v3906, 0.0
  %v4163 = vmax.f32 %v3907, 0.0
  %v4164 = vmax.f32 %v3908, 0.0
  %v4165 = vmax.f32 %v3909, 0.0
  %v4166 = vmax.f32 %v3910, 0.0
  %v4167 = vmax.f32 %v3911, 0.0
  %v4168 = vmax.f32 %v3912, 0.0
  %v4169 = vmax.f32 %v3913, 0.0
  %v4170 = vmax.f32 %v3914, 0.0
  %v4171 = vmax.f32 %v3915, 0.0
  %v4172 = vmax.f32 %v3916, 0.0
  %v4173 = vmax.f32 %v3917, 0.0
  %v4174 = vmax.f32 %v3918, 0.0
  %v4175 = vmax.f32 %v3919, 0.0
  %v4176 = vmax.f32 %v3920, 0.0
  %v4177 = vmax.f32 %v3921, 0.0
  %v4178 = vmax.f32 %v3922, 0.0
  %v4179 = vmax.f32 %v3923, 0.0
  %v4180 = vmax.f32 %v3924, 0.0
  %v4181 = vmax.f32 %v3925, 0.0
  %v4182 = vmax.f32 %v3926, 0.0
  %v4183 = vmax.f32 %v3927, 0.0
  %v4184 = vmax.f32 %v3928, 0.0
  %v4185 = vmax.f32 %v3929, 0.0
  %v4186 = vmax.f32 %v3930, 0.0
  %v4187 = vmax.f32 %v3931, 0.0
  %v4188 = vmax.f32 %v3932, 0.0
  %v4189 = vmax.f32 %v3933, 0.0
  %v4190 = vmax.f32 %v3934, 0.0
  %v4191 = vmax.f32 %v3935, 0.0
  %v4192 = vmax.f32 %v3936, 0.0
  %v4193 = vmax.f32 %v3937, 0.0
  %v4194 = vmax.f32 %v3938, 0.0
  %v4195 = vmax.f32 %v3939, 0.0
  %v4196 = vmax.f32 %v3940, 0.0
  %v4197 = vmax.f32 %v3941, 0.0
  %v4198 = vmax.f32 %v3942, 0.0
  %v4199 = vmax.f32 %v3943, 0.0
  %v4200 = vmax.f32 %v3944, 0.0
  %v4201 = vmax.f32 %v3945, 0.0
  %v4202 = vmax.f32 %v3946, 0.0
  %v4203 = vmax.f32 %v3947, 0.0
  %v4204 = vmax.f32 %v3948, 0.0
  %v4205 = vmax.f32 %v3949, 0.0
  %v4206 = vmax.f32 %v3950, 0.0
  %v4207 = vmax.f32 %v3951, 0.0
  %v4208 = vmax.f32 %v3952, 0.0
  %v4209 = vmax.f32 %v3953, 0.0
  %v4210 = vmax.f32 %v3954, 0.0
  %v4211 = vmax.f32 %v3955, 0.0
  %v4212 = vmax.f32 %v3956, 0.0
  %v4213 = vmax.f32 %v3957, 0.0
  %v4214 = vmax.f32 %v3958, 0.0
  %v4215 = vmax.f32 %v3959, 0.0
  %v4216 = vmax.f32 %v3960, 0.0
  %v4217 = vmax.f32 %v3961, 0.0
  %v4218 = vmax.f32 %v3962, 0.0
  %v4219 = vmax.f32 %v3963, 0.0
  %v4220 = vmax.f32 %v3964, 0.0
  %v4221 = vmax.f32 %v3965, 0.0
  %v4222 = vmax.f32 %v3966, 0.0
  %v4223 = vmax.f32 %v3967, 0.0
  %v4224 = vmax.f32 %v3968, 0.0
  %v4225 = vmax.f32 %v3969, 0.0
  %v4226 = vmax.f32 %v3970, 0.0
  %v4227 = vmax.f32 %v3971, 0.0
  %v4228 = vmax.f32 %v3972, 0.0
  %v4229 = vmax.f32 %v3973, 0.0
  %v4230 = vmax.f32 %v3974, 0.0
  %v4231 = vmax.f32 %v3975, 0.0
  %v4232 = vmax.f32 %v3976, 0.0
  %v4233 = vmax.f32 %v3977, 0.0
  %v4234 = vmax.f32 %v3978, 0.0
  %v4235 = vmax.f32 %v3979, 0.0
  %v4236 = vmax.f32 %v3980, 0.0
  %v4237 = vmax.f32 %v3981, 0.0
  %v4238 = vmax.f32 %v3982, 0.0
  %v4239 = vmax.f32 %v3983, 0.0
  %v4240 = vmax.f32 %v3984, 0.0
  %v4241 = vmax.f32 %v3985, 0.0
  %v4242 = vmax.f32 %v3986, 0.0
  %v4243 = vmax.f32 %v3987, 0.0
  %v4244 = vmax.f32 %v3988, 0.0
  %v4245 = vmax.f32 %v3989, 0.0
  %v4246 = vmax.f32 %v3990, 0.0
  %v4247 = vmax.f32 %v3991, 0.0
  %v4248 = vmax.f32 %v3992, 0.0
  %v4249 = vmax.f32 %v3993, 0.0
  %v4250 = vmax.f32 %v3994, 0.0
  %v4251 = vmax.f32 %v3995, 0.0
  %v4252 = vmax.f32 %v3996, 0.0
  %v4253 = vmax.f32 %v3997, 0.0
  %v4254 = vmax.f32 %v3998, 0.0
  %v4255 = vmax.f32 %v3999, 0.0
  %v4256 = vmax.f32 %v4000, 0.0
  %v4257 = vmax.f32 %v4001, 0.0
  %v4258 = vmax.f32 %v4002, 0.0
  %v4259 = vmax.f32 %v4003, 0.0
  %v4260 = vmax.f32 %v4004, 0.0
  %v4261 = vmax.f32 %v4005, 0.0
  %v4262 = vmax.f32 %v4006, 0.0
  %v4263 = vmax.f32 %v4007, 0.0
  %v4264 = vmax.f32 %v4008, 0.0
  %v4265 = vmax.f32 %v4009, 0.0
  %v4266 = vmax.f32 %v4010, 0.0
  %v4267 = vmax.f32 %v4011, 0.0
  %v4268 = vmax.f32 %v4012, 0.0
  %v4269 = vmax.f32 %v4013, 0.0
  %v4270 = vmax.f32 %v4014, 0.0
  %v4271 = vmax.f32 %v4015, 0.0
  %v4272 = vmax.f32 %v4016, 0.0
  %v4273 = vmax.f32 %v4017, 0.0
  %v4274 = vmax.f32 %v4018, 0.0
  %v4275 = vmax.f32 %v4019, 0.0
  %v4276 = vmax.f32 %v4020, 0.0
  %v4277 = vmax.f32 %v4021, 0.0
  %v4278 = vmax.f32 %v4022, 0.0
  %v4279 = vmax.f32 %v4023, 0.0
  %v4280 = vmax.f32 %v4024, 0.0
  %v4281 = vmax.f32 %v4025, 0.0
  %v4282 = vmax.f32 %v4026, 0.0
  %v4283 = vmax.f32 %v4027, 0.0
  %v4284 = vmax.f32 %v4028, 0.0
  %v4285 = vmax.f32 %v4029, 0.0
  %v4286 = vmax.f32 %v4030, 0.0
  %v4287 = vmax.f32 %v4031, 0.0
  %v4288 = vmax.f32 %v4032, 0.0
  %v4289 = vmax.f32 %v4033, 0.0
  %v4290 = vmax.f32 %v4034, 0.0
  %v4291 = vmax.f32 %v4035, 0.0
  %v4292 = vmax.f32 %v4036, 0.0
  %v4293 = vpack.c.bf16 %v4037, %v4037
  %v4294 = vpack.c.bf16 %v4038, %v4038
  %v4295 = vpack.c.bf16 %v4039, %v4039
  %v4296 = vpack.c.bf16 %v4040, %v4040
  %v4297 = vpack.c.bf16 %v4041, %v4041
  %v4298 = vpack.c.bf16 %v4042, %v4042
  %v4299 = vpack.c.bf16 %v4043, %v4043
  %v4300 = vpack.c.bf16 %v4044, %v4044
  %v4301 = vpack.c.bf16 %v4045, %v4045
  %v4302 = vpack.c.bf16 %v4046, %v4046
  %v4303 = vpack.c.bf16 %v4047, %v4047
  %v4304 = vpack.c.bf16 %v4048, %v4048
  %v4305 = vpack.c.bf16 %v4049, %v4049
  %v4306 = vpack.c.bf16 %v4050, %v4050
  %v4307 = vpack.c.bf16 %v4051, %v4051
  %v4308 = vpack.c.bf16 %v4052, %v4052
  %v4309 = vpack.c.bf16 %v4053, %v4053
  %v4310 = vpack.c.bf16 %v4054, %v4054
  %v4311 = vpack.c.bf16 %v4055, %v4055
  %v4312 = vpack.c.bf16 %v4056, %v4056
  %v4313 = vpack.c.bf16 %v4057, %v4057
  %v4314 = vpack.c.bf16 %v4058, %v4058
  %v4315 = vpack.c.bf16 %v4059, %v4059
  %v4316 = vpack.c.bf16 %v4060, %v4060
  %v4317 = vpack.c.bf16 %v4061, %v4061
  %v4318 = vpack.c.bf16 %v4062, %v4062
  %v4319 = vpack.c.bf16 %v4063, %v4063
  %v4320 = vpack.c.bf16 %v4064, %v4064
  %v4321 = vpack.c.bf16 %v4065, %v4065
  %v4322 = vpack.c.bf16 %v4066, %v4066
  %v4323 = vpack.c.bf16 %v4067, %v4067
  %v4324 = vpack.c.bf16 %v4068, %v4068
  %v4325 = vpack.c.bf16 %v4069, %v4069
  %v4326 = vpack.c.bf16 %v4070, %v4070
  %v4327 = vpack.c.bf16 %v4071, %v4071
  %v4328 = vpack.c.bf16 %v4072, %v4072
  %v4329 = vpack.c.bf16 %v4073, %v4073
  %v4330 = vpack.c.bf16 %v4074, %v4074
  %v4331 = vpack.c.bf16 %v4075, %v4075
  %v4332 = vpack.c.bf16 %v4076, %v4076
  %v4333 = vpack.c.bf16 %v4077, %v4077
  %v4334 = vpack.c.bf16 %v4078, %v4078
  %v4335 = vpack.c.bf16 %v4079, %v4079
  %v4336 = vpack.c.bf16 %v4080, %v4080
  %v4337 = vpack.c.bf16 %v4081, %v4081
  %v4338 = vpack.c.bf16 %v4082, %v4082
  %v4339 = vpack.c.bf16 %v4083, %v4083
  %v4340 = vpack.c.bf16 %v4084, %v4084
  %v4341 = vpack.c.bf16 %v4085, %v4085
  %v4342 = vpack.c.bf16 %v4086, %v4086
  %v4343 = vpack.c.bf16 %v4087, %v4087
  %v4344 = vpack.c.bf16 %v4088, %v4088
  %v4345 = vpack.c.bf16 %v4089, %v4089
  %v4346 = vpack.c.bf16 %v4090, %v4090
  %v4347 = vpack.c.bf16 %v4091, %v4091
  %v4348 = vpack.c.bf16 %v4092, %v4092
  %v4349 = vpack.c.bf16 %v4093, %v4093
  %v4350 = vpack.c.bf16 %v4094, %v4094
  %v4351 = vpack.c.bf16 %v4095, %v4095
  %v4352 = vpack.c.bf16 %v4096, %v4096
  %v4353 = vpack.c.bf16 %v4097, %v4097
  %v4354 = vpack.c.bf16 %v4098, %v4098
  %v4355 = vpack.c.bf16 %v4099, %v4099
  %v4356 = vpack.c.bf16 %v4100, %v4100
  %v4357 = vpack.c.bf16 %v4101, %v4101
  %v4358 = vpack.c.bf16 %v4102, %v4102
  %v4359 = vpack.c.bf16 %v4103, %v4103
  %v4360 = vpack.c.bf16 %v4104, %v4104
  %v4361 = vpack.c.bf16 %v4105, %v4105
  %v4362 = vpack.c.bf16 %v4106, %v4106
  %v4363 = vpack.c.bf16 %v4107, %v4107
  %v4364 = vpack.c.bf16 %v4108, %v4108
  %v4365 = vpack.c.bf16 %v4109, %v4109
  %v4366 = vpack.c.bf16 %v4110, %v4110
  %v4367 = vpack.c.bf16 %v4111, %v4111
  %v4368 = vpack.c.bf16 %v4112, %v4112
  %v4369 = vpack.c.bf16 %v4113, %v4113
  %v4370 = vpack.c.bf16 %v4114, %v4114
  %v4371 = vpack.c.bf16 %v4115, %v4115
  %v4372 = vpack.c.bf16 %v4116, %v4116
  %v4373 = vpack.c.bf16 %v4117, %v4117
  %v4374 = vpack.c.bf16 %v4118, %v4118
  %v4375 = vpack.c.bf16 %v4119, %v4119
  %v4376 = vpack.c.bf16 %v4120, %v4120
  %v4377 = vpack.c.bf16 %v4121, %v4121
  %v4378 = vpack.c.bf16 %v4122, %v4122
  %v4379 = vpack.c.bf16 %v4123, %v4123
  %v4380 = vpack.c.bf16 %v4124, %v4124
  %v4381 = vpack.c.bf16 %v4125, %v4125
  %v4382 = vpack.c.bf16 %v4126, %v4126
  %v4383 = vpack.c.bf16 %v4127, %v4127
  %v4384 = vpack.c.bf16 %v4128, %v4128
  %v4385 = vpack.c.bf16 %v4129, %v4129
  %v4386 = vpack.c.bf16 %v4130, %v4130
  %v4387 = vpack.c.bf16 %v4131, %v4131
  %v4388 = vpack.c.bf16 %v4132, %v4132
  %v4389 = vpack.c.bf16 %v4133, %v4133
  %v4390 = vpack.c.bf16 %v4134, %v4134
  %v4391 = vpack.c.bf16 %v4135, %v4135
  %v4392 = vpack.c.bf16 %v4136, %v4136
  %v4393 = vpack.c.bf16 %v4137, %v4137
  %v4394 = vpack.c.bf16 %v4138, %v4138
  %v4395 = vpack.c.bf16 %v4139, %v4139
  %v4396 = vpack.c.bf16 %v4140, %v4140
  %v4397 = vpack.c.bf16 %v4141, %v4141
  %v4398 = vpack.c.bf16 %v4142, %v4142
  %v4399 = vpack.c.bf16 %v4143, %v4143
  %v4400 = vpack.c.bf16 %v4144, %v4144
  %v4401 = vpack.c.bf16 %v4145, %v4145
  %v4402 = vpack.c.bf16 %v4146, %v4146
  %v4403 = vpack.c.bf16 %v4147, %v4147
  %v4404 = vpack.c.bf16 %v4148, %v4148
  %v4405 = vpack.c.bf16 %v4149, %v4149
  %v4406 = vpack.c.bf16 %v4150, %v4150
  %v4407 = vpack.c.bf16 %v4151, %v4151
  %v4408 = vpack.c.bf16 %v4152, %v4152
  %v4409 = vpack.c.bf16 %v4153, %v4153
  %v4410 = vpack.c.bf16 %v4154, %v4154
  %v4411 = vpack.c.bf16 %v4155, %v4155
  %v4412 = vpack.c.bf16 %v4156, %v4156
  %v4413 = vpack.c.bf16 %v4157, %v4157
  %v4414 = vpack.c.bf16 %v4158, %v4158
  %v4415 = vpack.c.bf16 %v4159, %v4159
  %v4416 = vpack.c.bf16 %v4160, %v4160
  %v4417 = vpack.c.bf16 %v4161, %v4161
  %v4418 = vpack.c.bf16 %v4162, %v4162
  %v4419 = vpack.c.bf16 %v4163, %v4163
  %v4420 = vpack.c.bf16 %v4164, %v4164
  %v4421 = vpack.c.bf16 %v4165, %v4165
  %v4422 = vpack.c.bf16 %v4166, %v4166
  %v4423 = vpack.c.bf16 %v4167, %v4167
  %v4424 = vpack.c.bf16 %v4168, %v4168
  %v4425 = vpack.c.bf16 %v4169, %v4169
  %v4426 = vpack.c.bf16 %v4170, %v4170
  %v4427 = vpack.c.bf16 %v4171, %v4171
  %v4428 = vpack.c.bf16 %v4172, %v4172
  %v4429 = vpack.c.bf16 %v4173, %v4173
  %v4430 = vpack.c.bf16 %v4174, %v4174
  %v4431 = vpack.c.bf16 %v4175, %v4175
  %v4432 = vpack.c.bf16 %v4176, %v4176
  %v4433 = vpack.c.bf16 %v4177, %v4177
  %v4434 = vpack.c.bf16 %v4178, %v4178
  %v4435 = vpack.c.bf16 %v4179, %v4179
  %v4436 = vpack.c.bf16 %v4180, %v4180
  %v4437 = vpack.c.bf16 %v4181, %v4181
  %v4438 = vpack.c.bf16 %v4182, %v4182
  %v4439 = vpack.c.bf16 %v4183, %v4183
  %v4440 = vpack.c.bf16 %v4184, %v4184
  %v4441 = vpack.c.bf16 %v4185, %v4185
  %v4442 = vpack.c.bf16 %v4186, %v4186
  %v4443 = vpack.c.bf16 %v4187, %v4187
  %v4444 = vpack.c.bf16 %v4188, %v4188
  %v4445 = vpack.c.bf16 %v4189, %v4189
  %v4446 = vpack.c.bf16 %v4190, %v4190
  %v4447 = vpack.c.bf16 %v4191, %v4191
  %v4448 = vpack.c.bf16 %v4192, %v4192
  %v4449 = vpack.c.bf16 %v4193, %v4193
  %v4450 = vpack.c.bf16 %v4194, %v4194
  %v4451 = vpack.c.bf16 %v4195, %v4195
  %v4452 = vpack.c.bf16 %v4196, %v4196
  %v4453 = vpack.c.bf16 %v4197, %v4197
  %v4454 = vpack.c.bf16 %v4198, %v4198
  %v4455 = vpack.c.bf16 %v4199, %v4199
  %v4456 = vpack.c.bf16 %v4200, %v4200
  %v4457 = vpack.c.bf16 %v4201, %v4201
  %v4458 = vpack.c.bf16 %v4202, %v4202
  %v4459 = vpack.c.bf16 %v4203, %v4203
  %v4460 = vpack.c.bf16 %v4204, %v4204
  %v4461 = vpack.c.bf16 %v4205, %v4205
  %v4462 = vpack.c.bf16 %v4206, %v4206
  %v4463 = vpack.c.bf16 %v4207, %v4207
  %v4464 = vpack.c.bf16 %v4208, %v4208
  %v4465 = vpack.c.bf16 %v4209, %v4209
  %v4466 = vpack.c.bf16 %v4210, %v4210
  %v4467 = vpack.c.bf16 %v4211, %v4211
  %v4468 = vpack.c.bf16 %v4212, %v4212
  %v4469 = vpack.c.bf16 %v4213, %v4213
  %v4470 = vpack.c.bf16 %v4214, %v4214
  %v4471 = vpack.c.bf16 %v4215, %v4215
  %v4472 = vpack.c.bf16 %v4216, %v4216
  %v4473 = vpack.c.bf16 %v4217, %v4217
  %v4474 = vpack.c.bf16 %v4218, %v4218
  %v4475 = vpack.c.bf16 %v4219, %v4219
  %v4476 = vpack.c.bf16 %v4220, %v4220
  %v4477 = vpack.c.bf16 %v4221, %v4221
  %v4478 = vpack.c.bf16 %v4222, %v4222
  %v4479 = vpack.c.bf16 %v4223, %v4223
  %v4480 = vpack.c.bf16 %v4224, %v4224
  %v4481 = vpack.c.bf16 %v4225, %v4225
  %v4482 = vpack.c.bf16 %v4226, %v4226
  %v4483 = vpack.c.bf16 %v4227, %v4227
  %v4484 = vpack.c.bf16 %v4228, %v4228
  %v4485 = vpack.c.bf16 %v4229, %v4229
  %v4486 = vpack.c.bf16 %v4230, %v4230
  %v4487 = vpack.c.bf16 %v4231, %v4231
  %v4488 = vpack.c.bf16 %v4232, %v4232
  %v4489 = vpack.c.bf16 %v4233, %v4233
  %v4490 = vpack.c.bf16 %v4234, %v4234
  %v4491 = vpack.c.bf16 %v4235, %v4235
  %v4492 = vpack.c.bf16 %v4236, %v4236
  %v4493 = vpack.c.bf16 %v4237, %v4237
  %v4494 = vpack.c.bf16 %v4238, %v4238
  %v4495 = vpack.c.bf16 %v4239, %v4239
  %v4496 = vpack.c.bf16 %v4240, %v4240
  %v4497 = vpack.c.bf16 %v4241, %v4241
  %v4498 = vpack.c.bf16 %v4242, %v4242
  %v4499 = vpack.c.bf16 %v4243, %v4243
  %v4500 = vpack.c.bf16 %v4244, %v4244
  %v4501 = vpack.c.bf16 %v4245, %v4245
  %v4502 = vpack.c.bf16 %v4246, %v4246
  %v4503 = vpack.c.bf16 %v4247, %v4247
  %v4504 = vpack.c.bf16 %v4248, %v4248
  %v4505 = vpack.c.bf16 %v4249, %v4249
  %v4506 = vpack.c.bf16 %v4250, %v4250
  %v4507 = vpack.c.bf16 %v4251, %v4251
  %v4508 = vpack.c.bf16 %v4252, %v4252
  %v4509 = vpack.c.bf16 %v4253, %v4253
  %v4510 = vpack.c.bf16 %v4254, %v4254
  %v4511 = vpack.c.bf16 %v4255, %v4255
  %v4512 = vpack.c.bf16 %v4256, %v4256
  %v4513 = vpack.c.bf16 %v4257, %v4257
  %v4514 = vpack.c.bf16 %v4258, %v4258
  %v4515 = vpack.c.bf16 %v4259, %v4259
  %v4516 = vpack.c.bf16 %v4260, %v4260
  %v4517 = vpack.c.bf16 %v4261, %v4261
  %v4518 = vpack.c.bf16 %v4262, %v4262
  %v4519 = vpack.c.bf16 %v4263, %v4263
  %v4520 = vpack.c.bf16 %v4264, %v4264
  %v4521 = vpack.c.bf16 %v4265, %v4265
  %v4522 = vpack.c.bf16 %v4266, %v4266
  %v4523 = vpack.c.bf16 %v4267, %v4267
  %v4524 = vpack.c.bf16 %v4268, %v4268
  %v4525 = vpack.c.bf16 %v4269, %v4269
  %v4526 = vpack.c.bf16 %v4270, %v4270
  %v4527 = vpack.c.bf16 %v4271, %v4271
  %v4528 = vpack.c.bf16 %v4272, %v4272
  %v4529 = vpack.c.bf16 %v4273, %v4273
  %v4530 = vpack.c.bf16 %v4274, %v4274
  %v4531 = vpack.c.bf16 %v4275, %v4275
  %v4532 = vpack.c.bf16 %v4276, %v4276
  %v4533 = vpack.c.bf16 %v4277, %v4277
  %v4534 = vpack.c.bf16 %v4278, %v4278
  %v4535 = vpack.c.bf16 %v4279, %v4279
  %v4536 = vpack.c.bf16 %v4280, %v4280
  %v4537 = vpack.c.bf16 %v4281, %v4281
  %v4538 = vpack.c.bf16 %v4282, %v4282
  %v4539 = vpack.c.bf16 %v4283, %v4283
  %v4540 = vpack.c.bf16 %v4284, %v4284
  %v4541 = vpack.c.bf16 %v4285, %v4285
  %v4542 = vpack.c.bf16 %v4286, %v4286
  %v4543 = vpack.c.bf16 %v4287, %v4287
  %v4544 = vpack.c.bf16 %v4288, %v4288
  %v4545 = vpack.c.bf16 %v4289, %v4289
  %v4546 = vpack.c.bf16 %v4290, %v4290
  %v4547 = vpack.c.bf16 %v4291, %v4291
  %v4548 = vpack.c.bf16 %v4292, %v4292
  %vm4549 = vcmask 257024
  %4550 = vst.msk [vmem:[%s4] sm:$0xf] %vm4549, %v4293
  %4551 = vst.msk [vmem:[%s4 + $0x4] sm:$0xf] %vm4549, %v4294
  %4552 = vst.msk [vmem:[%s4 + $0x8] sm:$0xf] %vm4549, %v4295
  %4553 = vst.msk [vmem:[%s4 + $0xc] sm:$0xf] %vm4549, %v4296
  %4554 = vst.msk [vmem:[%s4 + $0x10] sm:$0xf] %vm4549, %v4297
  %4555 = vst.msk [vmem:[%s4 + $0x14] sm:$0xf] %vm4549, %v4298
  %4556 = vst.msk [vmem:[%s4 + $0x18] sm:$0xf] %vm4549, %v4299
  %4557 = vst.msk [vmem:[%s4 + $0x1c] sm:$0xf] %vm4549, %v4300
  %4558 = vst.msk [vmem:[%s4 + $0x20] sm:$0xf] %vm4549, %v4301
  %4559 = vst.msk [vmem:[%s4 + $0x24] sm:$0xf] %vm4549, %v4302
  %4560 = vst.msk [vmem:[%s4 + $0x28] sm:$0xf] %vm4549, %v4303
  %4561 = vst.msk [vmem:[%s4 + $0x2c] sm:$0xf] %vm4549, %v4304
  %4562 = vst.msk [vmem:[%s4 + $0x30] sm:$0xf] %vm4549, %v4305
  %4563 = vst.msk [vmem:[%s4 + $0x34] sm:$0xf] %vm4549, %v4306
  %4564 = vst.msk [vmem:[%s4 + $0x38] sm:$0xf] %vm4549, %v4307
  %4565 = vst.msk [vmem:[%s4 + $0x3c] sm:$0xf] %vm4549, %v4308
  %4566 = vst.msk [vmem:[%s4 + $0x40] sm:$0xf] %vm4549, %v4309
  %4567 = vst.msk [vmem:[%s4 + $0x44] sm:$0xf] %vm4549, %v4310
  %4568 = vst.msk [vmem:[%s4 + $0x48] sm:$0xf] %vm4549, %v4311
  %4569 = vst.msk [vmem:[%s4 + $0x4c] sm:$0xf] %vm4549, %v4312
  %4570 = vst.msk [vmem:[%s4 + $0x50] sm:$0xf] %vm4549, %v4313
  %4571 = vst.msk [vmem:[%s4 + $0x54] sm:$0xf] %vm4549, %v4314
  %4572 = vst.msk [vmem:[%s4 + $0x58] sm:$0xf] %vm4549, %v4315
  %4573 = vst.msk [vmem:[%s4 + $0x5c] sm:$0xf] %vm4549, %v4316
  %4574 = vst.msk [vmem:[%s4 + $0x60] sm:$0xf] %vm4549, %v4317
  %4575 = vst.msk [vmem:[%s4 + $0x64] sm:$0xf] %vm4549, %v4318
  %4576 = vst.msk [vmem:[%s4 + $0x68] sm:$0xf] %vm4549, %v4319
  %4577 = vst.msk [vmem:[%s4 + $0x6c] sm:$0xf] %vm4549, %v4320
  %4578 = vst.msk [vmem:[%s4 + $0x70] sm:$0xf] %vm4549, %v4321
  %4579 = vst.msk [vmem:[%s4 + $0x74] sm:$0xf] %vm4549, %v4322
  %4580 = vst.msk [vmem:[%s4 + $0x78] sm:$0xf] %vm4549, %v4323
  %4581 = vst.msk [vmem:[%s4 + $0x7c] sm:$0xf] %vm4549, %v4324
  %4582 = vst.msk [vmem:[%s4 + $0x80] sm:$0xf] %vm4549, %v4325
  %4583 = vst.msk [vmem:[%s4 + $0x84] sm:$0xf] %vm4549, %v4326
  %4584 = vst.msk [vmem:[%s4 + $0x88] sm:$0xf] %vm4549, %v4327
  %4585 = vst.msk [vmem:[%s4 + $0x8c] sm:$0xf] %vm4549, %v4328
  %4586 = vst.msk [vmem:[%s4 + $0x90] sm:$0xf] %vm4549, %v4329
  %4587 = vst.msk [vmem:[%s4 + $0x94] sm:$0xf] %vm4549, %v4330
  %4588 = vst.msk [vmem:[%s4 + $0x98] sm:$0xf] %vm4549, %v4331
  %4589 = vst.msk [vmem:[%s4 + $0x9c] sm:$0xf] %vm4549, %v4332
  %4590 = vst.msk [vmem:[%s4 + $0xa0] sm:$0xf] %vm4549, %v4333
  %4591 = vst.msk [vmem:[%s4 + $0xa4] sm:$0xf] %vm4549, %v4334
  %4592 = vst.msk [vmem:[%s4 + $0xa8] sm:$0xf] %vm4549, %v4335
  %4593 = vst.msk [vmem:[%s4 + $0xac] sm:$0xf] %vm4549, %v4336
  %4594 = vst.msk [vmem:[%s4 + $0xb0] sm:$0xf] %vm4549, %v4337
  %4595 = vst.msk [vmem:[%s4 + $0xb4] sm:$0xf] %vm4549, %v4338
  %4596 = vst.msk [vmem:[%s4 + $0xb8] sm:$0xf] %vm4549, %v4339
  %4597 = vst.msk [vmem:[%s4 + $0xbc] sm:$0xf] %vm4549, %v4340
  %4598 = vst.msk [vmem:[%s4 + $0xc0] sm:$0xf] %vm4549, %v4341
  %4599 = vst.msk [vmem:[%s4 + $0xc4] sm:$0xf] %vm4549, %v4342
  %4600 = vst.msk [vmem:[%s4 + $0xc8] sm:$0xf] %vm4549, %v4343
  %4601 = vst.msk [vmem:[%s4 + $0xcc] sm:$0xf] %vm4549, %v4344
  %4602 = vst.msk [vmem:[%s4 + $0xd0] sm:$0xf] %vm4549, %v4345
  %4603 = vst.msk [vmem:[%s4 + $0xd4] sm:$0xf] %vm4549, %v4346
  %4604 = vst.msk [vmem:[%s4 + $0xd8] sm:$0xf] %vm4549, %v4347
  %4605 = vst.msk [vmem:[%s4 + $0xdc] sm:$0xf] %vm4549, %v4348
  %4606 = vst.msk [vmem:[%s4 + $0xe0] sm:$0xf] %vm4549, %v4349
  %4607 = vst.msk [vmem:[%s4 + $0xe4] sm:$0xf] %vm4549, %v4350
  %4608 = vst.msk [vmem:[%s4 + $0xe8] sm:$0xf] %vm4549, %v4351
  %4609 = vst.msk [vmem:[%s4 + $0xec] sm:$0xf] %vm4549, %v4352
  %4610 = vst.msk [vmem:[%s4 + $0xf0] sm:$0xf] %vm4549, %v4353
  %4611 = vst.msk [vmem:[%s4 + $0xf4] sm:$0xf] %vm4549, %v4354
  %4612 = vst.msk [vmem:[%s4 + $0xf8] sm:$0xf] %vm4549, %v4355
  %4613 = vst.msk [vmem:[%s4 + $0xfc] sm:$0xf] %vm4549, %v4356
  %4614 = vst.msk [vmem:[%s4 + $0x100] sm:$0xf] %vm4549, %v4357
  %4615 = vst.msk [vmem:[%s4 + $0x104] sm:$0xf] %vm4549, %v4358
  %4616 = vst.msk [vmem:[%s4 + $0x108] sm:$0xf] %vm4549, %v4359
  %4617 = vst.msk [vmem:[%s4 + $0x10c] sm:$0xf] %vm4549, %v4360
  %4618 = vst.msk [vmem:[%s4 + $0x110] sm:$0xf] %vm4549, %v4361
  %4619 = vst.msk [vmem:[%s4 + $0x114] sm:$0xf] %vm4549, %v4362
  %4620 = vst.msk [vmem:[%s4 + $0x118] sm:$0xf] %vm4549, %v4363
  %4621 = vst.msk [vmem:[%s4 + $0x11c] sm:$0xf] %vm4549, %v4364
  %4622 = vst.msk [vmem:[%s4 + $0x120] sm:$0xf] %vm4549, %v4365
  %4623 = vst.msk [vmem:[%s4 + $0x124] sm:$0xf] %vm4549, %v4366
  %4624 = vst.msk [vmem:[%s4 + $0x128] sm:$0xf] %vm4549, %v4367
  %4625 = vst.msk [vmem:[%s4 + $0x12c] sm:$0xf] %vm4549, %v4368
  %4626 = vst.msk [vmem:[%s4 + $0x130] sm:$0xf] %vm4549, %v4369
  %4627 = vst.msk [vmem:[%s4 + $0x134] sm:$0xf] %vm4549, %v4370
  %4628 = vst.msk [vmem:[%s4 + $0x138] sm:$0xf] %vm4549, %v4371
  %4629 = vst.msk [vmem:[%s4 + $0x13c] sm:$0xf] %vm4549, %v4372
  %4630 = vst.msk [vmem:[%s4 + $0x140] sm:$0xf] %vm4549, %v4373
  %4631 = vst.msk [vmem:[%s4 + $0x144] sm:$0xf] %vm4549, %v4374
  %4632 = vst.msk [vmem:[%s4 + $0x148] sm:$0xf] %vm4549, %v4375
  %4633 = vst.msk [vmem:[%s4 + $0x14c] sm:$0xf] %vm4549, %v4376
  %4634 = vst.msk [vmem:[%s4 + $0x150] sm:$0xf] %vm4549, %v4377
  %4635 = vst.msk [vmem:[%s4 + $0x154] sm:$0xf] %vm4549, %v4378
  %4636 = vst.msk [vmem:[%s4 + $0x158] sm:$0xf] %vm4549, %v4379
  %4637 = vst.msk [vmem:[%s4 + $0x15c] sm:$0xf] %vm4549, %v4380
  %4638 = vst.msk [vmem:[%s4 + $0x160] sm:$0xf] %vm4549, %v4381
  %4639 = vst.msk [vmem:[%s4 + $0x164] sm:$0xf] %vm4549, %v4382
  %4640 = vst.msk [vmem:[%s4 + $0x168] sm:$0xf] %vm4549, %v4383
  %4641 = vst.msk [vmem:[%s4 + $0x16c] sm:$0xf] %vm4549, %v4384
  %4642 = vst.msk [vmem:[%s4 + $0x170] sm:$0xf] %vm4549, %v4385
  %4643 = vst.msk [vmem:[%s4 + $0x174] sm:$0xf] %vm4549, %v4386
  %4644 = vst.msk [vmem:[%s4 + $0x178] sm:$0xf] %vm4549, %v4387
  %4645 = vst.msk [vmem:[%s4 + $0x17c] sm:$0xf] %vm4549, %v4388
  %4646 = vst.msk [vmem:[%s4 + $0x180] sm:$0xf] %vm4549, %v4389
  %4647 = vst.msk [vmem:[%s4 + $0x184] sm:$0xf] %vm4549, %v4390
  %4648 = vst.msk [vmem:[%s4 + $0x188] sm:$0xf] %vm4549, %v4391
  %4649 = vst.msk [vmem:[%s4 + $0x18c] sm:$0xf] %vm4549, %v4392
  %4650 = vst.msk [vmem:[%s4 + $0x190] sm:$0xf] %vm4549, %v4393
  %4651 = vst.msk [vmem:[%s4 + $0x194] sm:$0xf] %vm4549, %v4394
  %4652 = vst.msk [vmem:[%s4 + $0x198] sm:$0xf] %vm4549, %v4395
  %4653 = vst.msk [vmem:[%s4 + $0x19c] sm:$0xf] %vm4549, %v4396
  %4654 = vst.msk [vmem:[%s4 + $0x1a0] sm:$0xf] %vm4549, %v4397
  %4655 = vst.msk [vmem:[%s4 + $0x1a4] sm:$0xf] %vm4549, %v4398
  %4656 = vst.msk [vmem:[%s4 + $0x1a8] sm:$0xf] %vm4549, %v4399
  %4657 = vst.msk [vmem:[%s4 + $0x1ac] sm:$0xf] %vm4549, %v4400
  %4658 = vst.msk [vmem:[%s4 + $0x1b0] sm:$0xf] %vm4549, %v4401
  %4659 = vst.msk [vmem:[%s4 + $0x1b4] sm:$0xf] %vm4549, %v4402
  %4660 = vst.msk [vmem:[%s4 + $0x1b8] sm:$0xf] %vm4549, %v4403
  %4661 = vst.msk [vmem:[%s4 + $0x1bc] sm:$0xf] %vm4549, %v4404
  %4662 = vst.msk [vmem:[%s4 + $0x1c0] sm:$0xf] %vm4549, %v4405
  %4663 = vst.msk [vmem:[%s4 + $0x1c4] sm:$0xf] %vm4549, %v4406
  %4664 = vst.msk [vmem:[%s4 + $0x1c8] sm:$0xf] %vm4549, %v4407
  %4665 = vst.msk [vmem:[%s4 + $0x1cc] sm:$0xf] %vm4549, %v4408
  %4666 = vst.msk [vmem:[%s4 + $0x1d0] sm:$0xf] %vm4549, %v4409
  %4667 = vst.msk [vmem:[%s4 + $0x1d4] sm:$0xf] %vm4549, %v4410
  %4668 = vst.msk [vmem:[%s4 + $0x1d8] sm:$0xf] %vm4549, %v4411
  %4669 = vst.msk [vmem:[%s4 + $0x1dc] sm:$0xf] %vm4549, %v4412
  %4670 = vst.msk [vmem:[%s4 + $0x1e0] sm:$0xf] %vm4549, %v4413
  %4671 = vst.msk [vmem:[%s4 + $0x1e4] sm:$0xf] %vm4549, %v4414
  %4672 = vst.msk [vmem:[%s4 + $0x1e8] sm:$0xf] %vm4549, %v4415
  %4673 = vst.msk [vmem:[%s4 + $0x1ec] sm:$0xf] %vm4549, %v4416
  %4674 = vst.msk [vmem:[%s4 + $0x1f0] sm:$0xf] %vm4549, %v4417
  %4675 = vst.msk [vmem:[%s4 + $0x1f4] sm:$0xf] %vm4549, %v4418
  %4676 = vst.msk [vmem:[%s4 + $0x1f8] sm:$0xf] %vm4549, %v4419
  %4677 = vst.msk [vmem:[%s4 + $0x1fc] sm:$0xf] %vm4549, %v4420
  %4678 = vst.msk [vmem:[%s4 + $0x200] sm:$0xf] %vm4549, %v4421
  %4679 = vst.msk [vmem:[%s4 + $0x204] sm:$0xf] %vm4549, %v4422
  %4680 = vst.msk [vmem:[%s4 + $0x208] sm:$0xf] %vm4549, %v4423
  %4681 = vst.msk [vmem:[%s4 + $0x20c] sm:$0xf] %vm4549, %v4424
  %4682 = vst.msk [vmem:[%s4 + $0x210] sm:$0xf] %vm4549, %v4425
  %4683 = vst.msk [vmem:[%s4 + $0x214] sm:$0xf] %vm4549, %v4426
  %4684 = vst.msk [vmem:[%s4 + $0x218] sm:$0xf] %vm4549, %v4427
  %4685 = vst.msk [vmem:[%s4 + $0x21c] sm:$0xf] %vm4549, %v4428
  %4686 = vst.msk [vmem:[%s4 + $0x220] sm:$0xf] %vm4549, %v4429
  %4687 = vst.msk [vmem:[%s4 + $0x224] sm:$0xf] %vm4549, %v4430
  %4688 = vst.msk [vmem:[%s4 + $0x228] sm:$0xf] %vm4549, %v4431
  %4689 = vst.msk [vmem:[%s4 + $0x22c] sm:$0xf] %vm4549, %v4432
  %4690 = vst.msk [vmem:[%s4 + $0x230] sm:$0xf] %vm4549, %v4433
  %4691 = vst.msk [vmem:[%s4 + $0x234] sm:$0xf] %vm4549, %v4434
  %4692 = vst.msk [vmem:[%s4 + $0x238] sm:$0xf] %vm4549, %v4435
  %4693 = vst.msk [vmem:[%s4 + $0x23c] sm:$0xf] %vm4549, %v4436
  %4694 = vst.msk [vmem:[%s4 + $0x240] sm:$0xf] %vm4549, %v4437
  %4695 = vst.msk [vmem:[%s4 + $0x244] sm:$0xf] %vm4549, %v4438
  %4696 = vst.msk [vmem:[%s4 + $0x248] sm:$0xf] %vm4549, %v4439
  %4697 = vst.msk [vmem:[%s4 + $0x24c] sm:$0xf] %vm4549, %v4440
  %4698 = vst.msk [vmem:[%s4 + $0x250] sm:$0xf] %vm4549, %v4441
  %4699 = vst.msk [vmem:[%s4 + $0x254] sm:$0xf] %vm4549, %v4442
  %4700 = vst.msk [vmem:[%s4 + $0x258] sm:$0xf] %vm4549, %v4443
  %4701 = vst.msk [vmem:[%s4 + $0x25c] sm:$0xf] %vm4549, %v4444
  %4702 = vst.msk [vmem:[%s4 + $0x260] sm:$0xf] %vm4549, %v4445
  %4703 = vst.msk [vmem:[%s4 + $0x264] sm:$0xf] %vm4549, %v4446
  %4704 = vst.msk [vmem:[%s4 + $0x268] sm:$0xf] %vm4549, %v4447
  %4705 = vst.msk [vmem:[%s4 + $0x26c] sm:$0xf] %vm4549, %v4448
  %4706 = vst.msk [vmem:[%s4 + $0x270] sm:$0xf] %vm4549, %v4449
  %4707 = vst.msk [vmem:[%s4 + $0x274] sm:$0xf] %vm4549, %v4450
  %4708 = vst.msk [vmem:[%s4 + $0x278] sm:$0xf] %vm4549, %v4451
  %4709 = vst.msk [vmem:[%s4 + $0x27c] sm:$0xf] %vm4549, %v4452
  %4710 = vst.msk [vmem:[%s4 + $0x280] sm:$0xf] %vm4549, %v4453
  %4711 = vst.msk [vmem:[%s4 + $0x284] sm:$0xf] %vm4549, %v4454
  %4712 = vst.msk [vmem:[%s4 + $0x288] sm:$0xf] %vm4549, %v4455
  %4713 = vst.msk [vmem:[%s4 + $0x28c] sm:$0xf] %vm4549, %v4456
  %4714 = vst.msk [vmem:[%s4 + $0x290] sm:$0xf] %vm4549, %v4457
  %4715 = vst.msk [vmem:[%s4 + $0x294] sm:$0xf] %vm4549, %v4458
  %4716 = vst.msk [vmem:[%s4 + $0x298] sm:$0xf] %vm4549, %v4459
  %4717 = vst.msk [vmem:[%s4 + $0x29c] sm:$0xf] %vm4549, %v4460
  %4718 = vst.msk [vmem:[%s4 + $0x2a0] sm:$0xf] %vm4549, %v4461
  %4719 = vst.msk [vmem:[%s4 + $0x2a4] sm:$0xf] %vm4549, %v4462
  %4720 = vst.msk [vmem:[%s4 + $0x2a8] sm:$0xf] %vm4549, %v4463
  %4721 = vst.msk [vmem:[%s4 + $0x2ac] sm:$0xf] %vm4549, %v4464
  %4722 = vst.msk [vmem:[%s4 + $0x2b0] sm:$0xf] %vm4549, %v4465
  %4723 = vst.msk [vmem:[%s4 + $0x2b4] sm:$0xf] %vm4549, %v4466
  %4724 = vst.msk [vmem:[%s4 + $0x2b8] sm:$0xf] %vm4549, %v4467
  %4725 = vst.msk [vmem:[%s4 + $0x2bc] sm:$0xf] %vm4549, %v4468
  %4726 = vst.msk [vmem:[%s4 + $0x2c0] sm:$0xf] %vm4549, %v4469
  %4727 = vst.msk [vmem:[%s4 + $0x2c4] sm:$0xf] %vm4549, %v4470
  %4728 = vst.msk [vmem:[%s4 + $0x2c8] sm:$0xf] %vm4549, %v4471
  %4729 = vst.msk [vmem:[%s4 + $0x2cc] sm:$0xf] %vm4549, %v4472
  %4730 = vst.msk [vmem:[%s4 + $0x2d0] sm:$0xf] %vm4549, %v4473
  %4731 = vst.msk [vmem:[%s4 + $0x2d4] sm:$0xf] %vm4549, %v4474
  %4732 = vst.msk [vmem:[%s4 + $0x2d8] sm:$0xf] %vm4549, %v4475
  %4733 = vst.msk [vmem:[%s4 + $0x2dc] sm:$0xf] %vm4549, %v4476
  %4734 = vst.msk [vmem:[%s4 + $0x2e0] sm:$0xf] %vm4549, %v4477
  %4735 = vst.msk [vmem:[%s4 + $0x2e4] sm:$0xf] %vm4549, %v4478
  %4736 = vst.msk [vmem:[%s4 + $0x2e8] sm:$0xf] %vm4549, %v4479
  %4737 = vst.msk [vmem:[%s4 + $0x2ec] sm:$0xf] %vm4549, %v4480
  %4738 = vst.msk [vmem:[%s4 + $0x2f0] sm:$0xf] %vm4549, %v4481
  %4739 = vst.msk [vmem:[%s4 + $0x2f4] sm:$0xf] %vm4549, %v4482
  %4740 = vst.msk [vmem:[%s4 + $0x2f8] sm:$0xf] %vm4549, %v4483
  %4741 = vst.msk [vmem:[%s4 + $0x2fc] sm:$0xf] %vm4549, %v4484
  %4742 = vst.msk [vmem:[%s4 + $0x300] sm:$0xf] %vm4549, %v4485
  %4743 = vst.msk [vmem:[%s4 + $0x304] sm:$0xf] %vm4549, %v4486
  %4744 = vst.msk [vmem:[%s4 + $0x308] sm:$0xf] %vm4549, %v4487
  %4745 = vst.msk [vmem:[%s4 + $0x30c] sm:$0xf] %vm4549, %v4488
  %4746 = vst.msk [vmem:[%s4 + $0x310] sm:$0xf] %vm4549, %v4489
  %4747 = vst.msk [vmem:[%s4 + $0x314] sm:$0xf] %vm4549, %v4490
  %4748 = vst.msk [vmem:[%s4 + $0x318] sm:$0xf] %vm4549, %v4491
  %4749 = vst.msk [vmem:[%s4 + $0x31c] sm:$0xf] %vm4549, %v4492
  %4750 = vst.msk [vmem:[%s4 + $0x320] sm:$0xf] %vm4549, %v4493
  %4751 = vst.msk [vmem:[%s4 + $0x324] sm:$0xf] %vm4549, %v4494
  %4752 = vst.msk [vmem:[%s4 + $0x328] sm:$0xf] %vm4549, %v4495
  %4753 = vst.msk [vmem:[%s4 + $0x32c] sm:$0xf] %vm4549, %v4496
  %4754 = vst.msk [vmem:[%s4 + $0x330] sm:$0xf] %vm4549, %v4497
  %4755 = vst.msk [vmem:[%s4 + $0x334] sm:$0xf] %vm4549, %v4498
  %4756 = vst.msk [vmem:[%s4 + $0x338] sm:$0xf] %vm4549, %v4499
  %4757 = vst.msk [vmem:[%s4 + $0x33c] sm:$0xf] %vm4549, %v4500
  %4758 = vst.msk [vmem:[%s4 + $0x340] sm:$0xf] %vm4549, %v4501
  %4759 = vst.msk [vmem:[%s4 + $0x344] sm:$0xf] %vm4549, %v4502
  %4760 = vst.msk [vmem:[%s4 + $0x348] sm:$0xf] %vm4549, %v4503
  %4761 = vst.msk [vmem:[%s4 + $0x34c] sm:$0xf] %vm4549, %v4504
  %4762 = vst.msk [vmem:[%s4 + $0x350] sm:$0xf] %vm4549, %v4505
  %4763 = vst.msk [vmem:[%s4 + $0x354] sm:$0xf] %vm4549, %v4506
  %4764 = vst.msk [vmem:[%s4 + $0x358] sm:$0xf] %vm4549, %v4507
  %4765 = vst.msk [vmem:[%s4 + $0x35c] sm:$0xf] %vm4549, %v4508
  %4766 = vst.msk [vmem:[%s4 + $0x360] sm:$0xf] %vm4549, %v4509
  %4767 = vst.msk [vmem:[%s4 + $0x364] sm:$0xf] %vm4549, %v4510
  %4768 = vst.msk [vmem:[%s4 + $0x368] sm:$0xf] %vm4549, %v4511
  %4769 = vst.msk [vmem:[%s4 + $0x36c] sm:$0xf] %vm4549, %v4512
  %4770 = vst.msk [vmem:[%s4 + $0x370] sm:$0xf] %vm4549, %v4513
  %4771 = vst.msk [vmem:[%s4 + $0x374] sm:$0xf] %vm4549, %v4514
  %4772 = vst.msk [vmem:[%s4 + $0x378] sm:$0xf] %vm4549, %v4515
  %4773 = vst.msk [vmem:[%s4 + $0x37c] sm:$0xf] %vm4549, %v4516
  %4774 = vst.msk [vmem:[%s4 + $0x380] sm:$0xf] %vm4549, %v4517
  %4775 = vst.msk [vmem:[%s4 + $0x384] sm:$0xf] %vm4549, %v4518
  %4776 = vst.msk [vmem:[%s4 + $0x388] sm:$0xf] %vm4549, %v4519
  %4777 = vst.msk [vmem:[%s4 + $0x38c] sm:$0xf] %vm4549, %v4520
  %4778 = vst.msk [vmem:[%s4 + $0x390] sm:$0xf] %vm4549, %v4521
  %4779 = vst.msk [vmem:[%s4 + $0x394] sm:$0xf] %vm4549, %v4522
  %4780 = vst.msk [vmem:[%s4 + $0x398] sm:$0xf] %vm4549, %v4523
  %4781 = vst.msk [vmem:[%s4 + $0x39c] sm:$0xf] %vm4549, %v4524
  %4782 = vst.msk [vmem:[%s4 + $0x3a0] sm:$0xf] %vm4549, %v4525
  %4783 = vst.msk [vmem:[%s4 + $0x3a4] sm:$0xf] %vm4549, %v4526
  %4784 = vst.msk [vmem:[%s4 + $0x3a8] sm:$0xf] %vm4549, %v4527
  %4785 = vst.msk [vmem:[%s4 + $0x3ac] sm:$0xf] %vm4549, %v4528
  %4786 = vst.msk [vmem:[%s4 + $0x3b0] sm:$0xf] %vm4549, %v4529
  %4787 = vst.msk [vmem:[%s4 + $0x3b4] sm:$0xf] %vm4549, %v4530
  %4788 = vst.msk [vmem:[%s4 + $0x3b8] sm:$0xf] %vm4549, %v4531
  %4789 = vst.msk [vmem:[%s4 + $0x3bc] sm:$0xf] %vm4549, %v4532
  %4790 = vst.msk [vmem:[%s4 + $0x3c0] sm:$0xf] %vm4549, %v4533
  %4791 = vst.msk [vmem:[%s4 + $0x3c4] sm:$0xf] %vm4549, %v4534
  %4792 = vst.msk [vmem:[%s4 + $0x3c8] sm:$0xf] %vm4549, %v4535
  %4793 = vst.msk [vmem:[%s4 + $0x3cc] sm:$0xf] %vm4549, %v4536
  %4794 = vst.msk [vmem:[%s4 + $0x3d0] sm:$0xf] %vm4549, %v4537
  %4795 = vst.msk [vmem:[%s4 + $0x3d4] sm:$0xf] %vm4549, %v4538
  %4796 = vst.msk [vmem:[%s4 + $0x3d8] sm:$0xf] %vm4549, %v4539
  %4797 = vst.msk [vmem:[%s4 + $0x3dc] sm:$0xf] %vm4549, %v4540
  %4798 = vst.msk [vmem:[%s4 + $0x3e0] sm:$0xf] %vm4549, %v4541
  %4799 = vst.msk [vmem:[%s4 + $0x3e4] sm:$0xf] %vm4549, %v4542
  %4800 = vst.msk [vmem:[%s4 + $0x3e8] sm:$0xf] %vm4549, %v4543
  %4801 = vst.msk [vmem:[%s4 + $0x3ec] sm:$0xf] %vm4549, %v4544
  %4802 = vst.msk [vmem:[%s4 + $0x3f0] sm:$0xf] %vm4549, %v4545
  %4803 = vst.msk [vmem:[%s4 + $0x3f4] sm:$0xf] %vm4549, %v4546
  %4804 = vst.msk [vmem:[%s4 + $0x3f8] sm:$0xf] %vm4549, %v4547
  %4805 = vst.msk [vmem:[%s4 + $0x3fc] sm:$0xf] %vm4549, %v4548
  // Predicated region
  $region18: #{sentence_encoder_forward.6} parent=0 // pred_check
    _
  $region19: #{sentence_encoder_forward.6} parent=0 // pred_check_branch
    %4807 = sbr.rel (0) target = $region21
  $region20: #{sentence_encoder_forward.6} parent=0 // pred_region
    _
  $region21: #{sentence_encoder_forward.6} parent=0 // pred_fallthru
    _
  // Predicated region
  $region22: #{sentence_encoder_forward.6} parent=0 // pred_check
    _
  $region23: #{sentence_encoder_forward.6} parent=0 // pred_check_branch
    %4809 = sbr.rel (0) target = $region25
  $region24: #{sentence_encoder_forward.6} parent=0 // pred_region
    _
  $region25: #{sentence_encoder_forward.6} parent=0 // pred_fallthru
    _

// kernel: sentence_encoder_forward.7
$region0: #{sentence_encoder_forward.7}
  #allocation0 [shape = 'u32[]', space=smem, size = 0x4, offset = 0x4, fixed_abs, tag = 'smem constant byte address 0x4 - core index']
  #allocation1 [shape = 'u32[72,128]{1,0:T(1,128)}', space=vmem, size = 0x9000, scoped, tag = 'internal scratch']
  %s0 = inlined_call_operand.vmem [shape: bf16[512,512], index: 0, kind: input, shape index: {}]
  %s1 = inlined_call_operand.vmem [shape: bf16[512,64], index: 1, kind: input, shape index: {}]
  %s2 = inlined_call_operand.vmem [shape: f32[1,64], index: 2, kind: input, shape index: {}]
  %s3 = inlined_call_operand.vmem [shape: f32[1,64], index: 3, kind: input, shape index: {}]
  %s4 = inlined_call_operand.vmem [shape: bf16[512,64], index: 4, kind: output, shape index: {}]
  %s5 = sld [smem:[#allocation0]]
  $region26: #{sentence_encoder_forward.7} parent=0
    _
  %s7 = ssub.s32 1, %s5
  %s8 = scalar_select 0, %s7, %s5
  // Predicated region
  $region2: #{sentence_encoder_forward.7} parent=0 // pred_check
    _
  $region3: #{sentence_encoder_forward.7} parent=0 // pred_check_branch
    %10 = sbr.rel (0) target = $region5
  $region4: #{sentence_encoder_forward.7} parent=0 // pred_region
    _
  $region5: #{sentence_encoder_forward.7} parent=0 // pred_fallthru
    _
  // Predicated region
  $region6: #{sentence_encoder_forward.7} parent=0 // pred_check
    _
  $region7: #{sentence_encoder_forward.7} parent=0 // pred_check_branch
    %12 = sbr.rel (0) target = $region9
  $region8: #{sentence_encoder_forward.7} parent=0 // pred_region
    _
  $region9: #{sentence_encoder_forward.7} parent=0 // pred_fallthru
    _
  // Predicated region
  $region10: #{sentence_encoder_forward.7} parent=0 // pred_check
    _
  $region11: #{sentence_encoder_forward.7} parent=0 // pred_check_branch
    %14 = sbr.rel (0) target = $region13
  $region12: #{sentence_encoder_forward.7} parent=0 // pred_region
    _
  $region13: #{sentence_encoder_forward.7} parent=0 // pred_fallthru
    _
  // Predicated region
  $region14: #{sentence_encoder_forward.7} parent=0 // pred_check
    _
  $region15: #{sentence_encoder_forward.7} parent=0 // pred_check_branch
    %16 = sbr.rel (0) target = $region17
  $region16: #{sentence_encoder_forward.7} parent=0 // pred_region
    _
  $region17: #{sentence_encoder_forward.7} parent=0 // pred_fallthru
    _
  %v17 = vld [vmem:[%s0] sm:$0xff]
  %v18 = vld [vmem:[%s0 + $0x8] sm:$0xff]
  %v19 = vld [vmem:[%s0 + $0x10] sm:$0xff]
  %v20 = vld [vmem:[%s0 + $0x18] sm:$0xff]
  %v21 = vld [vmem:[%s0 + $0x20] sm:$0xff]
  %v22 = vld [vmem:[%s0 + $0x28] sm:$0xff]
  %v23 = vld [vmem:[%s0 + $0x30] sm:$0xff]
  %v24 = vld [vmem:[%s0 + $0x38] sm:$0xff]
  %v25 = vld [vmem:[%s0 + $0x40] sm:$0xff]
  %v26 = vld [vmem:[%s0 + $0x48] sm:$0xff]
  %v27 = vld [vmem:[%s0 + $0x50] sm:$0xff]
  %v28 = vld [vmem:[%s0 + $0x58] sm:$0xff]
  %v29 = vld [vmem:[%s0 + $0x60] sm:$0xff]
  %v30 = vld [vmem:[%s0 + $0x68] sm:$0xff]
  %v31 = vld [vmem:[%s0 + $0x70] sm:$0xff]
  %v32 = vld [vmem:[%s0 + $0x78] sm:$0xff]
  %v33 = vld [vmem:[%s0 + $0x80] sm:$0xff]
  %v34 = vld [vmem:[%s0 + $0x88] sm:$0xff]
  %v35 = vld [vmem:[%s0 + $0x90] sm:$0xff]
  %v36 = vld [vmem:[%s0 + $0x98] sm:$0xff]
  %v37 = vld [vmem:[%s0 + $0xa0] sm:$0xff]
  %v38 = vld [vmem:[%s0 + $0xa8] sm:$0xff]
  %v39 = vld [vmem:[%s0 + $0xb0] sm:$0xff]
  %v40 = vld [vmem:[%s0 + $0xb8] sm:$0xff]
  %v41 = vld [vmem:[%s0 + $0xc0] sm:$0xff]
  %v42 = vld [vmem:[%s0 + $0xc8] sm:$0xff]
  %v43 = vld [vmem:[%s0 + $0xd0] sm:$0xff]
  %v44 = vld [vmem:[%s0 + $0xd8] sm:$0xff]
  %v45 = vld [vmem:[%s0 + $0xe0] sm:$0xff]
  %v46 = vld [vmem:[%s0 + $0xe8] sm:$0xff]
  %v47 = vld [vmem:[%s0 + $0xf0] sm:$0xff]
  %v48 = vld [vmem:[%s0 + $0xf8] sm:$0xff]
  %v49 = vld [vmem:[%s0 + $0x100] sm:$0xff]
  %v50 = vld [vmem:[%s0 + $0x108] sm:$0xff]
  %v51 = vld [vmem:[%s0 + $0x110] sm:$0xff]
  %v52 = vld [vmem:[%s0 + $0x118] sm:$0xff]
  %v53 = vld [vmem:[%s0 + $0x120] sm:$0xff]
  %v54 = vld [vmem:[%s0 + $0x128] sm:$0xff]
  %v55 = vld [vmem:[%s0 + $0x130] sm:$0xff]
  %v56 = vld [vmem:[%s0 + $0x138] sm:$0xff]
  %v57 = vld [vmem:[%s0 + $0x140] sm:$0xff]
  %v58 = vld [vmem:[%s0 + $0x148] sm:$0xff]
  %v59 = vld [vmem:[%s0 + $0x150] sm:$0xff]
  %v60 = vld [vmem:[%s0 + $0x158] sm:$0xff]
  %v61 = vld [vmem:[%s0 + $0x160] sm:$0xff]
  %v62 = vld [vmem:[%s0 + $0x168] sm:$0xff]
  %v63 = vld [vmem:[%s0 + $0x170] sm:$0xff]
  %v64 = vld [vmem:[%s0 + $0x178] sm:$0xff]
  %v65 = vld [vmem:[%s0 + $0x180] sm:$0xff]
  %v66 = vld [vmem:[%s0 + $0x188] sm:$0xff]
  %v67 = vld [vmem:[%s0 + $0x190] sm:$0xff]
  %v68 = vld [vmem:[%s0 + $0x198] sm:$0xff]
  %v69 = vld [vmem:[%s0 + $0x1a0] sm:$0xff]
  %v70 = vld [vmem:[%s0 + $0x1a8] sm:$0xff]
  %v71 = vld [vmem:[%s0 + $0x1b0] sm:$0xff]
  %v72 = vld [vmem:[%s0 + $0x1b8] sm:$0xff]
  %v73 = vld [vmem:[%s0 + $0x1c0] sm:$0xff]
  %v74 = vld [vmem:[%s0 + $0x1c8] sm:$0xff]
  %v75 = vld [vmem:[%s0 + $0x1d0] sm:$0xff]
  %v76 = vld [vmem:[%s0 + $0x1d8] sm:$0xff]
  %v77 = vld [vmem:[%s0 + $0x1e0] sm:$0xff]
  %v78 = vld [vmem:[%s0 + $0x1e8] sm:$0xff]
  %v79 = vld [vmem:[%s0 + $0x1f0] sm:$0xff]
  %v80 = vld [vmem:[%s0 + $0x1f8] sm:$0xff]
  %v81 = vld [vmem:[%s0 + $0x200] sm:$0xff]
  %v82 = vld [vmem:[%s0 + $0x208] sm:$0xff]
  %v83 = vld [vmem:[%s0 + $0x210] sm:$0xff]
  %v84 = vld [vmem:[%s0 + $0x218] sm:$0xff]
  %v85 = vld [vmem:[%s0 + $0x220] sm:$0xff]
  %v86 = vld [vmem:[%s0 + $0x228] sm:$0xff]
  %v87 = vld [vmem:[%s0 + $0x230] sm:$0xff]
  %v88 = vld [vmem:[%s0 + $0x238] sm:$0xff]
  %v89 = vld [vmem:[%s0 + $0x240] sm:$0xff]
  %v90 = vld [vmem:[%s0 + $0x248] sm:$0xff]
  %v91 = vld [vmem:[%s0 + $0x250] sm:$0xff]
  %v92 = vld [vmem:[%s0 + $0x258] sm:$0xff]
  %v93 = vld [vmem:[%s0 + $0x260] sm:$0xff]
  %v94 = vld [vmem:[%s0 + $0x268] sm:$0xff]
  %v95 = vld [vmem:[%s0 + $0x270] sm:$0xff]
  %v96 = vld [vmem:[%s0 + $0x278] sm:$0xff]
  %v97 = vld [vmem:[%s0 + $0x280] sm:$0xff]
  %v98 = vld [vmem:[%s0 + $0x288] sm:$0xff]
  %v99 = vld [vmem:[%s0 + $0x290] sm:$0xff]
  %v100 = vld [vmem:[%s0 + $0x298] sm:$0xff]
  %v101 = vld [vmem:[%s0 + $0x2a0] sm:$0xff]
  %v102 = vld [vmem:[%s0 + $0x2a8] sm:$0xff]
  %v103 = vld [vmem:[%s0 + $0x2b0] sm:$0xff]
  %v104 = vld [vmem:[%s0 + $0x2b8] sm:$0xff]
  %v105 = vld [vmem:[%s0 + $0x2c0] sm:$0xff]
  %v106 = vld [vmem:[%s0 + $0x2c8] sm:$0xff]
  %v107 = vld [vmem:[%s0 + $0x2d0] sm:$0xff]
  %v108 = vld [vmem:[%s0 + $0x2d8] sm:$0xff]
  %v109 = vld [vmem:[%s0 + $0x2e0] sm:$0xff]
  %v110 = vld [vmem:[%s0 + $0x2e8] sm:$0xff]
  %v111 = vld [vmem:[%s0 + $0x2f0] sm:$0xff]
  %v112 = vld [vmem:[%s0 + $0x2f8] sm:$0xff]
  %v113 = vld [vmem:[%s0 + $0x300] sm:$0xff]
  %v114 = vld [vmem:[%s0 + $0x308] sm:$0xff]
  %v115 = vld [vmem:[%s0 + $0x310] sm:$0xff]
  %v116 = vld [vmem:[%s0 + $0x318] sm:$0xff]
  %v117 = vld [vmem:[%s0 + $0x320] sm:$0xff]
  %v118 = vld [vmem:[%s0 + $0x328] sm:$0xff]
  %v119 = vld [vmem:[%s0 + $0x330] sm:$0xff]
  %v120 = vld [vmem:[%s0 + $0x338] sm:$0xff]
  %v121 = vld [vmem:[%s0 + $0x340] sm:$0xff]
  %v122 = vld [vmem:[%s0 + $0x348] sm:$0xff]
  %v123 = vld [vmem:[%s0 + $0x350] sm:$0xff]
  %v124 = vld [vmem:[%s0 + $0x358] sm:$0xff]
  %v125 = vld [vmem:[%s0 + $0x360] sm:$0xff]
  %v126 = vld [vmem:[%s0 + $0x368] sm:$0xff]
  %v127 = vld [vmem:[%s0 + $0x370] sm:$0xff]
  %v128 = vld [vmem:[%s0 + $0x378] sm:$0xff]
  %v129 = vld [vmem:[%s0 + $0x380] sm:$0xff]
  %v130 = vld [vmem:[%s0 + $0x388] sm:$0xff]
  %v131 = vld [vmem:[%s0 + $0x390] sm:$0xff]
  %v132 = vld [vmem:[%s0 + $0x398] sm:$0xff]
  %v133 = vld [vmem:[%s0 + $0x3a0] sm:$0xff]
  %v134 = vld [vmem:[%s0 + $0x3a8] sm:$0xff]
  %v135 = vld [vmem:[%s0 + $0x3b0] sm:$0xff]
  %v136 = vld [vmem:[%s0 + $0x3b8] sm:$0xff]
  %v137 = vld [vmem:[%s0 + $0x3c0] sm:$0xff]
  %v138 = vld [vmem:[%s0 + $0x3c8] sm:$0xff]
  %v139 = vld [vmem:[%s0 + $0x3d0] sm:$0xff]
  %v140 = vld [vmem:[%s0 + $0x3d8] sm:$0xff]
  %v141 = vld [vmem:[%s0 + $0x3e0] sm:$0xff]
  %v142 = vld [vmem:[%s0 + $0x3e8] sm:$0xff]
  %v143 = vld [vmem:[%s0 + $0x3f0] sm:$0xff]
  %v144 = vld [vmem:[%s0 + $0x3f8] sm:$0xff]
  %v145 = vld [vmem:[%s1] sm:$0xf]
  %v146 = vld [vmem:[%s1 + $0x4] sm:$0xf]
  %v147 = vld [vmem:[%s1 + $0x8] sm:$0xf]
  %v148 = vld [vmem:[%s1 + $0xc] sm:$0xf]
  %v149 = vld [vmem:[%s1 + $0x10] sm:$0xf]
  %v150 = vld [vmem:[%s1 + $0x14] sm:$0xf]
  %v151 = vld [vmem:[%s1 + $0x18] sm:$0xf]
  %v152 = vld [vmem:[%s1 + $0x1c] sm:$0xf]
  %v153 = vld [vmem:[%s1 + $0x20] sm:$0xf]
  %v154 = vld [vmem:[%s1 + $0x24] sm:$0xf]
  %v155 = vld [vmem:[%s1 + $0x28] sm:$0xf]
  %v156 = vld [vmem:[%s1 + $0x2c] sm:$0xf]
  %v157 = vld [vmem:[%s1 + $0x30] sm:$0xf]
  %v158 = vld [vmem:[%s1 + $0x34] sm:$0xf]
  %v159 = vld [vmem:[%s1 + $0x38] sm:$0xf]
  %v160 = vld [vmem:[%s1 + $0x3c] sm:$0xf]
  %v161 = vld [vmem:[%s1 + $0x40] sm:$0xf]
  %v162 = vld [vmem:[%s1 + $0x44] sm:$0xf]
  %v163 = vld [vmem:[%s1 + $0x48] sm:$0xf]
  %v164 = vld [vmem:[%s1 + $0x4c] sm:$0xf]
  %v165 = vld [vmem:[%s1 + $0x50] sm:$0xf]
  %v166 = vld [vmem:[%s1 + $0x54] sm:$0xf]
  %v167 = vld [vmem:[%s1 + $0x58] sm:$0xf]
  %v168 = vld [vmem:[%s1 + $0x5c] sm:$0xf]
  %v169 = vld [vmem:[%s1 + $0x60] sm:$0xf]
  %v170 = vld [vmem:[%s1 + $0x64] sm:$0xf]
  %v171 = vld [vmem:[%s1 + $0x68] sm:$0xf]
  %v172 = vld [vmem:[%s1 + $0x6c] sm:$0xf]
  %v173 = vld [vmem:[%s1 + $0x70] sm:$0xf]
  %v174 = vld [vmem:[%s1 + $0x74] sm:$0xf]
  %v175 = vld [vmem:[%s1 + $0x78] sm:$0xf]
  %v176 = vld [vmem:[%s1 + $0x7c] sm:$0xf]
  %v177 = vld [vmem:[%s1 + $0x80] sm:$0xf]
  %v178 = vld [vmem:[%s1 + $0x84] sm:$0xf]
  %v179 = vld [vmem:[%s1 + $0x88] sm:$0xf]
  %v180 = vld [vmem:[%s1 + $0x8c] sm:$0xf]
  %v181 = vld [vmem:[%s1 + $0x90] sm:$0xf]
  %v182 = vld [vmem:[%s1 + $0x94] sm:$0xf]
  %v183 = vld [vmem:[%s1 + $0x98] sm:$0xf]
  %v184 = vld [vmem:[%s1 + $0x9c] sm:$0xf]
  %v185 = vld [vmem:[%s1 + $0xa0] sm:$0xf]
  %v186 = vld [vmem:[%s1 + $0xa4] sm:$0xf]
  %v187 = vld [vmem:[%s1 + $0xa8] sm:$0xf]
  %v188 = vld [vmem:[%s1 + $0xac] sm:$0xf]
  %v189 = vld [vmem:[%s1 + $0xb0] sm:$0xf]
  %v190 = vld [vmem:[%s1 + $0xb4] sm:$0xf]
  %v191 = vld [vmem:[%s1 + $0xb8] sm:$0xf]
  %v192 = vld [vmem:[%s1 + $0xbc] sm:$0xf]
  %v193 = vld [vmem:[%s1 + $0xc0] sm:$0xf]
  %v194 = vld [vmem:[%s1 + $0xc4] sm:$0xf]
  %v195 = vld [vmem:[%s1 + $0xc8] sm:$0xf]
  %v196 = vld [vmem:[%s1 + $0xcc] sm:$0xf]
  %v197 = vld [vmem:[%s1 + $0xd0] sm:$0xf]
  %v198 = vld [vmem:[%s1 + $0xd4] sm:$0xf]
  %v199 = vld [vmem:[%s1 + $0xd8] sm:$0xf]
  %v200 = vld [vmem:[%s1 + $0xdc] sm:$0xf]
  %v201 = vld [vmem:[%s1 + $0xe0] sm:$0xf]
  %v202 = vld [vmem:[%s1 + $0xe4] sm:$0xf]
  %v203 = vld [vmem:[%s1 + $0xe8] sm:$0xf]
  %v204 = vld [vmem:[%s1 + $0xec] sm:$0xf]
  %v205 = vld [vmem:[%s1 + $0xf0] sm:$0xf]
  %v206 = vld [vmem:[%s1 + $0xf4] sm:$0xf]
  %v207 = vld [vmem:[%s1 + $0xf8] sm:$0xf]
  %v208 = vld [vmem:[%s1 + $0xfc] sm:$0xf]
  %v337 = vunpack.c.l.b16 %v17
  %v338 = vunpack.c.h.b16 %v17
  %v339 = vunpack.c.l.b16 %v18
  %v340 = vunpack.c.h.b16 %v18
  %v341 = vunpack.c.l.b16 %v19
  %v342 = vunpack.c.h.b16 %v19
  %v343 = vunpack.c.l.b16 %v20
  %v344 = vunpack.c.h.b16 %v20
  %v345 = vunpack.c.l.b16 %v21
  %v346 = vunpack.c.h.b16 %v21
  %v347 = vunpack.c.l.b16 %v22
  %v348 = vunpack.c.h.b16 %v22
  %v349 = vunpack.c.l.b16 %v23
  %v350 = vunpack.c.h.b16 %v23
  %v351 = vunpack.c.l.b16 %v24
  %v352 = vunpack.c.h.b16 %v24
  %v353 = vunpack.c.l.b16 %v25
  %v354 = vunpack.c.h.b16 %v25
  %v355 = vunpack.c.l.b16 %v26
  %v356 = vunpack.c.h.b16 %v26
  %v357 = vunpack.c.l.b16 %v27
  %v358 = vunpack.c.h.b16 %v27
  %v359 = vunpack.c.l.b16 %v28
  %v360 = vunpack.c.h.b16 %v28
  %v361 = vunpack.c.l.b16 %v29
  %v362 = vunpack.c.h.b16 %v29
  %v363 = vunpack.c.l.b16 %v30
  %v364 = vunpack.c.h.b16 %v30
  %v365 = vunpack.c.l.b16 %v31
  %v366 = vunpack.c.h.b16 %v31
  %v367 = vunpack.c.l.b16 %v32
  %v368 = vunpack.c.h.b16 %v32
  %v369 = vunpack.c.l.b16 %v33
  %v370 = vunpack.c.h.b16 %v33
  %v371 = vunpack.c.l.b16 %v34
  %v372 = vunpack.c.h.b16 %v34
  %v373 = vunpack.c.l.b16 %v35
  %v374 = vunpack.c.h.b16 %v35
  %v375 = vunpack.c.l.b16 %v36
  %v376 = vunpack.c.h.b16 %v36
  %v377 = vunpack.c.l.b16 %v37
  %v378 = vunpack.c.h.b16 %v37
  %v379 = vunpack.c.l.b16 %v38
  %v380 = vunpack.c.h.b16 %v38
  %v381 = vunpack.c.l.b16 %v39
  %v382 = vunpack.c.h.b16 %v39
  %v383 = vunpack.c.l.b16 %v40
  %v384 = vunpack.c.h.b16 %v40
  %v385 = vunpack.c.l.b16 %v41
  %v386 = vunpack.c.h.b16 %v41
  %v387 = vunpack.c.l.b16 %v42
  %v388 = vunpack.c.h.b16 %v42
  %v389 = vunpack.c.l.b16 %v43
  %v390 = vunpack.c.h.b16 %v43
  %v391 = vunpack.c.l.b16 %v44
  %v392 = vunpack.c.h.b16 %v44
  %v393 = vunpack.c.l.b16 %v45
  %v394 = vunpack.c.h.b16 %v45
  %v395 = vunpack.c.l.b16 %v46
  %v396 = vunpack.c.h.b16 %v46
  %v397 = vunpack.c.l.b16 %v47
  %v398 = vunpack.c.h.b16 %v47
  %v399 = vunpack.c.l.b16 %v48
  %v400 = vunpack.c.h.b16 %v48
  %v401 = vunpack.c.l.b16 %v49
  %v402 = vunpack.c.h.b16 %v49
  %v403 = vunpack.c.l.b16 %v50
  %v404 = vunpack.c.h.b16 %v50
  %v405 = vunpack.c.l.b16 %v51
  %v406 = vunpack.c.h.b16 %v51
  %v407 = vunpack.c.l.b16 %v52
  %v408 = vunpack.c.h.b16 %v52
  %v409 = vunpack.c.l.b16 %v53
  %v410 = vunpack.c.h.b16 %v53
  %v411 = vunpack.c.l.b16 %v54
  %v412 = vunpack.c.h.b16 %v54
  %v413 = vunpack.c.l.b16 %v55
  %v414 = vunpack.c.h.b16 %v55
  %v415 = vunpack.c.l.b16 %v56
  %v416 = vunpack.c.h.b16 %v56
  %v417 = vunpack.c.l.b16 %v57
  %v418 = vunpack.c.h.b16 %v57
  %v419 = vunpack.c.l.b16 %v58
  %v420 = vunpack.c.h.b16 %v58
  %v421 = vunpack.c.l.b16 %v59
  %v422 = vunpack.c.h.b16 %v59
  %v423 = vunpack.c.l.b16 %v60
  %v424 = vunpack.c.h.b16 %v60
  %v425 = vunpack.c.l.b16 %v61
  %v426 = vunpack.c.h.b16 %v61
  %v427 = vunpack.c.l.b16 %v62
  %v428 = vunpack.c.h.b16 %v62
  %v429 = vunpack.c.l.b16 %v63
  %v430 = vunpack.c.h.b16 %v63
  %v431 = vunpack.c.l.b16 %v64
  %v432 = vunpack.c.h.b16 %v64
  %v433 = vunpack.c.l.b16 %v65
  %v434 = vunpack.c.h.b16 %v65
  %v435 = vunpack.c.l.b16 %v66
  %v436 = vunpack.c.h.b16 %v66
  %v437 = vunpack.c.l.b16 %v67
  %v438 = vunpack.c.h.b16 %v67
  %v439 = vunpack.c.l.b16 %v68
  %v440 = vunpack.c.h.b16 %v68
  %v441 = vunpack.c.l.b16 %v69
  %v442 = vunpack.c.h.b16 %v69
  %v443 = vunpack.c.l.b16 %v70
  %v444 = vunpack.c.h.b16 %v70
  %v445 = vunpack.c.l.b16 %v71
  %v446 = vunpack.c.h.b16 %v71
  %v447 = vunpack.c.l.b16 %v72
  %v448 = vunpack.c.h.b16 %v72
  %v449 = vunpack.c.l.b16 %v73
  %v450 = vunpack.c.h.b16 %v73
  %v451 = vunpack.c.l.b16 %v74
  %v452 = vunpack.c.h.b16 %v74
  %v453 = vunpack.c.l.b16 %v75
  %v454 = vunpack.c.h.b16 %v75
  %v455 = vunpack.c.l.b16 %v76
  %v456 = vunpack.c.h.b16 %v76
  %v457 = vunpack.c.l.b16 %v77
  %v458 = vunpack.c.h.b16 %v77
  %v459 = vunpack.c.l.b16 %v78
  %v460 = vunpack.c.h.b16 %v78
  %v461 = vunpack.c.l.b16 %v79
  %v462 = vunpack.c.h.b16 %v79
  %v463 = vunpack.c.l.b16 %v80
  %v464 = vunpack.c.h.b16 %v80
  %v465 = vunpack.c.l.b16 %v81
  %v466 = vunpack.c.h.b16 %v81
  %v467 = vunpack.c.l.b16 %v82
  %v468 = vunpack.c.h.b16 %v82
  %v469 = vunpack.c.l.b16 %v83
  %v470 = vunpack.c.h.b16 %v83
  %v471 = vunpack.c.l.b16 %v84
  %v472 = vunpack.c.h.b16 %v84
  %v473 = vunpack.c.l.b16 %v85
  %v474 = vunpack.c.h.b16 %v85
  %v475 = vunpack.c.l.b16 %v86
  %v476 = vunpack.c.h.b16 %v86
  %v477 = vunpack.c.l.b16 %v87
  %v478 = vunpack.c.h.b16 %v87
  %v479 = vunpack.c.l.b16 %v88
  %v480 = vunpack.c.h.b16 %v88
  %v481 = vunpack.c.l.b16 %v89
  %v482 = vunpack.c.h.b16 %v89
  %v483 = vunpack.c.l.b16 %v90
  %v484 = vunpack.c.h.b16 %v90
  %v485 = vunpack.c.l.b16 %v91
  %v486 = vunpack.c.h.b16 %v91
  %v487 = vunpack.c.l.b16 %v92
  %v488 = vunpack.c.h.b16 %v92
  %v489 = vunpack.c.l.b16 %v93
  %v490 = vunpack.c.h.b16 %v93
  %v491 = vunpack.c.l.b16 %v94
  %v492 = vunpack.c.h.b16 %v94
  %v493 = vunpack.c.l.b16 %v95
  %v494 = vunpack.c.h.b16 %v95
  %v495 = vunpack.c.l.b16 %v96
  %v496 = vunpack.c.h.b16 %v96
  %v497 = vunpack.c.l.b16 %v97
  %v498 = vunpack.c.h.b16 %v97
  %v499 = vunpack.c.l.b16 %v98
  %v500 = vunpack.c.h.b16 %v98
  %v501 = vunpack.c.l.b16 %v99
  %v502 = vunpack.c.h.b16 %v99
  %v503 = vunpack.c.l.b16 %v100
  %v504 = vunpack.c.h.b16 %v100
  %v505 = vunpack.c.l.b16 %v101
  %v506 = vunpack.c.h.b16 %v101
  %v507 = vunpack.c.l.b16 %v102
  %v508 = vunpack.c.h.b16 %v102
  %v509 = vunpack.c.l.b16 %v103
  %v510 = vunpack.c.h.b16 %v103
  %v511 = vunpack.c.l.b16 %v104
  %v512 = vunpack.c.h.b16 %v104
  %v513 = vunpack.c.l.b16 %v105
  %v514 = vunpack.c.h.b16 %v105
  %v515 = vunpack.c.l.b16 %v106
  %v516 = vunpack.c.h.b16 %v106
  %v517 = vunpack.c.l.b16 %v107
  %v518 = vunpack.c.h.b16 %v107
  %v519 = vunpack.c.l.b16 %v108
  %v520 = vunpack.c.h.b16 %v108
  %v521 = vunpack.c.l.b16 %v109
  %v522 = vunpack.c.h.b16 %v109
  %v523 = vunpack.c.l.b16 %v110
  %v524 = vunpack.c.h.b16 %v110
  %v525 = vunpack.c.l.b16 %v111
  %v526 = vunpack.c.h.b16 %v111
  %v527 = vunpack.c.l.b16 %v112
  %v528 = vunpack.c.h.b16 %v112
  %v529 = vunpack.c.l.b16 %v113
  %v530 = vunpack.c.h.b16 %v113
  %v531 = vunpack.c.l.b16 %v114
  %v532 = vunpack.c.h.b16 %v114
  %v533 = vunpack.c.l.b16 %v115
  %v534 = vunpack.c.h.b16 %v115
  %v535 = vunpack.c.l.b16 %v116
  %v536 = vunpack.c.h.b16 %v116
  %v537 = vunpack.c.l.b16 %v117
  %v538 = vunpack.c.h.b16 %v117
  %v539 = vunpack.c.l.b16 %v118
  %v540 = vunpack.c.h.b16 %v118
  %v541 = vunpack.c.l.b16 %v119
  %v542 = vunpack.c.h.b16 %v119
  %v543 = vunpack.c.l.b16 %v120
  %v544 = vunpack.c.h.b16 %v120
  %v545 = vunpack.c.l.b16 %v121
  %v546 = vunpack.c.h.b16 %v121
  %v547 = vunpack.c.l.b16 %v122
  %v548 = vunpack.c.h.b16 %v122
  %v549 = vunpack.c.l.b16 %v123
  %v550 = vunpack.c.h.b16 %v123
  %v551 = vunpack.c.l.b16 %v124
  %v552 = vunpack.c.h.b16 %v124
  %v553 = vunpack.c.l.b16 %v125
  %v554 = vunpack.c.h.b16 %v125
  %v555 = vunpack.c.l.b16 %v126
  %v556 = vunpack.c.h.b16 %v126
  %v557 = vunpack.c.l.b16 %v127
  %v558 = vunpack.c.h.b16 %v127
  %v559 = vunpack.c.l.b16 %v128
  %v560 = vunpack.c.h.b16 %v128
  %v561 = vunpack.c.l.b16 %v129
  %v562 = vunpack.c.h.b16 %v129
  %v563 = vunpack.c.l.b16 %v130
  %v564 = vunpack.c.h.b16 %v130
  %v565 = vunpack.c.l.b16 %v131
  %v566 = vunpack.c.h.b16 %v131
  %v567 = vunpack.c.l.b16 %v132
  %v568 = vunpack.c.h.b16 %v132
  %v569 = vunpack.c.l.b16 %v133
  %v570 = vunpack.c.h.b16 %v133
  %v571 = vunpack.c.l.b16 %v134
  %v572 = vunpack.c.h.b16 %v134
  %v573 = vunpack.c.l.b16 %v135
  %v574 = vunpack.c.h.b16 %v135
  %v575 = vunpack.c.l.b16 %v136
  %v576 = vunpack.c.h.b16 %v136
  %v577 = vunpack.c.l.b16 %v137
  %v578 = vunpack.c.h.b16 %v137
  %v579 = vunpack.c.l.b16 %v138
  %v580 = vunpack.c.h.b16 %v138
  %v581 = vunpack.c.l.b16 %v139
  %v582 = vunpack.c.h.b16 %v139
  %v583 = vunpack.c.l.b16 %v140
  %v584 = vunpack.c.h.b16 %v140
  %v585 = vunpack.c.l.b16 %v141
  %v586 = vunpack.c.h.b16 %v141
  %v587 = vunpack.c.l.b16 %v142
  %v588 = vunpack.c.h.b16 %v142
  %v589 = vunpack.c.l.b16 %v143
  %v590 = vunpack.c.h.b16 %v143
  %v591 = vunpack.c.l.b16 %v144
  %v592 = vunpack.c.h.b16 %v144
  %v593 = vpack.c.b16 %v341, %v337
  %v594 = vpack.c.b16 %v342, %v338
  %v595 = vpack.c.b16 %v343, %v339
  %v596 = vpack.c.b16 %v344, %v340
  %v597 = vpack.c.b16 %v349, %v345
  %v598 = vpack.c.b16 %v350, %v346
  %v599 = vpack.c.b16 %v351, %v347
  %v600 = vpack.c.b16 %v352, %v348
  %v601 = vpack.c.b16 %v357, %v353
  %v602 = vpack.c.b16 %v358, %v354
  %v603 = vpack.c.b16 %v359, %v355
  %v604 = vpack.c.b16 %v360, %v356
  %v605 = vpack.c.b16 %v365, %v361
  %v606 = vpack.c.b16 %v366, %v362
  %v607 = vpack.c.b16 %v367, %v363
  %v608 = vpack.c.b16 %v368, %v364
  %v609 = vpack.c.b16 %v373, %v369
  %v610 = vpack.c.b16 %v374, %v370
  %v611 = vpack.c.b16 %v375, %v371
  %v612 = vpack.c.b16 %v376, %v372
  %v613 = vpack.c.b16 %v381, %v377
  %v614 = vpack.c.b16 %v382, %v378
  %v615 = vpack.c.b16 %v383, %v379
  %v616 = vpack.c.b16 %v384, %v380
  %v617 = vpack.c.b16 %v389, %v385
  %v618 = vpack.c.b16 %v390, %v386
  %v619 = vpack.c.b16 %v391, %v387
  %v620 = vpack.c.b16 %v392, %v388
  %v621 = vpack.c.b16 %v397, %v393
  %v622 = vpack.c.b16 %v398, %v394
  %v623 = vpack.c.b16 %v399, %v395
  %v624 = vpack.c.b16 %v400, %v396
  %v625 = vpack.c.b16 %v405, %v401
  %v626 = vpack.c.b16 %v406, %v402
  %v627 = vpack.c.b16 %v407, %v403
  %v628 = vpack.c.b16 %v408, %v404
  %v629 = vpack.c.b16 %v413, %v409
  %v630 = vpack.c.b16 %v414, %v410
  %v631 = vpack.c.b16 %v415, %v411
  %v632 = vpack.c.b16 %v416, %v412
  %v633 = vpack.c.b16 %v421, %v417
  %v634 = vpack.c.b16 %v422, %v418
  %v635 = vpack.c.b16 %v423, %v419
  %v636 = vpack.c.b16 %v424, %v420
  %v637 = vpack.c.b16 %v429, %v425
  %v638 = vpack.c.b16 %v430, %v426
  %v639 = vpack.c.b16 %v431, %v427
  %v640 = vpack.c.b16 %v432, %v428
  %v641 = vpack.c.b16 %v437, %v433
  %v642 = vpack.c.b16 %v438, %v434
  %v643 = vpack.c.b16 %v439, %v435
  %v644 = vpack.c.b16 %v440, %v436
  %v645 = vpack.c.b16 %v445, %v441
  %v646 = vpack.c.b16 %v446, %v442
  %v647 = vpack.c.b16 %v447, %v443
  %v648 = vpack.c.b16 %v448, %v444
  %v649 = vpack.c.b16 %v453, %v449
  %v650 = vpack.c.b16 %v454, %v450
  %v651 = vpack.c.b16 %v455, %v451
  %v652 = vpack.c.b16 %v456, %v452
  %v653 = vpack.c.b16 %v461, %v457
  %v654 = vpack.c.b16 %v462, %v458
  %v655 = vpack.c.b16 %v463, %v459
  %v656 = vpack.c.b16 %v464, %v460
  %v657 = vpack.c.b16 %v469, %v465
  %v658 = vpack.c.b16 %v470, %v466
  %v659 = vpack.c.b16 %v471, %v467
  %v660 = vpack.c.b16 %v472, %v468
  %v661 = vpack.c.b16 %v477, %v473
  %v662 = vpack.c.b16 %v478, %v474
  %v663 = vpack.c.b16 %v479, %v475
  %v664 = vpack.c.b16 %v480, %v476
  %v665 = vpack.c.b16 %v485, %v481
  %v666 = vpack.c.b16 %v486, %v482
  %v667 = vpack.c.b16 %v487, %v483
  %v668 = vpack.c.b16 %v488, %v484
  %v669 = vpack.c.b16 %v493, %v489
  %v670 = vpack.c.b16 %v494, %v490
  %v671 = vpack.c.b16 %v495, %v491
  %v672 = vpack.c.b16 %v496, %v492
  %v673 = vpack.c.b16 %v501, %v497
  %v674 = vpack.c.b16 %v502, %v498
  %v675 = vpack.c.b16 %v503, %v499
  %v676 = vpack.c.b16 %v504, %v500
  %v677 = vpack.c.b16 %v509, %v505
  %v678 = vpack.c.b16 %v510, %v506
  %v679 = vpack.c.b16 %v511, %v507
  %v680 = vpack.c.b16 %v512, %v508
  %v681 = vpack.c.b16 %v517, %v513
  %v682 = vpack.c.b16 %v518, %v514
  %v683 = vpack.c.b16 %v519, %v515
  %v684 = vpack.c.b16 %v520, %v516
  %v685 = vpack.c.b16 %v525, %v521
  %v686 = vpack.c.b16 %v526, %v522
  %v687 = vpack.c.b16 %v527, %v523
  %v688 = vpack.c.b16 %v528, %v524
  %v689 = vpack.c.b16 %v533, %v529
  %v690 = vpack.c.b16 %v534, %v530
  %v691 = vpack.c.b16 %v535, %v531
  %v692 = vpack.c.b16 %v536, %v532
  %v693 = vpack.c.b16 %v541, %v537
  %v694 = vpack.c.b16 %v542, %v538
  %v695 = vpack.c.b16 %v543, %v539
  %v696 = vpack.c.b16 %v544, %v540
  %v697 = vpack.c.b16 %v549, %v545
  %v698 = vpack.c.b16 %v550, %v546
  %v699 = vpack.c.b16 %v551, %v547
  %v700 = vpack.c.b16 %v552, %v548
  %v701 = vpack.c.b16 %v557, %v553
  %v702 = vpack.c.b16 %v558, %v554
  %v703 = vpack.c.b16 %v559, %v555
  %v704 = vpack.c.b16 %v560, %v556
  %v705 = vpack.c.b16 %v565, %v561
  %v706 = vpack.c.b16 %v566, %v562
  %v707 = vpack.c.b16 %v567, %v563
  %v708 = vpack.c.b16 %v568, %v564
  %v709 = vpack.c.b16 %v573, %v569
  %v710 = vpack.c.b16 %v574, %v570
  %v711 = vpack.c.b16 %v575, %v571
  %v712 = vpack.c.b16 %v576, %v572
  %v713 = vpack.c.b16 %v581, %v577
  %v714 = vpack.c.b16 %v582, %v578
  %v715 = vpack.c.b16 %v583, %v579
  %v716 = vpack.c.b16 %v584, %v580
  %v717 = vpack.c.b16 %v589, %v585
  %v718 = vpack.c.b16 %v590, %v586
  %v719 = vpack.c.b16 %v591, %v587
  %v720 = vpack.c.b16 %v592, %v588
  %v913 = vunpack.c.l.b16 %v145
  %v914 = vunpack.c.l.b16 %v146
  %v915 = vunpack.c.l.b16 %v147
  %v916 = vunpack.c.l.b16 %v148
  %v917 = vunpack.c.l.b16 %v149
  %v918 = vunpack.c.l.b16 %v150
  %v919 = vunpack.c.l.b16 %v151
  %v920 = vunpack.c.l.b16 %v152
  %v921 = vunpack.c.l.b16 %v153
  %v922 = vunpack.c.l.b16 %v154
  %v923 = vunpack.c.l.b16 %v155
  %v924 = vunpack.c.l.b16 %v156
  %v925 = vunpack.c.l.b16 %v157
  %v926 = vunpack.c.l.b16 %v158
  %v927 = vunpack.c.l.b16 %v159
  %v928 = vunpack.c.l.b16 %v160
  %v929 = vunpack.c.l.b16 %v161
  %v930 = vunpack.c.l.b16 %v162
  %v931 = vunpack.c.l.b16 %v163
  %v932 = vunpack.c.l.b16 %v164
  %v933 = vunpack.c.l.b16 %v165
  %v934 = vunpack.c.l.b16 %v166
  %v935 = vunpack.c.l.b16 %v167
  %v936 = vunpack.c.l.b16 %v168
  %v937 = vunpack.c.l.b16 %v169
  %v938 = vunpack.c.l.b16 %v170
  %v939 = vunpack.c.l.b16 %v171
  %v940 = vunpack.c.l.b16 %v172
  %v941 = vunpack.c.l.b16 %v173
  %v942 = vunpack.c.l.b16 %v174
  %v943 = vunpack.c.l.b16 %v175
  %v944 = vunpack.c.l.b16 %v176
  %v945 = vunpack.c.l.b16 %v177
  %v946 = vunpack.c.l.b16 %v178
  %v947 = vunpack.c.l.b16 %v179
  %v948 = vunpack.c.l.b16 %v180
  %v949 = vunpack.c.l.b16 %v181
  %v950 = vunpack.c.l.b16 %v182
  %v951 = vunpack.c.l.b16 %v183
  %v952 = vunpack.c.l.b16 %v184
  %v953 = vunpack.c.l.b16 %v185
  %v954 = vunpack.c.l.b16 %v186
  %v955 = vunpack.c.l.b16 %v187
  %v956 = vunpack.c.l.b16 %v188
  %v957 = vunpack.c.l.b16 %v189
  %v958 = vunpack.c.l.b16 %v190
  %v959 = vunpack.c.l.b16 %v191
  %v960 = vunpack.c.l.b16 %v192
  %v961 = vunpack.c.l.b16 %v193
  %v962 = vunpack.c.l.b16 %v194
  %v963 = vunpack.c.l.b16 %v195
  %v964 = vunpack.c.l.b16 %v196
  %v965 = vunpack.c.l.b16 %v197
  %v966 = vunpack.c.l.b16 %v198
  %v967 = vunpack.c.l.b16 %v199
  %v968 = vunpack.c.l.b16 %v200
  %v969 = vunpack.c.l.b16 %v201
  %v970 = vunpack.c.l.b16 %v202
  %v971 = vunpack.c.l.b16 %v203
  %v972 = vunpack.c.l.b16 %v204
  %v973 = vunpack.c.l.b16 %v205
  %v974 = vunpack.c.l.b16 %v206
  %v975 = vunpack.c.l.b16 %v207
  %v976 = vunpack.c.l.b16 %v208
  %v977 = vpack.c.b16 %v914, %v913
  %v978 = vpack.c.b16 %v916, %v915
  %v979 = vpack.c.b16 %v918, %v917
  %v980 = vpack.c.b16 %v920, %v919
  %v981 = vpack.c.b16 %v922, %v921
  %v982 = vpack.c.b16 %v924, %v923
  %v983 = vpack.c.b16 %v926, %v925
  %v984 = vpack.c.b16 %v928, %v927
  %v985 = vpack.c.b16 %v930, %v929
  %v986 = vpack.c.b16 %v932, %v931
  %v987 = vpack.c.b16 %v934, %v933
  %v988 = vpack.c.b16 %v936, %v935
  %v989 = vpack.c.b16 %v938, %v937
  %v990 = vpack.c.b16 %v940, %v939
  %v991 = vpack.c.b16 %v942, %v941
  %v992 = vpack.c.b16 %v944, %v943
  %v993 = vpack.c.b16 %v946, %v945
  %v994 = vpack.c.b16 %v948, %v947
  %v995 = vpack.c.b16 %v950, %v949
  %v996 = vpack.c.b16 %v952, %v951
  %v997 = vpack.c.b16 %v954, %v953
  %v998 = vpack.c.b16 %v956, %v955
  %v999 = vpack.c.b16 %v958, %v957
  %v1000 = vpack.c.b16 %v960, %v959
  %v1001 = vpack.c.b16 %v962, %v961
  %v1002 = vpack.c.b16 %v964, %v963
  %v1003 = vpack.c.b16 %v966, %v965
  %v1004 = vpack.c.b16 %v968, %v967
  %v1005 = vpack.c.b16 %v970, %v969
  %v1006 = vpack.c.b16 %v972, %v971
  %v1007 = vpack.c.b16 %v974, %v973
  %v1008 = vpack.c.b16 %v976, %v975
  %1041 = vmatpush.bf16.msra.mxu0 %v984
  %1042 = vmatpush.bf16.msra.mxu0 %v983
  %1043 = vmatpush.bf16.msra.mxu0 %v982
  %1044 = vmatpush.bf16.msra.mxu0 %v981
  %1045 = vmatpush.bf16.msra.mxu0 %v980
  %1046 = vmatpush.bf16.msra.mxu0 %v979
  %1047 = vmatpush.bf16.msra.mxu0 %v978
  %1048 = vmatpush.bf16.msra.mxu0 %v977
  %1049 = vmatmul.bf16.gmra.mxu0 %v593
  %v1050 = vpop.f32.mrf.mxu0
  %v1051 = vadd.f32 0.0, %v1050
  %v1052 = vpop.f32.mrf.mxu0
  %v1053 = vadd.f32 0.0, %v1052
  %1054 = vmatmul.bf16.gmra.mxu0 %v597
  %v1055 = vpop.f32.mrf.mxu0
  %v1056 = vadd.f32 0.0, %v1055
  %v1057 = vpop.f32.mrf.mxu0
  %v1058 = vadd.f32 0.0, %v1057
  %1059 = vmatmul.bf16.gmra.mxu0 %v601
  %v1060 = vpop.f32.mrf.mxu0
  %v1061 = vadd.f32 0.0, %v1060
  %v1062 = vpop.f32.mrf.mxu0
  %v1063 = vadd.f32 0.0, %v1062
  %1064 = vmatmul.bf16.gmra.mxu0 %v605
  %v1065 = vpop.f32.mrf.mxu0
  %v1066 = vadd.f32 0.0, %v1065
  %v1067 = vpop.f32.mrf.mxu0
  %v1068 = vadd.f32 0.0, %v1067
  %1069 = vmatmul.bf16.gmra.mxu0 %v609
  %v1070 = vpop.f32.mrf.mxu0
  %v1071 = vadd.f32 0.0, %v1070
  %v1072 = vpop.f32.mrf.mxu0
  %v1073 = vadd.f32 0.0, %v1072
  %1074 = vmatmul.bf16.gmra.mxu0 %v613
  %v1075 = vpop.f32.mrf.mxu0
  %v1076 = vadd.f32 0.0, %v1075
  %v1077 = vpop.f32.mrf.mxu0
  %v1078 = vadd.f32 0.0, %v1077
  %1079 = vmatmul.bf16.gmra.mxu0 %v617
  %v1080 = vpop.f32.mrf.mxu0
  %v1081 = vadd.f32 0.0, %v1080
  %v1082 = vpop.f32.mrf.mxu0
  %v1083 = vadd.f32 0.0, %v1082
  %1084 = vmatmul.bf16.gmra.mxu0 %v621
  %v1085 = vpop.f32.mrf.mxu0
  %v1086 = vadd.f32 0.0, %v1085
  %v1087 = vpop.f32.mrf.mxu0
  %v1088 = vadd.f32 0.0, %v1087
  %1089 = vmatmul.bf16.gmra.mxu0 %v625
  %v1090 = vpop.f32.mrf.mxu0
  %v1091 = vadd.f32 0.0, %v1090
  %v1092 = vpop.f32.mrf.mxu0
  %v1093 = vadd.f32 0.0, %v1092
  %1094 = vmatmul.bf16.gmra.mxu0 %v629
  %v1095 = vpop.f32.mrf.mxu0
  %v1096 = vadd.f32 0.0, %v1095
  %v1097 = vpop.f32.mrf.mxu0
  %v1098 = vadd.f32 0.0, %v1097
  %1099 = vmatmul.bf16.gmra.mxu0 %v633
  %v1100 = vpop.f32.mrf.mxu0
  %v1101 = vadd.f32 0.0, %v1100
  %v1102 = vpop.f32.mrf.mxu0
  %v1103 = vadd.f32 0.0, %v1102
  %1104 = vmatmul.bf16.gmra.mxu0 %v637
  %v1105 = vpop.f32.mrf.mxu0
  %v1106 = vadd.f32 0.0, %v1105
  %v1107 = vpop.f32.mrf.mxu0
  %v1108 = vadd.f32 0.0, %v1107
  %1109 = vmatmul.bf16.gmra.mxu0 %v641
  %v1110 = vpop.f32.mrf.mxu0
  %v1111 = vadd.f32 0.0, %v1110
  %v1112 = vpop.f32.mrf.mxu0
  %v1113 = vadd.f32 0.0, %v1112
  %1114 = vmatmul.bf16.gmra.mxu0 %v645
  %v1115 = vpop.f32.mrf.mxu0
  %v1116 = vadd.f32 0.0, %v1115
  %v1117 = vpop.f32.mrf.mxu0
  %v1118 = vadd.f32 0.0, %v1117
  %1119 = vmatmul.bf16.gmra.mxu0 %v649
  %v1120 = vpop.f32.mrf.mxu0
  %v1121 = vadd.f32 0.0, %v1120
  %v1122 = vpop.f32.mrf.mxu0
  %v1123 = vadd.f32 0.0, %v1122
  %1124 = vmatmul.bf16.gmra.mxu0 %v653
  %v1125 = vpop.f32.mrf.mxu0
  %v1126 = vadd.f32 0.0, %v1125
  %v1127 = vpop.f32.mrf.mxu0
  %v1128 = vadd.f32 0.0, %v1127
  %1129 = vmatmul.bf16.gmra.mxu0 %v657
  %v1130 = vpop.f32.mrf.mxu0
  %v1131 = vadd.f32 0.0, %v1130
  %v1132 = vpop.f32.mrf.mxu0
  %v1133 = vadd.f32 0.0, %v1132
  %1134 = vmatmul.bf16.gmra.mxu0 %v661
  %v1135 = vpop.f32.mrf.mxu0
  %v1136 = vadd.f32 0.0, %v1135
  %v1137 = vpop.f32.mrf.mxu0
  %v1138 = vadd.f32 0.0, %v1137
  %1139 = vmatmul.bf16.gmra.mxu0 %v665
  %v1140 = vpop.f32.mrf.mxu0
  %v1141 = vadd.f32 0.0, %v1140
  %v1142 = vpop.f32.mrf.mxu0
  %v1143 = vadd.f32 0.0, %v1142
  %1144 = vmatmul.bf16.gmra.mxu0 %v669
  %v1145 = vpop.f32.mrf.mxu0
  %v1146 = vadd.f32 0.0, %v1145
  %v1147 = vpop.f32.mrf.mxu0
  %v1148 = vadd.f32 0.0, %v1147
  %1149 = vmatmul.bf16.gmra.mxu0 %v673
  %v1150 = vpop.f32.mrf.mxu0
  %v1151 = vadd.f32 0.0, %v1150
  %v1152 = vpop.f32.mrf.mxu0
  %v1153 = vadd.f32 0.0, %v1152
  %1154 = vmatmul.bf16.gmra.mxu0 %v677
  %v1155 = vpop.f32.mrf.mxu0
  %v1156 = vadd.f32 0.0, %v1155
  %v1157 = vpop.f32.mrf.mxu0
  %v1158 = vadd.f32 0.0, %v1157
  %1159 = vmatmul.bf16.gmra.mxu0 %v681
  %v1160 = vpop.f32.mrf.mxu0
  %v1161 = vadd.f32 0.0, %v1160
  %v1162 = vpop.f32.mrf.mxu0
  %v1163 = vadd.f32 0.0, %v1162
  %1164 = vmatmul.bf16.gmra.mxu0 %v685
  %v1165 = vpop.f32.mrf.mxu0
  %v1166 = vadd.f32 0.0, %v1165
  %v1167 = vpop.f32.mrf.mxu0
  %v1168 = vadd.f32 0.0, %v1167
  %1169 = vmatmul.bf16.gmra.mxu0 %v689
  %v1170 = vpop.f32.mrf.mxu0
  %v1171 = vadd.f32 0.0, %v1170
  %v1172 = vpop.f32.mrf.mxu0
  %v1173 = vadd.f32 0.0, %v1172
  %1174 = vmatmul.bf16.gmra.mxu0 %v693
  %v1175 = vpop.f32.mrf.mxu0
  %v1176 = vadd.f32 0.0, %v1175
  %v1177 = vpop.f32.mrf.mxu0
  %v1178 = vadd.f32 0.0, %v1177
  %1179 = vmatmul.bf16.gmra.mxu0 %v697
  %v1180 = vpop.f32.mrf.mxu0
  %v1181 = vadd.f32 0.0, %v1180
  %v1182 = vpop.f32.mrf.mxu0
  %v1183 = vadd.f32 0.0, %v1182
  %1184 = vmatmul.bf16.gmra.mxu0 %v701
  %v1185 = vpop.f32.mrf.mxu0
  %v1186 = vadd.f32 0.0, %v1185
  %v1187 = vpop.f32.mrf.mxu0
  %v1188 = vadd.f32 0.0, %v1187
  %1189 = vmatmul.bf16.gmra.mxu0 %v705
  %v1190 = vpop.f32.mrf.mxu0
  %v1191 = vadd.f32 0.0, %v1190
  %v1192 = vpop.f32.mrf.mxu0
  %v1193 = vadd.f32 0.0, %v1192
  %1194 = vmatmul.bf16.gmra.mxu0 %v709
  %v1195 = vpop.f32.mrf.mxu0
  %v1196 = vadd.f32 0.0, %v1195
  %v1197 = vpop.f32.mrf.mxu0
  %v1198 = vadd.f32 0.0, %v1197
  %1199 = vmatmul.bf16.gmra.mxu0 %v713
  %v1200 = vpop.f32.mrf.mxu0
  %v1201 = vadd.f32 0.0, %v1200
  %v1202 = vpop.f32.mrf.mxu0
  %v1203 = vadd.f32 0.0, %v1202
  %1204 = vmatmul.bf16.gmra.mxu0 %v717
  %v1205 = vpop.f32.mrf.mxu0
  %v1206 = vadd.f32 0.0, %v1205
  %v1207 = vpop.f32.mrf.mxu0
  %v1208 = vadd.f32 0.0, %v1207
  %1209 = vdwg.mxu0
  %1210 = vmatpush.bf16.msra.mxu0 %v992
  %1211 = vmatpush.bf16.msra.mxu0 %v991
  %1212 = vmatpush.bf16.msra.mxu0 %v990
  %1213 = vmatpush.bf16.msra.mxu0 %v989
  %1214 = vmatpush.bf16.msra.mxu0 %v988
  %1215 = vmatpush.bf16.msra.mxu0 %v987
  %1216 = vmatpush.bf16.msra.mxu0 %v986
  %1217 = vmatpush.bf16.msra.mxu0 %v985
  %1218 = vmatmul.bf16.gmra.mxu0 %v594
  %v1219 = vpop.f32.mrf.mxu0
  %v1220 = vadd.f32 %v1051, %v1219
  %v1221 = vpop.f32.mrf.mxu0
  %v1222 = vadd.f32 %v1053, %v1221
  %1223 = vmatmul.bf16.gmra.mxu0 %v598
  %v1224 = vpop.f32.mrf.mxu0
  %v1225 = vadd.f32 %v1056, %v1224
  %v1226 = vpop.f32.mrf.mxu0
  %v1227 = vadd.f32 %v1058, %v1226
  %1228 = vmatmul.bf16.gmra.mxu0 %v602
  %v1229 = vpop.f32.mrf.mxu0
  %v1230 = vadd.f32 %v1061, %v1229
  %v1231 = vpop.f32.mrf.mxu0
  %v1232 = vadd.f32 %v1063, %v1231
  %1233 = vmatmul.bf16.gmra.mxu0 %v606
  %v1234 = vpop.f32.mrf.mxu0
  %v1235 = vadd.f32 %v1066, %v1234
  %v1236 = vpop.f32.mrf.mxu0
  %v1237 = vadd.f32 %v1068, %v1236
  %1238 = vmatmul.bf16.gmra.mxu0 %v610
  %v1239 = vpop.f32.mrf.mxu0
  %v1240 = vadd.f32 %v1071, %v1239
  %v1241 = vpop.f32.mrf.mxu0
  %v1242 = vadd.f32 %v1073, %v1241
  %1243 = vmatmul.bf16.gmra.mxu0 %v614
  %v1244 = vpop.f32.mrf.mxu0
  %v1245 = vadd.f32 %v1076, %v1244
  %v1246 = vpop.f32.mrf.mxu0
  %v1247 = vadd.f32 %v1078, %v1246
  %1248 = vmatmul.bf16.gmra.mxu0 %v618
  %v1249 = vpop.f32.mrf.mxu0
  %v1250 = vadd.f32 %v1081, %v1249
  %v1251 = vpop.f32.mrf.mxu0
  %v1252 = vadd.f32 %v1083, %v1251
  %1253 = vmatmul.bf16.gmra.mxu0 %v622
  %v1254 = vpop.f32.mrf.mxu0
  %v1255 = vadd.f32 %v1086, %v1254
  %v1256 = vpop.f32.mrf.mxu0
  %v1257 = vadd.f32 %v1088, %v1256
  %1258 = vmatmul.bf16.gmra.mxu0 %v626
  %v1259 = vpop.f32.mrf.mxu0
  %v1260 = vadd.f32 %v1091, %v1259
  %v1261 = vpop.f32.mrf.mxu0
  %v1262 = vadd.f32 %v1093, %v1261
  %1263 = vmatmul.bf16.gmra.mxu0 %v630
  %v1264 = vpop.f32.mrf.mxu0
  %v1265 = vadd.f32 %v1096, %v1264
  %v1266 = vpop.f32.mrf.mxu0
  %v1267 = vadd.f32 %v1098, %v1266
  %1268 = vmatmul.bf16.gmra.mxu0 %v634
  %v1269 = vpop.f32.mrf.mxu0
  %v1270 = vadd.f32 %v1101, %v1269
  %v1271 = vpop.f32.mrf.mxu0
  %v1272 = vadd.f32 %v1103, %v1271
  %1273 = vmatmul.bf16.gmra.mxu0 %v638
  %v1274 = vpop.f32.mrf.mxu0
  %v1275 = vadd.f32 %v1106, %v1274
  %v1276 = vpop.f32.mrf.mxu0
  %v1277 = vadd.f32 %v1108, %v1276
  %1278 = vmatmul.bf16.gmra.mxu0 %v642
  %v1279 = vpop.f32.mrf.mxu0
  %v1280 = vadd.f32 %v1111, %v1279
  %v1281 = vpop.f32.mrf.mxu0
  %v1282 = vadd.f32 %v1113, %v1281
  %1283 = vmatmul.bf16.gmra.mxu0 %v646
  %v1284 = vpop.f32.mrf.mxu0
  %v1285 = vadd.f32 %v1116, %v1284
  %v1286 = vpop.f32.mrf.mxu0
  %v1287 = vadd.f32 %v1118, %v1286
  %1288 = vmatmul.bf16.gmra.mxu0 %v650
  %v1289 = vpop.f32.mrf.mxu0
  %v1290 = vadd.f32 %v1121, %v1289
  %v1291 = vpop.f32.mrf.mxu0
  %v1292 = vadd.f32 %v1123, %v1291
  %1293 = vmatmul.bf16.gmra.mxu0 %v654
  %v1294 = vpop.f32.mrf.mxu0
  %v1295 = vadd.f32 %v1126, %v1294
  %v1296 = vpop.f32.mrf.mxu0
  %v1297 = vadd.f32 %v1128, %v1296
  %1298 = vmatmul.bf16.gmra.mxu0 %v658
  %v1299 = vpop.f32.mrf.mxu0
  %v1300 = vadd.f32 %v1131, %v1299
  %v1301 = vpop.f32.mrf.mxu0
  %v1302 = vadd.f32 %v1133, %v1301
  %1303 = vmatmul.bf16.gmra.mxu0 %v662
  %v1304 = vpop.f32.mrf.mxu0
  %v1305 = vadd.f32 %v1136, %v1304
  %v1306 = vpop.f32.mrf.mxu0
  %v1307 = vadd.f32 %v1138, %v1306
  %1308 = vmatmul.bf16.gmra.mxu0 %v666
  %v1309 = vpop.f32.mrf.mxu0
  %v1310 = vadd.f32 %v1141, %v1309
  %v1311 = vpop.f32.mrf.mxu0
  %v1312 = vadd.f32 %v1143, %v1311
  %1313 = vmatmul.bf16.gmra.mxu0 %v670
  %v1314 = vpop.f32.mrf.mxu0
  %v1315 = vadd.f32 %v1146, %v1314
  %v1316 = vpop.f32.mrf.mxu0
  %v1317 = vadd.f32 %v1148, %v1316
  %1318 = vmatmul.bf16.gmra.mxu0 %v674
  %v1319 = vpop.f32.mrf.mxu0
  %v1320 = vadd.f32 %v1151, %v1319
  %v1321 = vpop.f32.mrf.mxu0
  %v1322 = vadd.f32 %v1153, %v1321
  %1323 = vmatmul.bf16.gmra.mxu0 %v678
  %v1324 = vpop.f32.mrf.mxu0
  %v1325 = vadd.f32 %v1156, %v1324
  %v1326 = vpop.f32.mrf.mxu0
  %v1327 = vadd.f32 %v1158, %v1326
  %1328 = vmatmul.bf16.gmra.mxu0 %v682
  %v1329 = vpop.f32.mrf.mxu0
  %v1330 = vadd.f32 %v1161, %v1329
  %v1331 = vpop.f32.mrf.mxu0
  %v1332 = vadd.f32 %v1163, %v1331
  %1333 = vmatmul.bf16.gmra.mxu0 %v686
  %v1334 = vpop.f32.mrf.mxu0
  %v1335 = vadd.f32 %v1166, %v1334
  %v1336 = vpop.f32.mrf.mxu0
  %v1337 = vadd.f32 %v1168, %v1336
  %1338 = vmatmul.bf16.gmra.mxu0 %v690
  %v1339 = vpop.f32.mrf.mxu0
  %v1340 = vadd.f32 %v1171, %v1339
  %v1341 = vpop.f32.mrf.mxu0
  %v1342 = vadd.f32 %v1173, %v1341
  %1343 = vmatmul.bf16.gmra.mxu0 %v694
  %v1344 = vpop.f32.mrf.mxu0
  %v1345 = vadd.f32 %v1176, %v1344
  %v1346 = vpop.f32.mrf.mxu0
  %v1347 = vadd.f32 %v1178, %v1346
  %1348 = vmatmul.bf16.gmra.mxu0 %v698
  %v1349 = vpop.f32.mrf.mxu0
  %v1350 = vadd.f32 %v1181, %v1349
  %v1351 = vpop.f32.mrf.mxu0
  %v1352 = vadd.f32 %v1183, %v1351
  %1353 = vmatmul.bf16.gmra.mxu0 %v702
  %v1354 = vpop.f32.mrf.mxu0
  %v1355 = vadd.f32 %v1186, %v1354
  %v1356 = vpop.f32.mrf.mxu0
  %v1357 = vadd.f32 %v1188, %v1356
  %1358 = vmatmul.bf16.gmra.mxu0 %v706
  %v1359 = vpop.f32.mrf.mxu0
  %v1360 = vadd.f32 %v1191, %v1359
  %v1361 = vpop.f32.mrf.mxu0
  %v1362 = vadd.f32 %v1193, %v1361
  %1363 = vmatmul.bf16.gmra.mxu0 %v710
  %v1364 = vpop.f32.mrf.mxu0
  %v1365 = vadd.f32 %v1196, %v1364
  %v1366 = vpop.f32.mrf.mxu0
  %v1367 = vadd.f32 %v1198, %v1366
  %1368 = vmatmul.bf16.gmra.mxu0 %v714
  %v1369 = vpop.f32.mrf.mxu0
  %v1370 = vadd.f32 %v1201, %v1369
  %v1371 = vpop.f32.mrf.mxu0
  %v1372 = vadd.f32 %v1203, %v1371
  %1373 = vmatmul.bf16.gmra.mxu0 %v718
  %v1374 = vpop.f32.mrf.mxu0
  %v1375 = vadd.f32 %v1206, %v1374
  %v1376 = vpop.f32.mrf.mxu0
  %v1377 = vadd.f32 %v1208, %v1376
  %1378 = vdwg.mxu0
  %1379 = vmatpush.bf16.msra.mxu0 %v1000
  %1380 = vmatpush.bf16.msra.mxu0 %v999
  %1381 = vmatpush.bf16.msra.mxu0 %v998
  %1382 = vmatpush.bf16.msra.mxu0 %v997
  %1383 = vmatpush.bf16.msra.mxu0 %v996
  %1384 = vmatpush.bf16.msra.mxu0 %v995
  %1385 = vmatpush.bf16.msra.mxu0 %v994
  %1386 = vmatpush.bf16.msra.mxu0 %v993
  %1387 = vmatmul.bf16.gmra.mxu0 %v595
  %v1388 = vpop.f32.mrf.mxu0
  %v1389 = vadd.f32 %v1220, %v1388
  %v1390 = vpop.f32.mrf.mxu0
  %v1391 = vadd.f32 %v1222, %v1390
  %1392 = vmatmul.bf16.gmra.mxu0 %v599
  %v1393 = vpop.f32.mrf.mxu0
  %v1394 = vadd.f32 %v1225, %v1393
  %v1395 = vpop.f32.mrf.mxu0
  %v1396 = vadd.f32 %v1227, %v1395
  %1397 = vmatmul.bf16.gmra.mxu0 %v603
  %v1398 = vpop.f32.mrf.mxu0
  %v1399 = vadd.f32 %v1230, %v1398
  %v1400 = vpop.f32.mrf.mxu0
  %v1401 = vadd.f32 %v1232, %v1400
  %1402 = vmatmul.bf16.gmra.mxu0 %v607
  %v1403 = vpop.f32.mrf.mxu0
  %v1404 = vadd.f32 %v1235, %v1403
  %v1405 = vpop.f32.mrf.mxu0
  %v1406 = vadd.f32 %v1237, %v1405
  %1407 = vmatmul.bf16.gmra.mxu0 %v611
  %v1408 = vpop.f32.mrf.mxu0
  %v1409 = vadd.f32 %v1240, %v1408
  %v1410 = vpop.f32.mrf.mxu0
  %v1411 = vadd.f32 %v1242, %v1410
  %1412 = vmatmul.bf16.gmra.mxu0 %v615
  %v1413 = vpop.f32.mrf.mxu0
  %v1414 = vadd.f32 %v1245, %v1413
  %v1415 = vpop.f32.mrf.mxu0
  %v1416 = vadd.f32 %v1247, %v1415
  %1417 = vmatmul.bf16.gmra.mxu0 %v619
  %v1418 = vpop.f32.mrf.mxu0
  %v1419 = vadd.f32 %v1250, %v1418
  %v1420 = vpop.f32.mrf.mxu0
  %v1421 = vadd.f32 %v1252, %v1420
  %1422 = vmatmul.bf16.gmra.mxu0 %v623
  %v1423 = vpop.f32.mrf.mxu0
  %v1424 = vadd.f32 %v1255, %v1423
  %v1425 = vpop.f32.mrf.mxu0
  %v1426 = vadd.f32 %v1257, %v1425
  %1427 = vmatmul.bf16.gmra.mxu0 %v627
  %v1428 = vpop.f32.mrf.mxu0
  %v1429 = vadd.f32 %v1260, %v1428
  %v1430 = vpop.f32.mrf.mxu0
  %v1431 = vadd.f32 %v1262, %v1430
  %1432 = vmatmul.bf16.gmra.mxu0 %v631
  %v1433 = vpop.f32.mrf.mxu0
  %v1434 = vadd.f32 %v1265, %v1433
  %v1435 = vpop.f32.mrf.mxu0
  %v1436 = vadd.f32 %v1267, %v1435
  %1437 = vmatmul.bf16.gmra.mxu0 %v635
  %v1438 = vpop.f32.mrf.mxu0
  %v1439 = vadd.f32 %v1270, %v1438
  %v1440 = vpop.f32.mrf.mxu0
  %v1441 = vadd.f32 %v1272, %v1440
  %1442 = vmatmul.bf16.gmra.mxu0 %v639
  %v1443 = vpop.f32.mrf.mxu0
  %v1444 = vadd.f32 %v1275, %v1443
  %v1445 = vpop.f32.mrf.mxu0
  %v1446 = vadd.f32 %v1277, %v1445
  %1447 = vmatmul.bf16.gmra.mxu0 %v643
  %v1448 = vpop.f32.mrf.mxu0
  %v1449 = vadd.f32 %v1280, %v1448
  %v1450 = vpop.f32.mrf.mxu0
  %v1451 = vadd.f32 %v1282, %v1450
  %1452 = vmatmul.bf16.gmra.mxu0 %v647
  %v1453 = vpop.f32.mrf.mxu0
  %v1454 = vadd.f32 %v1285, %v1453
  %v1455 = vpop.f32.mrf.mxu0
  %v1456 = vadd.f32 %v1287, %v1455
  %1457 = vmatmul.bf16.gmra.mxu0 %v651
  %v1458 = vpop.f32.mrf.mxu0
  %v1459 = vadd.f32 %v1290, %v1458
  %v1460 = vpop.f32.mrf.mxu0
  %v1461 = vadd.f32 %v1292, %v1460
  %1462 = vmatmul.bf16.gmra.mxu0 %v655
  %v1463 = vpop.f32.mrf.mxu0
  %v1464 = vadd.f32 %v1295, %v1463
  %v1465 = vpop.f32.mrf.mxu0
  %v1466 = vadd.f32 %v1297, %v1465
  %1467 = vmatmul.bf16.gmra.mxu0 %v659
  %v1468 = vpop.f32.mrf.mxu0
  %v1469 = vadd.f32 %v1300, %v1468
  %v1470 = vpop.f32.mrf.mxu0
  %v1471 = vadd.f32 %v1302, %v1470
  %1472 = vmatmul.bf16.gmra.mxu0 %v663
  %v1473 = vpop.f32.mrf.mxu0
  %v1474 = vadd.f32 %v1305, %v1473
  %v1475 = vpop.f32.mrf.mxu0
  %v1476 = vadd.f32 %v1307, %v1475
  %1477 = vmatmul.bf16.gmra.mxu0 %v667
  %v1478 = vpop.f32.mrf.mxu0
  %v1479 = vadd.f32 %v1310, %v1478
  %v1480 = vpop.f32.mrf.mxu0
  %v1481 = vadd.f32 %v1312, %v1480
  %1482 = vmatmul.bf16.gmra.mxu0 %v671
  %v1483 = vpop.f32.mrf.mxu0
  %v1484 = vadd.f32 %v1315, %v1483
  %v1485 = vpop.f32.mrf.mxu0
  %v1486 = vadd.f32 %v1317, %v1485
  %1487 = vmatmul.bf16.gmra.mxu0 %v675
  %v1488 = vpop.f32.mrf.mxu0
  %v1489 = vadd.f32 %v1320, %v1488
  %v1490 = vpop.f32.mrf.mxu0
  %v1491 = vadd.f32 %v1322, %v1490
  %1492 = vmatmul.bf16.gmra.mxu0 %v679
  %v1493 = vpop.f32.mrf.mxu0
  %v1494 = vadd.f32 %v1325, %v1493
  %v1495 = vpop.f32.mrf.mxu0
  %v1496 = vadd.f32 %v1327, %v1495
  %1497 = vmatmul.bf16.gmra.mxu0 %v683
  %v1498 = vpop.f32.mrf.mxu0
  %v1499 = vadd.f32 %v1330, %v1498
  %v1500 = vpop.f32.mrf.mxu0
  %v1501 = vadd.f32 %v1332, %v1500
  %1502 = vmatmul.bf16.gmra.mxu0 %v687
  %v1503 = vpop.f32.mrf.mxu0
  %v1504 = vadd.f32 %v1335, %v1503
  %v1505 = vpop.f32.mrf.mxu0
  %v1506 = vadd.f32 %v1337, %v1505
  %1507 = vmatmul.bf16.gmra.mxu0 %v691
  %v1508 = vpop.f32.mrf.mxu0
  %v1509 = vadd.f32 %v1340, %v1508
  %v1510 = vpop.f32.mrf.mxu0
  %v1511 = vadd.f32 %v1342, %v1510
  %1512 = vmatmul.bf16.gmra.mxu0 %v695
  %v1513 = vpop.f32.mrf.mxu0
  %v1514 = vadd.f32 %v1345, %v1513
  %v1515 = vpop.f32.mrf.mxu0
  %v1516 = vadd.f32 %v1347, %v1515
  %1517 = vmatmul.bf16.gmra.mxu0 %v699
  %v1518 = vpop.f32.mrf.mxu0
  %v1519 = vadd.f32 %v1350, %v1518
  %v1520 = vpop.f32.mrf.mxu0
  %v1521 = vadd.f32 %v1352, %v1520
  %1522 = vmatmul.bf16.gmra.mxu0 %v703
  %v1523 = vpop.f32.mrf.mxu0
  %v1524 = vadd.f32 %v1355, %v1523
  %v1525 = vpop.f32.mrf.mxu0
  %v1526 = vadd.f32 %v1357, %v1525
  %1527 = vmatmul.bf16.gmra.mxu0 %v707
  %v1528 = vpop.f32.mrf.mxu0
  %v1529 = vadd.f32 %v1360, %v1528
  %v1530 = vpop.f32.mrf.mxu0
  %v1531 = vadd.f32 %v1362, %v1530
  %1532 = vmatmul.bf16.gmra.mxu0 %v711
  %v1533 = vpop.f32.mrf.mxu0
  %v1534 = vadd.f32 %v1365, %v1533
  %v1535 = vpop.f32.mrf.mxu0
  %v1536 = vadd.f32 %v1367, %v1535
  %1537 = vmatmul.bf16.gmra.mxu0 %v715
  %v1538 = vpop.f32.mrf.mxu0
  %v1539 = vadd.f32 %v1370, %v1538
  %v1540 = vpop.f32.mrf.mxu0
  %v1541 = vadd.f32 %v1372, %v1540
  %1542 = vmatmul.bf16.gmra.mxu0 %v719
  %v1543 = vpop.f32.mrf.mxu0
  %v1544 = vadd.f32 %v1375, %v1543
  %v1545 = vpop.f32.mrf.mxu0
  %v1546 = vadd.f32 %v1377, %v1545
  %1547 = vdwg.mxu0
  %1548 = vmatpush.bf16.msra.mxu0 %v1008
  %1549 = vmatpush.bf16.msra.mxu0 %v1007
  %1550 = vmatpush.bf16.msra.mxu0 %v1006
  %1551 = vmatpush.bf16.msra.mxu0 %v1005
  %1552 = vmatpush.bf16.msra.mxu0 %v1004
  %1553 = vmatpush.bf16.msra.mxu0 %v1003
  %1554 = vmatpush.bf16.msra.mxu0 %v1002
  %1555 = vmatpush.bf16.msra.mxu0 %v1001
  %1556 = vmatmul.bf16.gmra.mxu0 %v596
  %v1557 = vpop.f32.mrf.mxu0
  %v1558 = vadd.f32 %v1389, %v1557
  %v1559 = vpop.f32.mrf.mxu0
  %v1560 = vadd.f32 %v1391, %v1559
  %1561 = vmatmul.bf16.gmra.mxu0 %v600
  %v1562 = vpop.f32.mrf.mxu0
  %v1563 = vadd.f32 %v1394, %v1562
  %v1564 = vpop.f32.mrf.mxu0
  %v1565 = vadd.f32 %v1396, %v1564
  %1566 = vmatmul.bf16.gmra.mxu0 %v604
  %v1567 = vpop.f32.mrf.mxu0
  %v1568 = vadd.f32 %v1399, %v1567
  %v1569 = vpop.f32.mrf.mxu0
  %v1570 = vadd.f32 %v1401, %v1569
  %1571 = vmatmul.bf16.gmra.mxu0 %v608
  %v1572 = vpop.f32.mrf.mxu0
  %v1573 = vadd.f32 %v1404, %v1572
  %v1574 = vpop.f32.mrf.mxu0
  %v1575 = vadd.f32 %v1406, %v1574
  %1576 = vmatmul.bf16.gmra.mxu0 %v612
  %v1577 = vpop.f32.mrf.mxu0
  %v1578 = vadd.f32 %v1409, %v1577
  %v1579 = vpop.f32.mrf.mxu0
  %v1580 = vadd.f32 %v1411, %v1579
  %1581 = vmatmul.bf16.gmra.mxu0 %v616
  %v1582 = vpop.f32.mrf.mxu0
  %v1583 = vadd.f32 %v1414, %v1582
  %v1584 = vpop.f32.mrf.mxu0
  %v1585 = vadd.f32 %v1416, %v1584
  %1586 = vmatmul.bf16.gmra.mxu0 %v620
  %v1587 = vpop.f32.mrf.mxu0
  %v1588 = vadd.f32 %v1419, %v1587
  %v1589 = vpop.f32.mrf.mxu0
  %v1590 = vadd.f32 %v1421, %v1589
  %1591 = vmatmul.bf16.gmra.mxu0 %v624
  %v1592 = vpop.f32.mrf.mxu0
  %v1593 = vadd.f32 %v1424, %v1592
  %v1594 = vpop.f32.mrf.mxu0
  %v1595 = vadd.f32 %v1426, %v1594
  %1596 = vmatmul.bf16.gmra.mxu0 %v628
  %v1597 = vpop.f32.mrf.mxu0
  %v1598 = vadd.f32 %v1429, %v1597
  %v1599 = vpop.f32.mrf.mxu0
  %v1600 = vadd.f32 %v1431, %v1599
  %1601 = vmatmul.bf16.gmra.mxu0 %v632
  %v1602 = vpop.f32.mrf.mxu0
  %v1603 = vadd.f32 %v1434, %v1602
  %v1604 = vpop.f32.mrf.mxu0
  %v1605 = vadd.f32 %v1436, %v1604
  %1606 = vmatmul.bf16.gmra.mxu0 %v636
  %v1607 = vpop.f32.mrf.mxu0
  %v1608 = vadd.f32 %v1439, %v1607
  %v1609 = vpop.f32.mrf.mxu0
  %v1610 = vadd.f32 %v1441, %v1609
  %1611 = vmatmul.bf16.gmra.mxu0 %v640
  %v1612 = vpop.f32.mrf.mxu0
  %v1613 = vadd.f32 %v1444, %v1612
  %v1614 = vpop.f32.mrf.mxu0
  %v1615 = vadd.f32 %v1446, %v1614
  %1616 = vmatmul.bf16.gmra.mxu0 %v644
  %v1617 = vpop.f32.mrf.mxu0
  %v1618 = vadd.f32 %v1449, %v1617
  %v1619 = vpop.f32.mrf.mxu0
  %v1620 = vadd.f32 %v1451, %v1619
  %1621 = vmatmul.bf16.gmra.mxu0 %v648
  %v1622 = vpop.f32.mrf.mxu0
  %v1623 = vadd.f32 %v1454, %v1622
  %v1624 = vpop.f32.mrf.mxu0
  %v1625 = vadd.f32 %v1456, %v1624
  %1626 = vmatmul.bf16.gmra.mxu0 %v652
  %v1627 = vpop.f32.mrf.mxu0
  %v1628 = vadd.f32 %v1459, %v1627
  %v1629 = vpop.f32.mrf.mxu0
  %v1630 = vadd.f32 %v1461, %v1629
  %1631 = vmatmul.bf16.gmra.mxu0 %v656
  %v1632 = vpop.f32.mrf.mxu0
  %v1633 = vadd.f32 %v1464, %v1632
  %v1634 = vpop.f32.mrf.mxu0
  %v1635 = vadd.f32 %v1466, %v1634
  %1636 = vmatmul.bf16.gmra.mxu0 %v660
  %v1637 = vpop.f32.mrf.mxu0
  %v1638 = vadd.f32 %v1469, %v1637
  %v1639 = vpop.f32.mrf.mxu0
  %v1640 = vadd.f32 %v1471, %v1639
  %1641 = vmatmul.bf16.gmra.mxu0 %v664
  %v1642 = vpop.f32.mrf.mxu0
  %v1643 = vadd.f32 %v1474, %v1642
  %v1644 = vpop.f32.mrf.mxu0
  %v1645 = vadd.f32 %v1476, %v1644
  %1646 = vmatmul.bf16.gmra.mxu0 %v668
  %v1647 = vpop.f32.mrf.mxu0
  %v1648 = vadd.f32 %v1479, %v1647
  %v1649 = vpop.f32.mrf.mxu0
  %v1650 = vadd.f32 %v1481, %v1649
  %1651 = vmatmul.bf16.gmra.mxu0 %v672
  %v1652 = vpop.f32.mrf.mxu0
  %v1653 = vadd.f32 %v1484, %v1652
  %v1654 = vpop.f32.mrf.mxu0
  %v1655 = vadd.f32 %v1486, %v1654
  %1656 = vmatmul.bf16.gmra.mxu0 %v676
  %v1657 = vpop.f32.mrf.mxu0
  %v1658 = vadd.f32 %v1489, %v1657
  %v1659 = vpop.f32.mrf.mxu0
  %v1660 = vadd.f32 %v1491, %v1659
  %1661 = vmatmul.bf16.gmra.mxu0 %v680
  %v1662 = vpop.f32.mrf.mxu0
  %v1663 = vadd.f32 %v1494, %v1662
  %v1664 = vpop.f32.mrf.mxu0
  %v1665 = vadd.f32 %v1496, %v1664
  %1666 = vmatmul.bf16.gmra.mxu0 %v684
  %v1667 = vpop.f32.mrf.mxu0
  %v1668 = vadd.f32 %v1499, %v1667
  %v1669 = vpop.f32.mrf.mxu0
  %v1670 = vadd.f32 %v1501, %v1669
  %1671 = vmatmul.bf16.gmra.mxu0 %v688
  %v1672 = vpop.f32.mrf.mxu0
  %v1673 = vadd.f32 %v1504, %v1672
  %v1674 = vpop.f32.mrf.mxu0
  %v1675 = vadd.f32 %v1506, %v1674
  %1676 = vmatmul.bf16.gmra.mxu0 %v692
  %v1677 = vpop.f32.mrf.mxu0
  %v1678 = vadd.f32 %v1509, %v1677
  %v1679 = vpop.f32.mrf.mxu0
  %v1680 = vadd.f32 %v1511, %v1679
  %1681 = vmatmul.bf16.gmra.mxu0 %v696
  %v1682 = vpop.f32.mrf.mxu0
  %v1683 = vadd.f32 %v1514, %v1682
  %v1684 = vpop.f32.mrf.mxu0
  %v1685 = vadd.f32 %v1516, %v1684
  %1686 = vmatmul.bf16.gmra.mxu0 %v700
  %v1687 = vpop.f32.mrf.mxu0
  %v1688 = vadd.f32 %v1519, %v1687
  %v1689 = vpop.f32.mrf.mxu0
  %v1690 = vadd.f32 %v1521, %v1689
  %1691 = vmatmul.bf16.gmra.mxu0 %v704
  %v1692 = vpop.f32.mrf.mxu0
  %v1693 = vadd.f32 %v1524, %v1692
  %v1694 = vpop.f32.mrf.mxu0
  %v1695 = vadd.f32 %v1526, %v1694
  %1696 = vmatmul.bf16.gmra.mxu0 %v708
  %v1697 = vpop.f32.mrf.mxu0
  %v1698 = vadd.f32 %v1529, %v1697
  %v1699 = vpop.f32.mrf.mxu0
  %v1700 = vadd.f32 %v1531, %v1699
  %1701 = vmatmul.bf16.gmra.mxu0 %v712
  %v1702 = vpop.f32.mrf.mxu0
  %v1703 = vadd.f32 %v1534, %v1702
  %v1704 = vpop.f32.mrf.mxu0
  %v1705 = vadd.f32 %v1536, %v1704
  %1706 = vmatmul.bf16.gmra.mxu0 %v716
  %v1707 = vpop.f32.mrf.mxu0
  %v1708 = vadd.f32 %v1539, %v1707
  %v1709 = vpop.f32.mrf.mxu0
  %v1710 = vadd.f32 %v1541, %v1709
  %1711 = vmatmul.bf16.gmra.mxu0 %v720
  %v1712 = vpop.f32.mrf.mxu0
  %v1713 = vadd.f32 %v1544, %v1712
  %v1714 = vpop.f32.mrf.mxu0
  %v1715 = vadd.f32 %v1546, %v1714
  %1716 = vdwg.mxu0
  %vm1717 = vcmask 523264
  %v1718 = vsel %vm1717, %v1558, 0.0
  %v1719 = vsel %vm1717, %v1560, 0.0
  %v1720 = vadd.f32 %v1718, %v1719
  %v1721 = vsel %vm1717, %v1563, 0.0
  %v1722 = vadd.f32 %v1720, %v1721
  %v1723 = vsel %vm1717, %v1565, 0.0
  %v1724 = vadd.f32 %v1722, %v1723
  %v1725 = vsel %vm1717, %v1568, 0.0
  %v1726 = vadd.f32 %v1724, %v1725
  %v1727 = vsel %vm1717, %v1570, 0.0
  %v1728 = vadd.f32 %v1726, %v1727
  %v1729 = vsel %vm1717, %v1573, 0.0
  %v1730 = vadd.f32 %v1728, %v1729
  %v1731 = vsel %vm1717, %v1575, 0.0
  %v1732 = vadd.f32 %v1730, %v1731
  %v1733 = vsel %vm1717, %v1578, 0.0
  %v1734 = vadd.f32 %v1732, %v1733
  %v1735 = vsel %vm1717, %v1580, 0.0
  %v1736 = vadd.f32 %v1734, %v1735
  %v1737 = vsel %vm1717, %v1583, 0.0
  %v1738 = vadd.f32 %v1736, %v1737
  %v1739 = vsel %vm1717, %v1585, 0.0
  %v1740 = vadd.f32 %v1738, %v1739
  %v1741 = vsel %vm1717, %v1588, 0.0
  %v1742 = vadd.f32 %v1740, %v1741
  %v1743 = vsel %vm1717, %v1590, 0.0
  %v1744 = vadd.f32 %v1742, %v1743
  %v1745 = vsel %vm1717, %v1593, 0.0
  %v1746 = vadd.f32 %v1744, %v1745
  %v1747 = vsel %vm1717, %v1595, 0.0
  %v1748 = vadd.f32 %v1746, %v1747
  %v1749 = vsel %vm1717, %v1598, 0.0
  %v1750 = vadd.f32 %v1748, %v1749
  %v1751 = vsel %vm1717, %v1600, 0.0
  %v1752 = vadd.f32 %v1750, %v1751
  %v1753 = vsel %vm1717, %v1603, 0.0
  %v1754 = vadd.f32 %v1752, %v1753
  %v1755 = vsel %vm1717, %v1605, 0.0
  %v1756 = vadd.f32 %v1754, %v1755
  %v1757 = vsel %vm1717, %v1608, 0.0
  %v1758 = vadd.f32 %v1756, %v1757
  %v1759 = vsel %vm1717, %v1610, 0.0
  %v1760 = vadd.f32 %v1758, %v1759
  %v1761 = vsel %vm1717, %v1613, 0.0
  %v1762 = vadd.f32 %v1760, %v1761
  %v1763 = vsel %vm1717, %v1615, 0.0
  %v1764 = vadd.f32 %v1762, %v1763
  %v1765 = vsel %vm1717, %v1618, 0.0
  %v1766 = vadd.f32 %v1764, %v1765
  %v1767 = vsel %vm1717, %v1620, 0.0
  %v1768 = vadd.f32 %v1766, %v1767
  %v1769 = vsel %vm1717, %v1623, 0.0
  %v1770 = vadd.f32 %v1768, %v1769
  %v1771 = vsel %vm1717, %v1625, 0.0
  %v1772 = vadd.f32 %v1770, %v1771
  %v1773 = vsel %vm1717, %v1628, 0.0
  %v1774 = vadd.f32 %v1772, %v1773
  %v1775 = vsel %vm1717, %v1630, 0.0
  %v1776 = vadd.f32 %v1774, %v1775
  %v1777 = vsel %vm1717, %v1633, 0.0
  %v1778 = vadd.f32 %v1776, %v1777
  %v1779 = vsel %vm1717, %v1635, 0.0
  %v1780 = vadd.f32 %v1778, %v1779
  %v1781 = vsel %vm1717, %v1638, 0.0
  %v1782 = vadd.f32 %v1780, %v1781
  %v1783 = vsel %vm1717, %v1640, 0.0
  %v1784 = vadd.f32 %v1782, %v1783
  %v1785 = vsel %vm1717, %v1643, 0.0
  %v1786 = vadd.f32 %v1784, %v1785
  %v1787 = vsel %vm1717, %v1645, 0.0
  %v1788 = vadd.f32 %v1786, %v1787
  %v1789 = vsel %vm1717, %v1648, 0.0
  %v1790 = vadd.f32 %v1788, %v1789
  %v1791 = vsel %vm1717, %v1650, 0.0
  %v1792 = vadd.f32 %v1790, %v1791
  %v1793 = vsel %vm1717, %v1653, 0.0
  %v1794 = vadd.f32 %v1792, %v1793
  %v1795 = vsel %vm1717, %v1655, 0.0
  %v1796 = vadd.f32 %v1794, %v1795
  %v1797 = vsel %vm1717, %v1658, 0.0
  %v1798 = vadd.f32 %v1796, %v1797
  %v1799 = vsel %vm1717, %v1660, 0.0
  %v1800 = vadd.f32 %v1798, %v1799
  %v1801 = vsel %vm1717, %v1663, 0.0
  %v1802 = vadd.f32 %v1800, %v1801
  %v1803 = vsel %vm1717, %v1665, 0.0
  %v1804 = vadd.f32 %v1802, %v1803
  %v1805 = vsel %vm1717, %v1668, 0.0
  %v1806 = vadd.f32 %v1804, %v1805
  %v1807 = vsel %vm1717, %v1670, 0.0
  %v1808 = vadd.f32 %v1806, %v1807
  %v1809 = vsel %vm1717, %v1673, 0.0
  %v1810 = vadd.f32 %v1808, %v1809
  %v1811 = vsel %vm1717, %v1675, 0.0
  %v1812 = vadd.f32 %v1810, %v1811
  %v1813 = vsel %vm1717, %v1678, 0.0
  %v1814 = vadd.f32 %v1812, %v1813
  %v1815 = vsel %vm1717, %v1680, 0.0
  %v1816 = vadd.f32 %v1814, %v1815
  %v1817 = vsel %vm1717, %v1683, 0.0
  %v1818 = vadd.f32 %v1816, %v1817
  %v1819 = vsel %vm1717, %v1685, 0.0
  %v1820 = vadd.f32 %v1818, %v1819
  %v1821 = vsel %vm1717, %v1688, 0.0
  %v1822 = vadd.f32 %v1820, %v1821
  %v1823 = vsel %vm1717, %v1690, 0.0
  %v1824 = vadd.f32 %v1822, %v1823
  %v1825 = vsel %vm1717, %v1693, 0.0
  %v1826 = vadd.f32 %v1824, %v1825
  %v1827 = vsel %vm1717, %v1695, 0.0
  %v1828 = vadd.f32 %v1826, %v1827
  %v1829 = vsel %vm1717, %v1698, 0.0
  %v1830 = vadd.f32 %v1828, %v1829
  %v1831 = vsel %vm1717, %v1700, 0.0
  %v1832 = vadd.f32 %v1830, %v1831
  %v1833 = vsel %vm1717, %v1703, 0.0
  %v1834 = vadd.f32 %v1832, %v1833
  %v1835 = vsel %vm1717, %v1705, 0.0
  %v1836 = vadd.f32 %v1834, %v1835
  %v1837 = vsel %vm1717, %v1708, 0.0
  %v1838 = vadd.f32 %v1836, %v1837
  %v1839 = vsel %vm1717, %v1710, 0.0
  %v1840 = vadd.f32 %v1838, %v1839
  %v1841 = vsel %vm1717, %v1713, 0.0
  %v1842 = vadd.f32 %v1840, %v1841
  %v1843 = vsel %vm1717, %v1715, 0.0
  %v1844 = vadd.f32 %v1842, %v1843
  %v1845 = vrot.slane %v1844, 4
  %v1846 = vadd.f32 %v1844, %v1845
  %v1847 = vrot.slane %v1846, 2
  %v1848 = vadd.f32 %v1846, %v1847
  %v1849 = vrot.slane %v1848, 1
  %v1850 = vadd.f32 %v1848, %v1849
  %v1851 = vmul.f32 %v1850, 0.001953125
  %v1852 = vsub.f32 %v1558, %v1851
  %v1853 = vsub.f32 %v1560, %v1851
  %v1854 = vsub.f32 %v1563, %v1851
  %v1855 = vsub.f32 %v1565, %v1851
  %v1856 = vsub.f32 %v1568, %v1851
  %v1857 = vsub.f32 %v1570, %v1851
  %v1858 = vsub.f32 %v1573, %v1851
  %v1859 = vsub.f32 %v1575, %v1851
  %v1860 = vsub.f32 %v1578, %v1851
  %v1861 = vsub.f32 %v1580, %v1851
  %v1862 = vsub.f32 %v1583, %v1851
  %v1863 = vsub.f32 %v1585, %v1851
  %v1864 = vsub.f32 %v1588, %v1851
  %v1865 = vsub.f32 %v1590, %v1851
  %v1866 = vsub.f32 %v1593, %v1851
  %v1867 = vsub.f32 %v1595, %v1851
  %v1868 = vsub.f32 %v1598, %v1851
  %v1869 = vsub.f32 %v1600, %v1851
  %v1870 = vsub.f32 %v1603, %v1851
  %v1871 = vsub.f32 %v1605, %v1851
  %v1872 = vsub.f32 %v1608, %v1851
  %v1873 = vsub.f32 %v1610, %v1851
  %v1874 = vsub.f32 %v1613, %v1851
  %v1875 = vsub.f32 %v1615, %v1851
  %v1876 = vsub.f32 %v1618, %v1851
  %v1877 = vsub.f32 %v1620, %v1851
  %v1878 = vsub.f32 %v1623, %v1851
  %v1879 = vsub.f32 %v1625, %v1851
  %v1880 = vsub.f32 %v1628, %v1851
  %v1881 = vsub.f32 %v1630, %v1851
  %v1882 = vsub.f32 %v1633, %v1851
  %v1883 = vsub.f32 %v1635, %v1851
  %v1884 = vsub.f32 %v1638, %v1851
  %v1885 = vsub.f32 %v1640, %v1851
  %v1886 = vsub.f32 %v1643, %v1851
  %v1887 = vsub.f32 %v1645, %v1851
  %v1888 = vsub.f32 %v1648, %v1851
  %v1889 = vsub.f32 %v1650, %v1851
  %v1890 = vsub.f32 %v1653, %v1851
  %v1891 = vsub.f32 %v1655, %v1851
  %v1892 = vsub.f32 %v1658, %v1851
  %v1893 = vsub.f32 %v1660, %v1851
  %v1894 = vsub.f32 %v1663, %v1851
  %v1895 = vsub.f32 %v1665, %v1851
  %v1896 = vsub.f32 %v1668, %v1851
  %v1897 = vsub.f32 %v1670, %v1851
  %v1898 = vsub.f32 %v1673, %v1851
  %v1899 = vsub.f32 %v1675, %v1851
  %v1900 = vsub.f32 %v1678, %v1851
  %v1901 = vsub.f32 %v1680, %v1851
  %v1902 = vsub.f32 %v1683, %v1851
  %v1903 = vsub.f32 %v1685, %v1851
  %v1904 = vsub.f32 %v1688, %v1851
  %v1905 = vsub.f32 %v1690, %v1851
  %v1906 = vsub.f32 %v1693, %v1851
  %v1907 = vsub.f32 %v1695, %v1851
  %v1908 = vsub.f32 %v1698, %v1851
  %v1909 = vsub.f32 %v1700, %v1851
  %v1910 = vsub.f32 %v1703, %v1851
  %v1911 = vsub.f32 %v1705, %v1851
  %v1912 = vsub.f32 %v1708, %v1851
  %v1913 = vsub.f32 %v1710, %v1851
  %v1914 = vsub.f32 %v1713, %v1851
  %v1915 = vsub.f32 %v1715, %v1851
  %v1916 = vmul.f32 %v1852, %v1852
  %v1917 = vmul.f32 %v1853, %v1853
  %v1918 = vmul.f32 %v1854, %v1854
  %v1919 = vmul.f32 %v1855, %v1855
  %v1920 = vmul.f32 %v1856, %v1856
  %v1921 = vmul.f32 %v1857, %v1857
  %v1922 = vmul.f32 %v1858, %v1858
  %v1923 = vmul.f32 %v1859, %v1859
  %v1924 = vmul.f32 %v1860, %v1860
  %v1925 = vmul.f32 %v1861, %v1861
  %v1926 = vmul.f32 %v1862, %v1862
  %v1927 = vmul.f32 %v1863, %v1863
  %v1928 = vmul.f32 %v1864, %v1864
  %v1929 = vmul.f32 %v1865, %v1865
  %v1930 = vmul.f32 %v1866, %v1866
  %v1931 = vmul.f32 %v1867, %v1867
  %v1932 = vmul.f32 %v1868, %v1868
  %v1933 = vmul.f32 %v1869, %v1869
  %v1934 = vmul.f32 %v1870, %v1870
  %v1935 = vmul.f32 %v1871, %v1871
  %v1936 = vmul.f32 %v1872, %v1872
  %v1937 = vmul.f32 %v1873, %v1873
  %v1938 = vmul.f32 %v1874, %v1874
  %v1939 = vmul.f32 %v1875, %v1875
  %v1940 = vmul.f32 %v1876, %v1876
  %v1941 = vmul.f32 %v1877, %v1877
  %v1942 = vmul.f32 %v1878, %v1878
  %v1943 = vmul.f32 %v1879, %v1879
  %v1944 = vmul.f32 %v1880, %v1880
  %v1945 = vmul.f32 %v1881, %v1881
  %v1946 = vmul.f32 %v1882, %v1882
  %v1947 = vmul.f32 %v1883, %v1883
  %v1948 = vmul.f32 %v1884, %v1884
  %v1949 = vmul.f32 %v1885, %v1885
  %v1950 = vmul.f32 %v1886, %v1886
  %v1951 = vmul.f32 %v1887, %v1887
  %v1952 = vmul.f32 %v1888, %v1888
  %v1953 = vmul.f32 %v1889, %v1889
  %v1954 = vmul.f32 %v1890, %v1890
  %v1955 = vmul.f32 %v1891, %v1891
  %v1956 = vmul.f32 %v1892, %v1892
  %v1957 = vmul.f32 %v1893, %v1893
  %v1958 = vmul.f32 %v1894, %v1894
  %v1959 = vmul.f32 %v1895, %v1895
  %v1960 = vmul.f32 %v1896, %v1896
  %v1961 = vmul.f32 %v1897, %v1897
  %v1962 = vmul.f32 %v1898, %v1898
  %v1963 = vmul.f32 %v1899, %v1899
  %v1964 = vmul.f32 %v1900, %v1900
  %v1965 = vmul.f32 %v1901, %v1901
  %v1966 = vmul.f32 %v1902, %v1902
  %v1967 = vmul.f32 %v1903, %v1903
  %v1968 = vmul.f32 %v1904, %v1904
  %v1969 = vmul.f32 %v1905, %v1905
  %v1970 = vmul.f32 %v1906, %v1906
  %v1971 = vmul.f32 %v1907, %v1907
  %v1972 = vmul.f32 %v1908, %v1908
  %v1973 = vmul.f32 %v1909, %v1909
  %v1974 = vmul.f32 %v1910, %v1910
  %v1975 = vmul.f32 %v1911, %v1911
  %v1976 = vmul.f32 %v1912, %v1912
  %v1977 = vmul.f32 %v1913, %v1913
  %v1978 = vmul.f32 %v1914, %v1914
  %v1979 = vmul.f32 %v1915, %v1915
  %v1980 = vsel %vm1717, %v1916, 0.0
  %v1981 = vsel %vm1717, %v1917, 0.0
  %v1982 = vadd.f32 %v1980, %v1981
  %v1983 = vsel %vm1717, %v1918, 0.0
  %v1984 = vadd.f32 %v1982, %v1983
  %v1985 = vsel %vm1717, %v1919, 0.0
  %v1986 = vadd.f32 %v1984, %v1985
  %v1987 = vsel %vm1717, %v1920, 0.0
  %v1988 = vadd.f32 %v1986, %v1987
  %v1989 = vsel %vm1717, %v1921, 0.0
  %v1990 = vadd.f32 %v1988, %v1989
  %v1991 = vsel %vm1717, %v1922, 0.0
  %v1992 = vadd.f32 %v1990, %v1991
  %v1993 = vsel %vm1717, %v1923, 0.0
  %v1994 = vadd.f32 %v1992, %v1993
  %v1995 = vsel %vm1717, %v1924, 0.0
  %v1996 = vadd.f32 %v1994, %v1995
  %v1997 = vsel %vm1717, %v1925, 0.0
  %v1998 = vadd.f32 %v1996, %v1997
  %v1999 = vsel %vm1717, %v1926, 0.0
  %v2000 = vadd.f32 %v1998, %v1999
  %v2001 = vsel %vm1717, %v1927, 0.0
  %v2002 = vadd.f32 %v2000, %v2001
  %v2003 = vsel %vm1717, %v1928, 0.0
  %v2004 = vadd.f32 %v2002, %v2003
  %v2005 = vsel %vm1717, %v1929, 0.0
  %v2006 = vadd.f32 %v2004, %v2005
  %v2007 = vsel %vm1717, %v1930, 0.0
  %v2008 = vadd.f32 %v2006, %v2007
  %v2009 = vsel %vm1717, %v1931, 0.0
  %v2010 = vadd.f32 %v2008, %v2009
  %v2011 = vsel %vm1717, %v1932, 0.0
  %v2012 = vadd.f32 %v2010, %v2011
  %v2013 = vsel %vm1717, %v1933, 0.0
  %v2014 = vadd.f32 %v2012, %v2013
  %v2015 = vsel %vm1717, %v1934, 0.0
  %v2016 = vadd.f32 %v2014, %v2015
  %v2017 = vsel %vm1717, %v1935, 0.0
  %v2018 = vadd.f32 %v2016, %v2017
  %v2019 = vsel %vm1717, %v1936, 0.0
  %v2020 = vadd.f32 %v2018, %v2019
  %v2021 = vsel %vm1717, %v1937, 0.0
  %v2022 = vadd.f32 %v2020, %v2021
  %v2023 = vsel %vm1717, %v1938, 0.0
  %v2024 = vadd.f32 %v2022, %v2023
  %v2025 = vsel %vm1717, %v1939, 0.0
  %v2026 = vadd.f32 %v2024, %v2025
  %v2027 = vsel %vm1717, %v1940, 0.0
  %v2028 = vadd.f32 %v2026, %v2027
  %v2029 = vsel %vm1717, %v1941, 0.0
  %v2030 = vadd.f32 %v2028, %v2029
  %v2031 = vsel %vm1717, %v1942, 0.0
  %v2032 = vadd.f32 %v2030, %v2031
  %v2033 = vsel %vm1717, %v1943, 0.0
  %v2034 = vadd.f32 %v2032, %v2033
  %v2035 = vsel %vm1717, %v1944, 0.0
  %v2036 = vadd.f32 %v2034, %v2035
  %v2037 = vsel %vm1717, %v1945, 0.0
  %v2038 = vadd.f32 %v2036, %v2037
  %v2039 = vsel %vm1717, %v1946, 0.0
  %v2040 = vadd.f32 %v2038, %v2039
  %v2041 = vsel %vm1717, %v1947, 0.0
  %v2042 = vadd.f32 %v2040, %v2041
  %v2043 = vsel %vm1717, %v1948, 0.0
  %v2044 = vadd.f32 %v2042, %v2043
  %v2045 = vsel %vm1717, %v1949, 0.0
  %v2046 = vadd.f32 %v2044, %v2045
  %v2047 = vsel %vm1717, %v1950, 0.0
  %v2048 = vadd.f32 %v2046, %v2047
  %v2049 = vsel %vm1717, %v1951, 0.0
  %v2050 = vadd.f32 %v2048, %v2049
  %v2051 = vsel %vm1717, %v1952, 0.0
  %v2052 = vadd.f32 %v2050, %v2051
  %v2053 = vsel %vm1717, %v1953, 0.0
  %v2054 = vadd.f32 %v2052, %v2053
  %v2055 = vsel %vm1717, %v1954, 0.0
  %v2056 = vadd.f32 %v2054, %v2055
  %v2057 = vsel %vm1717, %v1955, 0.0
  %v2058 = vadd.f32 %v2056, %v2057
  %v2059 = vsel %vm1717, %v1956, 0.0
  %v2060 = vadd.f32 %v2058, %v2059
  %v2061 = vsel %vm1717, %v1957, 0.0
  %v2062 = vadd.f32 %v2060, %v2061
  %v2063 = vsel %vm1717, %v1958, 0.0
  %v2064 = vadd.f32 %v2062, %v2063
  %v2065 = vsel %vm1717, %v1959, 0.0
  %v2066 = vadd.f32 %v2064, %v2065
  %v2067 = vsel %vm1717, %v1960, 0.0
  %v2068 = vadd.f32 %v2066, %v2067
  %v2069 = vsel %vm1717, %v1961, 0.0
  %v2070 = vadd.f32 %v2068, %v2069
  %v2071 = vsel %vm1717, %v1962, 0.0
  %v2072 = vadd.f32 %v2070, %v2071
  %v2073 = vsel %vm1717, %v1963, 0.0
  %v2074 = vadd.f32 %v2072, %v2073
  %v2075 = vsel %vm1717, %v1964, 0.0
  %v2076 = vadd.f32 %v2074, %v2075
  %v2077 = vsel %vm1717, %v1965, 0.0
  %v2078 = vadd.f32 %v2076, %v2077
  %v2079 = vsel %vm1717, %v1966, 0.0
  %v2080 = vadd.f32 %v2078, %v2079
  %v2081 = vsel %vm1717, %v1967, 0.0
  %v2082 = vadd.f32 %v2080, %v2081
  %v2083 = vsel %vm1717, %v1968, 0.0
  %v2084 = vadd.f32 %v2082, %v2083
  %v2085 = vsel %vm1717, %v1969, 0.0
  %v2086 = vadd.f32 %v2084, %v2085
  %v2087 = vsel %vm1717, %v1970, 0.0
  %v2088 = vadd.f32 %v2086, %v2087
  %v2089 = vsel %vm1717, %v1971, 0.0
  %v2090 = vadd.f32 %v2088, %v2089
  %v2091 = vsel %vm1717, %v1972, 0.0
  %v2092 = vadd.f32 %v2090, %v2091
  %v2093 = vsel %vm1717, %v1973, 0.0
  %v2094 = vadd.f32 %v2092, %v2093
  %v2095 = vsel %vm1717, %v1974, 0.0
  %v2096 = vadd.f32 %v2094, %v2095
  %v2097 = vsel %vm1717, %v1975, 0.0
  %v2098 = vadd.f32 %v2096, %v2097
  %v2099 = vsel %vm1717, %v1976, 0.0
  %v2100 = vadd.f32 %v2098, %v2099
  %v2101 = vsel %vm1717, %v1977, 0.0
  %v2102 = vadd.f32 %v2100, %v2101
  %v2103 = vsel %vm1717, %v1978, 0.0
  %v2104 = vadd.f32 %v2102, %v2103
  %v2105 = vsel %vm1717, %v1979, 0.0
  %v2106 = vadd.f32 %v2104, %v2105
  %v2107 = vrot.slane %v2106, 4
  %v2108 = vadd.f32 %v2106, %v2107
  %v2109 = vrot.slane %v2108, 2
  %v2110 = vadd.f32 %v2108, %v2109
  %v2111 = vrot.slane %v2110, 1
  %v2112 = vadd.f32 %v2110, %v2111
  %v2113 = vmul.f32 %v2112, 0.001953125
  %v2114 = vld [vmem:[%s2] sm:$0x1]
  %v2115 = vadd.f32 %v2113, 1e-05
  %v2116 = vrsqrt.pop %v2115
  %v2117 = vmul.f32 %v2116, %v2115
  %v2118 = vmul.f32 %v2117, %v2116
  %v2119 = vmul.f32 0.5, %v2118
  %v2120 = vsub.f32 1.5, %v2119
  %v2121 = vmul.f32 %v2116, %v2120
  %vm2122 = vweird.f32 %v2115
  %vm2123 = vweird.f32 %v2116
  %vm2124 = vmor %vm2122, %vm2123
  %v2125 = vsel %vm2124, %v2116, %v2121
  %v2126 = vmul.f32 %v2114, %v2125
  %v2128 = vperm.slane %v2126, 0
  %v2130 = vmul.f32 %v1852, %v2128
  %v2131 = vmul.f32 %v1853, %v2128
  %v2132 = vmul.f32 %v1854, %v2128
  %v2133 = vmul.f32 %v1855, %v2128
  %v2134 = vmul.f32 %v1856, %v2128
  %v2135 = vmul.f32 %v1857, %v2128
  %v2136 = vmul.f32 %v1858, %v2128
  %v2137 = vmul.f32 %v1859, %v2128
  %v2138 = vmul.f32 %v1860, %v2128
  %v2139 = vmul.f32 %v1861, %v2128
  %v2140 = vmul.f32 %v1862, %v2128
  %v2141 = vmul.f32 %v1863, %v2128
  %v2142 = vmul.f32 %v1864, %v2128
  %v2143 = vmul.f32 %v1865, %v2128
  %v2144 = vmul.f32 %v1866, %v2128
  %v2145 = vmul.f32 %v1867, %v2128
  %v2146 = vmul.f32 %v1868, %v2128
  %v2147 = vmul.f32 %v1869, %v2128
  %v2148 = vmul.f32 %v1870, %v2128
  %v2149 = vmul.f32 %v1871, %v2128
  %v2150 = vmul.f32 %v1872, %v2128
  %v2151 = vmul.f32 %v1873, %v2128
  %v2152 = vmul.f32 %v1874, %v2128
  %v2153 = vmul.f32 %v1875, %v2128
  %v2154 = vmul.f32 %v1876, %v2128
  %v2155 = vmul.f32 %v1877, %v2128
  %v2156 = vmul.f32 %v1878, %v2128
  %v2157 = vmul.f32 %v1879, %v2128
  %v2158 = vmul.f32 %v1880, %v2128
  %v2159 = vmul.f32 %v1881, %v2128
  %v2160 = vmul.f32 %v1882, %v2128
  %v2161 = vmul.f32 %v1883, %v2128
  %v2162 = vmul.f32 %v1884, %v2128
  %v2163 = vmul.f32 %v1885, %v2128
  %v2164 = vmul.f32 %v1886, %v2128
  %v2165 = vmul.f32 %v1887, %v2128
  %v2166 = vmul.f32 %v1888, %v2128
  %v2167 = vmul.f32 %v1889, %v2128
  %v2168 = vmul.f32 %v1890, %v2128
  %v2169 = vmul.f32 %v1891, %v2128
  %v2170 = vmul.f32 %v1892, %v2128
  %v2171 = vmul.f32 %v1893, %v2128
  %v2172 = vmul.f32 %v1894, %v2128
  %v2173 = vmul.f32 %v1895, %v2128
  %v2174 = vmul.f32 %v1896, %v2128
  %v2175 = vmul.f32 %v1897, %v2128
  %v2176 = vmul.f32 %v1898, %v2128
  %v2177 = vmul.f32 %v1899, %v2128
  %v2178 = vmul.f32 %v1900, %v2128
  %v2179 = vmul.f32 %v1901, %v2128
  %v2180 = vmul.f32 %v1902, %v2128
  %v2181 = vmul.f32 %v1903, %v2128
  %v2182 = vmul.f32 %v1904, %v2128
  %v2183 = vmul.f32 %v1905, %v2128
  %v2184 = vmul.f32 %v1906, %v2128
  %v2185 = vmul.f32 %v1907, %v2128
  %v2186 = vmul.f32 %v1908, %v2128
  %v2187 = vmul.f32 %v1909, %v2128
  %v2188 = vmul.f32 %v1910, %v2128
  %v2189 = vmul.f32 %v1911, %v2128
  %v2190 = vmul.f32 %v1912, %v2128
  %v2191 = vmul.f32 %v1913, %v2128
  %v2192 = vmul.f32 %v1914, %v2128
  %v2193 = vmul.f32 %v1915, %v2128
  %v2194 = vld [vmem:[%s3] sm:$0x1]
  %v2196 = vperm.slane %v2194, 0
  %v2198 = vadd.f32 %v2130, %v2196
  %v2199 = vadd.f32 %v2131, %v2196
  %v2200 = vadd.f32 %v2132, %v2196
  %v2201 = vadd.f32 %v2133, %v2196
  %v2202 = vadd.f32 %v2134, %v2196
  %v2203 = vadd.f32 %v2135, %v2196
  %v2204 = vadd.f32 %v2136, %v2196
  %v2205 = vadd.f32 %v2137, %v2196
  %v2206 = vadd.f32 %v2138, %v2196
  %v2207 = vadd.f32 %v2139, %v2196
  %v2208 = vadd.f32 %v2140, %v2196
  %v2209 = vadd.f32 %v2141, %v2196
  %v2210 = vadd.f32 %v2142, %v2196
  %v2211 = vadd.f32 %v2143, %v2196
  %v2212 = vadd.f32 %v2144, %v2196
  %v2213 = vadd.f32 %v2145, %v2196
  %v2214 = vadd.f32 %v2146, %v2196
  %v2215 = vadd.f32 %v2147, %v2196
  %v2216 = vadd.f32 %v2148, %v2196
  %v2217 = vadd.f32 %v2149, %v2196
  %v2218 = vadd.f32 %v2150, %v2196
  %v2219 = vadd.f32 %v2151, %v2196
  %v2220 = vadd.f32 %v2152, %v2196
  %v2221 = vadd.f32 %v2153, %v2196
  %v2222 = vadd.f32 %v2154, %v2196
  %v2223 = vadd.f32 %v2155, %v2196
  %v2224 = vadd.f32 %v2156, %v2196
  %v2225 = vadd.f32 %v2157, %v2196
  %v2226 = vadd.f32 %v2158, %v2196
  %v2227 = vadd.f32 %v2159, %v2196
  %v2228 = vadd.f32 %v2160, %v2196
  %v2229 = vadd.f32 %v2161, %v2196
  %v2230 = vadd.f32 %v2162, %v2196
  %v2231 = vadd.f32 %v2163, %v2196
  %v2232 = vadd.f32 %v2164, %v2196
  %v2233 = vadd.f32 %v2165, %v2196
  %v2234 = vadd.f32 %v2166, %v2196
  %v2235 = vadd.f32 %v2167, %v2196
  %v2236 = vadd.f32 %v2168, %v2196
  %v2237 = vadd.f32 %v2169, %v2196
  %v2238 = vadd.f32 %v2170, %v2196
  %v2239 = vadd.f32 %v2171, %v2196
  %v2240 = vadd.f32 %v2172, %v2196
  %v2241 = vadd.f32 %v2173, %v2196
  %v2242 = vadd.f32 %v2174, %v2196
  %v2243 = vadd.f32 %v2175, %v2196
  %v2244 = vadd.f32 %v2176, %v2196
  %v2245 = vadd.f32 %v2177, %v2196
  %v2246 = vadd.f32 %v2178, %v2196
  %v2247 = vadd.f32 %v2179, %v2196
  %v2248 = vadd.f32 %v2180, %v2196
  %v2249 = vadd.f32 %v2181, %v2196
  %v2250 = vadd.f32 %v2182, %v2196
  %v2251 = vadd.f32 %v2183, %v2196
  %v2252 = vadd.f32 %v2184, %v2196
  %v2253 = vadd.f32 %v2185, %v2196
  %v2254 = vadd.f32 %v2186, %v2196
  %v2255 = vadd.f32 %v2187, %v2196
  %v2256 = vadd.f32 %v2188, %v2196
  %v2257 = vadd.f32 %v2189, %v2196
  %v2258 = vadd.f32 %v2190, %v2196
  %v2259 = vadd.f32 %v2191, %v2196
  %v2260 = vadd.f32 %v2192, %v2196
  %v2261 = vadd.f32 %v2193, %v2196
  %v2262 = vmax.f32 %v2198, 0.0
  %v2263 = vmax.f32 %v2199, 0.0
  %v2264 = vmax.f32 %v2200, 0.0
  %v2265 = vmax.f32 %v2201, 0.0
  %v2266 = vmax.f32 %v2202, 0.0
  %v2267 = vmax.f32 %v2203, 0.0
  %v2268 = vmax.f32 %v2204, 0.0
  %v2269 = vmax.f32 %v2205, 0.0
  %v2270 = vmax.f32 %v2206, 0.0
  %v2271 = vmax.f32 %v2207, 0.0
  %v2272 = vmax.f32 %v2208, 0.0
  %v2273 = vmax.f32 %v2209, 0.0
  %v2274 = vmax.f32 %v2210, 0.0
  %v2275 = vmax.f32 %v2211, 0.0
  %v2276 = vmax.f32 %v2212, 0.0
  %v2277 = vmax.f32 %v2213, 0.0
  %v2278 = vmax.f32 %v2214, 0.0
  %v2279 = vmax.f32 %v2215, 0.0
  %v2280 = vmax.f32 %v2216, 0.0
  %v2281 = vmax.f32 %v2217, 0.0
  %v2282 = vmax.f32 %v2218, 0.0
  %v2283 = vmax.f32 %v2219, 0.0
  %v2284 = vmax.f32 %v2220, 0.0
  %v2285 = vmax.f32 %v2221, 0.0
  %v2286 = vmax.f32 %v2222, 0.0
  %v2287 = vmax.f32 %v2223, 0.0
  %v2288 = vmax.f32 %v2224, 0.0
  %v2289 = vmax.f32 %v2225, 0.0
  %v2290 = vmax.f32 %v2226, 0.0
  %v2291 = vmax.f32 %v2227, 0.0
  %v2292 = vmax.f32 %v2228, 0.0
  %v2293 = vmax.f32 %v2229, 0.0
  %v2294 = vmax.f32 %v2230, 0.0
  %v2295 = vmax.f32 %v2231, 0.0
  %v2296 = vmax.f32 %v2232, 0.0
  %v2297 = vmax.f32 %v2233, 0.0
  %v2298 = vmax.f32 %v2234, 0.0
  %v2299 = vmax.f32 %v2235, 0.0
  %v2300 = vmax.f32 %v2236, 0.0
  %v2301 = vmax.f32 %v2237, 0.0
  %v2302 = vmax.f32 %v2238, 0.0
  %v2303 = vmax.f32 %v2239, 0.0
  %v2304 = vmax.f32 %v2240, 0.0
  %v2305 = vmax.f32 %v2241, 0.0
  %v2306 = vmax.f32 %v2242, 0.0
  %v2307 = vmax.f32 %v2243, 0.0
  %v2308 = vmax.f32 %v2244, 0.0
  %v2309 = vmax.f32 %v2245, 0.0
  %v2310 = vmax.f32 %v2246, 0.0
  %v2311 = vmax.f32 %v2247, 0.0
  %v2312 = vmax.f32 %v2248, 0.0
  %v2313 = vmax.f32 %v2249, 0.0
  %v2314 = vmax.f32 %v2250, 0.0
  %v2315 = vmax.f32 %v2251, 0.0
  %v2316 = vmax.f32 %v2252, 0.0
  %v2317 = vmax.f32 %v2253, 0.0
  %v2318 = vmax.f32 %v2254, 0.0
  %v2319 = vmax.f32 %v2255, 0.0
  %v2320 = vmax.f32 %v2256, 0.0
  %v2321 = vmax.f32 %v2257, 0.0
  %v2322 = vmax.f32 %v2258, 0.0
  %v2323 = vmax.f32 %v2259, 0.0
  %v2324 = vmax.f32 %v2260, 0.0
  %v2325 = vmax.f32 %v2261, 0.0
  %v2326 = vpack.c.bf16 %v2262, %v2262
  %v2327 = vpack.c.bf16 %v2263, %v2263
  %v2328 = vpack.c.bf16 %v2264, %v2264
  %v2329 = vpack.c.bf16 %v2265, %v2265
  %v2330 = vpack.c.bf16 %v2266, %v2266
  %v2331 = vpack.c.bf16 %v2267, %v2267
  %v2332 = vpack.c.bf16 %v2268, %v2268
  %v2333 = vpack.c.bf16 %v2269, %v2269
  %v2334 = vpack.c.bf16 %v2270, %v2270
  %v2335 = vpack.c.bf16 %v2271, %v2271
  %v2336 = vpack.c.bf16 %v2272, %v2272
  %v2337 = vpack.c.bf16 %v2273, %v2273
  %v2338 = vpack.c.bf16 %v2274, %v2274
  %v2339 = vpack.c.bf16 %v2275, %v2275
  %v2340 = vpack.c.bf16 %v2276, %v2276
  %v2341 = vpack.c.bf16 %v2277, %v2277
  %v2342 = vpack.c.bf16 %v2278, %v2278
  %v2343 = vpack.c.bf16 %v2279, %v2279
  %v2344 = vpack.c.bf16 %v2280, %v2280
  %v2345 = vpack.c.bf16 %v2281, %v2281
  %v2346 = vpack.c.bf16 %v2282, %v2282
  %v2347 = vpack.c.bf16 %v2283, %v2283
  %v2348 = vpack.c.bf16 %v2284, %v2284
  %v2349 = vpack.c.bf16 %v2285, %v2285
  %v2350 = vpack.c.bf16 %v2286, %v2286
  %v2351 = vpack.c.bf16 %v2287, %v2287
  %v2352 = vpack.c.bf16 %v2288, %v2288
  %v2353 = vpack.c.bf16 %v2289, %v2289
  %v2354 = vpack.c.bf16 %v2290, %v2290
  %v2355 = vpack.c.bf16 %v2291, %v2291
  %v2356 = vpack.c.bf16 %v2292, %v2292
  %v2357 = vpack.c.bf16 %v2293, %v2293
  %v2358 = vpack.c.bf16 %v2294, %v2294
  %v2359 = vpack.c.bf16 %v2295, %v2295
  %v2360 = vpack.c.bf16 %v2296, %v2296
  %v2361 = vpack.c.bf16 %v2297, %v2297
  %v2362 = vpack.c.bf16 %v2298, %v2298
  %v2363 = vpack.c.bf16 %v2299, %v2299
  %v2364 = vpack.c.bf16 %v2300, %v2300
  %v2365 = vpack.c.bf16 %v2301, %v2301
  %v2366 = vpack.c.bf16 %v2302, %v2302
  %v2367 = vpack.c.bf16 %v2303, %v2303
  %v2368 = vpack.c.bf16 %v2304, %v2304
  %v2369 = vpack.c.bf16 %v2305, %v2305
  %v2370 = vpack.c.bf16 %v2306, %v2306
  %v2371 = vpack.c.bf16 %v2307, %v2307
  %v2372 = vpack.c.bf16 %v2308, %v2308
  %v2373 = vpack.c.bf16 %v2309, %v2309
  %v2374 = vpack.c.bf16 %v2310, %v2310
  %v2375 = vpack.c.bf16 %v2311, %v2311
  %v2376 = vpack.c.bf16 %v2312, %v2312
  %v2377 = vpack.c.bf16 %v2313, %v2313
  %v2378 = vpack.c.bf16 %v2314, %v2314
  %v2379 = vpack.c.bf16 %v2315, %v2315
  %v2380 = vpack.c.bf16 %v2316, %v2316
  %v2381 = vpack.c.bf16 %v2317, %v2317
  %v2382 = vpack.c.bf16 %v2318, %v2318
  %v2383 = vpack.c.bf16 %v2319, %v2319
  %v2384 = vpack.c.bf16 %v2320, %v2320
  %v2385 = vpack.c.bf16 %v2321, %v2321
  %v2386 = vpack.c.bf16 %v2322, %v2322
  %v2387 = vpack.c.bf16 %v2323, %v2323
  %v2388 = vpack.c.bf16 %v2324, %v2324
  %v2389 = vpack.c.bf16 %v2325, %v2325
  %vm2390 = vcmask 519168
  %2391 = vst.msk [vmem:[%s4] sm:$0xf] %vm2390, %v2326
  %2392 = vst.msk [vmem:[%s4 + $0x4] sm:$0xf] %vm2390, %v2327
  %2393 = vst.msk [vmem:[%s4 + $0x8] sm:$0xf] %vm2390, %v2328
  %2394 = vst.msk [vmem:[%s4 + $0xc] sm:$0xf] %vm2390, %v2329
  %2395 = vst.msk [vmem:[%s4 + $0x10] sm:$0xf] %vm2390, %v2330
  %2396 = vst.msk [vmem:[%s4 + $0x14] sm:$0xf] %vm2390, %v2331
  %2397 = vst.msk [vmem:[%s4 + $0x18] sm:$0xf] %vm2390, %v2332
  %2398 = vst.msk [vmem:[%s4 + $0x1c] sm:$0xf] %vm2390, %v2333
  %2399 = vst.msk [vmem:[%s4 + $0x20] sm:$0xf] %vm2390, %v2334
  %2400 = vst.msk [vmem:[%s4 + $0x24] sm:$0xf] %vm2390, %v2335
  %2401 = vst.msk [vmem:[%s4 + $0x28] sm:$0xf] %vm2390, %v2336
  %2402 = vst.msk [vmem:[%s4 + $0x2c] sm:$0xf] %vm2390, %v2337
  %2403 = vst.msk [vmem:[%s4 + $0x30] sm:$0xf] %vm2390, %v2338
  %2404 = vst.msk [vmem:[%s4 + $0x34] sm:$0xf] %vm2390, %v2339
  %2405 = vst.msk [vmem:[%s4 + $0x38] sm:$0xf] %vm2390, %v2340
  %2406 = vst.msk [vmem:[%s4 + $0x3c] sm:$0xf] %vm2390, %v2341
  %2407 = vst.msk [vmem:[%s4 + $0x40] sm:$0xf] %vm2390, %v2342
  %2408 = vst.msk [vmem:[%s4 + $0x44] sm:$0xf] %vm2390, %v2343
  %2409 = vst.msk [vmem:[%s4 + $0x48] sm:$0xf] %vm2390, %v2344
  %2410 = vst.msk [vmem:[%s4 + $0x4c] sm:$0xf] %vm2390, %v2345
  %2411 = vst.msk [vmem:[%s4 + $0x50] sm:$0xf] %vm2390, %v2346
  %2412 = vst.msk [vmem:[%s4 + $0x54] sm:$0xf] %vm2390, %v2347
  %2413 = vst.msk [vmem:[%s4 + $0x58] sm:$0xf] %vm2390, %v2348
  %2414 = vst.msk [vmem:[%s4 + $0x5c] sm:$0xf] %vm2390, %v2349
  %2415 = vst.msk [vmem:[%s4 + $0x60] sm:$0xf] %vm2390, %v2350
  %2416 = vst.msk [vmem:[%s4 + $0x64] sm:$0xf] %vm2390, %v2351
  %2417 = vst.msk [vmem:[%s4 + $0x68] sm:$0xf] %vm2390, %v2352
  %2418 = vst.msk [vmem:[%s4 + $0x6c] sm:$0xf] %vm2390, %v2353
  %2419 = vst.msk [vmem:[%s4 + $0x70] sm:$0xf] %vm2390, %v2354
  %2420 = vst.msk [vmem:[%s4 + $0x74] sm:$0xf] %vm2390, %v2355
  %2421 = vst.msk [vmem:[%s4 + $0x78] sm:$0xf] %vm2390, %v2356
  %2422 = vst.msk [vmem:[%s4 + $0x7c] sm:$0xf] %vm2390, %v2357
  %2423 = vst.msk [vmem:[%s4 + $0x80] sm:$0xf] %vm2390, %v2358
  %2424 = vst.msk [vmem:[%s4 + $0x84] sm:$0xf] %vm2390, %v2359
  %2425 = vst.msk [vmem:[%s4 + $0x88] sm:$0xf] %vm2390, %v2360
  %2426 = vst.msk [vmem:[%s4 + $0x8c] sm:$0xf] %vm2390, %v2361
  %2427 = vst.msk [vmem:[%s4 + $0x90] sm:$0xf] %vm2390, %v2362
  %2428 = vst.msk [vmem:[%s4 + $0x94] sm:$0xf] %vm2390, %v2363
  %2429 = vst.msk [vmem:[%s4 + $0x98] sm:$0xf] %vm2390, %v2364
  %2430 = vst.msk [vmem:[%s4 + $0x9c] sm:$0xf] %vm2390, %v2365
  %2431 = vst.msk [vmem:[%s4 + $0xa0] sm:$0xf] %vm2390, %v2366
  %2432 = vst.msk [vmem:[%s4 + $0xa4] sm:$0xf] %vm2390, %v2367
  %2433 = vst.msk [vmem:[%s4 + $0xa8] sm:$0xf] %vm2390, %v2368
  %2434 = vst.msk [vmem:[%s4 + $0xac] sm:$0xf] %vm2390, %v2369
  %2435 = vst.msk [vmem:[%s4 + $0xb0] sm:$0xf] %vm2390, %v2370
  %2436 = vst.msk [vmem:[%s4 + $0xb4] sm:$0xf] %vm2390, %v2371
  %2437 = vst.msk [vmem:[%s4 + $0xb8] sm:$0xf] %vm2390, %v2372
  %2438 = vst.msk [vmem:[%s4 + $0xbc] sm:$0xf] %vm2390, %v2373
  %2439 = vst.msk [vmem:[%s4 + $0xc0] sm:$0xf] %vm2390, %v2374
  %2440 = vst.msk [vmem:[%s4 + $0xc4] sm:$0xf] %vm2390, %v2375
  %2441 = vst.msk [vmem:[%s4 + $0xc8] sm:$0xf] %vm2390, %v2376
  %2442 = vst.msk [vmem:[%s4 + $0xcc] sm:$0xf] %vm2390, %v2377
  %2443 = vst.msk [vmem:[%s4 + $0xd0] sm:$0xf] %vm2390, %v2378
  %2444 = vst.msk [vmem:[%s4 + $0xd4] sm:$0xf] %vm2390, %v2379
  %2445 = vst.msk [vmem:[%s4 + $0xd8] sm:$0xf] %vm2390, %v2380
  %2446 = vst.msk [vmem:[%s4 + $0xdc] sm:$0xf] %vm2390, %v2381
  %2447 = vst.msk [vmem:[%s4 + $0xe0] sm:$0xf] %vm2390, %v2382
  %2448 = vst.msk [vmem:[%s4 + $0xe4] sm:$0xf] %vm2390, %v2383
  %2449 = vst.msk [vmem:[%s4 + $0xe8] sm:$0xf] %vm2390, %v2384
  %2450 = vst.msk [vmem:[%s4 + $0xec] sm:$0xf] %vm2390, %v2385
  %2451 = vst.msk [vmem:[%s4 + $0xf0] sm:$0xf] %vm2390, %v2386
  %2452 = vst.msk [vmem:[%s4 + $0xf4] sm:$0xf] %vm2390, %v2387
  %2453 = vst.msk [vmem:[%s4 + $0xf8] sm:$0xf] %vm2390, %v2388
  %2454 = vst.msk [vmem:[%s4 + $0xfc] sm:$0xf] %vm2390, %v2389
  // Predicated region
  $region18: #{sentence_encoder_forward.7} parent=0 // pred_check
    _
  $region19: #{sentence_encoder_forward.7} parent=0 // pred_check_branch
    %2456 = sbr.rel (0) target = $region21
  $region20: #{sentence_encoder_forward.7} parent=0 // pred_region
    _
  $region21: #{sentence_encoder_forward.7} parent=0 // pred_fallthru
    _
  // Predicated region
  $region22: #{sentence_encoder_forward.7} parent=0 // pred_check
    _
  $region23: #{sentence_encoder_forward.7} parent=0 // pred_check_branch
    %2458 = sbr.rel (0) target = $region25
  $region24: #{sentence_encoder_forward.7} parent=0 // pred_region
    _
  $region25: #{sentence_encoder_forward.7} parent=0 // pred_fallthru
    _

// kernel: sentence_encoder_forward.8
$region0: #{sentence_encoder_forward.8}
  #allocation0 [shape = 'u32[]', space=smem, size = 0x4, offset = 0x4, fixed_abs, tag = 'smem constant byte address 0x4 - core index']
  #allocation1 [shape = 'u32[72,128]{1,0:T(1,128)}', space=vmem, size = 0x9000, scoped, tag = 'internal scratch']
  %s0 = inlined_call_operand.vmem [shape: bf16[128,1024], index: 0, kind: input, shape index: {}]
  %s1 = inlined_call_operand.vmem [shape: bf16[1024,128], index: 1, kind: input, shape index: {}]
  %s2 = inlined_call_operand.vmem [shape: f32[1,128], index: 2, kind: input, shape index: {}]
  %s3 = inlined_call_operand.vmem [shape: f32[1,128], index: 3, kind: input, shape index: {}]
  %s4 = inlined_call_operand.vmem [shape: bf16[128,128], index: 4, kind: output, shape index: {}]
  %s5 = sld [smem:[#allocation0]]
  $region26: #{sentence_encoder_forward.8} parent=0
    _
  %s7 = ssub.s32 1, %s5
  %s8 = scalar_select 0, %s7, %s5
  // Predicated region
  $region2: #{sentence_encoder_forward.8} parent=0 // pred_check
    _
  $region3: #{sentence_encoder_forward.8} parent=0 // pred_check_branch
    %10 = sbr.rel (0) target = $region5
  $region4: #{sentence_encoder_forward.8} parent=0 // pred_region
    _
  $region5: #{sentence_encoder_forward.8} parent=0 // pred_fallthru
    _
  // Predicated region
  $region6: #{sentence_encoder_forward.8} parent=0 // pred_check
    _
  $region7: #{sentence_encoder_forward.8} parent=0 // pred_check_branch
    %12 = sbr.rel (0) target = $region9
  $region8: #{sentence_encoder_forward.8} parent=0 // pred_region
    _
  $region9: #{sentence_encoder_forward.8} parent=0 // pred_fallthru
    _
  // Predicated region
  $region10: #{sentence_encoder_forward.8} parent=0 // pred_check
    _
  $region11: #{sentence_encoder_forward.8} parent=0 // pred_check_branch
    %14 = sbr.rel (0) target = $region13
  $region12: #{sentence_encoder_forward.8} parent=0 // pred_region
    _
  $region13: #{sentence_encoder_forward.8} parent=0 // pred_fallthru
    _
  // Predicated region
  $region14: #{sentence_encoder_forward.8} parent=0 // pred_check
    _
  $region15: #{sentence_encoder_forward.8} parent=0 // pred_check_branch
    %16 = sbr.rel (0) target = $region17
  $region16: #{sentence_encoder_forward.8} parent=0 // pred_region
    _
  $region17: #{sentence_encoder_forward.8} parent=0 // pred_fallthru
    _
  %v17 = vld [vmem:[%s0] sm:$0xff]
  %v18 = vld [vmem:[%s0 + $0x8] sm:$0xff]
  %v19 = vld [vmem:[%s0 + $0x10] sm:$0xff]
  %v20 = vld [vmem:[%s0 + $0x18] sm:$0xff]
  %v21 = vld [vmem:[%s0 + $0x20] sm:$0xff]
  %v22 = vld [vmem:[%s0 + $0x28] sm:$0xff]
  %v23 = vld [vmem:[%s0 + $0x30] sm:$0xff]
  %v24 = vld [vmem:[%s0 + $0x38] sm:$0xff]
  %v25 = vld [vmem:[%s0 + $0x40] sm:$0xff]
  %v26 = vld [vmem:[%s0 + $0x48] sm:$0xff]
  %v27 = vld [vmem:[%s0 + $0x50] sm:$0xff]
  %v28 = vld [vmem:[%s0 + $0x58] sm:$0xff]
  %v29 = vld [vmem:[%s0 + $0x60] sm:$0xff]
  %v30 = vld [vmem:[%s0 + $0x68] sm:$0xff]
  %v31 = vld [vmem:[%s0 + $0x70] sm:$0xff]
  %v32 = vld [vmem:[%s0 + $0x78] sm:$0xff]
  %v33 = vld [vmem:[%s0 + $0x80] sm:$0xff]
  %v34 = vld [vmem:[%s0 + $0x88] sm:$0xff]
  %v35 = vld [vmem:[%s0 + $0x90] sm:$0xff]
  %v36 = vld [vmem:[%s0 + $0x98] sm:$0xff]
  %v37 = vld [vmem:[%s0 + $0xa0] sm:$0xff]
  %v38 = vld [vmem:[%s0 + $0xa8] sm:$0xff]
  %v39 = vld [vmem:[%s0 + $0xb0] sm:$0xff]
  %v40 = vld [vmem:[%s0 + $0xb8] sm:$0xff]
  %v41 = vld [vmem:[%s0 + $0xc0] sm:$0xff]
  %v42 = vld [vmem:[%s0 + $0xc8] sm:$0xff]
  %v43 = vld [vmem:[%s0 + $0xd0] sm:$0xff]
  %v44 = vld [vmem:[%s0 + $0xd8] sm:$0xff]
  %v45 = vld [vmem:[%s0 + $0xe0] sm:$0xff]
  %v46 = vld [vmem:[%s0 + $0xe8] sm:$0xff]
  %v47 = vld [vmem:[%s0 + $0xf0] sm:$0xff]
  %v48 = vld [vmem:[%s0 + $0xf8] sm:$0xff]
  %v49 = vld [vmem:[%s0 + $0x100] sm:$0xff]
  %v50 = vld [vmem:[%s0 + $0x108] sm:$0xff]
  %v51 = vld [vmem:[%s0 + $0x110] sm:$0xff]
  %v52 = vld [vmem:[%s0 + $0x118] sm:$0xff]
  %v53 = vld [vmem:[%s0 + $0x120] sm:$0xff]
  %v54 = vld [vmem:[%s0 + $0x128] sm:$0xff]
  %v55 = vld [vmem:[%s0 + $0x130] sm:$0xff]
  %v56 = vld [vmem:[%s0 + $0x138] sm:$0xff]
  %v57 = vld [vmem:[%s0 + $0x140] sm:$0xff]
  %v58 = vld [vmem:[%s0 + $0x148] sm:$0xff]
  %v59 = vld [vmem:[%s0 + $0x150] sm:$0xff]
  %v60 = vld [vmem:[%s0 + $0x158] sm:$0xff]
  %v61 = vld [vmem:[%s0 + $0x160] sm:$0xff]
  %v62 = vld [vmem:[%s0 + $0x168] sm:$0xff]
  %v63 = vld [vmem:[%s0 + $0x170] sm:$0xff]
  %v64 = vld [vmem:[%s0 + $0x178] sm:$0xff]
  %v65 = vld [vmem:[%s0 + $0x180] sm:$0xff]
  %v66 = vld [vmem:[%s0 + $0x188] sm:$0xff]
  %v67 = vld [vmem:[%s0 + $0x190] sm:$0xff]
  %v68 = vld [vmem:[%s0 + $0x198] sm:$0xff]
  %v69 = vld [vmem:[%s0 + $0x1a0] sm:$0xff]
  %v70 = vld [vmem:[%s0 + $0x1a8] sm:$0xff]
  %v71 = vld [vmem:[%s0 + $0x1b0] sm:$0xff]
  %v72 = vld [vmem:[%s0 + $0x1b8] sm:$0xff]
  %v73 = vld [vmem:[%s0 + $0x1c0] sm:$0xff]
  %v74 = vld [vmem:[%s0 + $0x1c8] sm:$0xff]
  %v75 = vld [vmem:[%s0 + $0x1d0] sm:$0xff]
  %v76 = vld [vmem:[%s0 + $0x1d8] sm:$0xff]
  %v77 = vld [vmem:[%s0 + $0x1e0] sm:$0xff]
  %v78 = vld [vmem:[%s0 + $0x1e8] sm:$0xff]
  %v79 = vld [vmem:[%s0 + $0x1f0] sm:$0xff]
  %v80 = vld [vmem:[%s0 + $0x1f8] sm:$0xff]
  %v81 = vld [vmem:[%s1] sm:$0xf]
  %v82 = vld [vmem:[%s1 + $0x4] sm:$0xf]
  %v83 = vld [vmem:[%s1 + $0x8] sm:$0xf]
  %v84 = vld [vmem:[%s1 + $0xc] sm:$0xf]
  %v85 = vld [vmem:[%s1 + $0x10] sm:$0xf]
  %v86 = vld [vmem:[%s1 + $0x14] sm:$0xf]
  %v87 = vld [vmem:[%s1 + $0x18] sm:$0xf]
  %v88 = vld [vmem:[%s1 + $0x1c] sm:$0xf]
  %v89 = vld [vmem:[%s1 + $0x20] sm:$0xf]
  %v90 = vld [vmem:[%s1 + $0x24] sm:$0xf]
  %v91 = vld [vmem:[%s1 + $0x28] sm:$0xf]
  %v92 = vld [vmem:[%s1 + $0x2c] sm:$0xf]
  %v93 = vld [vmem:[%s1 + $0x30] sm:$0xf]
  %v94 = vld [vmem:[%s1 + $0x34] sm:$0xf]
  %v95 = vld [vmem:[%s1 + $0x38] sm:$0xf]
  %v96 = vld [vmem:[%s1 + $0x3c] sm:$0xf]
  %v97 = vld [vmem:[%s1 + $0x40] sm:$0xf]
  %v98 = vld [vmem:[%s1 + $0x44] sm:$0xf]
  %v99 = vld [vmem:[%s1 + $0x48] sm:$0xf]
  %v100 = vld [vmem:[%s1 + $0x4c] sm:$0xf]
  %v101 = vld [vmem:[%s1 + $0x50] sm:$0xf]
  %v102 = vld [vmem:[%s1 + $0x54] sm:$0xf]
  %v103 = vld [vmem:[%s1 + $0x58] sm:$0xf]
  %v104 = vld [vmem:[%s1 + $0x5c] sm:$0xf]
  %v105 = vld [vmem:[%s1 + $0x60] sm:$0xf]
  %v106 = vld [vmem:[%s1 + $0x64] sm:$0xf]
  %v107 = vld [vmem:[%s1 + $0x68] sm:$0xf]
  %v108 = vld [vmem:[%s1 + $0x6c] sm:$0xf]
  %v109 = vld [vmem:[%s1 + $0x70] sm:$0xf]
  %v110 = vld [vmem:[%s1 + $0x74] sm:$0xf]
  %v111 = vld [vmem:[%s1 + $0x78] sm:$0xf]
  %v112 = vld [vmem:[%s1 + $0x7c] sm:$0xf]
  %v113 = vld [vmem:[%s1 + $0x80] sm:$0xf]
  %v114 = vld [vmem:[%s1 + $0x84] sm:$0xf]
  %v115 = vld [vmem:[%s1 + $0x88] sm:$0xf]
  %v116 = vld [vmem:[%s1 + $0x8c] sm:$0xf]
  %v117 = vld [vmem:[%s1 + $0x90] sm:$0xf]
  %v118 = vld [vmem:[%s1 + $0x94] sm:$0xf]
  %v119 = vld [vmem:[%s1 + $0x98] sm:$0xf]
  %v120 = vld [vmem:[%s1 + $0x9c] sm:$0xf]
  %v121 = vld [vmem:[%s1 + $0xa0] sm:$0xf]
  %v122 = vld [vmem:[%s1 + $0xa4] sm:$0xf]
  %v123 = vld [vmem:[%s1 + $0xa8] sm:$0xf]
  %v124 = vld [vmem:[%s1 + $0xac] sm:$0xf]
  %v125 = vld [vmem:[%s1 + $0xb0] sm:$0xf]
  %v126 = vld [vmem:[%s1 + $0xb4] sm:$0xf]
  %v127 = vld [vmem:[%s1 + $0xb8] sm:$0xf]
  %v128 = vld [vmem:[%s1 + $0xbc] sm:$0xf]
  %v129 = vld [vmem:[%s1 + $0xc0] sm:$0xf]
  %v130 = vld [vmem:[%s1 + $0xc4] sm:$0xf]
  %v131 = vld [vmem:[%s1 + $0xc8] sm:$0xf]
  %v132 = vld [vmem:[%s1 + $0xcc] sm:$0xf]
  %v133 = vld [vmem:[%s1 + $0xd0] sm:$0xf]
  %v134 = vld [vmem:[%s1 + $0xd4] sm:$0xf]
  %v135 = vld [vmem:[%s1 + $0xd8] sm:$0xf]
  %v136 = vld [vmem:[%s1 + $0xdc] sm:$0xf]
  %v137 = vld [vmem:[%s1 + $0xe0] sm:$0xf]
  %v138 = vld [vmem:[%s1 + $0xe4] sm:$0xf]
  %v139 = vld [vmem:[%s1 + $0xe8] sm:$0xf]
  %v140 = vld [vmem:[%s1 + $0xec] sm:$0xf]
  %v141 = vld [vmem:[%s1 + $0xf0] sm:$0xf]
  %v142 = vld [vmem:[%s1 + $0xf4] sm:$0xf]
  %v143 = vld [vmem:[%s1 + $0xf8] sm:$0xf]
  %v144 = vld [vmem:[%s1 + $0xfc] sm:$0xf]
  %v145 = vld [vmem:[%s1 + $0x100] sm:$0xf]
  %v146 = vld [vmem:[%s1 + $0x104] sm:$0xf]
  %v147 = vld [vmem:[%s1 + $0x108] sm:$0xf]
  %v148 = vld [vmem:[%s1 + $0x10c] sm:$0xf]
  %v149 = vld [vmem:[%s1 + $0x110] sm:$0xf]
  %v150 = vld [vmem:[%s1 + $0x114] sm:$0xf]
  %v151 = vld [vmem:[%s1 + $0x118] sm:$0xf]
  %v152 = vld [vmem:[%s1 + $0x11c] sm:$0xf]
  %v153 = vld [vmem:[%s1 + $0x120] sm:$0xf]
  %v154 = vld [vmem:[%s1 + $0x124] sm:$0xf]
  %v155 = vld [vmem:[%s1 + $0x128] sm:$0xf]
  %v156 = vld [vmem:[%s1 + $0x12c] sm:$0xf]
  %v157 = vld [vmem:[%s1 + $0x130] sm:$0xf]
  %v158 = vld [vmem:[%s1 + $0x134] sm:$0xf]
  %v159 = vld [vmem:[%s1 + $0x138] sm:$0xf]
  %v160 = vld [vmem:[%s1 + $0x13c] sm:$0xf]
  %v161 = vld [vmem:[%s1 + $0x140] sm:$0xf]
  %v162 = vld [vmem:[%s1 + $0x144] sm:$0xf]
  %v163 = vld [vmem:[%s1 + $0x148] sm:$0xf]
  %v164 = vld [vmem:[%s1 + $0x14c] sm:$0xf]
  %v165 = vld [vmem:[%s1 + $0x150] sm:$0xf]
  %v166 = vld [vmem:[%s1 + $0x154] sm:$0xf]
  %v167 = vld [vmem:[%s1 + $0x158] sm:$0xf]
  %v168 = vld [vmem:[%s1 + $0x15c] sm:$0xf]
  %v169 = vld [vmem:[%s1 + $0x160] sm:$0xf]
  %v170 = vld [vmem:[%s1 + $0x164] sm:$0xf]
  %v171 = vld [vmem:[%s1 + $0x168] sm:$0xf]
  %v172 = vld [vmem:[%s1 + $0x16c] sm:$0xf]
  %v173 = vld [vmem:[%s1 + $0x170] sm:$0xf]
  %v174 = vld [vmem:[%s1 + $0x174] sm:$0xf]
  %v175 = vld [vmem:[%s1 + $0x178] sm:$0xf]
  %v176 = vld [vmem:[%s1 + $0x17c] sm:$0xf]
  %v177 = vld [vmem:[%s1 + $0x180] sm:$0xf]
  %v178 = vld [vmem:[%s1 + $0x184] sm:$0xf]
  %v179 = vld [vmem:[%s1 + $0x188] sm:$0xf]
  %v180 = vld [vmem:[%s1 + $0x18c] sm:$0xf]
  %v181 = vld [vmem:[%s1 + $0x190] sm:$0xf]
  %v182 = vld [vmem:[%s1 + $0x194] sm:$0xf]
  %v183 = vld [vmem:[%s1 + $0x198] sm:$0xf]
  %v184 = vld [vmem:[%s1 + $0x19c] sm:$0xf]
  %v185 = vld [vmem:[%s1 + $0x1a0] sm:$0xf]
  %v186 = vld [vmem:[%s1 + $0x1a4] sm:$0xf]
  %v187 = vld [vmem:[%s1 + $0x1a8] sm:$0xf]
  %v188 = vld [vmem:[%s1 + $0x1ac] sm:$0xf]
  %v189 = vld [vmem:[%s1 + $0x1b0] sm:$0xf]
  %v190 = vld [vmem:[%s1 + $0x1b4] sm:$0xf]
  %v191 = vld [vmem:[%s1 + $0x1b8] sm:$0xf]
  %v192 = vld [vmem:[%s1 + $0x1bc] sm:$0xf]
  %v193 = vld [vmem:[%s1 + $0x1c0] sm:$0xf]
  %v194 = vld [vmem:[%s1 + $0x1c4] sm:$0xf]
  %v195 = vld [vmem:[%s1 + $0x1c8] sm:$0xf]
  %v196 = vld [vmem:[%s1 + $0x1cc] sm:$0xf]
  %v197 = vld [vmem:[%s1 + $0x1d0] sm:$0xf]
  %v198 = vld [vmem:[%s1 + $0x1d4] sm:$0xf]
  %v199 = vld [vmem:[%s1 + $0x1d8] sm:$0xf]
  %v200 = vld [vmem:[%s1 + $0x1dc] sm:$0xf]
  %v201 = vld [vmem:[%s1 + $0x1e0] sm:$0xf]
  %v202 = vld [vmem:[%s1 + $0x1e4] sm:$0xf]
  %v203 = vld [vmem:[%s1 + $0x1e8] sm:$0xf]
  %v204 = vld [vmem:[%s1 + $0x1ec] sm:$0xf]
  %v205 = vld [vmem:[%s1 + $0x1f0] sm:$0xf]
  %v206 = vld [vmem:[%s1 + $0x1f4] sm:$0xf]
  %v207 = vld [vmem:[%s1 + $0x1f8] sm:$0xf]
  %v208 = vld [vmem:[%s1 + $0x1fc] sm:$0xf]
  %v273 = vunpack.c.l.b16 %v17
  %v274 = vunpack.c.h.b16 %v17
  %v275 = vunpack.c.l.b16 %v18
  %v276 = vunpack.c.h.b16 %v18
  %v277 = vunpack.c.l.b16 %v19
  %v278 = vunpack.c.h.b16 %v19
  %v279 = vunpack.c.l.b16 %v20
  %v280 = vunpack.c.h.b16 %v20
  %v281 = vunpack.c.l.b16 %v21
  %v282 = vunpack.c.h.b16 %v21
  %v283 = vunpack.c.l.b16 %v22
  %v284 = vunpack.c.h.b16 %v22
  %v285 = vunpack.c.l.b16 %v23
  %v286 = vunpack.c.h.b16 %v23
  %v287 = vunpack.c.l.b16 %v24
  %v288 = vunpack.c.h.b16 %v24
  %v289 = vunpack.c.l.b16 %v25
  %v290 = vunpack.c.h.b16 %v25
  %v291 = vunpack.c.l.b16 %v26
  %v292 = vunpack.c.h.b16 %v26
  %v293 = vunpack.c.l.b16 %v27
  %v294 = vunpack.c.h.b16 %v27
  %v295 = vunpack.c.l.b16 %v28
  %v296 = vunpack.c.h.b16 %v28
  %v297 = vunpack.c.l.b16 %v29
  %v298 = vunpack.c.h.b16 %v29
  %v299 = vunpack.c.l.b16 %v30
  %v300 = vunpack.c.h.b16 %v30
  %v301 = vunpack.c.l.b16 %v31
  %v302 = vunpack.c.h.b16 %v31
  %v303 = vunpack.c.l.b16 %v32
  %v304 = vunpack.c.h.b16 %v32
  %v305 = vunpack.c.l.b16 %v33
  %v306 = vunpack.c.h.b16 %v33
  %v307 = vunpack.c.l.b16 %v34
  %v308 = vunpack.c.h.b16 %v34
  %v309 = vunpack.c.l.b16 %v35
  %v310 = vunpack.c.h.b16 %v35
  %v311 = vunpack.c.l.b16 %v36
  %v312 = vunpack.c.h.b16 %v36
  %v313 = vunpack.c.l.b16 %v37
  %v314 = vunpack.c.h.b16 %v37
  %v315 = vunpack.c.l.b16 %v38
  %v316 = vunpack.c.h.b16 %v38
  %v317 = vunpack.c.l.b16 %v39
  %v318 = vunpack.c.h.b16 %v39
  %v319 = vunpack.c.l.b16 %v40
  %v320 = vunpack.c.h.b16 %v40
  %v321 = vunpack.c.l.b16 %v41
  %v322 = vunpack.c.h.b16 %v41
  %v323 = vunpack.c.l.b16 %v42
  %v324 = vunpack.c.h.b16 %v42
  %v325 = vunpack.c.l.b16 %v43
  %v326 = vunpack.c.h.b16 %v43
  %v327 = vunpack.c.l.b16 %v44
  %v328 = vunpack.c.h.b16 %v44
  %v329 = vunpack.c.l.b16 %v45
  %v330 = vunpack.c.h.b16 %v45
  %v331 = vunpack.c.l.b16 %v46
  %v332 = vunpack.c.h.b16 %v46
  %v333 = vunpack.c.l.b16 %v47
  %v334 = vunpack.c.h.b16 %v47
  %v335 = vunpack.c.l.b16 %v48
  %v336 = vunpack.c.h.b16 %v48
  %v337 = vunpack.c.l.b16 %v49
  %v338 = vunpack.c.h.b16 %v49
  %v339 = vunpack.c.l.b16 %v50
  %v340 = vunpack.c.h.b16 %v50
  %v341 = vunpack.c.l.b16 %v51
  %v342 = vunpack.c.h.b16 %v51
  %v343 = vunpack.c.l.b16 %v52
  %v344 = vunpack.c.h.b16 %v52
  %v345 = vunpack.c.l.b16 %v53
  %v346 = vunpack.c.h.b16 %v53
  %v347 = vunpack.c.l.b16 %v54
  %v348 = vunpack.c.h.b16 %v54
  %v349 = vunpack.c.l.b16 %v55
  %v350 = vunpack.c.h.b16 %v55
  %v351 = vunpack.c.l.b16 %v56
  %v352 = vunpack.c.h.b16 %v56
  %v353 = vunpack.c.l.b16 %v57
  %v354 = vunpack.c.h.b16 %v57
  %v355 = vunpack.c.l.b16 %v58
  %v356 = vunpack.c.h.b16 %v58
  %v357 = vunpack.c.l.b16 %v59
  %v358 = vunpack.c.h.b16 %v59
  %v359 = vunpack.c.l.b16 %v60
  %v360 = vunpack.c.h.b16 %v60
  %v361 = vunpack.c.l.b16 %v61
  %v362 = vunpack.c.h.b16 %v61
  %v363 = vunpack.c.l.b16 %v62
  %v364 = vunpack.c.h.b16 %v62
  %v365 = vunpack.c.l.b16 %v63
  %v366 = vunpack.c.h.b16 %v63
  %v367 = vunpack.c.l.b16 %v64
  %v368 = vunpack.c.h.b16 %v64
  %v369 = vunpack.c.l.b16 %v65
  %v370 = vunpack.c.h.b16 %v65
  %v371 = vunpack.c.l.b16 %v66
  %v372 = vunpack.c.h.b16 %v66
  %v373 = vunpack.c.l.b16 %v67
  %v374 = vunpack.c.h.b16 %v67
  %v375 = vunpack.c.l.b16 %v68
  %v376 = vunpack.c.h.b16 %v68
  %v377 = vunpack.c.l.b16 %v69
  %v378 = vunpack.c.h.b16 %v69
  %v379 = vunpack.c.l.b16 %v70
  %v380 = vunpack.c.h.b16 %v70
  %v381 = vunpack.c.l.b16 %v71
  %v382 = vunpack.c.h.b16 %v71
  %v383 = vunpack.c.l.b16 %v72
  %v384 = vunpack.c.h.b16 %v72
  %v385 = vunpack.c.l.b16 %v73
  %v386 = vunpack.c.h.b16 %v73
  %v387 = vunpack.c.l.b16 %v74
  %v388 = vunpack.c.h.b16 %v74
  %v389 = vunpack.c.l.b16 %v75
  %v390 = vunpack.c.h.b16 %v75
  %v391 = vunpack.c.l.b16 %v76
  %v392 = vunpack.c.h.b16 %v76
  %v393 = vunpack.c.l.b16 %v77
  %v394 = vunpack.c.h.b16 %v77
  %v395 = vunpack.c.l.b16 %v78
  %v396 = vunpack.c.h.b16 %v78
  %v397 = vunpack.c.l.b16 %v79
  %v398 = vunpack.c.h.b16 %v79
  %v399 = vunpack.c.l.b16 %v80
  %v400 = vunpack.c.h.b16 %v80
  %v401 = vpack.c.b16 %v281, %v273
  %v402 = vpack.c.b16 %v282, %v274
  %v403 = vpack.c.b16 %v283, %v275
  %v404 = vpack.c.b16 %v284, %v276
  %v405 = vpack.c.b16 %v285, %v277
  %v406 = vpack.c.b16 %v286, %v278
  %v407 = vpack.c.b16 %v287, %v279
  %v408 = vpack.c.b16 %v288, %v280
  %v409 = vpack.c.b16 %v297, %v289
  %v410 = vpack.c.b16 %v298, %v290
  %v411 = vpack.c.b16 %v299, %v291
  %v412 = vpack.c.b16 %v300, %v292
  %v413 = vpack.c.b16 %v301, %v293
  %v414 = vpack.c.b16 %v302, %v294
  %v415 = vpack.c.b16 %v303, %v295
  %v416 = vpack.c.b16 %v304, %v296
  %v417 = vpack.c.b16 %v313, %v305
  %v418 = vpack.c.b16 %v314, %v306
  %v419 = vpack.c.b16 %v315, %v307
  %v420 = vpack.c.b16 %v316, %v308
  %v421 = vpack.c.b16 %v317, %v309
  %v422 = vpack.c.b16 %v318, %v310
  %v423 = vpack.c.b16 %v319, %v311
  %v424 = vpack.c.b16 %v320, %v312
  %v425 = vpack.c.b16 %v329, %v321
  %v426 = vpack.c.b16 %v330, %v322
  %v427 = vpack.c.b16 %v331, %v323
  %v428 = vpack.c.b16 %v332, %v324
  %v429 = vpack.c.b16 %v333, %v325
  %v430 = vpack.c.b16 %v334, %v326
  %v431 = vpack.c.b16 %v335, %v327
  %v432 = vpack.c.b16 %v336, %v328
  %v433 = vpack.c.b16 %v345, %v337
  %v434 = vpack.c.b16 %v346, %v338
  %v435 = vpack.c.b16 %v347, %v339
  %v436 = vpack.c.b16 %v348, %v340
  %v437 = vpack.c.b16 %v349, %v341
  %v438 = vpack.c.b16 %v350, %v342
  %v439 = vpack.c.b16 %v351, %v343
  %v440 = vpack.c.b16 %v352, %v344
  %v441 = vpack.c.b16 %v361, %v353
  %v442 = vpack.c.b16 %v362, %v354
  %v443 = vpack.c.b16 %v363, %v355
  %v444 = vpack.c.b16 %v364, %v356
  %v445 = vpack.c.b16 %v365, %v357
  %v446 = vpack.c.b16 %v366, %v358
  %v447 = vpack.c.b16 %v367, %v359
  %v448 = vpack.c.b16 %v368, %v360
  %v449 = vpack.c.b16 %v377, %v369
  %v450 = vpack.c.b16 %v378, %v370
  %v451 = vpack.c.b16 %v379, %v371
  %v452 = vpack.c.b16 %v380, %v372
  %v453 = vpack.c.b16 %v381, %v373
  %v454 = vpack.c.b16 %v382, %v374
  %v455 = vpack.c.b16 %v383, %v375
  %v456 = vpack.c.b16 %v384, %v376
  %v457 = vpack.c.b16 %v393, %v385
  %v458 = vpack.c.b16 %v394, %v386
  %v459 = vpack.c.b16 %v395, %v387
  %v460 = vpack.c.b16 %v396, %v388
  %v461 = vpack.c.b16 %v397, %v389
  %v462 = vpack.c.b16 %v398, %v390
  %v463 = vpack.c.b16 %v399, %v391
  %v464 = vpack.c.b16 %v400, %v392
  %v657 = vunpack.c.l.b16 %v81
  %v658 = vunpack.c.l.b16 %v82
  %v659 = vunpack.c.l.b16 %v83
  %v660 = vunpack.c.l.b16 %v84
  %v661 = vunpack.c.l.b16 %v85
  %v662 = vunpack.c.l.b16 %v86
  %v663 = vunpack.c.l.b16 %v87
  %v664 = vunpack.c.l.b16 %v88
  %v665 = vunpack.c.l.b16 %v89
  %v666 = vunpack.c.l.b16 %v90
  %v667 = vunpack.c.l.b16 %v91
  %v668 = vunpack.c.l.b16 %v92
  %v669 = vunpack.c.l.b16 %v93
  %v670 = vunpack.c.l.b16 %v94
  %v671 = vunpack.c.l.b16 %v95
  %v672 = vunpack.c.l.b16 %v96
  %v673 = vunpack.c.l.b16 %v97
  %v674 = vunpack.c.l.b16 %v98
  %v675 = vunpack.c.l.b16 %v99
  %v676 = vunpack.c.l.b16 %v100
  %v677 = vunpack.c.l.b16 %v101
  %v678 = vunpack.c.l.b16 %v102
  %v679 = vunpack.c.l.b16 %v103
  %v680 = vunpack.c.l.b16 %v104
  %v681 = vunpack.c.l.b16 %v105
  %v682 = vunpack.c.l.b16 %v106
  %v683 = vunpack.c.l.b16 %v107
  %v684 = vunpack.c.l.b16 %v108
  %v685 = vunpack.c.l.b16 %v109
  %v686 = vunpack.c.l.b16 %v110
  %v687 = vunpack.c.l.b16 %v111
  %v688 = vunpack.c.l.b16 %v112
  %v689 = vunpack.c.l.b16 %v113
  %v690 = vunpack.c.l.b16 %v114
  %v691 = vunpack.c.l.b16 %v115
  %v692 = vunpack.c.l.b16 %v116
  %v693 = vunpack.c.l.b16 %v117
  %v694 = vunpack.c.l.b16 %v118
  %v695 = vunpack.c.l.b16 %v119
  %v696 = vunpack.c.l.b16 %v120
  %v697 = vunpack.c.l.b16 %v121
  %v698 = vunpack.c.l.b16 %v122
  %v699 = vunpack.c.l.b16 %v123
  %v700 = vunpack.c.l.b16 %v124
  %v701 = vunpack.c.l.b16 %v125
  %v702 = vunpack.c.l.b16 %v126
  %v703 = vunpack.c.l.b16 %v127
  %v704 = vunpack.c.l.b16 %v128
  %v705 = vunpack.c.l.b16 %v129
  %v706 = vunpack.c.l.b16 %v130
  %v707 = vunpack.c.l.b16 %v131
  %v708 = vunpack.c.l.b16 %v132
  %v709 = vunpack.c.l.b16 %v133
  %v710 = vunpack.c.l.b16 %v134
  %v711 = vunpack.c.l.b16 %v135
  %v712 = vunpack.c.l.b16 %v136
  %v713 = vunpack.c.l.b16 %v137
  %v714 = vunpack.c.l.b16 %v138
  %v715 = vunpack.c.l.b16 %v139
  %v716 = vunpack.c.l.b16 %v140
  %v717 = vunpack.c.l.b16 %v141
  %v718 = vunpack.c.l.b16 %v142
  %v719 = vunpack.c.l.b16 %v143
  %v720 = vunpack.c.l.b16 %v144
  %v721 = vunpack.c.l.b16 %v145
  %v722 = vunpack.c.l.b16 %v146
  %v723 = vunpack.c.l.b16 %v147
  %v724 = vunpack.c.l.b16 %v148
  %v725 = vunpack.c.l.b16 %v149
  %v726 = vunpack.c.l.b16 %v150
  %v727 = vunpack.c.l.b16 %v151
  %v728 = vunpack.c.l.b16 %v152
  %v729 = vunpack.c.l.b16 %v153
  %v730 = vunpack.c.l.b16 %v154
  %v731 = vunpack.c.l.b16 %v155
  %v732 = vunpack.c.l.b16 %v156
  %v733 = vunpack.c.l.b16 %v157
  %v734 = vunpack.c.l.b16 %v158
  %v735 = vunpack.c.l.b16 %v159
  %v736 = vunpack.c.l.b16 %v160
  %v737 = vunpack.c.l.b16 %v161
  %v738 = vunpack.c.l.b16 %v162
  %v739 = vunpack.c.l.b16 %v163
  %v740 = vunpack.c.l.b16 %v164
  %v741 = vunpack.c.l.b16 %v165
  %v742 = vunpack.c.l.b16 %v166
  %v743 = vunpack.c.l.b16 %v167
  %v744 = vunpack.c.l.b16 %v168
  %v745 = vunpack.c.l.b16 %v169
  %v746 = vunpack.c.l.b16 %v170
  %v747 = vunpack.c.l.b16 %v171
  %v748 = vunpack.c.l.b16 %v172
  %v749 = vunpack.c.l.b16 %v173
  %v750 = vunpack.c.l.b16 %v174
  %v751 = vunpack.c.l.b16 %v175
  %v752 = vunpack.c.l.b16 %v176
  %v753 = vunpack.c.l.b16 %v177
  %v754 = vunpack.c.l.b16 %v178
  %v755 = vunpack.c.l.b16 %v179
  %v756 = vunpack.c.l.b16 %v180
  %v757 = vunpack.c.l.b16 %v181
  %v758 = vunpack.c.l.b16 %v182
  %v759 = vunpack.c.l.b16 %v183
  %v760 = vunpack.c.l.b16 %v184
  %v761 = vunpack.c.l.b16 %v185
  %v762 = vunpack.c.l.b16 %v186
  %v763 = vunpack.c.l.b16 %v187
  %v764 = vunpack.c.l.b16 %v188
  %v765 = vunpack.c.l.b16 %v189
  %v766 = vunpack.c.l.b16 %v190
  %v767 = vunpack.c.l.b16 %v191
  %v768 = vunpack.c.l.b16 %v192
  %v769 = vunpack.c.l.b16 %v193
  %v770 = vunpack.c.l.b16 %v194
  %v771 = vunpack.c.l.b16 %v195
  %v772 = vunpack.c.l.b16 %v196
  %v773 = vunpack.c.l.b16 %v197
  %v774 = vunpack.c.l.b16 %v198
  %v775 = vunpack.c.l.b16 %v199
  %v776 = vunpack.c.l.b16 %v200
  %v777 = vunpack.c.l.b16 %v201
  %v778 = vunpack.c.l.b16 %v202
  %v779 = vunpack.c.l.b16 %v203
  %v780 = vunpack.c.l.b16 %v204
  %v781 = vunpack.c.l.b16 %v205
  %v782 = vunpack.c.l.b16 %v206
  %v783 = vunpack.c.l.b16 %v207
  %v784 = vunpack.c.l.b16 %v208
  %v785 = vpack.c.b16 %v658, %v657
  %v786 = vpack.c.b16 %v660, %v659
  %v787 = vpack.c.b16 %v662, %v661
  %v788 = vpack.c.b16 %v664, %v663
  %v789 = vpack.c.b16 %v666, %v665
  %v790 = vpack.c.b16 %v668, %v667
  %v791 = vpack.c.b16 %v670, %v669
  %v792 = vpack.c.b16 %v672, %v671
  %v793 = vpack.c.b16 %v674, %v673
  %v794 = vpack.c.b16 %v676, %v675
  %v795 = vpack.c.b16 %v678, %v677
  %v796 = vpack.c.b16 %v680, %v679
  %v797 = vpack.c.b16 %v682, %v681
  %v798 = vpack.c.b16 %v684, %v683
  %v799 = vpack.c.b16 %v686, %v685
  %v800 = vpack.c.b16 %v688, %v687
  %v801 = vpack.c.b16 %v690, %v689
  %v802 = vpack.c.b16 %v692, %v691
  %v803 = vpack.c.b16 %v694, %v693
  %v804 = vpack.c.b16 %v696, %v695
  %v805 = vpack.c.b16 %v698, %v697
  %v806 = vpack.c.b16 %v700, %v699
  %v807 = vpack.c.b16 %v702, %v701
  %v808 = vpack.c.b16 %v704, %v703
  %v809 = vpack.c.b16 %v706, %v705
  %v810 = vpack.c.b16 %v708, %v707
  %v811 = vpack.c.b16 %v710, %v709
  %v812 = vpack.c.b16 %v712, %v711
  %v813 = vpack.c.b16 %v714, %v713
  %v814 = vpack.c.b16 %v716, %v715
  %v815 = vpack.c.b16 %v718, %v717
  %v816 = vpack.c.b16 %v720, %v719
  %v817 = vpack.c.b16 %v722, %v721
  %v818 = vpack.c.b16 %v724, %v723
  %v819 = vpack.c.b16 %v726, %v725
  %v820 = vpack.c.b16 %v728, %v727
  %v821 = vpack.c.b16 %v730, %v729
  %v822 = vpack.c.b16 %v732, %v731
  %v823 = vpack.c.b16 %v734, %v733
  %v824 = vpack.c.b16 %v736, %v735
  %v825 = vpack.c.b16 %v738, %v737
  %v826 = vpack.c.b16 %v740, %v739
  %v827 = vpack.c.b16 %v742, %v741
  %v828 = vpack.c.b16 %v744, %v743
  %v829 = vpack.c.b16 %v746, %v745
  %v830 = vpack.c.b16 %v748, %v747
  %v831 = vpack.c.b16 %v750, %v749
  %v832 = vpack.c.b16 %v752, %v751
  %v833 = vpack.c.b16 %v754, %v753
  %v834 = vpack.c.b16 %v756, %v755
  %v835 = vpack.c.b16 %v758, %v757
  %v836 = vpack.c.b16 %v760, %v759
  %v837 = vpack.c.b16 %v762, %v761
  %v838 = vpack.c.b16 %v764, %v763
  %v839 = vpack.c.b16 %v766, %v765
  %v840 = vpack.c.b16 %v768, %v767
  %v841 = vpack.c.b16 %v770, %v769
  %v842 = vpack.c.b16 %v772, %v771
  %v843 = vpack.c.b16 %v774, %v773
  %v844 = vpack.c.b16 %v776, %v775
  %v845 = vpack.c.b16 %v778, %v777
  %v846 = vpack.c.b16 %v780, %v779
  %v847 = vpack.c.b16 %v782, %v781
  %v848 = vpack.c.b16 %v784, %v783
  %913 = vmatpush.bf16.msra.mxu0 %v792
  %914 = vmatpush.bf16.msra.mxu0 %v791
  %915 = vmatpush.bf16.msra.mxu0 %v790
  %916 = vmatpush.bf16.msra.mxu0 %v789
  %917 = vmatpush.bf16.msra.mxu0 %v788
  %918 = vmatpush.bf16.msra.mxu0 %v787
  %919 = vmatpush.bf16.msra.mxu0 %v786
  %920 = vmatpush.bf16.msra.mxu0 %v785
  %921 = vmatmul.bf16.gmra.mxu0 %v401
  %v922 = vpop.f32.mrf.mxu0
  %v923 = vadd.f32 0.0, %v922
  %v924 = vpop.f32.mrf.mxu0
  %v925 = vadd.f32 0.0, %v924
  %926 = vmatmul.bf16.gmra.mxu0 %v409
  %v927 = vpop.f32.mrf.mxu0
  %v928 = vadd.f32 0.0, %v927
  %v929 = vpop.f32.mrf.mxu0
  %v930 = vadd.f32 0.0, %v929
  %931 = vmatmul.bf16.gmra.mxu0 %v417
  %v932 = vpop.f32.mrf.mxu0
  %v933 = vadd.f32 0.0, %v932
  %v934 = vpop.f32.mrf.mxu0
  %v935 = vadd.f32 0.0, %v934
  %936 = vmatmul.bf16.gmra.mxu0 %v425
  %v937 = vpop.f32.mrf.mxu0
  %v938 = vadd.f32 0.0, %v937
  %v939 = vpop.f32.mrf.mxu0
  %v940 = vadd.f32 0.0, %v939
  %941 = vmatmul.bf16.gmra.mxu0 %v433
  %v942 = vpop.f32.mrf.mxu0
  %v943 = vadd.f32 0.0, %v942
  %v944 = vpop.f32.mrf.mxu0
  %v945 = vadd.f32 0.0, %v944
  %946 = vmatmul.bf16.gmra.mxu0 %v441
  %v947 = vpop.f32.mrf.mxu0
  %v948 = vadd.f32 0.0, %v947
  %v949 = vpop.f32.mrf.mxu0
  %v950 = vadd.f32 0.0, %v949
  %951 = vmatmul.bf16.gmra.mxu0 %v449
  %v952 = vpop.f32.mrf.mxu0
  %v953 = vadd.f32 0.0, %v952
  %v954 = vpop.f32.mrf.mxu0
  %v955 = vadd.f32 0.0, %v954
  %956 = vmatmul.bf16.gmra.mxu0 %v457
  %v957 = vpop.f32.mrf.mxu0
  %v958 = vadd.f32 0.0, %v957
  %v959 = vpop.f32.mrf.mxu0
  %v960 = vadd.f32 0.0, %v959
  %961 = vdwg.mxu0
  %962 = vmatpush.bf16.msra.mxu0 %v800
  %963 = vmatpush.bf16.msra.mxu0 %v799
  %964 = vmatpush.bf16.msra.mxu0 %v798
  %965 = vmatpush.bf16.msra.mxu0 %v797
  %966 = vmatpush.bf16.msra.mxu0 %v796
  %967 = vmatpush.bf16.msra.mxu0 %v795
  %968 = vmatpush.bf16.msra.mxu0 %v794
  %969 = vmatpush.bf16.msra.mxu0 %v793
  %970 = vmatmul.bf16.gmra.mxu0 %v402
  %v971 = vpop.f32.mrf.mxu0
  %v972 = vadd.f32 %v923, %v971
  %v973 = vpop.f32.mrf.mxu0
  %v974 = vadd.f32 %v925, %v973
  %975 = vmatmul.bf16.gmra.mxu0 %v410
  %v976 = vpop.f32.mrf.mxu0
  %v977 = vadd.f32 %v928, %v976
  %v978 = vpop.f32.mrf.mxu0
  %v979 = vadd.f32 %v930, %v978
  %980 = vmatmul.bf16.gmra.mxu0 %v418
  %v981 = vpop.f32.mrf.mxu0
  %v982 = vadd.f32 %v933, %v981
  %v983 = vpop.f32.mrf.mxu0
  %v984 = vadd.f32 %v935, %v983
  %985 = vmatmul.bf16.gmra.mxu0 %v426
  %v986 = vpop.f32.mrf.mxu0
  %v987 = vadd.f32 %v938, %v986
  %v988 = vpop.f32.mrf.mxu0
  %v989 = vadd.f32 %v940, %v988
  %990 = vmatmul.bf16.gmra.mxu0 %v434
  %v991 = vpop.f32.mrf.mxu0
  %v992 = vadd.f32 %v943, %v991
  %v993 = vpop.f32.mrf.mxu0
  %v994 = vadd.f32 %v945, %v993
  %995 = vmatmul.bf16.gmra.mxu0 %v442
  %v996 = vpop.f32.mrf.mxu0
  %v997 = vadd.f32 %v948, %v996
  %v998 = vpop.f32.mrf.mxu0
  %v999 = vadd.f32 %v950, %v998
  %1000 = vmatmul.bf16.gmra.mxu0 %v450
  %v1001 = vpop.f32.mrf.mxu0
  %v1002 = vadd.f32 %v953, %v1001
  %v1003 = vpop.f32.mrf.mxu0
  %v1004 = vadd.f32 %v955, %v1003
  %1005 = vmatmul.bf16.gmra.mxu0 %v458
  %v1006 = vpop.f32.mrf.mxu0
  %v1007 = vadd.f32 %v958, %v1006
  %v1008 = vpop.f32.mrf.mxu0
  %v1009 = vadd.f32 %v960, %v1008
  %1010 = vdwg.mxu0
  %1011 = vmatpush.bf16.msra.mxu0 %v808
  %1012 = vmatpush.bf16.msra.mxu0 %v807
  %1013 = vmatpush.bf16.msra.mxu0 %v806
  %1014 = vmatpush.bf16.msra.mxu0 %v805
  %1015 = vmatpush.bf16.msra.mxu0 %v804
  %1016 = vmatpush.bf16.msra.mxu0 %v803
  %1017 = vmatpush.bf16.msra.mxu0 %v802
  %1018 = vmatpush.bf16.msra.mxu0 %v801
  %1019 = vmatmul.bf16.gmra.mxu0 %v403
  %v1020 = vpop.f32.mrf.mxu0
  %v1021 = vadd.f32 %v972, %v1020
  %v1022 = vpop.f32.mrf.mxu0
  %v1023 = vadd.f32 %v974, %v1022
  %1024 = vmatmul.bf16.gmra.mxu0 %v411
  %v1025 = vpop.f32.mrf.mxu0
  %v1026 = vadd.f32 %v977, %v1025
  %v1027 = vpop.f32.mrf.mxu0
  %v1028 = vadd.f32 %v979, %v1027
  %1029 = vmatmul.bf16.gmra.mxu0 %v419
  %v1030 = vpop.f32.mrf.mxu0
  %v1031 = vadd.f32 %v982, %v1030
  %v1032 = vpop.f32.mrf.mxu0
  %v1033 = vadd.f32 %v984, %v1032
  %1034 = vmatmul.bf16.gmra.mxu0 %v427
  %v1035 = vpop.f32.mrf.mxu0
  %v1036 = vadd.f32 %v987, %v1035
  %v1037 = vpop.f32.mrf.mxu0
  %v1038 = vadd.f32 %v989, %v1037
  %1039 = vmatmul.bf16.gmra.mxu0 %v435
  %v1040 = vpop.f32.mrf.mxu0
  %v1041 = vadd.f32 %v992, %v1040
  %v1042 = vpop.f32.mrf.mxu0
  %v1043 = vadd.f32 %v994, %v1042
  %1044 = vmatmul.bf16.gmra.mxu0 %v443
  %v1045 = vpop.f32.mrf.mxu0
  %v1046 = vadd.f32 %v997, %v1045
  %v1047 = vpop.f32.mrf.mxu0
  %v1048 = vadd.f32 %v999, %v1047
  %1049 = vmatmul.bf16.gmra.mxu0 %v451
  %v1050 = vpop.f32.mrf.mxu0
  %v1051 = vadd.f32 %v1002, %v1050
  %v1052 = vpop.f32.mrf.mxu0
  %v1053 = vadd.f32 %v1004, %v1052
  %1054 = vmatmul.bf16.gmra.mxu0 %v459
  %v1055 = vpop.f32.mrf.mxu0
  %v1056 = vadd.f32 %v1007, %v1055
  %v1057 = vpop.f32.mrf.mxu0
  %v1058 = vadd.f32 %v1009, %v1057
  %1059 = vdwg.mxu0
  %1060 = vmatpush.bf16.msra.mxu0 %v816
  %1061 = vmatpush.bf16.msra.mxu0 %v815
  %1062 = vmatpush.bf16.msra.mxu0 %v814
  %1063 = vmatpush.bf16.msra.mxu0 %v813
  %1064 = vmatpush.bf16.msra.mxu0 %v812
  %1065 = vmatpush.bf16.msra.mxu0 %v811
  %1066 = vmatpush.bf16.msra.mxu0 %v810
  %1067 = vmatpush.bf16.msra.mxu0 %v809
  %1068 = vmatmul.bf16.gmra.mxu0 %v404
  %v1069 = vpop.f32.mrf.mxu0
  %v1070 = vadd.f32 %v1021, %v1069
  %v1071 = vpop.f32.mrf.mxu0
  %v1072 = vadd.f32 %v1023, %v1071
  %1073 = vmatmul.bf16.gmra.mxu0 %v412
  %v1074 = vpop.f32.mrf.mxu0
  %v1075 = vadd.f32 %v1026, %v1074
  %v1076 = vpop.f32.mrf.mxu0
  %v1077 = vadd.f32 %v1028, %v1076
  %1078 = vmatmul.bf16.gmra.mxu0 %v420
  %v1079 = vpop.f32.mrf.mxu0
  %v1080 = vadd.f32 %v1031, %v1079
  %v1081 = vpop.f32.mrf.mxu0
  %v1082 = vadd.f32 %v1033, %v1081
  %1083 = vmatmul.bf16.gmra.mxu0 %v428
  %v1084 = vpop.f32.mrf.mxu0
  %v1085 = vadd.f32 %v1036, %v1084
  %v1086 = vpop.f32.mrf.mxu0
  %v1087 = vadd.f32 %v1038, %v1086
  %1088 = vmatmul.bf16.gmra.mxu0 %v436
  %v1089 = vpop.f32.mrf.mxu0
  %v1090 = vadd.f32 %v1041, %v1089
  %v1091 = vpop.f32.mrf.mxu0
  %v1092 = vadd.f32 %v1043, %v1091
  %1093 = vmatmul.bf16.gmra.mxu0 %v444
  %v1094 = vpop.f32.mrf.mxu0
  %v1095 = vadd.f32 %v1046, %v1094
  %v1096 = vpop.f32.mrf.mxu0
  %v1097 = vadd.f32 %v1048, %v1096
  %1098 = vmatmul.bf16.gmra.mxu0 %v452
  %v1099 = vpop.f32.mrf.mxu0
  %v1100 = vadd.f32 %v1051, %v1099
  %v1101 = vpop.f32.mrf.mxu0
  %v1102 = vadd.f32 %v1053, %v1101
  %1103 = vmatmul.bf16.gmra.mxu0 %v460
  %v1104 = vpop.f32.mrf.mxu0
  %v1105 = vadd.f32 %v1056, %v1104
  %v1106 = vpop.f32.mrf.mxu0
  %v1107 = vadd.f32 %v1058, %v1106
  %1108 = vdwg.mxu0
  %1109 = vmatpush.bf16.msra.mxu0 %v824
  %1110 = vmatpush.bf16.msra.mxu0 %v823
  %1111 = vmatpush.bf16.msra.mxu0 %v822
  %1112 = vmatpush.bf16.msra.mxu0 %v821
  %1113 = vmatpush.bf16.msra.mxu0 %v820
  %1114 = vmatpush.bf16.msra.mxu0 %v819
  %1115 = vmatpush.bf16.msra.mxu0 %v818
  %1116 = vmatpush.bf16.msra.mxu0 %v817
  %1117 = vmatmul.bf16.gmra.mxu0 %v405
  %v1118 = vpop.f32.mrf.mxu0
  %v1119 = vadd.f32 %v1070, %v1118
  %v1120 = vpop.f32.mrf.mxu0
  %v1121 = vadd.f32 %v1072, %v1120
  %1122 = vmatmul.bf16.gmra.mxu0 %v413
  %v1123 = vpop.f32.mrf.mxu0
  %v1124 = vadd.f32 %v1075, %v1123
  %v1125 = vpop.f32.mrf.mxu0
  %v1126 = vadd.f32 %v1077, %v1125
  %1127 = vmatmul.bf16.gmra.mxu0 %v421
  %v1128 = vpop.f32.mrf.mxu0
  %v1129 = vadd.f32 %v1080, %v1128
  %v1130 = vpop.f32.mrf.mxu0
  %v1131 = vadd.f32 %v1082, %v1130
  %1132 = vmatmul.bf16.gmra.mxu0 %v429
  %v1133 = vpop.f32.mrf.mxu0
  %v1134 = vadd.f32 %v1085, %v1133
  %v1135 = vpop.f32.mrf.mxu0
  %v1136 = vadd.f32 %v1087, %v1135
  %1137 = vmatmul.bf16.gmra.mxu0 %v437
  %v1138 = vpop.f32.mrf.mxu0
  %v1139 = vadd.f32 %v1090, %v1138
  %v1140 = vpop.f32.mrf.mxu0
  %v1141 = vadd.f32 %v1092, %v1140
  %1142 = vmatmul.bf16.gmra.mxu0 %v445
  %v1143 = vpop.f32.mrf.mxu0
  %v1144 = vadd.f32 %v1095, %v1143
  %v1145 = vpop.f32.mrf.mxu0
  %v1146 = vadd.f32 %v1097, %v1145
  %1147 = vmatmul.bf16.gmra.mxu0 %v453
  %v1148 = vpop.f32.mrf.mxu0
  %v1149 = vadd.f32 %v1100, %v1148
  %v1150 = vpop.f32.mrf.mxu0
  %v1151 = vadd.f32 %v1102, %v1150
  %1152 = vmatmul.bf16.gmra.mxu0 %v461
  %v1153 = vpop.f32.mrf.mxu0
  %v1154 = vadd.f32 %v1105, %v1153
  %v1155 = vpop.f32.mrf.mxu0
  %v1156 = vadd.f32 %v1107, %v1155
  %1157 = vdwg.mxu0
  %1158 = vmatpush.bf16.msra.mxu0 %v832
  %1159 = vmatpush.bf16.msra.mxu0 %v831
  %1160 = vmatpush.bf16.msra.mxu0 %v830
  %1161 = vmatpush.bf16.msra.mxu0 %v829
  %1162 = vmatpush.bf16.msra.mxu0 %v828
  %1163 = vmatpush.bf16.msra.mxu0 %v827
  %1164 = vmatpush.bf16.msra.mxu0 %v826
  %1165 = vmatpush.bf16.msra.mxu0 %v825
  %1166 = vmatmul.bf16.gmra.mxu0 %v406
  %v1167 = vpop.f32.mrf.mxu0
  %v1168 = vadd.f32 %v1119, %v1167
  %v1169 = vpop.f32.mrf.mxu0
  %v1170 = vadd.f32 %v1121, %v1169
  %1171 = vmatmul.bf16.gmra.mxu0 %v414
  %v1172 = vpop.f32.mrf.mxu0
  %v1173 = vadd.f32 %v1124, %v1172
  %v1174 = vpop.f32.mrf.mxu0
  %v1175 = vadd.f32 %v1126, %v1174
  %1176 = vmatmul.bf16.gmra.mxu0 %v422
  %v1177 = vpop.f32.mrf.mxu0
  %v1178 = vadd.f32 %v1129, %v1177
  %v1179 = vpop.f32.mrf.mxu0
  %v1180 = vadd.f32 %v1131, %v1179
  %1181 = vmatmul.bf16.gmra.mxu0 %v430
  %v1182 = vpop.f32.mrf.mxu0
  %v1183 = vadd.f32 %v1134, %v1182
  %v1184 = vpop.f32.mrf.mxu0
  %v1185 = vadd.f32 %v1136, %v1184
  %1186 = vmatmul.bf16.gmra.mxu0 %v438
  %v1187 = vpop.f32.mrf.mxu0
  %v1188 = vadd.f32 %v1139, %v1187
  %v1189 = vpop.f32.mrf.mxu0
  %v1190 = vadd.f32 %v1141, %v1189
  %1191 = vmatmul.bf16.gmra.mxu0 %v446
  %v1192 = vpop.f32.mrf.mxu0
  %v1193 = vadd.f32 %v1144, %v1192
  %v1194 = vpop.f32.mrf.mxu0
  %v1195 = vadd.f32 %v1146, %v1194
  %1196 = vmatmul.bf16.gmra.mxu0 %v454
  %v1197 = vpop.f32.mrf.mxu0
  %v1198 = vadd.f32 %v1149, %v1197
  %v1199 = vpop.f32.mrf.mxu0
  %v1200 = vadd.f32 %v1151, %v1199
  %1201 = vmatmul.bf16.gmra.mxu0 %v462
  %v1202 = vpop.f32.mrf.mxu0
  %v1203 = vadd.f32 %v1154, %v1202
  %v1204 = vpop.f32.mrf.mxu0
  %v1205 = vadd.f32 %v1156, %v1204
  %1206 = vdwg.mxu0
  %1207 = vmatpush.bf16.msra.mxu0 %v840
  %1208 = vmatpush.bf16.msra.mxu0 %v839
  %1209 = vmatpush.bf16.msra.mxu0 %v838
  %1210 = vmatpush.bf16.msra.mxu0 %v837
  %1211 = vmatpush.bf16.msra.mxu0 %v836
  %1212 = vmatpush.bf16.msra.mxu0 %v835
  %1213 = vmatpush.bf16.msra.mxu0 %v834
  %1214 = vmatpush.bf16.msra.mxu0 %v833
  %1215 = vmatmul.bf16.gmra.mxu0 %v407
  %v1216 = vpop.f32.mrf.mxu0
  %v1217 = vadd.f32 %v1168, %v1216
  %v1218 = vpop.f32.mrf.mxu0
  %v1219 = vadd.f32 %v1170, %v1218
  %1220 = vmatmul.bf16.gmra.mxu0 %v415
  %v1221 = vpop.f32.mrf.mxu0
  %v1222 = vadd.f32 %v1173, %v1221
  %v1223 = vpop.f32.mrf.mxu0
  %v1224 = vadd.f32 %v1175, %v1223
  %1225 = vmatmul.bf16.gmra.mxu0 %v423
  %v1226 = vpop.f32.mrf.mxu0
  %v1227 = vadd.f32 %v1178, %v1226
  %v1228 = vpop.f32.mrf.mxu0
  %v1229 = vadd.f32 %v1180, %v1228
  %1230 = vmatmul.bf16.gmra.mxu0 %v431
  %v1231 = vpop.f32.mrf.mxu0
  %v1232 = vadd.f32 %v1183, %v1231
  %v1233 = vpop.f32.mrf.mxu0
  %v1234 = vadd.f32 %v1185, %v1233
  %1235 = vmatmul.bf16.gmra.mxu0 %v439
  %v1236 = vpop.f32.mrf.mxu0
  %v1237 = vadd.f32 %v1188, %v1236
  %v1238 = vpop.f32.mrf.mxu0
  %v1239 = vadd.f32 %v1190, %v1238
  %1240 = vmatmul.bf16.gmra.mxu0 %v447
  %v1241 = vpop.f32.mrf.mxu0
  %v1242 = vadd.f32 %v1193, %v1241
  %v1243 = vpop.f32.mrf.mxu0
  %v1244 = vadd.f32 %v1195, %v1243
  %1245 = vmatmul.bf16.gmra.mxu0 %v455
  %v1246 = vpop.f32.mrf.mxu0
  %v1247 = vadd.f32 %v1198, %v1246
  %v1248 = vpop.f32.mrf.mxu0
  %v1249 = vadd.f32 %v1200, %v1248
  %1250 = vmatmul.bf16.gmra.mxu0 %v463
  %v1251 = vpop.f32.mrf.mxu0
  %v1252 = vadd.f32 %v1203, %v1251
  %v1253 = vpop.f32.mrf.mxu0
  %v1254 = vadd.f32 %v1205, %v1253
  %1255 = vdwg.mxu0
  %1256 = vmatpush.bf16.msra.mxu0 %v848
  %1257 = vmatpush.bf16.msra.mxu0 %v847
  %1258 = vmatpush.bf16.msra.mxu0 %v846
  %1259 = vmatpush.bf16.msra.mxu0 %v845
  %1260 = vmatpush.bf16.msra.mxu0 %v844
  %1261 = vmatpush.bf16.msra.mxu0 %v843
  %1262 = vmatpush.bf16.msra.mxu0 %v842
  %1263 = vmatpush.bf16.msra.mxu0 %v841
  %1264 = vmatmul.bf16.gmra.mxu0 %v408
  %v1265 = vpop.f32.mrf.mxu0
  %v1266 = vadd.f32 %v1217, %v1265
  %v1267 = vpop.f32.mrf.mxu0
  %v1268 = vadd.f32 %v1219, %v1267
  %1269 = vmatmul.bf16.gmra.mxu0 %v416
  %v1270 = vpop.f32.mrf.mxu0
  %v1271 = vadd.f32 %v1222, %v1270
  %v1272 = vpop.f32.mrf.mxu0
  %v1273 = vadd.f32 %v1224, %v1272
  %1274 = vmatmul.bf16.gmra.mxu0 %v424
  %v1275 = vpop.f32.mrf.mxu0
  %v1276 = vadd.f32 %v1227, %v1275
  %v1277 = vpop.f32.mrf.mxu0
  %v1278 = vadd.f32 %v1229, %v1277
  %1279 = vmatmul.bf16.gmra.mxu0 %v432
  %v1280 = vpop.f32.mrf.mxu0
  %v1281 = vadd.f32 %v1232, %v1280
  %v1282 = vpop.f32.mrf.mxu0
  %v1283 = vadd.f32 %v1234, %v1282
  %1284 = vmatmul.bf16.gmra.mxu0 %v440
  %v1285 = vpop.f32.mrf.mxu0
  %v1286 = vadd.f32 %v1237, %v1285
  %v1287 = vpop.f32.mrf.mxu0
  %v1288 = vadd.f32 %v1239, %v1287
  %1289 = vmatmul.bf16.gmra.mxu0 %v448
  %v1290 = vpop.f32.mrf.mxu0
  %v1291 = vadd.f32 %v1242, %v1290
  %v1292 = vpop.f32.mrf.mxu0
  %v1293 = vadd.f32 %v1244, %v1292
  %1294 = vmatmul.bf16.gmra.mxu0 %v456
  %v1295 = vpop.f32.mrf.mxu0
  %v1296 = vadd.f32 %v1247, %v1295
  %v1297 = vpop.f32.mrf.mxu0
  %v1298 = vadd.f32 %v1249, %v1297
  %1299 = vmatmul.bf16.gmra.mxu0 %v464
  %v1300 = vpop.f32.mrf.mxu0
  %v1301 = vadd.f32 %v1252, %v1300
  %v1302 = vpop.f32.mrf.mxu0
  %v1303 = vadd.f32 %v1254, %v1302
  %1304 = vdwg.mxu0
  %v1305 = vadd.f32 %v1266, %v1268
  %v1306 = vadd.f32 %v1305, %v1271
  %v1307 = vadd.f32 %v1306, %v1273
  %v1308 = vadd.f32 %v1307, %v1276
  %v1309 = vadd.f32 %v1308, %v1278
  %v1310 = vadd.f32 %v1309, %v1281
  %v1311 = vadd.f32 %v1310, %v1283
  %v1312 = vadd.f32 %v1311, %v1286
  %v1313 = vadd.f32 %v1312, %v1288
  %v1314 = vadd.f32 %v1313, %v1291
  %v1315 = vadd.f32 %v1314, %v1293
  %v1316 = vadd.f32 %v1315, %v1296
  %v1317 = vadd.f32 %v1316, %v1298
  %v1318 = vadd.f32 %v1317, %v1301
  %v1319 = vadd.f32 %v1318, %v1303
  %v1320 = vrot.slane %v1319, 4
  %v1321 = vadd.f32 %v1319, %v1320
  %v1322 = vrot.slane %v1321, 2
  %v1323 = vadd.f32 %v1321, %v1322
  %v1324 = vrot.slane %v1323, 1
  %v1325 = vadd.f32 %v1323, %v1324
  %v1326 = vmul.f32 %v1325, 0.0078125
  %v1327 = vsub.f32 %v1266, %v1326
  %v1328 = vsub.f32 %v1268, %v1326
  %v1329 = vsub.f32 %v1271, %v1326
  %v1330 = vsub.f32 %v1273, %v1326
  %v1331 = vsub.f32 %v1276, %v1326
  %v1332 = vsub.f32 %v1278, %v1326
  %v1333 = vsub.f32 %v1281, %v1326
  %v1334 = vsub.f32 %v1283, %v1326
  %v1335 = vsub.f32 %v1286, %v1326
  %v1336 = vsub.f32 %v1288, %v1326
  %v1337 = vsub.f32 %v1291, %v1326
  %v1338 = vsub.f32 %v1293, %v1326
  %v1339 = vsub.f32 %v1296, %v1326
  %v1340 = vsub.f32 %v1298, %v1326
  %v1341 = vsub.f32 %v1301, %v1326
  %v1342 = vsub.f32 %v1303, %v1326
  %v1343 = vmul.f32 %v1327, %v1327
  %v1344 = vmul.f32 %v1328, %v1328
  %v1345 = vmul.f32 %v1329, %v1329
  %v1346 = vmul.f32 %v1330, %v1330
  %v1347 = vmul.f32 %v1331, %v1331
  %v1348 = vmul.f32 %v1332, %v1332
  %v1349 = vmul.f32 %v1333, %v1333
  %v1350 = vmul.f32 %v1334, %v1334
  %v1351 = vmul.f32 %v1335, %v1335
  %v1352 = vmul.f32 %v1336, %v1336
  %v1353 = vmul.f32 %v1337, %v1337
  %v1354 = vmul.f32 %v1338, %v1338
  %v1355 = vmul.f32 %v1339, %v1339
  %v1356 = vmul.f32 %v1340, %v1340
  %v1357 = vmul.f32 %v1341, %v1341
  %v1358 = vmul.f32 %v1342, %v1342
  %v1359 = vadd.f32 %v1343, %v1344
  %v1360 = vadd.f32 %v1359, %v1345
  %v1361 = vadd.f32 %v1360, %v1346
  %v1362 = vadd.f32 %v1361, %v1347
  %v1363 = vadd.f32 %v1362, %v1348
  %v1364 = vadd.f32 %v1363, %v1349
  %v1365 = vadd.f32 %v1364, %v1350
  %v1366 = vadd.f32 %v1365, %v1351
  %v1367 = vadd.f32 %v1366, %v1352
  %v1368 = vadd.f32 %v1367, %v1353
  %v1369 = vadd.f32 %v1368, %v1354
  %v1370 = vadd.f32 %v1369, %v1355
  %v1371 = vadd.f32 %v1370, %v1356
  %v1372 = vadd.f32 %v1371, %v1357
  %v1373 = vadd.f32 %v1372, %v1358
  %v1374 = vrot.slane %v1373, 4
  %v1375 = vadd.f32 %v1373, %v1374
  %v1376 = vrot.slane %v1375, 2
  %v1377 = vadd.f32 %v1375, %v1376
  %v1378 = vrot.slane %v1377, 1
  %v1379 = vadd.f32 %v1377, %v1378
  %v1380 = vmul.f32 %v1379, 0.0078125
  %v1381 = vld [vmem:[%s2] sm:$0x1]
  %v1382 = vadd.f32 %v1380, 1e-05
  %v1383 = vrsqrt.pop %v1382
  %v1384 = vmul.f32 %v1383, %v1382
  %v1385 = vmul.f32 %v1384, %v1383
  %v1386 = vmul.f32 0.5, %v1385
  %v1387 = vsub.f32 1.5, %v1386
  %v1388 = vmul.f32 %v1383, %v1387
  %vm1389 = vweird.f32 %v1382
  %vm1390 = vweird.f32 %v1383
  %vm1391 = vmor %vm1389, %vm1390
  %v1392 = vsel %vm1391, %v1383, %v1388
  %v1393 = vmul.f32 %v1381, %v1392
  %v1395 = vperm.slane %v1393, 0
  %v1397 = vmul.f32 %v1327, %v1395
  %v1398 = vmul.f32 %v1328, %v1395
  %v1399 = vmul.f32 %v1329, %v1395
  %v1400 = vmul.f32 %v1330, %v1395
  %v1401 = vmul.f32 %v1331, %v1395
  %v1402 = vmul.f32 %v1332, %v1395
  %v1403 = vmul.f32 %v1333, %v1395
  %v1404 = vmul.f32 %v1334, %v1395
  %v1405 = vmul.f32 %v1335, %v1395
  %v1406 = vmul.f32 %v1336, %v1395
  %v1407 = vmul.f32 %v1337, %v1395
  %v1408 = vmul.f32 %v1338, %v1395
  %v1409 = vmul.f32 %v1339, %v1395
  %v1410 = vmul.f32 %v1340, %v1395
  %v1411 = vmul.f32 %v1341, %v1395
  %v1412 = vmul.f32 %v1342, %v1395
  %v1413 = vld [vmem:[%s3] sm:$0x1]
  %v1415 = vperm.slane %v1413, 0
  %v1417 = vadd.f32 %v1397, %v1415
  %v1418 = vadd.f32 %v1398, %v1415
  %v1419 = vadd.f32 %v1399, %v1415
  %v1420 = vadd.f32 %v1400, %v1415
  %v1421 = vadd.f32 %v1401, %v1415
  %v1422 = vadd.f32 %v1402, %v1415
  %v1423 = vadd.f32 %v1403, %v1415
  %v1424 = vadd.f32 %v1404, %v1415
  %v1425 = vadd.f32 %v1405, %v1415
  %v1426 = vadd.f32 %v1406, %v1415
  %v1427 = vadd.f32 %v1407, %v1415
  %v1428 = vadd.f32 %v1408, %v1415
  %v1429 = vadd.f32 %v1409, %v1415
  %v1430 = vadd.f32 %v1410, %v1415
  %v1431 = vadd.f32 %v1411, %v1415
  %v1432 = vadd.f32 %v1412, %v1415
  %v1433 = vmax.f32 %v1417, 0.0
  %v1434 = vmax.f32 %v1418, 0.0
  %v1435 = vmax.f32 %v1419, 0.0
  %v1436 = vmax.f32 %v1420, 0.0
  %v1437 = vmax.f32 %v1421, 0.0
  %v1438 = vmax.f32 %v1422, 0.0
  %v1439 = vmax.f32 %v1423, 0.0
  %v1440 = vmax.f32 %v1424, 0.0
  %v1441 = vmax.f32 %v1425, 0.0
  %v1442 = vmax.f32 %v1426, 0.0
  %v1443 = vmax.f32 %v1427, 0.0
  %v1444 = vmax.f32 %v1428, 0.0
  %v1445 = vmax.f32 %v1429, 0.0
  %v1446 = vmax.f32 %v1430, 0.0
  %v1447 = vmax.f32 %v1431, 0.0
  %v1448 = vmax.f32 %v1432, 0.0
  %v1449 = vpack.c.bf16 %v1433, %v1433
  %v1450 = vpack.c.bf16 %v1434, %v1434
  %v1451 = vpack.c.bf16 %v1435, %v1435
  %v1452 = vpack.c.bf16 %v1436, %v1436
  %v1453 = vpack.c.bf16 %v1437, %v1437
  %v1454 = vpack.c.bf16 %v1438, %v1438
  %v1455 = vpack.c.bf16 %v1439, %v1439
  %v1456 = vpack.c.bf16 %v1440, %v1440
  %v1457 = vpack.c.bf16 %v1441, %v1441
  %v1458 = vpack.c.bf16 %v1442, %v1442
  %v1459 = vpack.c.bf16 %v1443, %v1443
  %v1460 = vpack.c.bf16 %v1444, %v1444
  %v1461 = vpack.c.bf16 %v1445, %v1445
  %v1462 = vpack.c.bf16 %v1446, %v1446
  %v1463 = vpack.c.bf16 %v1447, %v1447
  %v1464 = vpack.c.bf16 %v1448, %v1448
  %1465 = vst [vmem:[%s4] sm:$0xf] %v1449
  %1466 = vst [vmem:[%s4 + $0x4] sm:$0xf] %v1450
  %1467 = vst [vmem:[%s4 + $0x8] sm:$0xf] %v1451
  %1468 = vst [vmem:[%s4 + $0xc] sm:$0xf] %v1452
  %1469 = vst [vmem:[%s4 + $0x10] sm:$0xf] %v1453
  %1470 = vst [vmem:[%s4 + $0x14] sm:$0xf] %v1454
  %1471 = vst [vmem:[%s4 + $0x18] sm:$0xf] %v1455
  %1472 = vst [vmem:[%s4 + $0x1c] sm:$0xf] %v1456
  %1473 = vst [vmem:[%s4 + $0x20] sm:$0xf] %v1457
  %1474 = vst [vmem:[%s4 + $0x24] sm:$0xf] %v1458
  %1475 = vst [vmem:[%s4 + $0x28] sm:$0xf] %v1459
  %1476 = vst [vmem:[%s4 + $0x2c] sm:$0xf] %v1460
  %1477 = vst [vmem:[%s4 + $0x30] sm:$0xf] %v1461
  %1478 = vst [vmem:[%s4 + $0x34] sm:$0xf] %v1462
  %1479 = vst [vmem:[%s4 + $0x38] sm:$0xf] %v1463
  %1480 = vst [vmem:[%s4 + $0x3c] sm:$0xf] %v1464
  // Predicated region
  $region18: #{sentence_encoder_forward.8} parent=0 // pred_check
    _
  $region19: #{sentence_encoder_forward.8} parent=0 // pred_check_branch
    %1482 = sbr.rel (0) target = $region21
  $region20: #{sentence_encoder_forward.8} parent=0 // pred_region
    _
  $region21: #{sentence_encoder_forward.8} parent=0 // pred_fallthru
    _
  // Predicated region
  $region22: #{sentence_encoder_forward.8} parent=0 // pred_check
    _
  $region23: #{sentence_encoder_forward.8} parent=0 // pred_check_branch
    %1484 = sbr.rel (0) target = $region25
  $region24: #{sentence_encoder_forward.8} parent=0 // pred_region
    _
  $region25: #{sentence_encoder_forward.8} parent=0 // pred_fallthru
    _

// kernel: sentence_encoder_forward.9
$region0: #{sentence_encoder_forward.9}
  #allocation0 [shape = 'u32[]', space=smem, size = 0x4, offset = 0x4, fixed_abs, tag = 'smem constant byte address 0x4 - core index']
  #allocation1 [shape = 'u32[72,128]{1,0:T(1,128)}', space=vmem, size = 0x9000, scoped, tag = 'internal scratch']
  %s0 = inlined_call_operand.vmem [shape: bf16[64,512], index: 0, kind: input, shape index: {}]
  %s1 = inlined_call_operand.vmem [shape: bf16[512,128], index: 1, kind: input, shape index: {}]
  %s2 = inlined_call_operand.vmem [shape: f32[1,128], index: 2, kind: input, shape index: {}]
  %s3 = inlined_call_operand.vmem [shape: f32[1,128], index: 3, kind: input, shape index: {}]
  %s4 = inlined_call_operand.vmem [shape: bf16[64,128], index: 4, kind: output, shape index: {}]
  %s5 = sld [smem:[#allocation0]]
  $region26: #{sentence_encoder_forward.9} parent=0
    _
  %s7 = ssub.s32 1, %s5
  %s8 = scalar_select 0, %s7, %s5
  // Predicated region
  $region2: #{sentence_encoder_forward.9} parent=0 // pred_check
    _
  $region3: #{sentence_encoder_forward.9} parent=0 // pred_check_branch
    %10 = sbr.rel (0) target = $region5
  $region4: #{sentence_encoder_forward.9} parent=0 // pred_region
    _
  $region5: #{sentence_encoder_forward.9} parent=0 // pred_fallthru
    _
  // Predicated region
  $region6: #{sentence_encoder_forward.9} parent=0 // pred_check
    _
  $region7: #{sentence_encoder_forward.9} parent=0 // pred_check_branch
    %12 = sbr.rel (0) target = $region9
  $region8: #{sentence_encoder_forward.9} parent=0 // pred_region
    _
  $region9: #{sentence_encoder_forward.9} parent=0 // pred_fallthru
    _
  // Predicated region
  $region10: #{sentence_encoder_forward.9} parent=0 // pred_check
    _
  $region11: #{sentence_encoder_forward.9} parent=0 // pred_check_branch
    %14 = sbr.rel (0) target = $region13
  $region12: #{sentence_encoder_forward.9} parent=0 // pred_region
    _
  $region13: #{sentence_encoder_forward.9} parent=0 // pred_fallthru
    _
  // Predicated region
  $region14: #{sentence_encoder_forward.9} parent=0 // pred_check
    _
  $region15: #{sentence_encoder_forward.9} parent=0 // pred_check_branch
    %16 = sbr.rel (0) target = $region17
  $region16: #{sentence_encoder_forward.9} parent=0 // pred_region
    _
  $region17: #{sentence_encoder_forward.9} parent=0 // pred_fallthru
    _
  %v17 = vld [vmem:[%s0] sm:$0xff]
  %v18 = vld [vmem:[%s0 + $0x8] sm:$0xff]
  %v19 = vld [vmem:[%s0 + $0x10] sm:$0xff]
  %v20 = vld [vmem:[%s0 + $0x18] sm:$0xff]
  %v21 = vld [vmem:[%s0 + $0x20] sm:$0xff]
  %v22 = vld [vmem:[%s0 + $0x28] sm:$0xff]
  %v23 = vld [vmem:[%s0 + $0x30] sm:$0xff]
  %v24 = vld [vmem:[%s0 + $0x38] sm:$0xff]
  %v25 = vld [vmem:[%s0 + $0x40] sm:$0xff]
  %v26 = vld [vmem:[%s0 + $0x48] sm:$0xff]
  %v27 = vld [vmem:[%s0 + $0x50] sm:$0xff]
  %v28 = vld [vmem:[%s0 + $0x58] sm:$0xff]
  %v29 = vld [vmem:[%s0 + $0x60] sm:$0xff]
  %v30 = vld [vmem:[%s0 + $0x68] sm:$0xff]
  %v31 = vld [vmem:[%s0 + $0x70] sm:$0xff]
  %v32 = vld [vmem:[%s0 + $0x78] sm:$0xff]
  %v33 = vld [vmem:[%s1] sm:$0xf]
  %v34 = vld [vmem:[%s1 + $0x4] sm:$0xf]
  %v35 = vld [vmem:[%s1 + $0x8] sm:$0xf]
  %v36 = vld [vmem:[%s1 + $0xc] sm:$0xf]
  %v37 = vld [vmem:[%s1 + $0x10] sm:$0xf]
  %v38 = vld [vmem:[%s1 + $0x14] sm:$0xf]
  %v39 = vld [vmem:[%s1 + $0x18] sm:$0xf]
  %v40 = vld [vmem:[%s1 + $0x1c] sm:$0xf]
  %v41 = vld [vmem:[%s1 + $0x20] sm:$0xf]
  %v42 = vld [vmem:[%s1 + $0x24] sm:$0xf]
  %v43 = vld [vmem:[%s1 + $0x28] sm:$0xf]
  %v44 = vld [vmem:[%s1 + $0x2c] sm:$0xf]
  %v45 = vld [vmem:[%s1 + $0x30] sm:$0xf]
  %v46 = vld [vmem:[%s1 + $0x34] sm:$0xf]
  %v47 = vld [vmem:[%s1 + $0x38] sm:$0xf]
  %v48 = vld [vmem:[%s1 + $0x3c] sm:$0xf]
  %v49 = vld [vmem:[%s1 + $0x40] sm:$0xf]
  %v50 = vld [vmem:[%s1 + $0x44] sm:$0xf]
  %v51 = vld [vmem:[%s1 + $0x48] sm:$0xf]
  %v52 = vld [vmem:[%s1 + $0x4c] sm:$0xf]
  %v53 = vld [vmem:[%s1 + $0x50] sm:$0xf]
  %v54 = vld [vmem:[%s1 + $0x54] sm:$0xf]
  %v55 = vld [vmem:[%s1 + $0x58] sm:$0xf]
  %v56 = vld [vmem:[%s1 + $0x5c] sm:$0xf]
  %v57 = vld [vmem:[%s1 + $0x60] sm:$0xf]
  %v58 = vld [vmem:[%s1 + $0x64] sm:$0xf]
  %v59 = vld [vmem:[%s1 + $0x68] sm:$0xf]
  %v60 = vld [vmem:[%s1 + $0x6c] sm:$0xf]
  %v61 = vld [vmem:[%s1 + $0x70] sm:$0xf]
  %v62 = vld [vmem:[%s1 + $0x74] sm:$0xf]
  %v63 = vld [vmem:[%s1 + $0x78] sm:$0xf]
  %v64 = vld [vmem:[%s1 + $0x7c] sm:$0xf]
  %v65 = vld [vmem:[%s1 + $0x80] sm:$0xf]
  %v66 = vld [vmem:[%s1 + $0x84] sm:$0xf]
  %v67 = vld [vmem:[%s1 + $0x88] sm:$0xf]
  %v68 = vld [vmem:[%s1 + $0x8c] sm:$0xf]
  %v69 = vld [vmem:[%s1 + $0x90] sm:$0xf]
  %v70 = vld [vmem:[%s1 + $0x94] sm:$0xf]
  %v71 = vld [vmem:[%s1 + $0x98] sm:$0xf]
  %v72 = vld [vmem:[%s1 + $0x9c] sm:$0xf]
  %v73 = vld [vmem:[%s1 + $0xa0] sm:$0xf]
  %v74 = vld [vmem:[%s1 + $0xa4] sm:$0xf]
  %v75 = vld [vmem:[%s1 + $0xa8] sm:$0xf]
  %v76 = vld [vmem:[%s1 + $0xac] sm:$0xf]
  %v77 = vld [vmem:[%s1 + $0xb0] sm:$0xf]
  %v78 = vld [vmem:[%s1 + $0xb4] sm:$0xf]
  %v79 = vld [vmem:[%s1 + $0xb8] sm:$0xf]
  %v80 = vld [vmem:[%s1 + $0xbc] sm:$0xf]
  %v81 = vld [vmem:[%s1 + $0xc0] sm:$0xf]
  %v82 = vld [vmem:[%s1 + $0xc4] sm:$0xf]
  %v83 = vld [vmem:[%s1 + $0xc8] sm:$0xf]
  %v84 = vld [vmem:[%s1 + $0xcc] sm:$0xf]
  %v85 = vld [vmem:[%s1 + $0xd0] sm:$0xf]
  %v86 = vld [vmem:[%s1 + $0xd4] sm:$0xf]
  %v87 = vld [vmem:[%s1 + $0xd8] sm:$0xf]
  %v88 = vld [vmem:[%s1 + $0xdc] sm:$0xf]
  %v89 = vld [vmem:[%s1 + $0xe0] sm:$0xf]
  %v90 = vld [vmem:[%s1 + $0xe4] sm:$0xf]
  %v91 = vld [vmem:[%s1 + $0xe8] sm:$0xf]
  %v92 = vld [vmem:[%s1 + $0xec] sm:$0xf]
  %v93 = vld [vmem:[%s1 + $0xf0] sm:$0xf]
  %v94 = vld [vmem:[%s1 + $0xf4] sm:$0xf]
  %v95 = vld [vmem:[%s1 + $0xf8] sm:$0xf]
  %v96 = vld [vmem:[%s1 + $0xfc] sm:$0xf]
  %v113 = vunpack.c.l.b16 %v17
  %v114 = vunpack.c.h.b16 %v17
  %v115 = vunpack.c.l.b16 %v18
  %v116 = vunpack.c.h.b16 %v18
  %v117 = vunpack.c.l.b16 %v19
  %v118 = vunpack.c.h.b16 %v19
  %v119 = vunpack.c.l.b16 %v20
  %v120 = vunpack.c.h.b16 %v20
  %v121 = vunpack.c.l.b16 %v21
  %v122 = vunpack.c.h.b16 %v21
  %v123 = vunpack.c.l.b16 %v22
  %v124 = vunpack.c.h.b16 %v22
  %v125 = vunpack.c.l.b16 %v23
  %v126 = vunpack.c.h.b16 %v23
  %v127 = vunpack.c.l.b16 %v24
  %v128 = vunpack.c.h.b16 %v24
  %v129 = vunpack.c.l.b16 %v25
  %v130 = vunpack.c.h.b16 %v25
  %v131 = vunpack.c.l.b16 %v26
  %v132 = vunpack.c.h.b16 %v26
  %v133 = vunpack.c.l.b16 %v27
  %v134 = vunpack.c.h.b16 %v27
  %v135 = vunpack.c.l.b16 %v28
  %v136 = vunpack.c.h.b16 %v28
  %v137 = vunpack.c.l.b16 %v29
  %v138 = vunpack.c.h.b16 %v29
  %v139 = vunpack.c.l.b16 %v30
  %v140 = vunpack.c.h.b16 %v30
  %v141 = vunpack.c.l.b16 %v31
  %v142 = vunpack.c.h.b16 %v31
  %v143 = vunpack.c.l.b16 %v32
  %v144 = vunpack.c.h.b16 %v32
  %v145 = vpack.c.b16 %v117, %v113
  %v146 = vpack.c.b16 %v118, %v114
  %v147 = vpack.c.b16 %v119, %v115
  %v148 = vpack.c.b16 %v120, %v116
  %v149 = vpack.c.b16 %v125, %v121
  %v150 = vpack.c.b16 %v126, %v122
  %v151 = vpack.c.b16 %v127, %v123
  %v152 = vpack.c.b16 %v128, %v124
  %v153 = vpack.c.b16 %v133, %v129
  %v154 = vpack.c.b16 %v134, %v130
  %v155 = vpack.c.b16 %v135, %v131
  %v156 = vpack.c.b16 %v136, %v132
  %v157 = vpack.c.b16 %v141, %v137
  %v158 = vpack.c.b16 %v142, %v138
  %v159 = vpack.c.b16 %v143, %v139
  %v160 = vpack.c.b16 %v144, %v140
  %v241 = vunpack.c.l.b16 %v33
  %v242 = vunpack.c.l.b16 %v34
  %v243 = vunpack.c.l.b16 %v35
  %v244 = vunpack.c.l.b16 %v36
  %v245 = vunpack.c.l.b16 %v37
  %v246 = vunpack.c.l.b16 %v38
  %v247 = vunpack.c.l.b16 %v39
  %v248 = vunpack.c.l.b16 %v40
  %v249 = vunpack.c.l.b16 %v41
  %v250 = vunpack.c.l.b16 %v42
  %v251 = vunpack.c.l.b16 %v43
  %v252 = vunpack.c.l.b16 %v44
  %v253 = vunpack.c.l.b16 %v45
  %v254 = vunpack.c.l.b16 %v46
  %v255 = vunpack.c.l.b16 %v47
  %v256 = vunpack.c.l.b16 %v48
  %v257 = vunpack.c.l.b16 %v49
  %v258 = vunpack.c.l.b16 %v50
  %v259 = vunpack.c.l.b16 %v51
  %v260 = vunpack.c.l.b16 %v52
  %v261 = vunpack.c.l.b16 %v53
  %v262 = vunpack.c.l.b16 %v54
  %v263 = vunpack.c.l.b16 %v55
  %v264 = vunpack.c.l.b16 %v56
  %v265 = vunpack.c.l.b16 %v57
  %v266 = vunpack.c.l.b16 %v58
  %v267 = vunpack.c.l.b16 %v59
  %v268 = vunpack.c.l.b16 %v60
  %v269 = vunpack.c.l.b16 %v61
  %v270 = vunpack.c.l.b16 %v62
  %v271 = vunpack.c.l.b16 %v63
  %v272 = vunpack.c.l.b16 %v64
  %v273 = vunpack.c.l.b16 %v65
  %v274 = vunpack.c.l.b16 %v66
  %v275 = vunpack.c.l.b16 %v67
  %v276 = vunpack.c.l.b16 %v68
  %v277 = vunpack.c.l.b16 %v69
  %v278 = vunpack.c.l.b16 %v70
  %v279 = vunpack.c.l.b16 %v71
  %v280 = vunpack.c.l.b16 %v72
  %v281 = vunpack.c.l.b16 %v73
  %v282 = vunpack.c.l.b16 %v74
  %v283 = vunpack.c.l.b16 %v75
  %v284 = vunpack.c.l.b16 %v76
  %v285 = vunpack.c.l.b16 %v77
  %v286 = vunpack.c.l.b16 %v78
  %v287 = vunpack.c.l.b16 %v79
  %v288 = vunpack.c.l.b16 %v80
  %v289 = vunpack.c.l.b16 %v81
  %v290 = vunpack.c.l.b16 %v82
  %v291 = vunpack.c.l.b16 %v83
  %v292 = vunpack.c.l.b16 %v84
  %v293 = vunpack.c.l.b16 %v85
  %v294 = vunpack.c.l.b16 %v86
  %v295 = vunpack.c.l.b16 %v87
  %v296 = vunpack.c.l.b16 %v88
  %v297 = vunpack.c.l.b16 %v89
  %v298 = vunpack.c.l.b16 %v90
  %v299 = vunpack.c.l.b16 %v91
  %v300 = vunpack.c.l.b16 %v92
  %v301 = vunpack.c.l.b16 %v93
  %v302 = vunpack.c.l.b16 %v94
  %v303 = vunpack.c.l.b16 %v95
  %v304 = vunpack.c.l.b16 %v96
  %v305 = vpack.c.b16 %v242, %v241
  %v306 = vpack.c.b16 %v244, %v243
  %v307 = vpack.c.b16 %v246, %v245
  %v308 = vpack.c.b16 %v248, %v247
  %v309 = vpack.c.b16 %v250, %v249
  %v310 = vpack.c.b16 %v252, %v251
  %v311 = vpack.c.b16 %v254, %v253
  %v312 = vpack.c.b16 %v256, %v255
  %v313 = vpack.c.b16 %v258, %v257
  %v314 = vpack.c.b16 %v260, %v259
  %v315 = vpack.c.b16 %v262, %v261
  %v316 = vpack.c.b16 %v264, %v263
  %v317 = vpack.c.b16 %v266, %v265
  %v318 = vpack.c.b16 %v268, %v267
  %v319 = vpack.c.b16 %v270, %v269
  %v320 = vpack.c.b16 %v272, %v271
  %v321 = vpack.c.b16 %v274, %v273
  %v322 = vpack.c.b16 %v276, %v275
  %v323 = vpack.c.b16 %v278, %v277
  %v324 = vpack.c.b16 %v280, %v279
  %v325 = vpack.c.b16 %v282, %v281
  %v326 = vpack.c.b16 %v284, %v283
  %v327 = vpack.c.b16 %v286, %v285
  %v328 = vpack.c.b16 %v288, %v287
  %v329 = vpack.c.b16 %v290, %v289
  %v330 = vpack.c.b16 %v292, %v291
  %v331 = vpack.c.b16 %v294, %v293
  %v332 = vpack.c.b16 %v296, %v295
  %v333 = vpack.c.b16 %v298, %v297
  %v334 = vpack.c.b16 %v300, %v299
  %v335 = vpack.c.b16 %v302, %v301
  %v336 = vpack.c.b16 %v304, %v303
  %369 = vmatpush.bf16.msra.mxu0 %v312
  %370 = vmatpush.bf16.msra.mxu0 %v311
  %371 = vmatpush.bf16.msra.mxu0 %v310
  %372 = vmatpush.bf16.msra.mxu0 %v309
  %373 = vmatpush.bf16.msra.mxu0 %v308
  %374 = vmatpush.bf16.msra.mxu0 %v307
  %375 = vmatpush.bf16.msra.mxu0 %v306
  %376 = vmatpush.bf16.msra.mxu0 %v305
  %377 = vmatmul.bf16.gmra.mxu0 %v145
  %v378 = vpop.f32.mrf.mxu0
  %v379 = vadd.f32 0.0, %v378
  %v380 = vpop.f32.mrf.mxu0
  %v381 = vadd.f32 0.0, %v380
  %382 = vmatmul.bf16.gmra.mxu0 %v149
  %v383 = vpop.f32.mrf.mxu0
  %v384 = vadd.f32 0.0, %v383
  %v385 = vpop.f32.mrf.mxu0
  %v386 = vadd.f32 0.0, %v385
  %387 = vmatmul.bf16.gmra.mxu0 %v153
  %v388 = vpop.f32.mrf.mxu0
  %v389 = vadd.f32 0.0, %v388
  %v390 = vpop.f32.mrf.mxu0
  %v391 = vadd.f32 0.0, %v390
  %392 = vmatmul.bf16.gmra.mxu0 %v157
  %v393 = vpop.f32.mrf.mxu0
  %v394 = vadd.f32 0.0, %v393
  %v395 = vpop.f32.mrf.mxu0
  %v396 = vadd.f32 0.0, %v395
  %397 = vdwg.mxu0
  %398 = vmatpush.bf16.msra.mxu0 %v320
  %399 = vmatpush.bf16.msra.mxu0 %v319
  %400 = vmatpush.bf16.msra.mxu0 %v318
  %401 = vmatpush.bf16.msra.mxu0 %v317
  %402 = vmatpush.bf16.msra.mxu0 %v316
  %403 = vmatpush.bf16.msra.mxu0 %v315
  %404 = vmatpush.bf16.msra.mxu0 %v314
  %405 = vmatpush.bf16.msra.mxu0 %v313
  %406 = vmatmul.bf16.gmra.mxu0 %v146
  %v407 = vpop.f32.mrf.mxu0
  %v408 = vadd.f32 %v379, %v407
  %v409 = vpop.f32.mrf.mxu0
  %v410 = vadd.f32 %v381, %v409
  %411 = vmatmul.bf16.gmra.mxu0 %v150
  %v412 = vpop.f32.mrf.mxu0
  %v413 = vadd.f32 %v384, %v412
  %v414 = vpop.f32.mrf.mxu0
  %v415 = vadd.f32 %v386, %v414
  %416 = vmatmul.bf16.gmra.mxu0 %v154
  %v417 = vpop.f32.mrf.mxu0
  %v418 = vadd.f32 %v389, %v417
  %v419 = vpop.f32.mrf.mxu0
  %v420 = vadd.f32 %v391, %v419
  %421 = vmatmul.bf16.gmra.mxu0 %v158
  %v422 = vpop.f32.mrf.mxu0
  %v423 = vadd.f32 %v394, %v422
  %v424 = vpop.f32.mrf.mxu0
  %v425 = vadd.f32 %v396, %v424
  %426 = vdwg.mxu0
  %427 = vmatpush.bf16.msra.mxu0 %v328
  %428 = vmatpush.bf16.msra.mxu0 %v327
  %429 = vmatpush.bf16.msra.mxu0 %v326
  %430 = vmatpush.bf16.msra.mxu0 %v325
  %431 = vmatpush.bf16.msra.mxu0 %v324
  %432 = vmatpush.bf16.msra.mxu0 %v323
  %433 = vmatpush.bf16.msra.mxu0 %v322
  %434 = vmatpush.bf16.msra.mxu0 %v321
  %435 = vmatmul.bf16.gmra.mxu0 %v147
  %v436 = vpop.f32.mrf.mxu0
  %v437 = vadd.f32 %v408, %v436
  %v438 = vpop.f32.mrf.mxu0
  %v439 = vadd.f32 %v410, %v438
  %440 = vmatmul.bf16.gmra.mxu0 %v151
  %v441 = vpop.f32.mrf.mxu0
  %v442 = vadd.f32 %v413, %v441
  %v443 = vpop.f32.mrf.mxu0
  %v444 = vadd.f32 %v415, %v443
  %445 = vmatmul.bf16.gmra.mxu0 %v155
  %v446 = vpop.f32.mrf.mxu0
  %v447 = vadd.f32 %v418, %v446
  %v448 = vpop.f32.mrf.mxu0
  %v449 = vadd.f32 %v420, %v448
  %450 = vmatmul.bf16.gmra.mxu0 %v159
  %v451 = vpop.f32.mrf.mxu0
  %v452 = vadd.f32 %v423, %v451
  %v453 = vpop.f32.mrf.mxu0
  %v454 = vadd.f32 %v425, %v453
  %455 = vdwg.mxu0
  %456 = vmatpush.bf16.msra.mxu0 %v336
  %457 = vmatpush.bf16.msra.mxu0 %v335
  %458 = vmatpush.bf16.msra.mxu0 %v334
  %459 = vmatpush.bf16.msra.mxu0 %v333
  %460 = vmatpush.bf16.msra.mxu0 %v332
  %461 = vmatpush.bf16.msra.mxu0 %v331
  %462 = vmatpush.bf16.msra.mxu0 %v330
  %463 = vmatpush.bf16.msra.mxu0 %v329
  %464 = vmatmul.bf16.gmra.mxu0 %v148
  %v465 = vpop.f32.mrf.mxu0
  %v466 = vadd.f32 %v437, %v465
  %v467 = vpop.f32.mrf.mxu0
  %v468 = vadd.f32 %v439, %v467
  %469 = vmatmul.bf16.gmra.mxu0 %v152
  %v470 = vpop.f32.mrf.mxu0
  %v471 = vadd.f32 %v442, %v470
  %v472 = vpop.f32.mrf.mxu0
  %v473 = vadd.f32 %v444, %v472
  %474 = vmatmul.bf16.gmra.mxu0 %v156
  %v475 = vpop.f32.mrf.mxu0
  %v476 = vadd.f32 %v447, %v475
  %v477 = vpop.f32.mrf.mxu0
  %v478 = vadd.f32 %v449, %v477
  %479 = vmatmul.bf16.gmra.mxu0 %v160
  %v480 = vpop.f32.mrf.mxu0
  %v481 = vadd.f32 %v452, %v480
  %v482 = vpop.f32.mrf.mxu0
  %v483 = vadd.f32 %v454, %v482
  %484 = vdwg.mxu0
  %v485 = vadd.f32 %v466, %v468
  %v486 = vadd.f32 %v485, %v471
  %v487 = vadd.f32 %v486, %v473
  %v488 = vadd.f32 %v487, %v476
  %v489 = vadd.f32 %v488, %v478
  %v490 = vadd.f32 %v489, %v481
  %v491 = vadd.f32 %v490, %v483
  %v492 = vrot.slane %v491, 4
  %v493 = vadd.f32 %v491, %v492
  %v494 = vrot.slane %v493, 2
  %v495 = vadd.f32 %v493, %v494
  %v496 = vrot.slane %v495, 1
  %v497 = vadd.f32 %v495, %v496
  %v498 = vmul.f32 %v497, 0.015625
  %v499 = vsub.f32 %v466, %v498
  %v500 = vsub.f32 %v468, %v498
  %v501 = vsub.f32 %v471, %v498
  %v502 = vsub.f32 %v473, %v498
  %v503 = vsub.f32 %v476, %v498
  %v504 = vsub.f32 %v478, %v498
  %v505 = vsub.f32 %v481, %v498
  %v506 = vsub.f32 %v483, %v498
  %v507 = vmul.f32 %v499, %v499
  %v508 = vmul.f32 %v500, %v500
  %v509 = vmul.f32 %v501, %v501
  %v510 = vmul.f32 %v502, %v502
  %v511 = vmul.f32 %v503, %v503
  %v512 = vmul.f32 %v504, %v504
  %v513 = vmul.f32 %v505, %v505
  %v514 = vmul.f32 %v506, %v506
  %v515 = vadd.f32 %v507, %v508
  %v516 = vadd.f32 %v515, %v509
  %v517 = vadd.f32 %v516, %v510
  %v518 = vadd.f32 %v517, %v511
  %v519 = vadd.f32 %v518, %v512
  %v520 = vadd.f32 %v519, %v513
  %v521 = vadd.f32 %v520, %v514
  %v522 = vrot.slane %v521, 4
  %v523 = vadd.f32 %v521, %v522
  %v524 = vrot.slane %v523, 2
  %v525 = vadd.f32 %v523, %v524
  %v526 = vrot.slane %v525, 1
  %v527 = vadd.f32 %v525, %v526
  %v528 = vmul.f32 %v527, 0.015625
  %v529 = vld [vmem:[%s2] sm:$0x1]
  %v530 = vadd.f32 %v528, 1e-05
  %v531 = vrsqrt.pop %v530
  %v532 = vmul.f32 %v531, %v530
  %v533 = vmul.f32 %v532, %v531
  %v534 = vmul.f32 0.5, %v533
  %v535 = vsub.f32 1.5, %v534
  %v536 = vmul.f32 %v531, %v535
  %vm537 = vweird.f32 %v530
  %vm538 = vweird.f32 %v531
  %vm539 = vmor %vm537, %vm538
  %v540 = vsel %vm539, %v531, %v536
  %v541 = vmul.f32 %v529, %v540
  %v543 = vperm.slane %v541, 0
  %v545 = vmul.f32 %v499, %v543
  %v546 = vmul.f32 %v500, %v543
  %v547 = vmul.f32 %v501, %v543
  %v548 = vmul.f32 %v502, %v543
  %v549 = vmul.f32 %v503, %v543
  %v550 = vmul.f32 %v504, %v543
  %v551 = vmul.f32 %v505, %v543
  %v552 = vmul.f32 %v506, %v543
  %v553 = vld [vmem:[%s3] sm:$0x1]
  %v555 = vperm.slane %v553, 0
  %v557 = vadd.f32 %v545, %v555
  %v558 = vadd.f32 %v546, %v555
  %v559 = vadd.f32 %v547, %v555
  %v560 = vadd.f32 %v548, %v555
  %v561 = vadd.f32 %v549, %v555
  %v562 = vadd.f32 %v550, %v555
  %v563 = vadd.f32 %v551, %v555
  %v564 = vadd.f32 %v552, %v555
  %v565 = vmax.f32 %v557, 0.0
  %v566 = vmax.f32 %v558, 0.0
  %v567 = vmax.f32 %v559, 0.0
  %v568 = vmax.f32 %v560, 0.0
  %v569 = vmax.f32 %v561, 0.0
  %v570 = vmax.f32 %v562, 0.0
  %v571 = vmax.f32 %v563, 0.0
  %v572 = vmax.f32 %v564, 0.0
  %v573 = vpack.c.bf16 %v565, %v565
  %v574 = vpack.c.bf16 %v566, %v566
  %v575 = vpack.c.bf16 %v567, %v567
  %v576 = vpack.c.bf16 %v568, %v568
  %v577 = vpack.c.bf16 %v569, %v569
  %v578 = vpack.c.bf16 %v570, %v570
  %v579 = vpack.c.bf16 %v571, %v571
  %v580 = vpack.c.bf16 %v572, %v572
  %581 = vst [vmem:[%s4] sm:$0xf] %v573
  %582 = vst [vmem:[%s4 + $0x4] sm:$0xf] %v574
  %583 = vst [vmem:[%s4 + $0x8] sm:$0xf] %v575
  %584 = vst [vmem:[%s4 + $0xc] sm:$0xf] %v576
  %585 = vst [vmem:[%s4 + $0x10] sm:$0xf] %v577
  %586 = vst [vmem:[%s4 + $0x14] sm:$0xf] %v578
  %587 = vst [vmem:[%s4 + $0x18] sm:$0xf] %v579
  %588 = vst [vmem:[%s4 + $0x1c] sm:$0xf] %v580
  // Predicated region
  $region18: #{sentence_encoder_forward.9} parent=0 // pred_check
    _
  $region19: #{sentence_encoder_forward.9} parent=0 // pred_check_branch
    %590 = sbr.rel (0) target = $region21
  $region20: #{sentence_encoder_forward.9} parent=0 // pred_region
    _
  $region21: #{sentence_encoder_forward.9} parent=0 // pred_fallthru
    _
  // Predicated region
  $region22: #{sentence_encoder_forward.9} parent=0 // pred_check
    _
  $region23: #{sentence_encoder_forward.9} parent=0 // pred_check_branch
    %592 = sbr.rel (0) target = $region25
  $region24: #{sentence_encoder_forward.9} parent=0 // pred_region
    _
  $region25: #{sentence_encoder_forward.9} parent=0 // pred_fallthru
    _

// kernel: sentence_encoder_forward.10
$region0: #{sentence_encoder_forward.10}
  #allocation0 [shape = 'u32[]', space=smem, size = 0x4, offset = 0x4, fixed_abs, tag = 'smem constant byte address 0x4 - core index']
  #allocation1 [shape = 'u32[72,128]{1,0:T(1,128)}', space=vmem, size = 0x9000, scoped, tag = 'internal scratch']
  %s0 = inlined_call_operand.vmem [shape: bf16[32,512], index: 0, kind: input, shape index: {}]
  %s1 = inlined_call_operand.vmem [shape: bf16[512,128], index: 1, kind: input, shape index: {}]
  %s2 = inlined_call_operand.vmem [shape: f32[1,128], index: 2, kind: input, shape index: {}]
  %s3 = inlined_call_operand.vmem [shape: f32[1,128], index: 3, kind: input, shape index: {}]
  %s4 = inlined_call_operand.vmem [shape: bf16[32,128], index: 4, kind: output, shape index: {}]
  %s5 = sld [smem:[#allocation0]]
  $region26: #{sentence_encoder_forward.10} parent=0
    _
  %s7 = ssub.s32 1, %s5
  %s8 = scalar_select 0, %s7, %s5
  // Predicated region
  $region2: #{sentence_encoder_forward.10} parent=0 // pred_check
    _
  $region3: #{sentence_encoder_forward.10} parent=0 // pred_check_branch
    %10 = sbr.rel (0) target = $region5
  $region4: #{sentence_encoder_forward.10} parent=0 // pred_region
    _
  $region5: #{sentence_encoder_forward.10} parent=0 // pred_fallthru
    _
  // Predicated region
  $region6: #{sentence_encoder_forward.10} parent=0 // pred_check
    _
  $region7: #{sentence_encoder_forward.10} parent=0 // pred_check_branch
    %12 = sbr.rel (0) target = $region9
  $region8: #{sentence_encoder_forward.10} parent=0 // pred_region
    _
  $region9: #{sentence_encoder_forward.10} parent=0 // pred_fallthru
    _
  // Predicated region
  $region10: #{sentence_encoder_forward.10} parent=0 // pred_check
    _
  $region11: #{sentence_encoder_forward.10} parent=0 // pred_check_branch
    %14 = sbr.rel (0) target = $region13
  $region12: #{sentence_encoder_forward.10} parent=0 // pred_region
    _
  $region13: #{sentence_encoder_forward.10} parent=0 // pred_fallthru
    _
  // Predicated region
  $region14: #{sentence_encoder_forward.10} parent=0 // pred_check
    _
  $region15: #{sentence_encoder_forward.10} parent=0 // pred_check_branch
    %16 = sbr.rel (0) target = $region17
  $region16: #{sentence_encoder_forward.10} parent=0 // pred_region
    _
  $region17: #{sentence_encoder_forward.10} parent=0 // pred_fallthru
    _
  %v17 = vld [vmem:[%s0] sm:$0xff]
  %v18 = vld [vmem:[%s0 + $0x8] sm:$0xff]
  %v19 = vld [vmem:[%s0 + $0x10] sm:$0xff]
  %v20 = vld [vmem:[%s0 + $0x18] sm:$0xff]
  %v21 = vld [vmem:[%s0 + $0x20] sm:$0xff]
  %v22 = vld [vmem:[%s0 + $0x28] sm:$0xff]
  %v23 = vld [vmem:[%s0 + $0x30] sm:$0xff]
  %v24 = vld [vmem:[%s0 + $0x38] sm:$0xff]
  %v25 = vld [vmem:[%s1] sm:$0xf]
  %v26 = vld [vmem:[%s1 + $0x4] sm:$0xf]
  %v27 = vld [vmem:[%s1 + $0x8] sm:$0xf]
  %v28 = vld [vmem:[%s1 + $0xc] sm:$0xf]
  %v29 = vld [vmem:[%s1 + $0x10] sm:$0xf]
  %v30 = vld [vmem:[%s1 + $0x14] sm:$0xf]
  %v31 = vld [vmem:[%s1 + $0x18] sm:$0xf]
  %v32 = vld [vmem:[%s1 + $0x1c] sm:$0xf]
  %v33 = vld [vmem:[%s1 + $0x20] sm:$0xf]
  %v34 = vld [vmem:[%s1 + $0x24] sm:$0xf]
  %v35 = vld [vmem:[%s1 + $0x28] sm:$0xf]
  %v36 = vld [vmem:[%s1 + $0x2c] sm:$0xf]
  %v37 = vld [vmem:[%s1 + $0x30] sm:$0xf]
  %v38 = vld [vmem:[%s1 + $0x34] sm:$0xf]
  %v39 = vld [vmem:[%s1 + $0x38] sm:$0xf]
  %v40 = vld [vmem:[%s1 + $0x3c] sm:$0xf]
  %v41 = vld [vmem:[%s1 + $0x40] sm:$0xf]
  %v42 = vld [vmem:[%s1 + $0x44] sm:$0xf]
  %v43 = vld [vmem:[%s1 + $0x48] sm:$0xf]
  %v44 = vld [vmem:[%s1 + $0x4c] sm:$0xf]
  %v45 = vld [vmem:[%s1 + $0x50] sm:$0xf]
  %v46 = vld [vmem:[%s1 + $0x54] sm:$0xf]
  %v47 = vld [vmem:[%s1 + $0x58] sm:$0xf]
  %v48 = vld [vmem:[%s1 + $0x5c] sm:$0xf]
  %v49 = vld [vmem:[%s1 + $0x60] sm:$0xf]
  %v50 = vld [vmem:[%s1 + $0x64] sm:$0xf]
  %v51 = vld [vmem:[%s1 + $0x68] sm:$0xf]
  %v52 = vld [vmem:[%s1 + $0x6c] sm:$0xf]
  %v53 = vld [vmem:[%s1 + $0x70] sm:$0xf]
  %v54 = vld [vmem:[%s1 + $0x74] sm:$0xf]
  %v55 = vld [vmem:[%s1 + $0x78] sm:$0xf]
  %v56 = vld [vmem:[%s1 + $0x7c] sm:$0xf]
  %v57 = vld [vmem:[%s1 + $0x80] sm:$0xf]
  %v58 = vld [vmem:[%s1 + $0x84] sm:$0xf]
  %v59 = vld [vmem:[%s1 + $0x88] sm:$0xf]
  %v60 = vld [vmem:[%s1 + $0x8c] sm:$0xf]
  %v61 = vld [vmem:[%s1 + $0x90] sm:$0xf]
  %v62 = vld [vmem:[%s1 + $0x94] sm:$0xf]
  %v63 = vld [vmem:[%s1 + $0x98] sm:$0xf]
  %v64 = vld [vmem:[%s1 + $0x9c] sm:$0xf]
  %v65 = vld [vmem:[%s1 + $0xa0] sm:$0xf]
  %v66 = vld [vmem:[%s1 + $0xa4] sm:$0xf]
  %v67 = vld [vmem:[%s1 + $0xa8] sm:$0xf]
  %v68 = vld [vmem:[%s1 + $0xac] sm:$0xf]
  %v69 = vld [vmem:[%s1 + $0xb0] sm:$0xf]
  %v70 = vld [vmem:[%s1 + $0xb4] sm:$0xf]
  %v71 = vld [vmem:[%s1 + $0xb8] sm:$0xf]
  %v72 = vld [vmem:[%s1 + $0xbc] sm:$0xf]
  %v73 = vld [vmem:[%s1 + $0xc0] sm:$0xf]
  %v74 = vld [vmem:[%s1 + $0xc4] sm:$0xf]
  %v75 = vld [vmem:[%s1 + $0xc8] sm:$0xf]
  %v76 = vld [vmem:[%s1 + $0xcc] sm:$0xf]
  %v77 = vld [vmem:[%s1 + $0xd0] sm:$0xf]
  %v78 = vld [vmem:[%s1 + $0xd4] sm:$0xf]
  %v79 = vld [vmem:[%s1 + $0xd8] sm:$0xf]
  %v80 = vld [vmem:[%s1 + $0xdc] sm:$0xf]
  %v81 = vld [vmem:[%s1 + $0xe0] sm:$0xf]
  %v82 = vld [vmem:[%s1 + $0xe4] sm:$0xf]
  %v83 = vld [vmem:[%s1 + $0xe8] sm:$0xf]
  %v84 = vld [vmem:[%s1 + $0xec] sm:$0xf]
  %v85 = vld [vmem:[%s1 + $0xf0] sm:$0xf]
  %v86 = vld [vmem:[%s1 + $0xf4] sm:$0xf]
  %v87 = vld [vmem:[%s1 + $0xf8] sm:$0xf]
  %v88 = vld [vmem:[%s1 + $0xfc] sm:$0xf]
  %v97 = vunpack.c.l.b16 %v17
  %v98 = vunpack.c.h.b16 %v17
  %v99 = vunpack.c.l.b16 %v18
  %v100 = vunpack.c.h.b16 %v18
  %v101 = vunpack.c.l.b16 %v19
  %v102 = vunpack.c.h.b16 %v19
  %v103 = vunpack.c.l.b16 %v20
  %v104 = vunpack.c.h.b16 %v20
  %v105 = vunpack.c.l.b16 %v21
  %v106 = vunpack.c.h.b16 %v21
  %v107 = vunpack.c.l.b16 %v22
  %v108 = vunpack.c.h.b16 %v22
  %v109 = vunpack.c.l.b16 %v23
  %v110 = vunpack.c.h.b16 %v23
  %v111 = vunpack.c.l.b16 %v24
  %v112 = vunpack.c.h.b16 %v24
  %v113 = vpack.c.b16 %v101, %v97
  %v114 = vpack.c.b16 %v102, %v98
  %v115 = vpack.c.b16 %v103, %v99
  %v116 = vpack.c.b16 %v104, %v100
  %v117 = vpack.c.b16 %v109, %v105
  %v118 = vpack.c.b16 %v110, %v106
  %v119 = vpack.c.b16 %v111, %v107
  %v120 = vpack.c.b16 %v112, %v108
  %v193 = vunpack.c.l.b16 %v25
  %v194 = vunpack.c.l.b16 %v26
  %v195 = vunpack.c.l.b16 %v27
  %v196 = vunpack.c.l.b16 %v28
  %v197 = vunpack.c.l.b16 %v29
  %v198 = vunpack.c.l.b16 %v30
  %v199 = vunpack.c.l.b16 %v31
  %v200 = vunpack.c.l.b16 %v32
  %v201 = vunpack.c.l.b16 %v33
  %v202 = vunpack.c.l.b16 %v34
  %v203 = vunpack.c.l.b16 %v35
  %v204 = vunpack.c.l.b16 %v36
  %v205 = vunpack.c.l.b16 %v37
  %v206 = vunpack.c.l.b16 %v38
  %v207 = vunpack.c.l.b16 %v39
  %v208 = vunpack.c.l.b16 %v40
  %v209 = vunpack.c.l.b16 %v41
  %v210 = vunpack.c.l.b16 %v42
  %v211 = vunpack.c.l.b16 %v43
  %v212 = vunpack.c.l.b16 %v44
  %v213 = vunpack.c.l.b16 %v45
  %v214 = vunpack.c.l.b16 %v46
  %v215 = vunpack.c.l.b16 %v47
  %v216 = vunpack.c.l.b16 %v48
  %v217 = vunpack.c.l.b16 %v49
  %v218 = vunpack.c.l.b16 %v50
  %v219 = vunpack.c.l.b16 %v51
  %v220 = vunpack.c.l.b16 %v52
  %v221 = vunpack.c.l.b16 %v53
  %v222 = vunpack.c.l.b16 %v54
  %v223 = vunpack.c.l.b16 %v55
  %v224 = vunpack.c.l.b16 %v56
  %v225 = vunpack.c.l.b16 %v57
  %v226 = vunpack.c.l.b16 %v58
  %v227 = vunpack.c.l.b16 %v59
  %v228 = vunpack.c.l.b16 %v60
  %v229 = vunpack.c.l.b16 %v61
  %v230 = vunpack.c.l.b16 %v62
  %v231 = vunpack.c.l.b16 %v63
  %v232 = vunpack.c.l.b16 %v64
  %v233 = vunpack.c.l.b16 %v65
  %v234 = vunpack.c.l.b16 %v66
  %v235 = vunpack.c.l.b16 %v67
  %v236 = vunpack.c.l.b16 %v68
  %v237 = vunpack.c.l.b16 %v69
  %v238 = vunpack.c.l.b16 %v70
  %v239 = vunpack.c.l.b16 %v71
  %v240 = vunpack.c.l.b16 %v72
  %v241 = vunpack.c.l.b16 %v73
  %v242 = vunpack.c.l.b16 %v74
  %v243 = vunpack.c.l.b16 %v75
  %v244 = vunpack.c.l.b16 %v76
  %v245 = vunpack.c.l.b16 %v77
  %v246 = vunpack.c.l.b16 %v78
  %v247 = vunpack.c.l.b16 %v79
  %v248 = vunpack.c.l.b16 %v80
  %v249 = vunpack.c.l.b16 %v81
  %v250 = vunpack.c.l.b16 %v82
  %v251 = vunpack.c.l.b16 %v83
  %v252 = vunpack.c.l.b16 %v84
  %v253 = vunpack.c.l.b16 %v85
  %v254 = vunpack.c.l.b16 %v86
  %v255 = vunpack.c.l.b16 %v87
  %v256 = vunpack.c.l.b16 %v88
  %v257 = vpack.c.b16 %v194, %v193
  %v258 = vpack.c.b16 %v196, %v195
  %v259 = vpack.c.b16 %v198, %v197
  %v260 = vpack.c.b16 %v200, %v199
  %v261 = vpack.c.b16 %v202, %v201
  %v262 = vpack.c.b16 %v204, %v203
  %v263 = vpack.c.b16 %v206, %v205
  %v264 = vpack.c.b16 %v208, %v207
  %v265 = vpack.c.b16 %v210, %v209
  %v266 = vpack.c.b16 %v212, %v211
  %v267 = vpack.c.b16 %v214, %v213
  %v268 = vpack.c.b16 %v216, %v215
  %v269 = vpack.c.b16 %v218, %v217
  %v270 = vpack.c.b16 %v220, %v219
  %v271 = vpack.c.b16 %v222, %v221
  %v272 = vpack.c.b16 %v224, %v223
  %v273 = vpack.c.b16 %v226, %v225
  %v274 = vpack.c.b16 %v228, %v227
  %v275 = vpack.c.b16 %v230, %v229
  %v276 = vpack.c.b16 %v232, %v231
  %v277 = vpack.c.b16 %v234, %v233
  %v278 = vpack.c.b16 %v236, %v235
  %v279 = vpack.c.b16 %v238, %v237
  %v280 = vpack.c.b16 %v240, %v239
  %v281 = vpack.c.b16 %v242, %v241
  %v282 = vpack.c.b16 %v244, %v243
  %v283 = vpack.c.b16 %v246, %v245
  %v284 = vpack.c.b16 %v248, %v247
  %v285 = vpack.c.b16 %v250, %v249
  %v286 = vpack.c.b16 %v252, %v251
  %v287 = vpack.c.b16 %v254, %v253
  %v288 = vpack.c.b16 %v256, %v255
  %321 = vmatpush.bf16.msra.mxu0 %v264
  %322 = vmatpush.bf16.msra.mxu0 %v263
  %323 = vmatpush.bf16.msra.mxu0 %v262
  %324 = vmatpush.bf16.msra.mxu0 %v261
  %325 = vmatpush.bf16.msra.mxu0 %v260
  %326 = vmatpush.bf16.msra.mxu0 %v259
  %327 = vmatpush.bf16.msra.mxu0 %v258
  %328 = vmatpush.bf16.msra.mxu0 %v257
  %329 = vmatmul.bf16.gmra.mxu0 %v113
  %v330 = vpop.f32.mrf.mxu0
  %v331 = vadd.f32 0.0, %v330
  %v332 = vpop.f32.mrf.mxu0
  %v333 = vadd.f32 0.0, %v332
  %334 = vmatmul.bf16.gmra.mxu0 %v117
  %v335 = vpop.f32.mrf.mxu0
  %v336 = vadd.f32 0.0, %v335
  %v337 = vpop.f32.mrf.mxu0
  %v338 = vadd.f32 0.0, %v337
  %339 = vdwg.mxu0
  %340 = vmatpush.bf16.msra.mxu0 %v272
  %341 = vmatpush.bf16.msra.mxu0 %v271
  %342 = vmatpush.bf16.msra.mxu0 %v270
  %343 = vmatpush.bf16.msra.mxu0 %v269
  %344 = vmatpush.bf16.msra.mxu0 %v268
  %345 = vmatpush.bf16.msra.mxu0 %v267
  %346 = vmatpush.bf16.msra.mxu0 %v266
  %347 = vmatpush.bf16.msra.mxu0 %v265
  %348 = vmatmul.bf16.gmra.mxu0 %v114
  %v349 = vpop.f32.mrf.mxu0
  %v350 = vadd.f32 %v331, %v349
  %v351 = vpop.f32.mrf.mxu0
  %v352 = vadd.f32 %v333, %v351
  %353 = vmatmul.bf16.gmra.mxu0 %v118
  %v354 = vpop.f32.mrf.mxu0
  %v355 = vadd.f32 %v336, %v354
  %v356 = vpop.f32.mrf.mxu0
  %v357 = vadd.f32 %v338, %v356
  %358 = vdwg.mxu0
  %359 = vmatpush.bf16.msra.mxu0 %v280
  %360 = vmatpush.bf16.msra.mxu0 %v279
  %361 = vmatpush.bf16.msra.mxu0 %v278
  %362 = vmatpush.bf16.msra.mxu0 %v277
  %363 = vmatpush.bf16.msra.mxu0 %v276
  %364 = vmatpush.bf16.msra.mxu0 %v275
  %365 = vmatpush.bf16.msra.mxu0 %v274
  %366 = vmatpush.bf16.msra.mxu0 %v273
  %367 = vmatmul.bf16.gmra.mxu0 %v115
  %v368 = vpop.f32.mrf.mxu0
  %v369 = vadd.f32 %v350, %v368
  %v370 = vpop.f32.mrf.mxu0
  %v371 = vadd.f32 %v352, %v370
  %372 = vmatmul.bf16.gmra.mxu0 %v119
  %v373 = vpop.f32.mrf.mxu0
  %v374 = vadd.f32 %v355, %v373
  %v375 = vpop.f32.mrf.mxu0
  %v376 = vadd.f32 %v357, %v375
  %377 = vdwg.mxu0
  %378 = vmatpush.bf16.msra.mxu0 %v288
  %379 = vmatpush.bf16.msra.mxu0 %v287
  %380 = vmatpush.bf16.msra.mxu0 %v286
  %381 = vmatpush.bf16.msra.mxu0 %v285
  %382 = vmatpush.bf16.msra.mxu0 %v284
  %383 = vmatpush.bf16.msra.mxu0 %v283
  %384 = vmatpush.bf16.msra.mxu0 %v282
  %385 = vmatpush.bf16.msra.mxu0 %v281
  %386 = vmatmul.bf16.gmra.mxu0 %v116
  %v387 = vpop.f32.mrf.mxu0
  %v388 = vadd.f32 %v369, %v387
  %v389 = vpop.f32.mrf.mxu0
  %v390 = vadd.f32 %v371, %v389
  %391 = vmatmul.bf16.gmra.mxu0 %v120
  %v392 = vpop.f32.mrf.mxu0
  %v393 = vadd.f32 %v374, %v392
  %v394 = vpop.f32.mrf.mxu0
  %v395 = vadd.f32 %v376, %v394
  %396 = vdwg.mxu0
  %v397 = vadd.f32 %v388, %v390
  %v398 = vadd.f32 %v397, %v393
  %v399 = vadd.f32 %v398, %v395
  %v400 = vrot.slane %v399, 4
  %v401 = vadd.f32 %v399, %v400
  %v402 = vrot.slane %v401, 2
  %v403 = vadd.f32 %v401, %v402
  %v404 = vrot.slane %v403, 1
  %v405 = vadd.f32 %v403, %v404
  %v406 = vmul.f32 %v405, 0.03125
  %v407 = vsub.f32 %v388, %v406
  %v408 = vsub.f32 %v390, %v406
  %v409 = vsub.f32 %v393, %v406
  %v410 = vsub.f32 %v395, %v406
  %v411 = vmul.f32 %v407, %v407
  %v412 = vmul.f32 %v408, %v408
  %v413 = vmul.f32 %v409, %v409
  %v414 = vmul.f32 %v410, %v410
  %v415 = vadd.f32 %v411, %v412
  %v416 = vadd.f32 %v415, %v413
  %v417 = vadd.f32 %v416, %v414
  %v418 = vrot.slane %v417, 4
  %v419 = vadd.f32 %v417, %v418
  %v420 = vrot.slane %v419, 2
  %v421 = vadd.f32 %v419, %v420
  %v422 = vrot.slane %v421, 1
  %v423 = vadd.f32 %v421, %v422
  %v424 = vmul.f32 %v423, 0.03125
  %v425 = vld [vmem:[%s2] sm:$0x1]
  %v426 = vadd.f32 %v424, 1e-05
  %v427 = vrsqrt.pop %v426
  %v428 = vmul.f32 %v427, %v426
  %v429 = vmul.f32 %v428, %v427
  %v430 = vmul.f32 0.5, %v429
  %v431 = vsub.f32 1.5, %v430
  %v432 = vmul.f32 %v427, %v431
  %vm433 = vweird.f32 %v426
  %vm434 = vweird.f32 %v427
  %vm435 = vmor %vm433, %vm434
  %v436 = vsel %vm435, %v427, %v432
  %v437 = vmul.f32 %v425, %v436
  %v439 = vperm.slane %v437, 0
  %v441 = vmul.f32 %v407, %v439
  %v442 = vmul.f32 %v408, %v439
  %v443 = vmul.f32 %v409, %v439
  %v444 = vmul.f32 %v410, %v439
  %v445 = vld [vmem:[%s3] sm:$0x1]
  %v447 = vperm.slane %v445, 0
  %v449 = vadd.f32 %v441, %v447
  %v450 = vadd.f32 %v442, %v447
  %v451 = vadd.f32 %v443, %v447
  %v452 = vadd.f32 %v444, %v447
  %v453 = vmax.f32 %v449, 0.0
  %v454 = vmax.f32 %v450, 0.0
  %v455 = vmax.f32 %v451, 0.0
  %v456 = vmax.f32 %v452, 0.0
  %v457 = vpack.c.bf16 %v453, %v453
  %v458 = vpack.c.bf16 %v454, %v454
  %v459 = vpack.c.bf16 %v455, %v455
  %v460 = vpack.c.bf16 %v456, %v456
  %461 = vst [vmem:[%s4] sm:$0xf] %v457
  %462 = vst [vmem:[%s4 + $0x4] sm:$0xf] %v458
  %463 = vst [vmem:[%s4 + $0x8] sm:$0xf] %v459
  %464 = vst [vmem:[%s4 + $0xc] sm:$0xf] %v460
  // Predicated region
  $region18: #{sentence_encoder_forward.10} parent=0 // pred_check
    _
  $region19: #{sentence_encoder_forward.10} parent=0 // pred_check_branch
    %466 = sbr.rel (0) target = $region21
  $region20: #{sentence_encoder_forward.10} parent=0 // pred_region
    _
  $region21: #{sentence_encoder_forward.10} parent=0 // pred_fallthru
    _
  // Predicated region
  $region22: #{sentence_encoder_forward.10} parent=0 // pred_check
    _
  $region23: #{sentence_encoder_forward.10} parent=0 // pred_check_branch
    %468 = sbr.rel (0) target = $region25
  $region24: #{sentence_encoder_forward.10} parent=0 // pred_region
    _
  $region25: #{sentence_encoder_forward.10} parent=0 // pred_fallthru
    _

// kernel: sentence_encoder_forward.11
$region0: #{sentence_encoder_forward.11}
  #allocation0 [shape = 'u32[]', space=smem, size = 0x4, offset = 0x4, fixed_abs, tag = 'smem constant byte address 0x4 - core index']
  #allocation1 [shape = 'u32[72,128]{1,0:T(1,128)}', space=vmem, size = 0x9000, scoped, tag = 'internal scratch']
  %s0 = inlined_call_operand.vmem [shape: bf16[8,2048], index: 0, kind: input, shape index: {}]
  %s1 = inlined_call_operand.vmem [shape: bf16[2048,128], index: 1, kind: input, shape index: {}]
  %s2 = inlined_call_operand.vmem [shape: f32[8,128], index: 2, kind: output, shape index: {}]
  %s3 = sld [smem:[#allocation0]]
  $region18: #{sentence_encoder_forward.11} parent=0
    _
  %s5 = ssub.s32 1, %s3
  %s6 = scalar_select 0, %s5, %s3
  // Predicated region
  $region2: #{sentence_encoder_forward.11} parent=0 // pred_check
    _
  $region3: #{sentence_encoder_forward.11} parent=0 // pred_check_branch
    %8 = sbr.rel (0) target = $region5
  $region4: #{sentence_encoder_forward.11} parent=0 // pred_region
    _
  $region5: #{sentence_encoder_forward.11} parent=0 // pred_fallthru
    _
  // Predicated region
  $region6: #{sentence_encoder_forward.11} parent=0 // pred_check
    _
  $region7: #{sentence_encoder_forward.11} parent=0 // pred_check_branch
    %10 = sbr.rel (0) target = $region9
  $region8: #{sentence_encoder_forward.11} parent=0 // pred_region
    _
  $region9: #{sentence_encoder_forward.11} parent=0 // pred_fallthru
    _
  %v11 = vld [vmem:[%s0] sm:$0xff]
  %v12 = vld [vmem:[%s0 + $0x8] sm:$0xff]
  %v13 = vld [vmem:[%s0 + $0x10] sm:$0xff]
  %v14 = vld [vmem:[%s0 + $0x18] sm:$0xff]
  %v15 = vld [vmem:[%s0 + $0x20] sm:$0xff]
  %v16 = vld [vmem:[%s0 + $0x28] sm:$0xff]
  %v17 = vld [vmem:[%s0 + $0x30] sm:$0xff]
  %v18 = vld [vmem:[%s0 + $0x38] sm:$0xff]
  %v19 = vld [vmem:[%s1] sm:$0xf]
  %v20 = vld [vmem:[%s1 + $0x4] sm:$0xf]
  %v21 = vld [vmem:[%s1 + $0x8] sm:$0xf]
  %v22 = vld [vmem:[%s1 + $0xc] sm:$0xf]
  %v23 = vld [vmem:[%s1 + $0x10] sm:$0xf]
  %v24 = vld [vmem:[%s1 + $0x14] sm:$0xf]
  %v25 = vld [vmem:[%s1 + $0x18] sm:$0xf]
  %v26 = vld [vmem:[%s1 + $0x1c] sm:$0xf]
  %v27 = vld [vmem:[%s1 + $0x20] sm:$0xf]
  %v28 = vld [vmem:[%s1 + $0x24] sm:$0xf]
  %v29 = vld [vmem:[%s1 + $0x28] sm:$0xf]
  %v30 = vld [vmem:[%s1 + $0x2c] sm:$0xf]
  %v31 = vld [vmem:[%s1 + $0x30] sm:$0xf]
  %v32 = vld [vmem:[%s1 + $0x34] sm:$0xf]
  %v33 = vld [vmem:[%s1 + $0x38] sm:$0xf]
  %v34 = vld [vmem:[%s1 + $0x3c] sm:$0xf]
  %v35 = vld [vmem:[%s1 + $0x40] sm:$0xf]
  %v36 = vld [vmem:[%s1 + $0x44] sm:$0xf]
  %v37 = vld [vmem:[%s1 + $0x48] sm:$0xf]
  %v38 = vld [vmem:[%s1 + $0x4c] sm:$0xf]
  %v39 = vld [vmem:[%s1 + $0x50] sm:$0xf]
  %v40 = vld [vmem:[%s1 + $0x54] sm:$0xf]
  %v41 = vld [vmem:[%s1 + $0x58] sm:$0xf]
  %v42 = vld [vmem:[%s1 + $0x5c] sm:$0xf]
  %v43 = vld [vmem:[%s1 + $0x60] sm:$0xf]
  %v44 = vld [vmem:[%s1 + $0x64] sm:$0xf]
  %v45 = vld [vmem:[%s1 + $0x68] sm:$0xf]
  %v46 = vld [vmem:[%s1 + $0x6c] sm:$0xf]
  %v47 = vld [vmem:[%s1 + $0x70] sm:$0xf]
  %v48 = vld [vmem:[%s1 + $0x74] sm:$0xf]
  %v49 = vld [vmem:[%s1 + $0x78] sm:$0xf]
  %v50 = vld [vmem:[%s1 + $0x7c] sm:$0xf]
  %v51 = vld [vmem:[%s1 + $0x80] sm:$0xf]
  %v52 = vld [vmem:[%s1 + $0x84] sm:$0xf]
  %v53 = vld [vmem:[%s1 + $0x88] sm:$0xf]
  %v54 = vld [vmem:[%s1 + $0x8c] sm:$0xf]
  %v55 = vld [vmem:[%s1 + $0x90] sm:$0xf]
  %v56 = vld [vmem:[%s1 + $0x94] sm:$0xf]
  %v57 = vld [vmem:[%s1 + $0x98] sm:$0xf]
  %v58 = vld [vmem:[%s1 + $0x9c] sm:$0xf]
  %v59 = vld [vmem:[%s1 + $0xa0] sm:$0xf]
  %v60 = vld [vmem:[%s1 + $0xa4] sm:$0xf]
  %v61 = vld [vmem:[%s1 + $0xa8] sm:$0xf]
  %v62 = vld [vmem:[%s1 + $0xac] sm:$0xf]
  %v63 = vld [vmem:[%s1 + $0xb0] sm:$0xf]
  %v64 = vld [vmem:[%s1 + $0xb4] sm:$0xf]
  %v65 = vld [vmem:[%s1 + $0xb8] sm:$0xf]
  %v66 = vld [vmem:[%s1 + $0xbc] sm:$0xf]
  %v67 = vld [vmem:[%s1 + $0xc0] sm:$0xf]
  %v68 = vld [vmem:[%s1 + $0xc4] sm:$0xf]
  %v69 = vld [vmem:[%s1 + $0xc8] sm:$0xf]
  %v70 = vld [vmem:[%s1 + $0xcc] sm:$0xf]
  %v71 = vld [vmem:[%s1 + $0xd0] sm:$0xf]
  %v72 = vld [vmem:[%s1 + $0xd4] sm:$0xf]
  %v73 = vld [vmem:[%s1 + $0xd8] sm:$0xf]
  %v74 = vld [vmem:[%s1 + $0xdc] sm:$0xf]
  %v75 = vld [vmem:[%s1 + $0xe0] sm:$0xf]
  %v76 = vld [vmem:[%s1 + $0xe4] sm:$0xf]
  %v77 = vld [vmem:[%s1 + $0xe8] sm:$0xf]
  %v78 = vld [vmem:[%s1 + $0xec] sm:$0xf]
  %v79 = vld [vmem:[%s1 + $0xf0] sm:$0xf]
  %v80 = vld [vmem:[%s1 + $0xf4] sm:$0xf]
  %v81 = vld [vmem:[%s1 + $0xf8] sm:$0xf]
  %v82 = vld [vmem:[%s1 + $0xfc] sm:$0xf]
  %v83 = vld [vmem:[%s1 + $0x100] sm:$0xf]
  %v84 = vld [vmem:[%s1 + $0x104] sm:$0xf]
  %v85 = vld [vmem:[%s1 + $0x108] sm:$0xf]
  %v86 = vld [vmem:[%s1 + $0x10c] sm:$0xf]
  %v87 = vld [vmem:[%s1 + $0x110] sm:$0xf]
  %v88 = vld [vmem:[%s1 + $0x114] sm:$0xf]
  %v89 = vld [vmem:[%s1 + $0x118] sm:$0xf]
  %v90 = vld [vmem:[%s1 + $0x11c] sm:$0xf]
  %v91 = vld [vmem:[%s1 + $0x120] sm:$0xf]
  %v92 = vld [vmem:[%s1 + $0x124] sm:$0xf]
  %v93 = vld [vmem:[%s1 + $0x128] sm:$0xf]
  %v94 = vld [vmem:[%s1 + $0x12c] sm:$0xf]
  %v95 = vld [vmem:[%s1 + $0x130] sm:$0xf]
  %v96 = vld [vmem:[%s1 + $0x134] sm:$0xf]
  %v97 = vld [vmem:[%s1 + $0x138] sm:$0xf]
  %v98 = vld [vmem:[%s1 + $0x13c] sm:$0xf]
  %v99 = vld [vmem:[%s1 + $0x140] sm:$0xf]
  %v100 = vld [vmem:[%s1 + $0x144] sm:$0xf]
  %v101 = vld [vmem:[%s1 + $0x148] sm:$0xf]
  %v102 = vld [vmem:[%s1 + $0x14c] sm:$0xf]
  %v103 = vld [vmem:[%s1 + $0x150] sm:$0xf]
  %v104 = vld [vmem:[%s1 + $0x154] sm:$0xf]
  %v105 = vld [vmem:[%s1 + $0x158] sm:$0xf]
  %v106 = vld [vmem:[%s1 + $0x15c] sm:$0xf]
  %v107 = vld [vmem:[%s1 + $0x160] sm:$0xf]
  %v108 = vld [vmem:[%s1 + $0x164] sm:$0xf]
  %v109 = vld [vmem:[%s1 + $0x168] sm:$0xf]
  %v110 = vld [vmem:[%s1 + $0x16c] sm:$0xf]
  %v111 = vld [vmem:[%s1 + $0x170] sm:$0xf]
  %v112 = vld [vmem:[%s1 + $0x174] sm:$0xf]
  %v113 = vld [vmem:[%s1 + $0x178] sm:$0xf]
  %v114 = vld [vmem:[%s1 + $0x17c] sm:$0xf]
  %v115 = vld [vmem:[%s1 + $0x180] sm:$0xf]
  %v116 = vld [vmem:[%s1 + $0x184] sm:$0xf]
  %v117 = vld [vmem:[%s1 + $0x188] sm:$0xf]
  %v118 = vld [vmem:[%s1 + $0x18c] sm:$0xf]
  %v119 = vld [vmem:[%s1 + $0x190] sm:$0xf]
  %v120 = vld [vmem:[%s1 + $0x194] sm:$0xf]
  %v121 = vld [vmem:[%s1 + $0x198] sm:$0xf]
  %v122 = vld [vmem:[%s1 + $0x19c] sm:$0xf]
  %v123 = vld [vmem:[%s1 + $0x1a0] sm:$0xf]
  %v124 = vld [vmem:[%s1 + $0x1a4] sm:$0xf]
  %v125 = vld [vmem:[%s1 + $0x1a8] sm:$0xf]
  %v126 = vld [vmem:[%s1 + $0x1ac] sm:$0xf]
  %v127 = vld [vmem:[%s1 + $0x1b0] sm:$0xf]
  %v128 = vld [vmem:[%s1 + $0x1b4] sm:$0xf]
  %v129 = vld [vmem:[%s1 + $0x1b8] sm:$0xf]
  %v130 = vld [vmem:[%s1 + $0x1bc] sm:$0xf]
  %v131 = vld [vmem:[%s1 + $0x1c0] sm:$0xf]
  %v132 = vld [vmem:[%s1 + $0x1c4] sm:$0xf]
  %v133 = vld [vmem:[%s1 + $0x1c8] sm:$0xf]
  %v134 = vld [vmem:[%s1 + $0x1cc] sm:$0xf]
  %v135 = vld [vmem:[%s1 + $0x1d0] sm:$0xf]
  %v136 = vld [vmem:[%s1 + $0x1d4] sm:$0xf]
  %v137 = vld [vmem:[%s1 + $0x1d8] sm:$0xf]
  %v138 = vld [vmem:[%s1 + $0x1dc] sm:$0xf]
  %v139 = vld [vmem:[%s1 + $0x1e0] sm:$0xf]
  %v140 = vld [vmem:[%s1 + $0x1e4] sm:$0xf]
  %v141 = vld [vmem:[%s1 + $0x1e8] sm:$0xf]
  %v142 = vld [vmem:[%s1 + $0x1ec] sm:$0xf]
  %v143 = vld [vmem:[%s1 + $0x1f0] sm:$0xf]
  %v144 = vld [vmem:[%s1 + $0x1f4] sm:$0xf]
  %v145 = vld [vmem:[%s1 + $0x1f8] sm:$0xf]
  %v146 = vld [vmem:[%s1 + $0x1fc] sm:$0xf]
  %v147 = vld [vmem:[%s1 + $0x200] sm:$0xf]
  %v148 = vld [vmem:[%s1 + $0x204] sm:$0xf]
  %v149 = vld [vmem:[%s1 + $0x208] sm:$0xf]
  %v150 = vld [vmem:[%s1 + $0x20c] sm:$0xf]
  %v151 = vld [vmem:[%s1 + $0x210] sm:$0xf]
  %v152 = vld [vmem:[%s1 + $0x214] sm:$0xf]
  %v153 = vld [vmem:[%s1 + $0x218] sm:$0xf]
  %v154 = vld [vmem:[%s1 + $0x21c] sm:$0xf]
  %v155 = vld [vmem:[%s1 + $0x220] sm:$0xf]
  %v156 = vld [vmem:[%s1 + $0x224] sm:$0xf]
  %v157 = vld [vmem:[%s1 + $0x228] sm:$0xf]
  %v158 = vld [vmem:[%s1 + $0x22c] sm:$0xf]
  %v159 = vld [vmem:[%s1 + $0x230] sm:$0xf]
  %v160 = vld [vmem:[%s1 + $0x234] sm:$0xf]
  %v161 = vld [vmem:[%s1 + $0x238] sm:$0xf]
  %v162 = vld [vmem:[%s1 + $0x23c] sm:$0xf]
  %v163 = vld [vmem:[%s1 + $0x240] sm:$0xf]
  %v164 = vld [vmem:[%s1 + $0x244] sm:$0xf]
  %v165 = vld [vmem:[%s1 + $0x248] sm:$0xf]
  %v166 = vld [vmem:[%s1 + $0x24c] sm:$0xf]
  %v167 = vld [vmem:[%s1 + $0x250] sm:$0xf]
  %v168 = vld [vmem:[%s1 + $0x254] sm:$0xf]
  %v169 = vld [vmem:[%s1 + $0x258] sm:$0xf]
  %v170 = vld [vmem:[%s1 + $0x25c] sm:$0xf]
  %v171 = vld [vmem:[%s1 + $0x260] sm:$0xf]
  %v172 = vld [vmem:[%s1 + $0x264] sm:$0xf]
  %v173 = vld [vmem:[%s1 + $0x268] sm:$0xf]
  %v174 = vld [vmem:[%s1 + $0x26c] sm:$0xf]
  %v175 = vld [vmem:[%s1 + $0x270] sm:$0xf]
  %v176 = vld [vmem:[%s1 + $0x274] sm:$0xf]
  %v177 = vld [vmem:[%s1 + $0x278] sm:$0xf]
  %v178 = vld [vmem:[%s1 + $0x27c] sm:$0xf]
  %v179 = vld [vmem:[%s1 + $0x280] sm:$0xf]
  %v180 = vld [vmem:[%s1 + $0x284] sm:$0xf]
  %v181 = vld [vmem:[%s1 + $0x288] sm:$0xf]
  %v182 = vld [vmem:[%s1 + $0x28c] sm:$0xf]
  %v183 = vld [vmem:[%s1 + $0x290] sm:$0xf]
  %v184 = vld [vmem:[%s1 + $0x294] sm:$0xf]
  %v185 = vld [vmem:[%s1 + $0x298] sm:$0xf]
  %v186 = vld [vmem:[%s1 + $0x29c] sm:$0xf]
  %v187 = vld [vmem:[%s1 + $0x2a0] sm:$0xf]
  %v188 = vld [vmem:[%s1 + $0x2a4] sm:$0xf]
  %v189 = vld [vmem:[%s1 + $0x2a8] sm:$0xf]
  %v190 = vld [vmem:[%s1 + $0x2ac] sm:$0xf]
  %v191 = vld [vmem:[%s1 + $0x2b0] sm:$0xf]
  %v192 = vld [vmem:[%s1 + $0x2b4] sm:$0xf]
  %v193 = vld [vmem:[%s1 + $0x2b8] sm:$0xf]
  %v194 = vld [vmem:[%s1 + $0x2bc] sm:$0xf]
  %v195 = vld [vmem:[%s1 + $0x2c0] sm:$0xf]
  %v196 = vld [vmem:[%s1 + $0x2c4] sm:$0xf]
  %v197 = vld [vmem:[%s1 + $0x2c8] sm:$0xf]
  %v198 = vld [vmem:[%s1 + $0x2cc] sm:$0xf]
  %v199 = vld [vmem:[%s1 + $0x2d0] sm:$0xf]
  %v200 = vld [vmem:[%s1 + $0x2d4] sm:$0xf]
  %v201 = vld [vmem:[%s1 + $0x2d8] sm:$0xf]
  %v202 = vld [vmem:[%s1 + $0x2dc] sm:$0xf]
  %v203 = vld [vmem:[%s1 + $0x2e0] sm:$0xf]
  %v204 = vld [vmem:[%s1 + $0x2e4] sm:$0xf]
  %v205 = vld [vmem:[%s1 + $0x2e8] sm:$0xf]
  %v206 = vld [vmem:[%s1 + $0x2ec] sm:$0xf]
  %v207 = vld [vmem:[%s1 + $0x2f0] sm:$0xf]
  %v208 = vld [vmem:[%s1 + $0x2f4] sm:$0xf]
  %v209 = vld [vmem:[%s1 + $0x2f8] sm:$0xf]
  %v210 = vld [vmem:[%s1 + $0x2fc] sm:$0xf]
  %v211 = vld [vmem:[%s1 + $0x300] sm:$0xf]
  %v212 = vld [vmem:[%s1 + $0x304] sm:$0xf]
  %v213 = vld [vmem:[%s1 + $0x308] sm:$0xf]
  %v214 = vld [vmem:[%s1 + $0x30c] sm:$0xf]
  %v215 = vld [vmem:[%s1 + $0x310] sm:$0xf]
  %v216 = vld [vmem:[%s1 + $0x314] sm:$0xf]
  %v217 = vld [vmem:[%s1 + $0x318] sm:$0xf]
  %v218 = vld [vmem:[%s1 + $0x31c] sm:$0xf]
  %v219 = vld [vmem:[%s1 + $0x320] sm:$0xf]
  %v220 = vld [vmem:[%s1 + $0x324] sm:$0xf]
  %v221 = vld [vmem:[%s1 + $0x328] sm:$0xf]
  %v222 = vld [vmem:[%s1 + $0x32c] sm:$0xf]
  %v223 = vld [vmem:[%s1 + $0x330] sm:$0xf]
  %v224 = vld [vmem:[%s1 + $0x334] sm:$0xf]
  %v225 = vld [vmem:[%s1 + $0x338] sm:$0xf]
  %v226 = vld [vmem:[%s1 + $0x33c] sm:$0xf]
  %v227 = vld [vmem:[%s1 + $0x340] sm:$0xf]
  %v228 = vld [vmem:[%s1 + $0x344] sm:$0xf]
  %v229 = vld [vmem:[%s1 + $0x348] sm:$0xf]
  %v230 = vld [vmem:[%s1 + $0x34c] sm:$0xf]
  %v231 = vld [vmem:[%s1 + $0x350] sm:$0xf]
  %v232 = vld [vmem:[%s1 + $0x354] sm:$0xf]
  %v233 = vld [vmem:[%s1 + $0x358] sm:$0xf]
  %v234 = vld [vmem:[%s1 + $0x35c] sm:$0xf]
  %v235 = vld [vmem:[%s1 + $0x360] sm:$0xf]
  %v236 = vld [vmem:[%s1 + $0x364] sm:$0xf]
  %v237 = vld [vmem:[%s1 + $0x368] sm:$0xf]
  %v238 = vld [vmem:[%s1 + $0x36c] sm:$0xf]
  %v239 = vld [vmem:[%s1 + $0x370] sm:$0xf]
  %v240 = vld [vmem:[%s1 + $0x374] sm:$0xf]
  %v241 = vld [vmem:[%s1 + $0x378] sm:$0xf]
  %v242 = vld [vmem:[%s1 + $0x37c] sm:$0xf]
  %v243 = vld [vmem:[%s1 + $0x380] sm:$0xf]
  %v244 = vld [vmem:[%s1 + $0x384] sm:$0xf]
  %v245 = vld [vmem:[%s1 + $0x388] sm:$0xf]
  %v246 = vld [vmem:[%s1 + $0x38c] sm:$0xf]
  %v247 = vld [vmem:[%s1 + $0x390] sm:$0xf]
  %v248 = vld [vmem:[%s1 + $0x394] sm:$0xf]
  %v249 = vld [vmem:[%s1 + $0x398] sm:$0xf]
  %v250 = vld [vmem:[%s1 + $0x39c] sm:$0xf]
  %v251 = vld [vmem:[%s1 + $0x3a0] sm:$0xf]
  %v252 = vld [vmem:[%s1 + $0x3a4] sm:$0xf]
  %v253 = vld [vmem:[%s1 + $0x3a8] sm:$0xf]
  %v254 = vld [vmem:[%s1 + $0x3ac] sm:$0xf]
  %v255 = vld [vmem:[%s1 + $0x3b0] sm:$0xf]
  %v256 = vld [vmem:[%s1 + $0x3b4] sm:$0xf]
  %v257 = vld [vmem:[%s1 + $0x3b8] sm:$0xf]
  %v258 = vld [vmem:[%s1 + $0x3bc] sm:$0xf]
  %v259 = vld [vmem:[%s1 + $0x3c0] sm:$0xf]
  %v260 = vld [vmem:[%s1 + $0x3c4] sm:$0xf]
  %v261 = vld [vmem:[%s1 + $0x3c8] sm:$0xf]
  %v262 = vld [vmem:[%s1 + $0x3cc] sm:$0xf]
  %v263 = vld [vmem:[%s1 + $0x3d0] sm:$0xf]
  %v264 = vld [vmem:[%s1 + $0x3d4] sm:$0xf]
  %v265 = vld [vmem:[%s1 + $0x3d8] sm:$0xf]
  %v266 = vld [vmem:[%s1 + $0x3dc] sm:$0xf]
  %v267 = vld [vmem:[%s1 + $0x3e0] sm:$0xf]
  %v268 = vld [vmem:[%s1 + $0x3e4] sm:$0xf]
  %v269 = vld [vmem:[%s1 + $0x3e8] sm:$0xf]
  %v270 = vld [vmem:[%s1 + $0x3ec] sm:$0xf]
  %v271 = vld [vmem:[%s1 + $0x3f0] sm:$0xf]
  %v272 = vld [vmem:[%s1 + $0x3f4] sm:$0xf]
  %v273 = vld [vmem:[%s1 + $0x3f8] sm:$0xf]
  %v274 = vld [vmem:[%s1 + $0x3fc] sm:$0xf]
  %v283 = vunpack.c.l.b16 %v11
  %v284 = vunpack.c.h.b16 %v11
  %v285 = vunpack.c.l.b16 %v12
  %v286 = vunpack.c.h.b16 %v12
  %v287 = vunpack.c.l.b16 %v13
  %v288 = vunpack.c.h.b16 %v13
  %v289 = vunpack.c.l.b16 %v14
  %v290 = vunpack.c.h.b16 %v14
  %v291 = vunpack.c.l.b16 %v15
  %v292 = vunpack.c.h.b16 %v15
  %v293 = vunpack.c.l.b16 %v16
  %v294 = vunpack.c.h.b16 %v16
  %v295 = vunpack.c.l.b16 %v17
  %v296 = vunpack.c.h.b16 %v17
  %v297 = vunpack.c.l.b16 %v18
  %v298 = vunpack.c.h.b16 %v18
  %v299 = vpack.c.b16 %v283, %v283
  %v300 = vpack.c.b16 %v284, %v284
  %v301 = vpack.c.b16 %v285, %v285
  %v302 = vpack.c.b16 %v286, %v286
  %v303 = vpack.c.b16 %v287, %v287
  %v304 = vpack.c.b16 %v288, %v288
  %v305 = vpack.c.b16 %v289, %v289
  %v306 = vpack.c.b16 %v290, %v290
  %v307 = vpack.c.b16 %v291, %v291
  %v308 = vpack.c.b16 %v292, %v292
  %v309 = vpack.c.b16 %v293, %v293
  %v310 = vpack.c.b16 %v294, %v294
  %v311 = vpack.c.b16 %v295, %v295
  %v312 = vpack.c.b16 %v296, %v296
  %v313 = vpack.c.b16 %v297, %v297
  %v314 = vpack.c.b16 %v298, %v298
  %v587 = vunpack.c.l.b16 %v19
  %v588 = vunpack.c.l.b16 %v20
  %v589 = vunpack.c.l.b16 %v21
  %v590 = vunpack.c.l.b16 %v22
  %v591 = vunpack.c.l.b16 %v23
  %v592 = vunpack.c.l.b16 %v24
  %v593 = vunpack.c.l.b16 %v25
  %v594 = vunpack.c.l.b16 %v26
  %v595 = vunpack.c.l.b16 %v27
  %v596 = vunpack.c.l.b16 %v28
  %v597 = vunpack.c.l.b16 %v29
  %v598 = vunpack.c.l.b16 %v30
  %v599 = vunpack.c.l.b16 %v31
  %v600 = vunpack.c.l.b16 %v32
  %v601 = vunpack.c.l.b16 %v33
  %v602 = vunpack.c.l.b16 %v34
  %v603 = vunpack.c.l.b16 %v35
  %v604 = vunpack.c.l.b16 %v36
  %v605 = vunpack.c.l.b16 %v37
  %v606 = vunpack.c.l.b16 %v38
  %v607 = vunpack.c.l.b16 %v39
  %v608 = vunpack.c.l.b16 %v40
  %v609 = vunpack.c.l.b16 %v41
  %v610 = vunpack.c.l.b16 %v42
  %v611 = vunpack.c.l.b16 %v43
  %v612 = vunpack.c.l.b16 %v44
  %v613 = vunpack.c.l.b16 %v45
  %v614 = vunpack.c.l.b16 %v46
  %v615 = vunpack.c.l.b16 %v47
  %v616 = vunpack.c.l.b16 %v48
  %v617 = vunpack.c.l.b16 %v49
  %v618 = vunpack.c.l.b16 %v50
  %v619 = vunpack.c.l.b16 %v51
  %v620 = vunpack.c.l.b16 %v52
  %v621 = vunpack.c.l.b16 %v53
  %v622 = vunpack.c.l.b16 %v54
  %v623 = vunpack.c.l.b16 %v55
  %v624 = vunpack.c.l.b16 %v56
  %v625 = vunpack.c.l.b16 %v57
  %v626 = vunpack.c.l.b16 %v58
  %v627 = vunpack.c.l.b16 %v59
  %v628 = vunpack.c.l.b16 %v60
  %v629 = vunpack.c.l.b16 %v61
  %v630 = vunpack.c.l.b16 %v62
  %v631 = vunpack.c.l.b16 %v63
  %v632 = vunpack.c.l.b16 %v64
  %v633 = vunpack.c.l.b16 %v65
  %v634 = vunpack.c.l.b16 %v66
  %v635 = vunpack.c.l.b16 %v67
  %v636 = vunpack.c.l.b16 %v68
  %v637 = vunpack.c.l.b16 %v69
  %v638 = vunpack.c.l.b16 %v70
  %v639 = vunpack.c.l.b16 %v71
  %v640 = vunpack.c.l.b16 %v72
  %v641 = vunpack.c.l.b16 %v73
  %v642 = vunpack.c.l.b16 %v74
  %v643 = vunpack.c.l.b16 %v75
  %v644 = vunpack.c.l.b16 %v76
  %v645 = vunpack.c.l.b16 %v77
  %v646 = vunpack.c.l.b16 %v78
  %v647 = vunpack.c.l.b16 %v79
  %v648 = vunpack.c.l.b16 %v80
  %v649 = vunpack.c.l.b16 %v81
  %v650 = vunpack.c.l.b16 %v82
  %v651 = vunpack.c.l.b16 %v83
  %v652 = vunpack.c.l.b16 %v84
  %v653 = vunpack.c.l.b16 %v85
  %v654 = vunpack.c.l.b16 %v86
  %v655 = vunpack.c.l.b16 %v87
  %v656 = vunpack.c.l.b16 %v88
  %v657 = vunpack.c.l.b16 %v89
  %v658 = vunpack.c.l.b16 %v90
  %v659 = vunpack.c.l.b16 %v91
  %v660 = vunpack.c.l.b16 %v92
  %v661 = vunpack.c.l.b16 %v93
  %v662 = vunpack.c.l.b16 %v94
  %v663 = vunpack.c.l.b16 %v95
  %v664 = vunpack.c.l.b16 %v96
  %v665 = vunpack.c.l.b16 %v97
  %v666 = vunpack.c.l.b16 %v98
  %v667 = vunpack.c.l.b16 %v99
  %v668 = vunpack.c.l.b16 %v100
  %v669 = vunpack.c.l.b16 %v101
  %v670 = vunpack.c.l.b16 %v102
  %v671 = vunpack.c.l.b16 %v103
  %v672 = vunpack.c.l.b16 %v104
  %v673 = vunpack.c.l.b16 %v105
  %v674 = vunpack.c.l.b16 %v106
  %v675 = vunpack.c.l.b16 %v107
  %v676 = vunpack.c.l.b16 %v108
  %v677 = vunpack.c.l.b16 %v109
  %v678 = vunpack.c.l.b16 %v110
  %v679 = vunpack.c.l.b16 %v111
  %v680 = vunpack.c.l.b16 %v112
  %v681 = vunpack.c.l.b16 %v113
  %v682 = vunpack.c.l.b16 %v114
  %v683 = vunpack.c.l.b16 %v115
  %v684 = vunpack.c.l.b16 %v116
  %v685 = vunpack.c.l.b16 %v117
  %v686 = vunpack.c.l.b16 %v118
  %v687 = vunpack.c.l.b16 %v119
  %v688 = vunpack.c.l.b16 %v120
  %v689 = vunpack.c.l.b16 %v121
  %v690 = vunpack.c.l.b16 %v122
  %v691 = vunpack.c.l.b16 %v123
  %v692 = vunpack.c.l.b16 %v124
  %v693 = vunpack.c.l.b16 %v125
  %v694 = vunpack.c.l.b16 %v126
  %v695 = vunpack.c.l.b16 %v127
  %v696 = vunpack.c.l.b16 %v128
  %v697 = vunpack.c.l.b16 %v129
  %v698 = vunpack.c.l.b16 %v130
  %v699 = vunpack.c.l.b16 %v131
  %v700 = vunpack.c.l.b16 %v132
  %v701 = vunpack.c.l.b16 %v133
  %v702 = vunpack.c.l.b16 %v134
  %v703 = vunpack.c.l.b16 %v135
  %v704 = vunpack.c.l.b16 %v136
  %v705 = vunpack.c.l.b16 %v137
  %v706 = vunpack.c.l.b16 %v138
  %v707 = vunpack.c.l.b16 %v139
  %v708 = vunpack.c.l.b16 %v140
  %v709 = vunpack.c.l.b16 %v141
  %v710 = vunpack.c.l.b16 %v142
  %v711 = vunpack.c.l.b16 %v143
  %v712 = vunpack.c.l.b16 %v144
  %v713 = vunpack.c.l.b16 %v145
  %v714 = vunpack.c.l.b16 %v146
  %v715 = vunpack.c.l.b16 %v147
  %v716 = vunpack.c.l.b16 %v148
  %v717 = vunpack.c.l.b16 %v149
  %v718 = vunpack.c.l.b16 %v150
  %v719 = vunpack.c.l.b16 %v151
  %v720 = vunpack.c.l.b16 %v152
  %v721 = vunpack.c.l.b16 %v153
  %v722 = vunpack.c.l.b16 %v154
  %v723 = vunpack.c.l.b16 %v155
  %v724 = vunpack.c.l.b16 %v156
  %v725 = vunpack.c.l.b16 %v157
  %v726 = vunpack.c.l.b16 %v158
  %v727 = vunpack.c.l.b16 %v159
  %v728 = vunpack.c.l.b16 %v160
  %v729 = vunpack.c.l.b16 %v161
  %v730 = vunpack.c.l.b16 %v162
  %v731 = vunpack.c.l.b16 %v163
  %v732 = vunpack.c.l.b16 %v164
  %v733 = vunpack.c.l.b16 %v165
  %v734 = vunpack.c.l.b16 %v166
  %v735 = vunpack.c.l.b16 %v167
  %v736 = vunpack.c.l.b16 %v168
  %v737 = vunpack.c.l.b16 %v169
  %v738 = vunpack.c.l.b16 %v170
  %v739 = vunpack.c.l.b16 %v171
  %v740 = vunpack.c.l.b16 %v172
  %v741 = vunpack.c.l.b16 %v173
  %v742 = vunpack.c.l.b16 %v174
  %v743 = vunpack.c.l.b16 %v175
  %v744 = vunpack.c.l.b16 %v176
  %v745 = vunpack.c.l.b16 %v177
  %v746 = vunpack.c.l.b16 %v178
  %v747 = vunpack.c.l.b16 %v179
  %v748 = vunpack.c.l.b16 %v180
  %v749 = vunpack.c.l.b16 %v181
  %v750 = vunpack.c.l.b16 %v182
  %v751 = vunpack.c.l.b16 %v183
  %v752 = vunpack.c.l.b16 %v184
  %v753 = vunpack.c.l.b16 %v185
  %v754 = vunpack.c.l.b16 %v186
  %v755 = vunpack.c.l.b16 %v187
  %v756 = vunpack.c.l.b16 %v188
  %v757 = vunpack.c.l.b16 %v189
  %v758 = vunpack.c.l.b16 %v190
  %v759 = vunpack.c.l.b16 %v191
  %v760 = vunpack.c.l.b16 %v192
  %v761 = vunpack.c.l.b16 %v193
  %v762 = vunpack.c.l.b16 %v194
  %v763 = vunpack.c.l.b16 %v195
  %v764 = vunpack.c.l.b16 %v196
  %v765 = vunpack.c.l.b16 %v197
  %v766 = vunpack.c.l.b16 %v198
  %v767 = vunpack.c.l.b16 %v199
  %v768 = vunpack.c.l.b16 %v200
  %v769 = vunpack.c.l.b16 %v201
  %v770 = vunpack.c.l.b16 %v202
  %v771 = vunpack.c.l.b16 %v203
  %v772 = vunpack.c.l.b16 %v204
  %v773 = vunpack.c.l.b16 %v205
  %v774 = vunpack.c.l.b16 %v206
  %v775 = vunpack.c.l.b16 %v207
  %v776 = vunpack.c.l.b16 %v208
  %v777 = vunpack.c.l.b16 %v209
  %v778 = vunpack.c.l.b16 %v210
  %v779 = vunpack.c.l.b16 %v211
  %v780 = vunpack.c.l.b16 %v212
  %v781 = vunpack.c.l.b16 %v213
  %v782 = vunpack.c.l.b16 %v214
  %v783 = vunpack.c.l.b16 %v215
  %v784 = vunpack.c.l.b16 %v216
  %v785 = vunpack.c.l.b16 %v217
  %v786 = vunpack.c.l.b16 %v218
  %v787 = vunpack.c.l.b16 %v219
  %v788 = vunpack.c.l.b16 %v220
  %v789 = vunpack.c.l.b16 %v221
  %v790 = vunpack.c.l.b16 %v222
  %v791 = vunpack.c.l.b16 %v223
  %v792 = vunpack.c.l.b16 %v224
  %v793 = vunpack.c.l.b16 %v225
  %v794 = vunpack.c.l.b16 %v226
  %v795 = vunpack.c.l.b16 %v227
  %v796 = vunpack.c.l.b16 %v228
  %v797 = vunpack.c.l.b16 %v229
  %v798 = vunpack.c.l.b16 %v230
  %v799 = vunpack.c.l.b16 %v231
  %v800 = vunpack.c.l.b16 %v232
  %v801 = vunpack.c.l.b16 %v233
  %v802 = vunpack.c.l.b16 %v234
  %v803 = vunpack.c.l.b16 %v235
  %v804 = vunpack.c.l.b16 %v236
  %v805 = vunpack.c.l.b16 %v237
  %v806 = vunpack.c.l.b16 %v238
  %v807 = vunpack.c.l.b16 %v239
  %v808 = vunpack.c.l.b16 %v240
  %v809 = vunpack.c.l.b16 %v241
  %v810 = vunpack.c.l.b16 %v242
  %v811 = vunpack.c.l.b16 %v243
  %v812 = vunpack.c.l.b16 %v244
  %v813 = vunpack.c.l.b16 %v245
  %v814 = vunpack.c.l.b16 %v246
  %v815 = vunpack.c.l.b16 %v247
  %v816 = vunpack.c.l.b16 %v248
  %v817 = vunpack.c.l.b16 %v249
  %v818 = vunpack.c.l.b16 %v250
  %v819 = vunpack.c.l.b16 %v251
  %v820 = vunpack.c.l.b16 %v252
  %v821 = vunpack.c.l.b16 %v253
  %v822 = vunpack.c.l.b16 %v254
  %v823 = vunpack.c.l.b16 %v255
  %v824 = vunpack.c.l.b16 %v256
  %v825 = vunpack.c.l.b16 %v257
  %v826 = vunpack.c.l.b16 %v258
  %v827 = vunpack.c.l.b16 %v259
  %v828 = vunpack.c.l.b16 %v260
  %v829 = vunpack.c.l.b16 %v261
  %v830 = vunpack.c.l.b16 %v262
  %v831 = vunpack.c.l.b16 %v263
  %v832 = vunpack.c.l.b16 %v264
  %v833 = vunpack.c.l.b16 %v265
  %v834 = vunpack.c.l.b16 %v266
  %v835 = vunpack.c.l.b16 %v267
  %v836 = vunpack.c.l.b16 %v268
  %v837 = vunpack.c.l.b16 %v269
  %v838 = vunpack.c.l.b16 %v270
  %v839 = vunpack.c.l.b16 %v271
  %v840 = vunpack.c.l.b16 %v272
  %v841 = vunpack.c.l.b16 %v273
  %v842 = vunpack.c.l.b16 %v274
  %v843 = vpack.c.b16 %v588, %v587
  %v844 = vpack.c.b16 %v590, %v589
  %v845 = vpack.c.b16 %v592, %v591
  %v846 = vpack.c.b16 %v594, %v593
  %v847 = vpack.c.b16 %v596, %v595
  %v848 = vpack.c.b16 %v598, %v597
  %v849 = vpack.c.b16 %v600, %v599
  %v850 = vpack.c.b16 %v602, %v601
  %v851 = vpack.c.b16 %v604, %v603
  %v852 = vpack.c.b16 %v606, %v605
  %v853 = vpack.c.b16 %v608, %v607
  %v854 = vpack.c.b16 %v610, %v609
  %v855 = vpack.c.b16 %v612, %v611
  %v856 = vpack.c.b16 %v614, %v613
  %v857 = vpack.c.b16 %v616, %v615
  %v858 = vpack.c.b16 %v618, %v617
  %v859 = vpack.c.b16 %v620, %v619
  %v860 = vpack.c.b16 %v622, %v621
  %v861 = vpack.c.b16 %v624, %v623
  %v862 = vpack.c.b16 %v626, %v625
  %v863 = vpack.c.b16 %v628, %v627
  %v864 = vpack.c.b16 %v630, %v629
  %v865 = vpack.c.b16 %v632, %v631
  %v866 = vpack.c.b16 %v634, %v633
  %v867 = vpack.c.b16 %v636, %v635
  %v868 = vpack.c.b16 %v638, %v637
  %v869 = vpack.c.b16 %v640, %v639
  %v870 = vpack.c.b16 %v642, %v641
  %v871 = vpack.c.b16 %v644, %v643
  %v872 = vpack.c.b16 %v646, %v645
  %v873 = vpack.c.b16 %v648, %v647
  %v874 = vpack.c.b16 %v650, %v649
  %v875 = vpack.c.b16 %v652, %v651
  %v876 = vpack.c.b16 %v654, %v653
  %v877 = vpack.c.b16 %v656, %v655
  %v878 = vpack.c.b16 %v658, %v657
  %v879 = vpack.c.b16 %v660, %v659
  %v880 = vpack.c.b16 %v662, %v661
  %v881 = vpack.c.b16 %v664, %v663
  %v882 = vpack.c.b16 %v666, %v665
  %v883 = vpack.c.b16 %v668, %v667
  %v884 = vpack.c.b16 %v670, %v669
  %v885 = vpack.c.b16 %v672, %v671
  %v886 = vpack.c.b16 %v674, %v673
  %v887 = vpack.c.b16 %v676, %v675
  %v888 = vpack.c.b16 %v678, %v677
  %v889 = vpack.c.b16 %v680, %v679
  %v890 = vpack.c.b16 %v682, %v681
  %v891 = vpack.c.b16 %v684, %v683
  %v892 = vpack.c.b16 %v686, %v685
  %v893 = vpack.c.b16 %v688, %v687
  %v894 = vpack.c.b16 %v690, %v689
  %v895 = vpack.c.b16 %v692, %v691
  %v896 = vpack.c.b16 %v694, %v693
  %v897 = vpack.c.b16 %v696, %v695
  %v898 = vpack.c.b16 %v698, %v697
  %v899 = vpack.c.b16 %v700, %v699
  %v900 = vpack.c.b16 %v702, %v701
  %v901 = vpack.c.b16 %v704, %v703
  %v902 = vpack.c.b16 %v706, %v705
  %v903 = vpack.c.b16 %v708, %v707
  %v904 = vpack.c.b16 %v710, %v709
  %v905 = vpack.c.b16 %v712, %v711
  %v906 = vpack.c.b16 %v714, %v713
  %v907 = vpack.c.b16 %v716, %v715
  %v908 = vpack.c.b16 %v718, %v717
  %v909 = vpack.c.b16 %v720, %v719
  %v910 = vpack.c.b16 %v722, %v721
  %v911 = vpack.c.b16 %v724, %v723
  %v912 = vpack.c.b16 %v726, %v725
  %v913 = vpack.c.b16 %v728, %v727
  %v914 = vpack.c.b16 %v730, %v729
  %v915 = vpack.c.b16 %v732, %v731
  %v916 = vpack.c.b16 %v734, %v733
  %v917 = vpack.c.b16 %v736, %v735
  %v918 = vpack.c.b16 %v738, %v737
  %v919 = vpack.c.b16 %v740, %v739
  %v920 = vpack.c.b16 %v742, %v741
  %v921 = vpack.c.b16 %v744, %v743
  %v922 = vpack.c.b16 %v746, %v745
  %v923 = vpack.c.b16 %v748, %v747
  %v924 = vpack.c.b16 %v750, %v749
  %v925 = vpack.c.b16 %v752, %v751
  %v926 = vpack.c.b16 %v754, %v753
  %v927 = vpack.c.b16 %v756, %v755
  %v928 = vpack.c.b16 %v758, %v757
  %v929 = vpack.c.b16 %v760, %v759
  %v930 = vpack.c.b16 %v762, %v761
  %v931 = vpack.c.b16 %v764, %v763
  %v932 = vpack.c.b16 %v766, %v765
  %v933 = vpack.c.b16 %v768, %v767
  %v934 = vpack.c.b16 %v770, %v769
  %v935 = vpack.c.b16 %v772, %v771
  %v936 = vpack.c.b16 %v774, %v773
  %v937 = vpack.c.b16 %v776, %v775
  %v938 = vpack.c.b16 %v778, %v777
  %v939 = vpack.c.b16 %v780, %v779
  %v940 = vpack.c.b16 %v782, %v781
  %v941 = vpack.c.b16 %v784, %v783
  %v942 = vpack.c.b16 %v786, %v785
  %v943 = vpack.c.b16 %v788, %v787
  %v944 = vpack.c.b16 %v790, %v789
  %v945 = vpack.c.b16 %v792, %v791
  %v946 = vpack.c.b16 %v794, %v793
  %v947 = vpack.c.b16 %v796, %v795
  %v948 = vpack.c.b16 %v798, %v797
  %v949 = vpack.c.b16 %v800, %v799
  %v950 = vpack.c.b16 %v802, %v801
  %v951 = vpack.c.b16 %v804, %v803
  %v952 = vpack.c.b16 %v806, %v805
  %v953 = vpack.c.b16 %v808, %v807
  %v954 = vpack.c.b16 %v810, %v809
  %v955 = vpack.c.b16 %v812, %v811
  %v956 = vpack.c.b16 %v814, %v813
  %v957 = vpack.c.b16 %v816, %v815
  %v958 = vpack.c.b16 %v818, %v817
  %v959 = vpack.c.b16 %v820, %v819
  %v960 = vpack.c.b16 %v822, %v821
  %v961 = vpack.c.b16 %v824, %v823
  %v962 = vpack.c.b16 %v826, %v825
  %v963 = vpack.c.b16 %v828, %v827
  %v964 = vpack.c.b16 %v830, %v829
  %v965 = vpack.c.b16 %v832, %v831
  %v966 = vpack.c.b16 %v834, %v833
  %v967 = vpack.c.b16 %v836, %v835
  %v968 = vpack.c.b16 %v838, %v837
  %v969 = vpack.c.b16 %v840, %v839
  %v970 = vpack.c.b16 %v842, %v841
  %1099 = vmatpush.bf16.msra.mxu0 %v850
  %1100 = vmatpush.bf16.msra.mxu0 %v849
  %1101 = vmatpush.bf16.msra.mxu0 %v848
  %1102 = vmatpush.bf16.msra.mxu0 %v847
  %1103 = vmatpush.bf16.msra.mxu0 %v846
  %1104 = vmatpush.bf16.msra.mxu0 %v845
  %1105 = vmatpush.bf16.msra.mxu0 %v844
  %1106 = vmatpush.bf16.msra.mxu0 %v843
  %1107 = vmatmul.bf16.gmra.mxu0 %v299
  %v1108 = vpop.f32.mrf.mxu0
  %v1109 = vadd.f32 0.0, %v1108
  %v1110 = vpop.f32.mrf.mxu0
  %1111 = vdwg.mxu0
  %1112 = vmatpush.bf16.msra.mxu0 %v858
  %1113 = vmatpush.bf16.msra.mxu0 %v857
  %1114 = vmatpush.bf16.msra.mxu0 %v856
  %1115 = vmatpush.bf16.msra.mxu0 %v855
  %1116 = vmatpush.bf16.msra.mxu0 %v854
  %1117 = vmatpush.bf16.msra.mxu0 %v853
  %1118 = vmatpush.bf16.msra.mxu0 %v852
  %1119 = vmatpush.bf16.msra.mxu0 %v851
  %1120 = vmatmul.bf16.gmra.mxu0 %v300
  %v1121 = vpop.f32.mrf.mxu0
  %v1122 = vadd.f32 %v1109, %v1121
  %v1123 = vpop.f32.mrf.mxu0
  %1124 = vdwg.mxu0
  %1125 = vmatpush.bf16.msra.mxu0 %v866
  %1126 = vmatpush.bf16.msra.mxu0 %v865
  %1127 = vmatpush.bf16.msra.mxu0 %v864
  %1128 = vmatpush.bf16.msra.mxu0 %v863
  %1129 = vmatpush.bf16.msra.mxu0 %v862
  %1130 = vmatpush.bf16.msra.mxu0 %v861
  %1131 = vmatpush.bf16.msra.mxu0 %v860
  %1132 = vmatpush.bf16.msra.mxu0 %v859
  %1133 = vmatmul.bf16.gmra.mxu0 %v301
  %v1134 = vpop.f32.mrf.mxu0
  %v1135 = vadd.f32 %v1122, %v1134
  %v1136 = vpop.f32.mrf.mxu0
  %1137 = vdwg.mxu0
  %1138 = vmatpush.bf16.msra.mxu0 %v874
  %1139 = vmatpush.bf16.msra.mxu0 %v873
  %1140 = vmatpush.bf16.msra.mxu0 %v872
  %1141 = vmatpush.bf16.msra.mxu0 %v871
  %1142 = vmatpush.bf16.msra.mxu0 %v870
  %1143 = vmatpush.bf16.msra.mxu0 %v869
  %1144 = vmatpush.bf16.msra.mxu0 %v868
  %1145 = vmatpush.bf16.msra.mxu0 %v867
  %1146 = vmatmul.bf16.gmra.mxu0 %v302
  %v1147 = vpop.f32.mrf.mxu0
  %v1148 = vadd.f32 %v1135, %v1147
  %v1149 = vpop.f32.mrf.mxu0
  %1150 = vdwg.mxu0
  %1151 = vmatpush.bf16.msra.mxu0 %v882
  %1152 = vmatpush.bf16.msra.mxu0 %v881
  %1153 = vmatpush.bf16.msra.mxu0 %v880
  %1154 = vmatpush.bf16.msra.mxu0 %v879
  %1155 = vmatpush.bf16.msra.mxu0 %v878
  %1156 = vmatpush.bf16.msra.mxu0 %v877
  %1157 = vmatpush.bf16.msra.mxu0 %v876
  %1158 = vmatpush.bf16.msra.mxu0 %v875
  %1159 = vmatmul.bf16.gmra.mxu0 %v303
  %v1160 = vpop.f32.mrf.mxu0
  %v1161 = vadd.f32 %v1148, %v1160
  %v1162 = vpop.f32.mrf.mxu0
  %1163 = vdwg.mxu0
  %1164 = vmatpush.bf16.msra.mxu0 %v890
  %1165 = vmatpush.bf16.msra.mxu0 %v889
  %1166 = vmatpush.bf16.msra.mxu0 %v888
  %1167 = vmatpush.bf16.msra.mxu0 %v887
  %1168 = vmatpush.bf16.msra.mxu0 %v886
  %1169 = vmatpush.bf16.msra.mxu0 %v885
  %1170 = vmatpush.bf16.msra.mxu0 %v884
  %1171 = vmatpush.bf16.msra.mxu0 %v883
  %1172 = vmatmul.bf16.gmra.mxu0 %v304
  %v1173 = vpop.f32.mrf.mxu0
  %v1174 = vadd.f32 %v1161, %v1173
  %v1175 = vpop.f32.mrf.mxu0
  %1176 = vdwg.mxu0
  %1177 = vmatpush.bf16.msra.mxu0 %v898
  %1178 = vmatpush.bf16.msra.mxu0 %v897
  %1179 = vmatpush.bf16.msra.mxu0 %v896
  %1180 = vmatpush.bf16.msra.mxu0 %v895
  %1181 = vmatpush.bf16.msra.mxu0 %v894
  %1182 = vmatpush.bf16.msra.mxu0 %v893
  %1183 = vmatpush.bf16.msra.mxu0 %v892
  %1184 = vmatpush.bf16.msra.mxu0 %v891
  %1185 = vmatmul.bf16.gmra.mxu0 %v305
  %v1186 = vpop.f32.mrf.mxu0
  %v1187 = vadd.f32 %v1174, %v1186
  %v1188 = vpop.f32.mrf.mxu0
  %1189 = vdwg.mxu0
  %1190 = vmatpush.bf16.msra.mxu0 %v906
  %1191 = vmatpush.bf16.msra.mxu0 %v905
  %1192 = vmatpush.bf16.msra.mxu0 %v904
  %1193 = vmatpush.bf16.msra.mxu0 %v903
  %1194 = vmatpush.bf16.msra.mxu0 %v902
  %1195 = vmatpush.bf16.msra.mxu0 %v901
  %1196 = vmatpush.bf16.msra.mxu0 %v900
  %1197 = vmatpush.bf16.msra.mxu0 %v899
  %1198 = vmatmul.bf16.gmra.mxu0 %v306
  %v1199 = vpop.f32.mrf.mxu0
  %v1200 = vadd.f32 %v1187, %v1199
  %v1201 = vpop.f32.mrf.mxu0
  %1202 = vdwg.mxu0
  %1203 = vmatpush.bf16.msra.mxu0 %v914
  %1204 = vmatpush.bf16.msra.mxu0 %v913
  %1205 = vmatpush.bf16.msra.mxu0 %v912
  %1206 = vmatpush.bf16.msra.mxu0 %v911
  %1207 = vmatpush.bf16.msra.mxu0 %v910
  %1208 = vmatpush.bf16.msra.mxu0 %v909
  %1209 = vmatpush.bf16.msra.mxu0 %v908
  %1210 = vmatpush.bf16.msra.mxu0 %v907
  %1211 = vmatmul.bf16.gmra.mxu0 %v307
  %v1212 = vpop.f32.mrf.mxu0
  %v1213 = vadd.f32 %v1200, %v1212
  %v1214 = vpop.f32.mrf.mxu0
  %1215 = vdwg.mxu0
  %1216 = vmatpush.bf16.msra.mxu0 %v922
  %1217 = vmatpush.bf16.msra.mxu0 %v921
  %1218 = vmatpush.bf16.msra.mxu0 %v920
  %1219 = vmatpush.bf16.msra.mxu0 %v919
  %1220 = vmatpush.bf16.msra.mxu0 %v918
  %1221 = vmatpush.bf16.msra.mxu0 %v917
  %1222 = vmatpush.bf16.msra.mxu0 %v916
  %1223 = vmatpush.bf16.msra.mxu0 %v915
  %1224 = vmatmul.bf16.gmra.mxu0 %v308
  %v1225 = vpop.f32.mrf.mxu0
  %v1226 = vadd.f32 %v1213, %v1225
  %v1227 = vpop.f32.mrf.mxu0
  %1228 = vdwg.mxu0
  %1229 = vmatpush.bf16.msra.mxu0 %v930
  %1230 = vmatpush.bf16.msra.mxu0 %v929
  %1231 = vmatpush.bf16.msra.mxu0 %v928
  %1232 = vmatpush.bf16.msra.mxu0 %v927
  %1233 = vmatpush.bf16.msra.mxu0 %v926
  %1234 = vmatpush.bf16.msra.mxu0 %v925
  %1235 = vmatpush.bf16.msra.mxu0 %v924
  %1236 = vmatpush.bf16.msra.mxu0 %v923
  %1237 = vmatmul.bf16.gmra.mxu0 %v309
  %v1238 = vpop.f32.mrf.mxu0
  %v1239 = vadd.f32 %v1226, %v1238
  %v1240 = vpop.f32.mrf.mxu0
  %1241 = vdwg.mxu0
  %1242 = vmatpush.bf16.msra.mxu0 %v938
  %1243 = vmatpush.bf16.msra.mxu0 %v937
  %1244 = vmatpush.bf16.msra.mxu0 %v936
  %1245 = vmatpush.bf16.msra.mxu0 %v935
  %1246 = vmatpush.bf16.msra.mxu0 %v934
  %1247 = vmatpush.bf16.msra.mxu0 %v933
  %1248 = vmatpush.bf16.msra.mxu0 %v932
  %1249 = vmatpush.bf16.msra.mxu0 %v931
  %1250 = vmatmul.bf16.gmra.mxu0 %v310
  %v1251 = vpop.f32.mrf.mxu0
  %v1252 = vadd.f32 %v1239, %v1251
  %v1253 = vpop.f32.mrf.mxu0
  %1254 = vdwg.mxu0
  %1255 = vmatpush.bf16.msra.mxu0 %v946
  %1256 = vmatpush.bf16.msra.mxu0 %v945
  %1257 = vmatpush.bf16.msra.mxu0 %v944
  %1258 = vmatpush.bf16.msra.mxu0 %v943
  %1259 = vmatpush.bf16.msra.mxu0 %v942
  %1260 = vmatpush.bf16.msra.mxu0 %v941
  %1261 = vmatpush.bf16.msra.mxu0 %v940
  %1262 = vmatpush.bf16.msra.mxu0 %v939
  %1263 = vmatmul.bf16.gmra.mxu0 %v311
  %v1264 = vpop.f32.mrf.mxu0
  %v1265 = vadd.f32 %v1252, %v1264
  %v1266 = vpop.f32.mrf.mxu0
  %1267 = vdwg.mxu0
  %1268 = vmatpush.bf16.msra.mxu0 %v954
  %1269 = vmatpush.bf16.msra.mxu0 %v953
  %1270 = vmatpush.bf16.msra.mxu0 %v952
  %1271 = vmatpush.bf16.msra.mxu0 %v951
  %1272 = vmatpush.bf16.msra.mxu0 %v950
  %1273 = vmatpush.bf16.msra.mxu0 %v949
  %1274 = vmatpush.bf16.msra.mxu0 %v948
  %1275 = vmatpush.bf16.msra.mxu0 %v947
  %1276 = vmatmul.bf16.gmra.mxu0 %v312
  %v1277 = vpop.f32.mrf.mxu0
  %v1278 = vadd.f32 %v1265, %v1277
  %v1279 = vpop.f32.mrf.mxu0
  %1280 = vdwg.mxu0
  %1281 = vmatpush.bf16.msra.mxu0 %v962
  %1282 = vmatpush.bf16.msra.mxu0 %v961
  %1283 = vmatpush.bf16.msra.mxu0 %v960
  %1284 = vmatpush.bf16.msra.mxu0 %v959
  %1285 = vmatpush.bf16.msra.mxu0 %v958
  %1286 = vmatpush.bf16.msra.mxu0 %v957
  %1287 = vmatpush.bf16.msra.mxu0 %v956
  %1288 = vmatpush.bf16.msra.mxu0 %v955
  %1289 = vmatmul.bf16.gmra.mxu0 %v313
  %v1290 = vpop.f32.mrf.mxu0
  %v1291 = vadd.f32 %v1278, %v1290
  %v1292 = vpop.f32.mrf.mxu0
  %1293 = vdwg.mxu0
  %1294 = vmatpush.bf16.msra.mxu0 %v970
  %1295 = vmatpush.bf16.msra.mxu0 %v969
  %1296 = vmatpush.bf16.msra.mxu0 %v968
  %1297 = vmatpush.bf16.msra.mxu0 %v967
  %1298 = vmatpush.bf16.msra.mxu0 %v966
  %1299 = vmatpush.bf16.msra.mxu0 %v965
  %1300 = vmatpush.bf16.msra.mxu0 %v964
  %1301 = vmatpush.bf16.msra.mxu0 %v963
  %1302 = vmatmul.bf16.gmra.mxu0 %v314
  %v1303 = vpop.f32.mrf.mxu0
  %v1304 = vadd.f32 %v1291, %v1303
  %v1305 = vpop.f32.mrf.mxu0
  %1306 = vdwg.mxu0
  %vm1307 = vcmp.gt.f32.partialorder %v1304, 20.0
  %v1308 = vmin.f32 %v1304, 20.0
  %v1309 = vmul.f32 %v1308, 1.442695
  %v1310 = vpow.pop %v1309
  %v1311 = vadd.f32 %v1310, 1.0
  %v1312 = vlog2.pop %v1311
  %v1313 = vmul.f32 %v1312, 0.6931472
  %v1314 = vmul.f32 -0.5, %v1310
  %v1315 = vadd.f32 %v1314, 1.0
  %v1316 = vmul.f32 %v1315, %v1310
  %v1317 = vand.u32 2147483647, %v1310
  %vm1318 = vcmp.lt.f32.partialorder %v1317, 0.0004427343
  %v1319 = vsel %vm1318, %v1316, %v1313
  %v1320 = vsel %vm1307, %v1304, %v1319
  %v1321 = vadd.f32 %v1320, 1e-06
  %v1322 = vlaneseq
  %v1323 = vand.u32 %v1322, 127
  %vm1324 = vcmp.ge.s32.totalorder %v1323, 64
  %v1325 = vsel %vm1324, %v1321, %v1304
  %1326 = vst [vmem:[%s2] sm:$0xff] %v1325
  // Predicated region
  $region10: #{sentence_encoder_forward.11} parent=0 // pred_check
    _
  $region11: #{sentence_encoder_forward.11} parent=0 // pred_check_branch
    %1328 = sbr.rel (0) target = $region13
  $region12: #{sentence_encoder_forward.11} parent=0 // pred_region
    _
  $region13: #{sentence_encoder_forward.11} parent=0 // pred_fallthru
    _
  // Predicated region
  $region14: #{sentence_encoder_forward.11} parent=0 // pred_check
    _
  $region15: #{sentence_encoder_forward.11} parent=0 // pred_check_branch
    %1330 = sbr.rel (0) target = $region17
  $region16: #{sentence_encoder_forward.11} parent=0 // pred_region
    _
  $region17: #{sentence_encoder_forward.11} parent=0 // pred_fallthru
    _

</llo_original>
